<compile_context>
chip_gen: v5e
topology: v5e:2x2
jax: 0.10.0
libtpu: 0.0.40
codegen_flags: <defaults>
</compile_context>

<pallas_src>
import functools

import jax
import jax.numpy as jnp
from jax import lax
from jax.experimental import pallas as pl
from jax.experimental.pallas import tpu as pltpu


# ----------------------------------------------------------------------------
# Fused RefineBlock kernel (one grid step == Bt batch elements)
# ----------------------------------------------------------------------------

def _refine_block_kernel(x_ref, w1_ref, b1_ref, w2_ref, b2_ref, w3_ref, b3_ref,
                         o_ref, y1_ref, *, H, W, pad, dil):
    Bt = x_ref.shape[0]
    C = x_ref.shape[-1]
    M = Bt * H * W

    # Zero the padded scratch.  Only the halo really needs to be zero, but the
    # scratch persists across grid steps (and lives per-core on megacore
    # parts), so re-zero it every step; at 16x16 this is ~200 KiB of stores.
    y1_ref[...] = jnp.zeros_like(y1_ref)

    # Residual input, kept in f32 (read from HBM exactly once).
    xin = x_ref[...].reshape(M, C)

    # ---- conv1 (1x1) + bias + ReLU : interior rows only ------------------
    y1 = jnp.dot(xin.astype(jnp.bfloat16), w1_ref[...],
                 preferred_element_type=jnp.float32)
    y1 = jnp.maximum(y1 + b1_ref[...], 0.0)
    y1_ref[:, pl.ds(pad, H), pl.ds(pad, W), :] = (
        y1.reshape(Bt, H, W, C).astype(y1_ref.dtype))

    # ---- conv2 (3x3, dilation=2, padding=2) + bias + ReLU -----------------
    # Taps fed from ref slices of the padded VMEM scratch.  The 3 taps of each
    # kernel row are merged along K: lhs = [win(r,0)|win(r,1)|win(r,2)]
    # -> (M, 3C) bf16, dotted with w2[r] (3C, C).  Single f32 accumulator.
    acc = jnp.zeros((M, C), jnp.float32)
    for r in range(3):
        di = r * dil
        lhs = jnp.concatenate(
            [y1_ref[:, pl.ds(di, H), pl.ds(c * dil, W), :].reshape(M, C)
             for c in range(3)],
            axis=-1)                                          # (M, 3C) bf16
        acc = acc + jnp.dot(lhs, w2_ref[r],
                            preferred_element_type=jnp.float32)
    y2 = jnp.maximum(acc + b2_ref[...], 0.0)

    # ---- conv3 (1x1) + bias + ReLU ----------------------------------------
    y3 = jnp.dot(y2.astype(jnp.bfloat16), w3_ref[...],
                 preferred_element_type=jnp.float32)
    y3 = jnp.maximum(y3 + b3_ref[...], 0.0)

    # ---- residual add + final ReLU -----------------------------------------
    out = jnp.maximum(xin + y3, 0.0)
    o_ref[...] = out.reshape(Bt, H, W, C).astype(o_ref.dtype)


def _pick_bt(B, max_bt=8):
    """Largest divisor of B that is <= max_bt (batch elements per grid step)."""
    bt = 1
    for cand in range(1, min(B, max_bt) + 1):
        if B % cand == 0:
            bt = cand
    return bt


def refine_block_forward(x_nchw, params):
    """RefineBlock forward.  x_nchw: (B, C, H, W) float32 -> (B, C, H, W)."""
    x = jnp.transpose(x_nchw, (0, 2, 3, 1)).astype(jnp.float32)   # NHWC
    B, H, W, C = x.shape
    pad, dil = 2, 2
    Hp, Wp = H + 2 * pad, W + 2 * pad
    Bt = _pick_bt(B)

    # Weights as bf16 MXU operands; biases stay f32 for the VPU path.
    w1 = params['w1'].reshape(C, C).astype(jnp.bfloat16)
    # (kh, kw, Cin, Cout) -> (kh, kw*Cin, Cout): row-major matches the
    # [win(r,0)|win(r,1)|win(r,2)] channel concatenation in the kernel.
    w2 = params['w2'].reshape(3, 3 * C, C).astype(jnp.bfloat16)
    w3 = params['w3'].reshape(C, C).astype(jnp.bfloat16)
    b1 = params['b1'].reshape(1, C).astype(jnp.float32)
    b2 = params['b2'].reshape(1, C).astype(jnp.float32)
    b3 = params['b3'].reshape(1, C).astype(jnp.float32)

    out = pl.pallas_call(
        functools.partial(_refine_block_kernel, H=H, W=W, pad=pad, dil=dil),
        out_shape=jax.ShapeDtypeStruct((B, H, W, C), jnp.float32),
        grid=(B // Bt,),
        in_specs=[
            pl.BlockSpec((Bt, H, W, C), lambda g: (g, 0, 0, 0)),   # x (unpadded)
            pl.BlockSpec((C, C), lambda g: (0, 0)),                # w1
            pl.BlockSpec((1, C), lambda g: (0, 0)),                # b1
            pl.BlockSpec((3, 3 * C, C), lambda g: (0, 0, 0)),      # w2 (K-merged)
            pl.BlockSpec((1, C), lambda g: (0, 0)),                # b2
            pl.BlockSpec((C, C), lambda g: (0, 0)),                # w3
            pl.BlockSpec((1, C), lambda g: (0, 0)),                # b3
        ],
        out_specs=pl.BlockSpec((Bt, H, W, C), lambda g: (g, 0, 0, 0)),
        scratch_shapes=[pltpu.VMEM((Bt, Hp, Wp, C), jnp.bfloat16)],
        compiler_params=pltpu.CompilerParams(
            dimension_semantics=("parallel",),   # megacore-friendly batch axis
        ),
    )(x, w1, b1, w2, b2, w3, b3)

    return jnp.transpose(out, (0, 3, 1, 2))      # back to NCHW


# ----------------------------------------------------------------------------
# Pure-JAX reference (for in-script validation) and parameter init
# ----------------------------------------------------------------------------

def _conv_ref(x, w, b, dilation=1):
    kh = w.shape[0]
    p = dilation * (kh // 2)
    dn = lax.conv_dimension_numbers(x.shape, w.shape, ('NHWC', 'HWIO', 'NHWC'))
    y = lax.conv_general_dilated(
        x, w, window_strides=(1, 1), padding=((p, p), (p, p)),
        rhs_dilation=(dilation, dilation), dimension_numbers=dn,
        precision=lax.Precision.HIGHEST)
    return y + b


def refine_block_ref(x_nchw, params):
    x = jnp.transpose(x_nchw, (0, 2, 3, 1)).astype(jnp.float32)
    y = jax.nn.relu(_conv_ref(x, params['w1'], params['b1']))
    y = jax.nn.relu(_conv_ref(y, params['w2'], params['b2'], dilation=2))
    y = jax.nn.relu(_conv_ref(y, params['w3'], params['b3']))
    out = jax.nn.relu(x + y)
    return jnp.transpose(out, (0, 3, 1, 2))


def init_params(key, dim):
    ks = jax.random.split(key, 6)

    def w(k, kh, kw):
        return 0.05 * jax.random.normal(k, (kh, kw, dim, dim), jnp.float32)

    def b(k):
        return 0.05 * jax.random.normal(k, (dim,), jnp.float32)

    return {
        'w1': w(ks[0], 1, 1), 'b1': b(ks[1]),
        'w2': w(ks[2], 3, 3), 'b2': b(ks[3]),
        'w3': w(ks[4], 1, 1), 'b3': b(ks[5]),
    }


if __name__ == "__main__":
    key = jax.random.PRNGKey(0)
    pkey, xkey = jax.random.split(key)

    dim, B, H, W = 128, 2, 16, 16          # lane-dense channel count
    params = init_params(pkey, dim)
    x = jax.random.normal(xkey, (B, dim, H, W), jnp.float32)

    fwd = jax.jit(refine_block_forward)
    out = fwd(x, params)
    jax.block_until_ready(out)

    assert out.shape == (B, dim, H, W), out.shape
    assert out.dtype == jnp.float32

    ref = jax.jit(refine_block_ref)(x, params)
    jax.block_until_ready(ref)
    max_err = float(jnp.max(jnp.abs(out - ref)))
    # Tolerance sized for bf16 MXU operands with f32 accumulation vs. an
    # all-f32 reference (an all-f32 kernel would be ~1e-4).
    assert max_err < 3e-2, f"max abs error vs reference: {max_err}"

    print("KERNEL_OK")
</pallas_src>

<mosaic_0001>
module attributes {stable_mosaic.version = 11 : i64} {
  func.func @_refine_block_kernel(%arg0: i32, %arg1: memref<2x16x16x128xf32, #tpu.memory_space<vmem>>, %arg2: memref<128x128xbf16, #tpu.memory_space<vmem>>, %arg3: memref<1x128xf32, #tpu.memory_space<vmem>>, %arg4: memref<3x384x128xbf16, #tpu.memory_space<vmem>>, %arg5: memref<1x128xf32, #tpu.memory_space<vmem>>, %arg6: memref<128x128xbf16, #tpu.memory_space<vmem>>, %arg7: memref<1x128xf32, #tpu.memory_space<vmem>>, %arg8: memref<2x16x16x128xf32, #tpu.memory_space<vmem>>, %arg9: memref<2x20x20x128xbf16, #tpu.memory_space<vmem>>) attributes {dimension_semantics = [#tpu.dimension_semantics<parallel>], iteration_bounds = array<i64: 1>, scalar_prefetch = 0 : i64, scratch_operands = 1 : i64, tpu.core_type = #tpu.core_type<tc>, window_params = [{transform_indices = @transform_0, window_bounds = array<i64: 2, 16, 16, 128>}, {pipeline_mode = #tpu.pipeline_mode<synchronous>, transform_indices = @transform_1, window_bounds = array<i64: 128, 128>}, {pipeline_mode = #tpu.pipeline_mode<synchronous>, transform_indices = @transform_2, window_bounds = array<i64: 1, 128>}, {pipeline_mode = #tpu.pipeline_mode<synchronous>, transform_indices = @transform_3, window_bounds = array<i64: 3, 384, 128>}, {pipeline_mode = #tpu.pipeline_mode<synchronous>, transform_indices = @transform_4, window_bounds = array<i64: 1, 128>}, {pipeline_mode = #tpu.pipeline_mode<synchronous>, transform_indices = @transform_5, window_bounds = array<i64: 128, 128>}, {pipeline_mode = #tpu.pipeline_mode<synchronous>, transform_indices = @transform_6, window_bounds = array<i64: 1, 128>}, {transform_indices = @transform_7, window_bounds = array<i64: 2, 16, 16, 128>}]} {
    %cst = arith.constant 0.000000e+00 : bf16
    %0 = vector.broadcast %cst : bf16 to vector<2x20x20x128xbf16>
    %c0 = arith.constant 0 : index
    %c0_0 = arith.constant 0 : index
    %c0_1 = arith.constant 0 : index
    %c0_2 = arith.constant 0 : index
    %1 = vector.load %arg9[%c0, %c0_0, %c0_1, %c0_2] : memref<2x20x20x128xbf16, #tpu.memory_space<vmem>>, vector<2x20x20x128xbf16>
    tpu.vector_store %arg9[%c0, %c0_0, %c0_1, %c0_2], %0 {strides = array<i32>} : memref<2x20x20x128xbf16, #tpu.memory_space<vmem>>, vector<2x20x20x128xbf16>,
    %c0_3 = arith.constant 0 : index
    %c0_4 = arith.constant 0 : index
    %c0_5 = arith.constant 0 : index
    %c0_6 = arith.constant 0 : index
    %2 = vector.load %arg1[%c0_3, %c0_4, %c0_5, %c0_6] : memref<2x16x16x128xf32, #tpu.memory_space<vmem>>, vector<2x16x16x128xf32>
    %3 = vector.shape_cast %2 : vector<2x16x16x128xf32> to vector<512x128xf32>
    %4 = arith.truncf %3 : vector<512x128xf32> to vector<512x128xbf16>
    %c0_7 = arith.constant 0 : index
    %c0_8 = arith.constant 0 : index
    %5 = vector.load %arg2[%c0_7, %c0_8] : memref<128x128xbf16, #tpu.memory_space<vmem>>, vector<128x128xbf16>
    %cst_9 = arith.constant dense<0.000000e+00> : vector<512x128xf32>
    %6 = tpu.matmul %4, %5, %cst_9 {dimension_numbers = #tpu.dot_dimension_numbers<[1], [0], [0], [1], [0, 0, 1, 1], [], []>} : vector<512x128xbf16>, vector<128x128xbf16>, vector<512x128xf32> -> vector<512x128xf32>
    %c0_10 = arith.constant 0 : index
    %c0_11 = arith.constant 0 : index
    %7 = vector.load %arg3[%c0_10, %c0_11] : memref<1x128xf32, #tpu.memory_space<vmem>>, vector<1x128xf32>
    %8 = vector.broadcast %7 : vector<1x128xf32> to vector<512x128xf32>
    %9 = arith.addf %6, %8 : vector<512x128xf32>
    %cst_12 = arith.constant 0.000000e+00 : f32
    %10 = vector.broadcast %cst_12 : f32 to vector<512x128xf32>
    %11 = arith.maximumf %9, %10 : vector<512x128xf32>
    %12 = vector.shape_cast %11 : vector<512x128xf32> to vector<2x16x16x128xf32>
    %13 = arith.truncf %12 : vector<2x16x16x128xf32> to vector<2x16x16x128xbf16>
    %c0_13 = arith.constant 0 : index
    %c2 = arith.constant 2 : index
    %c2_14 = arith.constant 2 : index
    %c0_15 = arith.constant 0 : index
    %14 = vector.load %arg9[%c0_13, %c2, %c2_14, %c0_15] : memref<2x20x20x128xbf16, #tpu.memory_space<vmem>>, vector<2x16x16x128xbf16>
    tpu.vector_store %arg9[%c0_13, %c2, %c2_14, %c0_15], %13 {strides = array<i32>} : memref<2x20x20x128xbf16, #tpu.memory_space<vmem>>, vector<2x16x16x128xbf16>,
    %cst_16 = arith.constant 0.000000e+00 : f32
    %15 = vector.broadcast %cst_16 : f32 to vector<512x128xf32>
    %c0_17 = arith.constant 0 : index
    %c0_18 = arith.constant 0 : index
    %c0_19 = arith.constant 0 : index
    %c0_20 = arith.constant 0 : index
    %16 = vector.load %arg9[%c0_17, %c0_18, %c0_19, %c0_20] : memref<2x20x20x128xbf16, #tpu.memory_space<vmem>>, vector<2x16x16x128xbf16>
    %17 = vector.shape_cast %16 : vector<2x16x16x128xbf16> to vector<512x128xbf16>
    %c0_21 = arith.constant 0 : index
    %c0_22 = arith.constant 0 : index
    %c2_23 = arith.constant 2 : index
    %c0_24 = arith.constant 0 : index
    %18 = vector.load %arg9[%c0_21, %c0_22, %c2_23, %c0_24] : memref<2x20x20x128xbf16, #tpu.memory_space<vmem>>, vector<2x16x16x128xbf16>
    %19 = vector.shape_cast %18 : vector<2x16x16x128xbf16> to vector<512x128xbf16>
    %c0_25 = arith.constant 0 : index
    %c0_26 = arith.constant 0 : index
    %c4 = arith.constant 4 : index
    %c0_27 = arith.constant 0 : index
    %20 = vector.load %arg9[%c0_25, %c0_26, %c4, %c0_27] : memref<2x20x20x128xbf16, #tpu.memory_space<vmem>>, vector<2x16x16x128xbf16>
    %21 = vector.shape_cast %20 : vector<2x16x16x128xbf16> to vector<512x128xbf16>
    %22 = tpu.concatenate %17, %19, %21 in 1 : vector<512x128xbf16>, vector<512x128xbf16>, vector<512x128xbf16> -> vector<512x384xbf16>
    %c0_28 = arith.constant 0 : index
    %c0_29 = arith.constant 0 : index
    %c0_30 = arith.constant 0 : index
    %23 = vector.load %arg4[%c0_28, %c0_29, %c0_30] : memref<3x384x128xbf16, #tpu.memory_space<vmem>>, vector<1x384x128xbf16>
    %24 = vector.shape_cast %23 : vector<1x384x128xbf16> to vector<384x128xbf16>
    %cst_31 = arith.constant dense<0.000000e+00> : vector<512x128xf32>
    %25 = tpu.matmul %22, %24, %cst_31 {dimension_numbers = #tpu.dot_dimension_numbers<[1], [0], [0], [1], [0, 0, 1, 1], [], []>} : vector<512x384xbf16>, vector<384x128xbf16>, vector<512x128xf32> -> vector<512x128xf32>
    %26 = arith.addf %15, %25 : vector<512x128xf32>
    %c0_32 = arith.constant 0 : index
    %c2_33 = arith.constant 2 : index
    %c0_34 = arith.constant 0 : index
    %c0_35 = arith.constant 0 : index
    %27 = vector.load %arg9[%c0_32, %c2_33, %c0_34, %c0_35] : memref<2x20x20x128xbf16, #tpu.memory_space<vmem>>, vector<2x16x16x128xbf16>
    %28 = vector.shape_cast %27 : vector<2x16x16x128xbf16> to vector<512x128xbf16>
    %c0_36 = arith.constant 0 : index
    %c2_37 = arith.constant 2 : index
    %c2_38 = arith.constant 2 : index
    %c0_39 = arith.constant 0 : index
    %29 = vector.load %arg9[%c0_36, %c2_37, %c2_38, %c0_39] : memref<2x20x20x128xbf16, #tpu.memory_space<vmem>>, vector<2x16x16x128xbf16>
    %30 = vector.shape_cast %29 : vector<2x16x16x128xbf16> to vector<512x128xbf16>
    %c0_40 = arith.constant 0 : index
    %c2_41 = arith.constant 2 : index
    %c4_42 = arith.constant 4 : index
    %c0_43 = arith.constant 0 : index
    %31 = vector.load %arg9[%c0_40, %c2_41, %c4_42, %c0_43] : memref<2x20x20x128xbf16, #tpu.memory_space<vmem>>, vector<2x16x16x128xbf16>
    %32 = vector.shape_cast %31 : vector<2x16x16x128xbf16> to vector<512x128xbf16>
    %33 = tpu.concatenate %28, %30, %32 in 1 : vector<512x128xbf16>, vector<512x128xbf16>, vector<512x128xbf16> -> vector<512x384xbf16>
    %c1 = arith.constant 1 : index
    %c0_44 = arith.constant 0 : index
    %c0_45 = arith.constant 0 : index
    %34 = vector.load %arg4[%c1, %c0_44, %c0_45] : memref<3x384x128xbf16, #tpu.memory_space<vmem>>, vector<1x384x128xbf16>
    %35 = vector.shape_cast %34 : vector<1x384x128xbf16> to vector<384x128xbf16>
    %cst_46 = arith.constant dense<0.000000e+00> : vector<512x128xf32>
    %36 = tpu.matmul %33, %35, %cst_46 {dimension_numbers = #tpu.dot_dimension_numbers<[1], [0], [0], [1], [0, 0, 1, 1], [], []>} : vector<512x384xbf16>, vector<384x128xbf16>, vector<512x128xf32> -> vector<512x128xf32>
    %37 = arith.addf %26, %36 : vector<512x128xf32>
    %c0_47 = arith.constant 0 : index
    %c4_48 = arith.constant 4 : index
    %c0_49 = arith.constant 0 : index
    %c0_50 = arith.constant 0 : index
    %38 = vector.load %arg9[%c0_47, %c4_48, %c0_49, %c0_50] : memref<2x20x20x128xbf16, #tpu.memory_space<vmem>>, vector<2x16x16x128xbf16>
    %39 = vector.shape_cast %38 : vector<2x16x16x128xbf16> to vector<512x128xbf16>
    %c0_51 = arith.constant 0 : index
    %c4_52 = arith.constant 4 : index
    %c2_53 = arith.constant 2 : index
    %c0_54 = arith.constant 0 : index
    %40 = vector.load %arg9[%c0_51, %c4_52, %c2_53, %c0_54] : memref<2x20x20x128xbf16, #tpu.memory_space<vmem>>, vector<2x16x16x128xbf16>
    %41 = vector.shape_cast %40 : vector<2x16x16x128xbf16> to vector<512x128xbf16>
    %c0_55 = arith.constant 0 : index
    %c4_56 = arith.constant 4 : index
    %c4_57 = arith.constant 4 : index
    %c0_58 = arith.constant 0 : index
    %42 = vector.load %arg9[%c0_55, %c4_56, %c4_57, %c0_58] : memref<2x20x20x128xbf16, #tpu.memory_space<vmem>>, vector<2x16x16x128xbf16>
    %43 = vector.shape_cast %42 : vector<2x16x16x128xbf16> to vector<512x128xbf16>
    %44 = tpu.concatenate %39, %41, %43 in 1 : vector<512x128xbf16>, vector<512x128xbf16>, vector<512x128xbf16> -> vector<512x384xbf16>
    %c2_59 = arith.constant 2 : index
    %c0_60 = arith.constant 0 : index
    %c0_61 = arith.constant 0 : index
    %45 = vector.load %arg4[%c2_59, %c0_60, %c0_61] : memref<3x384x128xbf16, #tpu.memory_space<vmem>>, vector<1x384x128xbf16>
    %46 = vector.shape_cast %45 : vector<1x384x128xbf16> to vector<384x128xbf16>
    %cst_62 = arith.constant dense<0.000000e+00> : vector<512x128xf32>
    %47 = tpu.matmul %44, %46, %cst_62 {dimension_numbers = #tpu.dot_dimension_numbers<[1], [0], [0], [1], [0, 0, 1, 1], [], []>} : vector<512x384xbf16>, vector<384x128xbf16>, vector<512x128xf32> -> vector<512x128xf32>
    %48 = arith.addf %37, %47 : vector<512x128xf32>
    %c0_63 = arith.constant 0 : index
    %c0_64 = arith.constant 0 : index
    %49 = vector.load %arg5[%c0_63, %c0_64] : memref<1x128xf32, #tpu.memory_space<vmem>>, vector<1x128xf32>
    %50 = vector.broadcast %49 : vector<1x128xf32> to vector<512x128xf32>
    %51 = arith.addf %48, %50 : vector<512x128xf32>
    %cst_65 = arith.constant 0.000000e+00 : f32
    %52 = vector.broadcast %cst_65 : f32 to vector<512x128xf32>
    %53 = arith.maximumf %51, %52 : vector<512x128xf32>
    %54 = arith.truncf %53 : vector<512x128xf32> to vector<512x128xbf16>
    %c0_66 = arith.constant 0 : index
    %c0_67 = arith.constant 0 : index
    %55 = vector.load %arg6[%c0_66, %c0_67] : memref<128x128xbf16, #tpu.memory_space<vmem>>, vector<128x128xbf16>
    %cst_68 = arith.constant dense<0.000000e+00> : vector<512x128xf32>
    %56 = tpu.matmul %54, %55, %cst_68 {dimension_numbers = #tpu.dot_dimension_numbers<[1], [0], [0], [1], [0, 0, 1, 1], [], []>} : vector<512x128xbf16>, vector<128x128xbf16>, vector<512x128xf32> -> vector<512x128xf32>
    %c0_69 = arith.constant 0 : index
    %c0_70 = arith.constant 0 : index
    %57 = vector.load %arg7[%c0_69, %c0_70] : memref<1x128xf32, #tpu.memory_space<vmem>>, vector<1x128xf32>
    %58 = vector.broadcast %57 : vector<1x128xf32> to vector<512x128xf32>
    %59 = arith.addf %56, %58 : vector<512x128xf32>
    %cst_71 = arith.constant 0.000000e+00 : f32
    %60 = vector.broadcast %cst_71 : f32 to vector<512x128xf32>
    %61 = arith.maximumf %59, %60 : vector<512x128xf32>
    %62 = arith.addf %3, %61 : vector<512x128xf32>
    %cst_72 = arith.constant 0.000000e+00 : f32
    %63 = vector.broadcast %cst_72 : f32 to vector<512x128xf32>
    %64 = arith.maximumf %62, %63 : vector<512x128xf32>
    %65 = vector.shape_cast %64 : vector<512x128xf32> to vector<2x16x16x128xf32>
    %c0_73 = arith.constant 0 : index
    %c0_74 = arith.constant 0 : index
    %c0_75 = arith.constant 0 : index
    %c0_76 = arith.constant 0 : index
    %66 = vector.load %arg8[%c0_73, %c0_74, %c0_75, %c0_76] : memref<2x16x16x128xf32, #tpu.memory_space<vmem>>, vector<2x16x16x128xf32>
    tpu.vector_store %arg8[%c0_73, %c0_74, %c0_75, %c0_76], %65 {strides = array<i32>} : memref<2x16x16x128xf32, #tpu.memory_space<vmem>>, vector<2x16x16x128xf32>,
    return
  }
  func.func @transform_0(%arg0: i32) -> (i32, i32, i32, i32) {
    %c0_i32 = arith.constant 0 : i32
    %c0_i32_0 = arith.constant 0 : i32
    %c0_i32_1 = arith.constant 0 : i32
    %c0_i32_2 = arith.constant 0 : i32
    return %arg0, %c0_i32, %c0_i32_0, %c0_i32_1 : i32, i32, i32, i32
  }
  func.func @transform_1(%arg0: i32) -> (i32, i32) {
    %c0_i32 = arith.constant 0 : i32
    %c0_i32_0 = arith.constant 0 : i32
    %c0_i32_1 = arith.constant 0 : i32
    return %c0_i32, %c0_i32_0 : i32, i32
  }
  func.func @transform_2(%arg0: i32) -> (i32, i32) {
    %c0_i32 = arith.constant 0 : i32
    %c0_i32_0 = arith.constant 0 : i32
    %c0_i32_1 = arith.constant 0 : i32
    return %c0_i32, %c0_i32_0 : i32, i32
  }
  func.func @transform_3(%arg0: i32) -> (i32, i32, i32) {
    %c0_i32 = arith.constant 0 : i32
    %c0_i32_0 = arith.constant 0 : i32
    %c0_i32_1 = arith.constant 0 : i32
    %c0_i32_2 = arith.constant 0 : i32
    return %c0_i32, %c0_i32_0, %c0_i32_1 : i32, i32, i32
  }
  func.func @transform_4(%arg0: i32) -> (i32, i32) {
    %c0_i32 = arith.constant 0 : i32
    %c0_i32_0 = arith.constant 0 : i32
    %c0_i32_1 = arith.constant 0 : i32
    return %c0_i32, %c0_i32_0 : i32, i32
  }
  func.func @transform_5(%arg0: i32) -> (i32, i32) {
    %c0_i32 = arith.constant 0 : i32
    %c0_i32_0 = arith.constant 0 : i32
    %c0_i32_1 = arith.constant 0 : i32
    return %c0_i32, %c0_i32_0 : i32, i32
  }
  func.func @transform_6(%arg0: i32) -> (i32, i32) {
    %c0_i32 = arith.constant 0 : i32
    %c0_i32_0 = arith.constant 0 : i32
    %c0_i32_1 = arith.constant 0 : i32
    return %c0_i32, %c0_i32_0 : i32, i32
  }
  func.func @transform_7(%arg0: i32) -> (i32, i32, i32, i32) {
    %c0_i32 = arith.constant 0 : i32
    %c0_i32_0 = arith.constant 0 : i32
    %c0_i32_1 = arith.constant 0 : i32
    %c0_i32_2 = arith.constant 0 : i32
    return %arg0, %c0_i32, %c0_i32_0, %c0_i32_1 : i32, i32, i32, i32
  }
}

</mosaic_0001>

<llo_original>
// kernel: refine_block_forward.1
$region0: #{refine_block_forward.1}
  #allocation0 [shape = 'u32[]', space=smem, size = 0x4, offset = 0x4, fixed_abs, tag = 'smem constant byte address 0x4 - core index']
  #allocation1 [shape = 'u32[72,128]{1,0:T(1,128)}', space=vmem, size = 0x9000, scoped, tag = 'internal scratch']
  #allocation2 [shape = 'bf16[2,20,20,128]{3,2,1,0:T(8,128)(2,1)}', space=vmem, size = 0x3c000, scoped, tag = 'scratch operand']
  %s0 = inlined_call_operand.vmem [shape: f32[2,16,16,128], index: 0, kind: input, shape index: {}]
  %s1 = inlined_call_operand.vmem [shape: bf16[128,128], index: 1, kind: input, shape index: {}]
  %s2 = inlined_call_operand.vmem [shape: f32[1,128], index: 2, kind: input, shape index: {}]
  %s3 = inlined_call_operand.vmem [shape: bf16[3,384,128], index: 3, kind: input, shape index: {}]
  %s4 = inlined_call_operand.vmem [shape: f32[1,128], index: 4, kind: input, shape index: {}]
  %s5 = inlined_call_operand.vmem [shape: bf16[128,128], index: 5, kind: input, shape index: {}]
  %s6 = inlined_call_operand.vmem [shape: f32[1,128], index: 6, kind: input, shape index: {}]
  %s7 = inlined_call_operand.hbm [shape: f32[2,16,16,128], index: 7, kind: output, shape index: {}]
  %s8 = sld [smem:[#allocation0]]
  $region38: #{refine_block_forward.1} parent=0
    _
  %s10 = ssub.s32 1, %s8
  %s11 = scalar_select 0, %s10, %s8
  $region1: #{refine_block_forward.1} parent=0
    #allocation3 [shape = 'u8[262144]{0}', space=vmem, size = 0x40000, scoped, tag = 'output window, operand 0, single buffered']
    #allocation4 [shape = 's32[1]{0}', space=sflag, size = 0x4, scoped, tag = 'scoped memory for refine_block_forward.1']
    %12 = vsyncpa [#allocation4], 0
    // Predicated region
    $region2: #{refine_block_forward.1} parent=1 // pred_check
      _
    $region3: #{refine_block_forward.1} parent=1 // pred_check_branch
      %14 = sbr.rel (0) target = $region5
    $region4: #{refine_block_forward.1} parent=1 // pred_region
      _
    $region5: #{refine_block_forward.1} parent=1 // pred_fallthru
      _
    // Predicated region
    $region6: #{refine_block_forward.1} parent=1 // pred_check
      _
    $region7: #{refine_block_forward.1} parent=1 // pred_check_branch
      %16 = sbr.rel (0) target = $region9
    $region8: #{refine_block_forward.1} parent=1 // pred_region
      _
    $region9: #{refine_block_forward.1} parent=1 // pred_fallthru
      _
    // Predicated region
    $region10: #{refine_block_forward.1} parent=1 // pred_check
      _
    $region11: #{refine_block_forward.1} parent=1 // pred_check_branch
      %18 = sbr.rel (0) target = $region13
    $region12: #{refine_block_forward.1} parent=1 // pred_region
      _
    $region13: #{refine_block_forward.1} parent=1 // pred_fallthru
      _
    // Predicated region
    $region14: #{refine_block_forward.1} parent=1 // pred_check
      _
    $region15: #{refine_block_forward.1} parent=1 // pred_check_branch
      %20 = sbr.rel (0) target = $region17
    $region16: #{refine_block_forward.1} parent=1 // pred_region
      _
    $region17: #{refine_block_forward.1} parent=1 // pred_fallthru
      _
    // Predicated region
    $region18: #{refine_block_forward.1} parent=1 // pred_check
      _
    $region19: #{refine_block_forward.1} parent=1 // pred_check_branch
      %22 = sbr.rel (0) target = $region21
    $region20: #{refine_block_forward.1} parent=1 // pred_region
      _
    $region21: #{refine_block_forward.1} parent=1 // pred_fallthru
      _
    // Predicated region
    $region22: #{refine_block_forward.1} parent=1 // pred_check
      _
    $region23: #{refine_block_forward.1} parent=1 // pred_check_branch
      %24 = sbr.rel (0) target = $region25
    $region24: #{refine_block_forward.1} parent=1 // pred_region
      _
    $region25: #{refine_block_forward.1} parent=1 // pred_fallthru
      _
    // Predicated region
    $region26: #{refine_block_forward.1} parent=1 // pred_check
      _
    $region27: #{refine_block_forward.1} parent=1 // pred_check_branch
      %26 = sbr.rel (0) target = $region29
    $region28: #{refine_block_forward.1} parent=1 // pred_region
      _
    $region29: #{refine_block_forward.1} parent=1 // pred_fallthru
      _
    %28 = vst [vmem:[#allocation2] sm:$0xf] 0
    %29 = vst [vmem:[#allocation2 + $0x4] sm:$0xf] 0
    %30 = vst [vmem:[#allocation2 + $0x8] sm:$0x3] 0
    %31 = vst [vmem:[#allocation2 + $0xc] sm:$0xf] 0
    %32 = vst [vmem:[#allocation2 + $0x10] sm:$0xf] 0
    %33 = vst [vmem:[#allocation2 + $0x14] sm:$0x3] 0
    %34 = vst [vmem:[#allocation2 + $0x18] sm:$0xf] 0
    %35 = vst [vmem:[#allocation2 + $0x1c] sm:$0xf] 0
    %36 = vst [vmem:[#allocation2 + $0x20] sm:$0x3] 0
    %37 = vst [vmem:[#allocation2 + $0x24] sm:$0xf] 0
    %38 = vst [vmem:[#allocation2 + $0x28] sm:$0xf] 0
    %39 = vst [vmem:[#allocation2 + $0x2c] sm:$0x3] 0
    %40 = vst [vmem:[#allocation2 + $0x30] sm:$0xf] 0
    %41 = vst [vmem:[#allocation2 + $0x34] sm:$0xf] 0
    %42 = vst [vmem:[#allocation2 + $0x38] sm:$0x3] 0
    %43 = vst [vmem:[#allocation2 + $0x3c] sm:$0xf] 0
    %44 = vst [vmem:[#allocation2 + $0x40] sm:$0xf] 0
    %45 = vst [vmem:[#allocation2 + $0x44] sm:$0x3] 0
    %46 = vst [vmem:[#allocation2 + $0x48] sm:$0xf] 0
    %47 = vst [vmem:[#allocation2 + $0x4c] sm:$0xf] 0
    %48 = vst [vmem:[#allocation2 + $0x50] sm:$0x3] 0
    %49 = vst [vmem:[#allocation2 + $0x54] sm:$0xf] 0
    %50 = vst [vmem:[#allocation2 + $0x58] sm:$0xf] 0
    %51 = vst [vmem:[#allocation2 + $0x5c] sm:$0x3] 0
    %52 = vst [vmem:[#allocation2 + $0x60] sm:$0xf] 0
    %53 = vst [vmem:[#allocation2 + $0x64] sm:$0xf] 0
    %54 = vst [vmem:[#allocation2 + $0x68] sm:$0x3] 0
    %55 = vst [vmem:[#allocation2 + $0x6c] sm:$0xf] 0
    %56 = vst [vmem:[#allocation2 + $0x70] sm:$0xf] 0
    %57 = vst [vmem:[#allocation2 + $0x74] sm:$0x3] 0
    %58 = vst [vmem:[#allocation2 + $0x78] sm:$0xf] 0
    %59 = vst [vmem:[#allocation2 + $0x7c] sm:$0xf] 0
    %60 = vst [vmem:[#allocation2 + $0x80] sm:$0x3] 0
    %61 = vst [vmem:[#allocation2 + $0x84] sm:$0xf] 0
    %62 = vst [vmem:[#allocation2 + $0x88] sm:$0xf] 0
    %63 = vst [vmem:[#allocation2 + $0x8c] sm:$0x3] 0
    %64 = vst [vmem:[#allocation2 + $0x90] sm:$0xf] 0
    %65 = vst [vmem:[#allocation2 + $0x94] sm:$0xf] 0
    %66 = vst [vmem:[#allocation2 + $0x98] sm:$0x3] 0
    %67 = vst [vmem:[#allocation2 + $0x9c] sm:$0xf] 0
    %68 = vst [vmem:[#allocation2 + $0xa0] sm:$0xf] 0
    %69 = vst [vmem:[#allocation2 + $0xa4] sm:$0x3] 0
    %70 = vst [vmem:[#allocation2 + $0xa8] sm:$0xf] 0
    %71 = vst [vmem:[#allocation2 + $0xac] sm:$0xf] 0
    %72 = vst [vmem:[#allocation2 + $0xb0] sm:$0x3] 0
    %73 = vst [vmem:[#allocation2 + $0xb4] sm:$0xf] 0
    %74 = vst [vmem:[#allocation2 + $0xb8] sm:$0xf] 0
    %75 = vst [vmem:[#allocation2 + $0xbc] sm:$0x3] 0
    %76 = vst [vmem:[#allocation2 + $0xc0] sm:$0xf] 0
    %77 = vst [vmem:[#allocation2 + $0xc4] sm:$0xf] 0
    %78 = vst [vmem:[#allocation2 + $0xc8] sm:$0x3] 0
    %79 = vst [vmem:[#allocation2 + $0xcc] sm:$0xf] 0
    %80 = vst [vmem:[#allocation2 + $0xd0] sm:$0xf] 0
    %81 = vst [vmem:[#allocation2 + $0xd4] sm:$0x3] 0
    %82 = vst [vmem:[#allocation2 + $0xd8] sm:$0xf] 0
    %83 = vst [vmem:[#allocation2 + $0xdc] sm:$0xf] 0
    %84 = vst [vmem:[#allocation2 + $0xe0] sm:$0x3] 0
    %85 = vst [vmem:[#allocation2 + $0xe4] sm:$0xf] 0
    %86 = vst [vmem:[#allocation2 + $0xe8] sm:$0xf] 0
    %87 = vst [vmem:[#allocation2 + $0xec] sm:$0x3] 0
    %88 = vst [vmem:[#allocation2 + $0xf0] sm:$0xf] 0
    %89 = vst [vmem:[#allocation2 + $0xf4] sm:$0xf] 0
    %90 = vst [vmem:[#allocation2 + $0xf8] sm:$0x3] 0
    %91 = vst [vmem:[#allocation2 + $0xfc] sm:$0xf] 0
    %92 = vst [vmem:[#allocation2 + $0x100] sm:$0xf] 0
    %93 = vst [vmem:[#allocation2 + $0x104] sm:$0x3] 0
    %94 = vst [vmem:[#allocation2 + $0x108] sm:$0xf] 0
    %95 = vst [vmem:[#allocation2 + $0x10c] sm:$0xf] 0
    %96 = vst [vmem:[#allocation2 + $0x110] sm:$0x3] 0
    %97 = vst [vmem:[#allocation2 + $0x114] sm:$0xf] 0
    %98 = vst [vmem:[#allocation2 + $0x118] sm:$0xf] 0
    %99 = vst [vmem:[#allocation2 + $0x11c] sm:$0x3] 0
    %100 = vst [vmem:[#allocation2 + $0x120] sm:$0xf] 0
    %101 = vst [vmem:[#allocation2 + $0x124] sm:$0xf] 0
    %102 = vst [vmem:[#allocation2 + $0x128] sm:$0x3] 0
    %103 = vst [vmem:[#allocation2 + $0x12c] sm:$0xf] 0
    %104 = vst [vmem:[#allocation2 + $0x130] sm:$0xf] 0
    %105 = vst [vmem:[#allocation2 + $0x134] sm:$0x3] 0
    %106 = vst [vmem:[#allocation2 + $0x138] sm:$0xf] 0
    %107 = vst [vmem:[#allocation2 + $0x13c] sm:$0xf] 0
    %108 = vst [vmem:[#allocation2 + $0x140] sm:$0x3] 0
    %109 = vst [vmem:[#allocation2 + $0x144] sm:$0xf] 0
    %110 = vst [vmem:[#allocation2 + $0x148] sm:$0xf] 0
    %111 = vst [vmem:[#allocation2 + $0x14c] sm:$0x3] 0
    %112 = vst [vmem:[#allocation2 + $0x150] sm:$0xf] 0
    %113 = vst [vmem:[#allocation2 + $0x154] sm:$0xf] 0
    %114 = vst [vmem:[#allocation2 + $0x158] sm:$0x3] 0
    %115 = vst [vmem:[#allocation2 + $0x15c] sm:$0xf] 0
    %116 = vst [vmem:[#allocation2 + $0x160] sm:$0xf] 0
    %117 = vst [vmem:[#allocation2 + $0x164] sm:$0x3] 0
    %118 = vst [vmem:[#allocation2 + $0x168] sm:$0xf] 0
    %119 = vst [vmem:[#allocation2 + $0x16c] sm:$0xf] 0
    %120 = vst [vmem:[#allocation2 + $0x170] sm:$0x3] 0
    %121 = vst [vmem:[#allocation2 + $0x174] sm:$0xf] 0
    %122 = vst [vmem:[#allocation2 + $0x178] sm:$0xf] 0
    %123 = vst [vmem:[#allocation2 + $0x17c] sm:$0x3] 0
    %124 = vst [vmem:[#allocation2 + $0x180] sm:$0xf] 0
    %125 = vst [vmem:[#allocation2 + $0x184] sm:$0xf] 0
    %126 = vst [vmem:[#allocation2 + $0x188] sm:$0x3] 0
    %127 = vst [vmem:[#allocation2 + $0x18c] sm:$0xf] 0
    %128 = vst [vmem:[#allocation2 + $0x190] sm:$0xf] 0
    %129 = vst [vmem:[#allocation2 + $0x194] sm:$0x3] 0
    %130 = vst [vmem:[#allocation2 + $0x198] sm:$0xf] 0
    %131 = vst [vmem:[#allocation2 + $0x19c] sm:$0xf] 0
    %132 = vst [vmem:[#allocation2 + $0x1a0] sm:$0x3] 0
    %133 = vst [vmem:[#allocation2 + $0x1a4] sm:$0xf] 0
    %134 = vst [vmem:[#allocation2 + $0x1a8] sm:$0xf] 0
    %135 = vst [vmem:[#allocation2 + $0x1ac] sm:$0x3] 0
    %136 = vst [vmem:[#allocation2 + $0x1b0] sm:$0xf] 0
    %137 = vst [vmem:[#allocation2 + $0x1b4] sm:$0xf] 0
    %138 = vst [vmem:[#allocation2 + $0x1b8] sm:$0x3] 0
    %139 = vst [vmem:[#allocation2 + $0x1bc] sm:$0xf] 0
    %140 = vst [vmem:[#allocation2 + $0x1c0] sm:$0xf] 0
    %141 = vst [vmem:[#allocation2 + $0x1c4] sm:$0x3] 0
    %142 = vst [vmem:[#allocation2 + $0x1c8] sm:$0xf] 0
    %143 = vst [vmem:[#allocation2 + $0x1cc] sm:$0xf] 0
    %144 = vst [vmem:[#allocation2 + $0x1d0] sm:$0x3] 0
    %145 = vst [vmem:[#allocation2 + $0x1d4] sm:$0xf] 0
    %146 = vst [vmem:[#allocation2 + $0x1d8] sm:$0xf] 0
    %147 = vst [vmem:[#allocation2 + $0x1dc] sm:$0x3] 0
    %v148 = vld [vmem:[%s0] sm:$0xff]
    %v149 = vld [vmem:[%s0 + $0x8] sm:$0xff]
    %v150 = vld [vmem:[%s0 + $0x10] sm:$0xff]
    %v151 = vld [vmem:[%s0 + $0x18] sm:$0xff]
    %v152 = vld [vmem:[%s0 + $0x20] sm:$0xff]
    %v153 = vld [vmem:[%s0 + $0x28] sm:$0xff]
    %v154 = vld [vmem:[%s0 + $0x30] sm:$0xff]
    %v155 = vld [vmem:[%s0 + $0x38] sm:$0xff]
    %v156 = vld [vmem:[%s0 + $0x40] sm:$0xff]
    %v157 = vld [vmem:[%s0 + $0x48] sm:$0xff]
    %v158 = vld [vmem:[%s0 + $0x50] sm:$0xff]
    %v159 = vld [vmem:[%s0 + $0x58] sm:$0xff]
    %v160 = vld [vmem:[%s0 + $0x60] sm:$0xff]
    %v161 = vld [vmem:[%s0 + $0x68] sm:$0xff]
    %v162 = vld [vmem:[%s0 + $0x70] sm:$0xff]
    %v163 = vld [vmem:[%s0 + $0x78] sm:$0xff]
    %v164 = vld [vmem:[%s0 + $0x80] sm:$0xff]
    %v165 = vld [vmem:[%s0 + $0x88] sm:$0xff]
    %v166 = vld [vmem:[%s0 + $0x90] sm:$0xff]
    %v167 = vld [vmem:[%s0 + $0x98] sm:$0xff]
    %v168 = vld [vmem:[%s0 + $0xa0] sm:$0xff]
    %v169 = vld [vmem:[%s0 + $0xa8] sm:$0xff]
    %v170 = vld [vmem:[%s0 + $0xb0] sm:$0xff]
    %v171 = vld [vmem:[%s0 + $0xb8] sm:$0xff]
    %v172 = vld [vmem:[%s0 + $0xc0] sm:$0xff]
    %v173 = vld [vmem:[%s0 + $0xc8] sm:$0xff]
    %v174 = vld [vmem:[%s0 + $0xd0] sm:$0xff]
    %v175 = vld [vmem:[%s0 + $0xd8] sm:$0xff]
    %v176 = vld [vmem:[%s0 + $0xe0] sm:$0xff]
    %v177 = vld [vmem:[%s0 + $0xe8] sm:$0xff]
    %v178 = vld [vmem:[%s0 + $0xf0] sm:$0xff]
    %v179 = vld [vmem:[%s0 + $0xf8] sm:$0xff]
    %v180 = vld [vmem:[%s0 + $0x100] sm:$0xff]
    %v181 = vld [vmem:[%s0 + $0x108] sm:$0xff]
    %v182 = vld [vmem:[%s0 + $0x110] sm:$0xff]
    %v183 = vld [vmem:[%s0 + $0x118] sm:$0xff]
    %v184 = vld [vmem:[%s0 + $0x120] sm:$0xff]
    %v185 = vld [vmem:[%s0 + $0x128] sm:$0xff]
    %v186 = vld [vmem:[%s0 + $0x130] sm:$0xff]
    %v187 = vld [vmem:[%s0 + $0x138] sm:$0xff]
    %v188 = vld [vmem:[%s0 + $0x140] sm:$0xff]
    %v189 = vld [vmem:[%s0 + $0x148] sm:$0xff]
    %v190 = vld [vmem:[%s0 + $0x150] sm:$0xff]
    %v191 = vld [vmem:[%s0 + $0x158] sm:$0xff]
    %v192 = vld [vmem:[%s0 + $0x160] sm:$0xff]
    %v193 = vld [vmem:[%s0 + $0x168] sm:$0xff]
    %v194 = vld [vmem:[%s0 + $0x170] sm:$0xff]
    %v195 = vld [vmem:[%s0 + $0x178] sm:$0xff]
    %v196 = vld [vmem:[%s0 + $0x180] sm:$0xff]
    %v197 = vld [vmem:[%s0 + $0x188] sm:$0xff]
    %v198 = vld [vmem:[%s0 + $0x190] sm:$0xff]
    %v199 = vld [vmem:[%s0 + $0x198] sm:$0xff]
    %v200 = vld [vmem:[%s0 + $0x1a0] sm:$0xff]
    %v201 = vld [vmem:[%s0 + $0x1a8] sm:$0xff]
    %v202 = vld [vmem:[%s0 + $0x1b0] sm:$0xff]
    %v203 = vld [vmem:[%s0 + $0x1b8] sm:$0xff]
    %v204 = vld [vmem:[%s0 + $0x1c0] sm:$0xff]
    %v205 = vld [vmem:[%s0 + $0x1c8] sm:$0xff]
    %v206 = vld [vmem:[%s0 + $0x1d0] sm:$0xff]
    %v207 = vld [vmem:[%s0 + $0x1d8] sm:$0xff]
    %v208 = vld [vmem:[%s0 + $0x1e0] sm:$0xff]
    %v209 = vld [vmem:[%s0 + $0x1e8] sm:$0xff]
    %v210 = vld [vmem:[%s0 + $0x1f0] sm:$0xff]
    %v211 = vld [vmem:[%s0 + $0x1f8] sm:$0xff]
    %v212 = vpack.c.bf16 %v149, %v148
    %v213 = vpack.c.bf16 %v151, %v150
    %v214 = vpack.c.bf16 %v153, %v152
    %v215 = vpack.c.bf16 %v155, %v154
    %v216 = vpack.c.bf16 %v157, %v156
    %v217 = vpack.c.bf16 %v159, %v158
    %v218 = vpack.c.bf16 %v161, %v160
    %v219 = vpack.c.bf16 %v163, %v162
    %v220 = vpack.c.bf16 %v165, %v164
    %v221 = vpack.c.bf16 %v167, %v166
    %v222 = vpack.c.bf16 %v169, %v168
    %v223 = vpack.c.bf16 %v171, %v170
    %v224 = vpack.c.bf16 %v173, %v172
    %v225 = vpack.c.bf16 %v175, %v174
    %v226 = vpack.c.bf16 %v177, %v176
    %v227 = vpack.c.bf16 %v179, %v178
    %v228 = vpack.c.bf16 %v181, %v180
    %v229 = vpack.c.bf16 %v183, %v182
    %v230 = vpack.c.bf16 %v185, %v184
    %v231 = vpack.c.bf16 %v187, %v186
    %v232 = vpack.c.bf16 %v189, %v188
    %v233 = vpack.c.bf16 %v191, %v190
    %v234 = vpack.c.bf16 %v193, %v192
    %v235 = vpack.c.bf16 %v195, %v194
    %v236 = vpack.c.bf16 %v197, %v196
    %v237 = vpack.c.bf16 %v199, %v198
    %v238 = vpack.c.bf16 %v201, %v200
    %v239 = vpack.c.bf16 %v203, %v202
    %v240 = vpack.c.bf16 %v205, %v204
    %v241 = vpack.c.bf16 %v207, %v206
    %v242 = vpack.c.bf16 %v209, %v208
    %v243 = vpack.c.bf16 %v211, %v210
    %v244 = vld [vmem:[%s1] sm:$0xf]
    %v245 = vld [vmem:[%s1 + $0x4] sm:$0xf]
    %v246 = vld [vmem:[%s1 + $0x8] sm:$0xf]
    %v247 = vld [vmem:[%s1 + $0xc] sm:$0xf]
    %v248 = vld [vmem:[%s1 + $0x10] sm:$0xf]
    %v249 = vld [vmem:[%s1 + $0x14] sm:$0xf]
    %v250 = vld [vmem:[%s1 + $0x18] sm:$0xf]
    %v251 = vld [vmem:[%s1 + $0x1c] sm:$0xf]
    %v252 = vld [vmem:[%s1 + $0x20] sm:$0xf]
    %v253 = vld [vmem:[%s1 + $0x24] sm:$0xf]
    %v254 = vld [vmem:[%s1 + $0x28] sm:$0xf]
    %v255 = vld [vmem:[%s1 + $0x2c] sm:$0xf]
    %v256 = vld [vmem:[%s1 + $0x30] sm:$0xf]
    %v257 = vld [vmem:[%s1 + $0x34] sm:$0xf]
    %v258 = vld [vmem:[%s1 + $0x38] sm:$0xf]
    %v259 = vld [vmem:[%s1 + $0x3c] sm:$0xf]
    %v260 = vld [vmem:[%s2] sm:$0x1]
    %v262 = vperm.slane %v260, 0
    %v280 = vunpack.c.l.b16 %v244
    %v281 = vunpack.c.l.b16 %v245
    %v282 = vunpack.c.l.b16 %v246
    %v283 = vunpack.c.l.b16 %v247
    %v284 = vunpack.c.l.b16 %v248
    %v285 = vunpack.c.l.b16 %v249
    %v286 = vunpack.c.l.b16 %v250
    %v287 = vunpack.c.l.b16 %v251
    %v288 = vunpack.c.l.b16 %v252
    %v289 = vunpack.c.l.b16 %v253
    %v290 = vunpack.c.l.b16 %v254
    %v291 = vunpack.c.l.b16 %v255
    %v292 = vunpack.c.l.b16 %v256
    %v293 = vunpack.c.l.b16 %v257
    %v294 = vunpack.c.l.b16 %v258
    %v295 = vunpack.c.l.b16 %v259
    %v296 = vpack.c.b16 %v281, %v280
    %v297 = vpack.c.b16 %v283, %v282
    %v298 = vpack.c.b16 %v285, %v284
    %v299 = vpack.c.b16 %v287, %v286
    %v300 = vpack.c.b16 %v289, %v288
    %v301 = vpack.c.b16 %v291, %v290
    %v302 = vpack.c.b16 %v293, %v292
    %v303 = vpack.c.b16 %v295, %v294
    %312 = vmatpush.bf16.msra.mxu0 %v303
    %313 = vmatpush.bf16.msra.mxu0 %v302
    %314 = vmatpush.bf16.msra.mxu0 %v301
    %315 = vmatpush.bf16.msra.mxu0 %v300
    %316 = vmatpush.bf16.msra.mxu0 %v299
    %317 = vmatpush.bf16.msra.mxu0 %v298
    %318 = vmatpush.bf16.msra.mxu0 %v297
    %319 = vmatpush.bf16.msra.mxu0 %v296
    %320 = vmatmul.bf16.gmra.mxu0 %v212
    %v321 = vpop.f32.mrf.mxu0
    %v322 = vadd.f32 %v262, %v321
    %v323 = vpop.f32.mrf.mxu0
    %v324 = vadd.f32 %v262, %v323
    %325 = vmatmul.bf16.gmra.mxu0 %v213
    %v326 = vpop.f32.mrf.mxu0
    %v327 = vadd.f32 %v262, %v326
    %v328 = vpop.f32.mrf.mxu0
    %v329 = vadd.f32 %v262, %v328
    %330 = vmatmul.bf16.gmra.mxu0 %v214
    %v331 = vpop.f32.mrf.mxu0
    %v332 = vadd.f32 %v262, %v331
    %v333 = vpop.f32.mrf.mxu0
    %v334 = vadd.f32 %v262, %v333
    %335 = vmatmul.bf16.gmra.mxu0 %v215
    %v336 = vpop.f32.mrf.mxu0
    %v337 = vadd.f32 %v262, %v336
    %v338 = vpop.f32.mrf.mxu0
    %v339 = vadd.f32 %v262, %v338
    %340 = vmatmul.bf16.gmra.mxu0 %v216
    %v341 = vpop.f32.mrf.mxu0
    %v342 = vadd.f32 %v262, %v341
    %v343 = vpop.f32.mrf.mxu0
    %v344 = vadd.f32 %v262, %v343
    %345 = vmatmul.bf16.gmra.mxu0 %v217
    %v346 = vpop.f32.mrf.mxu0
    %v347 = vadd.f32 %v262, %v346
    %v348 = vpop.f32.mrf.mxu0
    %v349 = vadd.f32 %v262, %v348
    %350 = vmatmul.bf16.gmra.mxu0 %v218
    %v351 = vpop.f32.mrf.mxu0
    %v352 = vadd.f32 %v262, %v351
    %v353 = vpop.f32.mrf.mxu0
    %v354 = vadd.f32 %v262, %v353
    %355 = vmatmul.bf16.gmra.mxu0 %v219
    %v356 = vpop.f32.mrf.mxu0
    %v357 = vadd.f32 %v262, %v356
    %v358 = vpop.f32.mrf.mxu0
    %v359 = vadd.f32 %v262, %v358
    %360 = vmatmul.bf16.gmra.mxu0 %v220
    %v361 = vpop.f32.mrf.mxu0
    %v362 = vadd.f32 %v262, %v361
    %v363 = vpop.f32.mrf.mxu0
    %v364 = vadd.f32 %v262, %v363
    %365 = vmatmul.bf16.gmra.mxu0 %v221
    %v366 = vpop.f32.mrf.mxu0
    %v367 = vadd.f32 %v262, %v366
    %v368 = vpop.f32.mrf.mxu0
    %v369 = vadd.f32 %v262, %v368
    %370 = vmatmul.bf16.gmra.mxu0 %v222
    %v371 = vpop.f32.mrf.mxu0
    %v372 = vadd.f32 %v262, %v371
    %v373 = vpop.f32.mrf.mxu0
    %v374 = vadd.f32 %v262, %v373
    %375 = vmatmul.bf16.gmra.mxu0 %v223
    %v376 = vpop.f32.mrf.mxu0
    %v377 = vadd.f32 %v262, %v376
    %v378 = vpop.f32.mrf.mxu0
    %v379 = vadd.f32 %v262, %v378
    %380 = vmatmul.bf16.gmra.mxu0 %v224
    %v381 = vpop.f32.mrf.mxu0
    %v382 = vadd.f32 %v262, %v381
    %v383 = vpop.f32.mrf.mxu0
    %v384 = vadd.f32 %v262, %v383
    %385 = vmatmul.bf16.gmra.mxu0 %v225
    %v386 = vpop.f32.mrf.mxu0
    %v387 = vadd.f32 %v262, %v386
    %v388 = vpop.f32.mrf.mxu0
    %v389 = vadd.f32 %v262, %v388
    %390 = vmatmul.bf16.gmra.mxu0 %v226
    %v391 = vpop.f32.mrf.mxu0
    %v392 = vadd.f32 %v262, %v391
    %v393 = vpop.f32.mrf.mxu0
    %v394 = vadd.f32 %v262, %v393
    %395 = vmatmul.bf16.gmra.mxu0 %v227
    %v396 = vpop.f32.mrf.mxu0
    %v397 = vadd.f32 %v262, %v396
    %v398 = vpop.f32.mrf.mxu0
    %v399 = vadd.f32 %v262, %v398
    %400 = vmatmul.bf16.gmra.mxu0 %v228
    %v401 = vpop.f32.mrf.mxu0
    %v402 = vadd.f32 %v262, %v401
    %v403 = vpop.f32.mrf.mxu0
    %v404 = vadd.f32 %v262, %v403
    %405 = vmatmul.bf16.gmra.mxu0 %v229
    %v406 = vpop.f32.mrf.mxu0
    %v407 = vadd.f32 %v262, %v406
    %v408 = vpop.f32.mrf.mxu0
    %v409 = vadd.f32 %v262, %v408
    %410 = vmatmul.bf16.gmra.mxu0 %v230
    %v411 = vpop.f32.mrf.mxu0
    %v412 = vadd.f32 %v262, %v411
    %v413 = vpop.f32.mrf.mxu0
    %v414 = vadd.f32 %v262, %v413
    %415 = vmatmul.bf16.gmra.mxu0 %v231
    %v416 = vpop.f32.mrf.mxu0
    %v417 = vadd.f32 %v262, %v416
    %v418 = vpop.f32.mrf.mxu0
    %v419 = vadd.f32 %v262, %v418
    %420 = vmatmul.bf16.gmra.mxu0 %v232
    %v421 = vpop.f32.mrf.mxu0
    %v422 = vadd.f32 %v262, %v421
    %v423 = vpop.f32.mrf.mxu0
    %v424 = vadd.f32 %v262, %v423
    %425 = vmatmul.bf16.gmra.mxu0 %v233
    %v426 = vpop.f32.mrf.mxu0
    %v427 = vadd.f32 %v262, %v426
    %v428 = vpop.f32.mrf.mxu0
    %v429 = vadd.f32 %v262, %v428
    %430 = vmatmul.bf16.gmra.mxu0 %v234
    %v431 = vpop.f32.mrf.mxu0
    %v432 = vadd.f32 %v262, %v431
    %v433 = vpop.f32.mrf.mxu0
    %v434 = vadd.f32 %v262, %v433
    %435 = vmatmul.bf16.gmra.mxu0 %v235
    %v436 = vpop.f32.mrf.mxu0
    %v437 = vadd.f32 %v262, %v436
    %v438 = vpop.f32.mrf.mxu0
    %v439 = vadd.f32 %v262, %v438
    %440 = vmatmul.bf16.gmra.mxu0 %v236
    %v441 = vpop.f32.mrf.mxu0
    %v442 = vadd.f32 %v262, %v441
    %v443 = vpop.f32.mrf.mxu0
    %v444 = vadd.f32 %v262, %v443
    %445 = vmatmul.bf16.gmra.mxu0 %v237
    %v446 = vpop.f32.mrf.mxu0
    %v447 = vadd.f32 %v262, %v446
    %v448 = vpop.f32.mrf.mxu0
    %v449 = vadd.f32 %v262, %v448
    %450 = vmatmul.bf16.gmra.mxu0 %v238
    %v451 = vpop.f32.mrf.mxu0
    %v452 = vadd.f32 %v262, %v451
    %v453 = vpop.f32.mrf.mxu0
    %v454 = vadd.f32 %v262, %v453
    %455 = vmatmul.bf16.gmra.mxu0 %v239
    %v456 = vpop.f32.mrf.mxu0
    %v457 = vadd.f32 %v262, %v456
    %v458 = vpop.f32.mrf.mxu0
    %v459 = vadd.f32 %v262, %v458
    %460 = vmatmul.bf16.gmra.mxu0 %v240
    %v461 = vpop.f32.mrf.mxu0
    %v462 = vadd.f32 %v262, %v461
    %v463 = vpop.f32.mrf.mxu0
    %v464 = vadd.f32 %v262, %v463
    %465 = vmatmul.bf16.gmra.mxu0 %v241
    %v466 = vpop.f32.mrf.mxu0
    %v467 = vadd.f32 %v262, %v466
    %v468 = vpop.f32.mrf.mxu0
    %v469 = vadd.f32 %v262, %v468
    %470 = vmatmul.bf16.gmra.mxu0 %v242
    %v471 = vpop.f32.mrf.mxu0
    %v472 = vadd.f32 %v262, %v471
    %v473 = vpop.f32.mrf.mxu0
    %v474 = vadd.f32 %v262, %v473
    %475 = vmatmul.bf16.gmra.mxu0 %v243
    %v476 = vpop.f32.mrf.mxu0
    %v477 = vadd.f32 %v262, %v476
    %v478 = vpop.f32.mrf.mxu0
    %v479 = vadd.f32 %v262, %v478
    %480 = vdwg.mxu0
    %v481 = vmax.f32 %v322, 0.0
    %v482 = vmax.f32 %v324, 0.0
    %v483 = vmax.f32 %v327, 0.0
    %v484 = vmax.f32 %v329, 0.0
    %v485 = vmax.f32 %v332, 0.0
    %v486 = vmax.f32 %v334, 0.0
    %v487 = vmax.f32 %v337, 0.0
    %v488 = vmax.f32 %v339, 0.0
    %v489 = vmax.f32 %v342, 0.0
    %v490 = vmax.f32 %v344, 0.0
    %v491 = vmax.f32 %v347, 0.0
    %v492 = vmax.f32 %v349, 0.0
    %v493 = vmax.f32 %v352, 0.0
    %v494 = vmax.f32 %v354, 0.0
    %v495 = vmax.f32 %v357, 0.0
    %v496 = vmax.f32 %v359, 0.0
    %v497 = vmax.f32 %v362, 0.0
    %v498 = vmax.f32 %v364, 0.0
    %v499 = vmax.f32 %v367, 0.0
    %v500 = vmax.f32 %v369, 0.0
    %v501 = vmax.f32 %v372, 0.0
    %v502 = vmax.f32 %v374, 0.0
    %v503 = vmax.f32 %v377, 0.0
    %v504 = vmax.f32 %v379, 0.0
    %v505 = vmax.f32 %v382, 0.0
    %v506 = vmax.f32 %v384, 0.0
    %v507 = vmax.f32 %v387, 0.0
    %v508 = vmax.f32 %v389, 0.0
    %v509 = vmax.f32 %v392, 0.0
    %v510 = vmax.f32 %v394, 0.0
    %v511 = vmax.f32 %v397, 0.0
    %v512 = vmax.f32 %v399, 0.0
    %v513 = vmax.f32 %v402, 0.0
    %v514 = vmax.f32 %v404, 0.0
    %v515 = vmax.f32 %v407, 0.0
    %v516 = vmax.f32 %v409, 0.0
    %v517 = vmax.f32 %v412, 0.0
    %v518 = vmax.f32 %v414, 0.0
    %v519 = vmax.f32 %v417, 0.0
    %v520 = vmax.f32 %v419, 0.0
    %v521 = vmax.f32 %v422, 0.0
    %v522 = vmax.f32 %v424, 0.0
    %v523 = vmax.f32 %v427, 0.0
    %v524 = vmax.f32 %v429, 0.0
    %v525 = vmax.f32 %v432, 0.0
    %v526 = vmax.f32 %v434, 0.0
    %v527 = vmax.f32 %v437, 0.0
    %v528 = vmax.f32 %v439, 0.0
    %v529 = vmax.f32 %v442, 0.0
    %v530 = vmax.f32 %v444, 0.0
    %v531 = vmax.f32 %v447, 0.0
    %v532 = vmax.f32 %v449, 0.0
    %v533 = vmax.f32 %v452, 0.0
    %v534 = vmax.f32 %v454, 0.0
    %v535 = vmax.f32 %v457, 0.0
    %v536 = vmax.f32 %v459, 0.0
    %v537 = vmax.f32 %v462, 0.0
    %v538 = vmax.f32 %v464, 0.0
    %v539 = vmax.f32 %v467, 0.0
    %v540 = vmax.f32 %v469, 0.0
    %v541 = vmax.f32 %v472, 0.0
    %v542 = vmax.f32 %v474, 0.0
    %v543 = vmax.f32 %v477, 0.0
    %v544 = vmax.f32 %v479, 0.0
    %v545 = vpack.c.bf16 %v481, %v481
    %v546 = vpack.c.bf16 %v482, %v482
    %v547 = vpack.c.bf16 %v483, %v483
    %v548 = vpack.c.bf16 %v484, %v484
    %v549 = vpack.c.bf16 %v485, %v485
    %v550 = vpack.c.bf16 %v486, %v486
    %v551 = vpack.c.bf16 %v487, %v487
    %v552 = vpack.c.bf16 %v488, %v488
    %v553 = vpack.c.bf16 %v489, %v489
    %v554 = vpack.c.bf16 %v490, %v490
    %v555 = vpack.c.bf16 %v491, %v491
    %v556 = vpack.c.bf16 %v492, %v492
    %v557 = vpack.c.bf16 %v493, %v493
    %v558 = vpack.c.bf16 %v494, %v494
    %v559 = vpack.c.bf16 %v495, %v495
    %v560 = vpack.c.bf16 %v496, %v496
    %v561 = vpack.c.bf16 %v497, %v497
    %v562 = vpack.c.bf16 %v498, %v498
    %v563 = vpack.c.bf16 %v499, %v499
    %v564 = vpack.c.bf16 %v500, %v500
    %v565 = vpack.c.bf16 %v501, %v501
    %v566 = vpack.c.bf16 %v502, %v502
    %v567 = vpack.c.bf16 %v503, %v503
    %v568 = vpack.c.bf16 %v504, %v504
    %v569 = vpack.c.bf16 %v505, %v505
    %v570 = vpack.c.bf16 %v506, %v506
    %v571 = vpack.c.bf16 %v507, %v507
    %v572 = vpack.c.bf16 %v508, %v508
    %v573 = vpack.c.bf16 %v509, %v509
    %v574 = vpack.c.bf16 %v510, %v510
    %v575 = vpack.c.bf16 %v511, %v511
    %v576 = vpack.c.bf16 %v512, %v512
    %v577 = vpack.c.bf16 %v513, %v513
    %v578 = vpack.c.bf16 %v514, %v514
    %v579 = vpack.c.bf16 %v515, %v515
    %v580 = vpack.c.bf16 %v516, %v516
    %v581 = vpack.c.bf16 %v517, %v517
    %v582 = vpack.c.bf16 %v518, %v518
    %v583 = vpack.c.bf16 %v519, %v519
    %v584 = vpack.c.bf16 %v520, %v520
    %v585 = vpack.c.bf16 %v521, %v521
    %v586 = vpack.c.bf16 %v522, %v522
    %v587 = vpack.c.bf16 %v523, %v523
    %v588 = vpack.c.bf16 %v524, %v524
    %v589 = vpack.c.bf16 %v525, %v525
    %v590 = vpack.c.bf16 %v526, %v526
    %v591 = vpack.c.bf16 %v527, %v527
    %v592 = vpack.c.bf16 %v528, %v528
    %v593 = vpack.c.bf16 %v529, %v529
    %v594 = vpack.c.bf16 %v530, %v530
    %v595 = vpack.c.bf16 %v531, %v531
    %v596 = vpack.c.bf16 %v532, %v532
    %v597 = vpack.c.bf16 %v533, %v533
    %v598 = vpack.c.bf16 %v534, %v534
    %v599 = vpack.c.bf16 %v535, %v535
    %v600 = vpack.c.bf16 %v536, %v536
    %v601 = vpack.c.bf16 %v537, %v537
    %v602 = vpack.c.bf16 %v538, %v538
    %v603 = vpack.c.bf16 %v539, %v539
    %v604 = vpack.c.bf16 %v540, %v540
    %v605 = vpack.c.bf16 %v541, %v541
    %v606 = vpack.c.bf16 %v542, %v542
    %v607 = vpack.c.bf16 %v543, %v543
    %v608 = vpack.c.bf16 %v544, %v544
    %vm673 = vcmask 1040384
    %vm674 = vcmask 1044484
    %vm675 = vmor %vm673, %vm674
    %v676 = vrot.slane %v545, 7
    %v677 = vrot.slane %v676, 4
    %v678 = vrot.slane %v546, 7
    %v679 = vsel %vm675, %v677, %v678
    %v680 = vrot.slane %v678, 4
    %v681 = vrot.slane %v547, 7
    %v682 = vrot.slane %v681, 4
    %v683 = vrot.slane %v548, 7
    %v684 = vsel %vm675, %v682, %v683
    %v685 = vrot.slane %v683, 4
    %v686 = vrot.slane %v549, 7
    %v687 = vrot.slane %v686, 4
    %v688 = vrot.slane %v550, 7
    %v689 = vsel %vm675, %v687, %v688
    %v690 = vrot.slane %v688, 4
    %v691 = vrot.slane %v551, 7
    %v692 = vrot.slane %v691, 4
    %v693 = vrot.slane %v552, 7
    %v694 = vsel %vm675, %v692, %v693
    %v695 = vrot.slane %v693, 4
    %v696 = vrot.slane %v553, 7
    %v697 = vrot.slane %v696, 4
    %v698 = vrot.slane %v554, 7
    %v699 = vsel %vm675, %v697, %v698
    %v700 = vrot.slane %v698, 4
    %v701 = vrot.slane %v555, 7
    %v702 = vrot.slane %v701, 4
    %v703 = vrot.slane %v556, 7
    %v704 = vsel %vm675, %v702, %v703
    %v705 = vrot.slane %v703, 4
    %v706 = vrot.slane %v557, 7
    %v707 = vrot.slane %v706, 4
    %v708 = vrot.slane %v558, 7
    %v709 = vsel %vm675, %v707, %v708
    %v710 = vrot.slane %v708, 4
    %v711 = vrot.slane %v559, 7
    %v712 = vrot.slane %v711, 4
    %v713 = vrot.slane %v560, 7
    %v714 = vsel %vm675, %v712, %v713
    %v715 = vrot.slane %v713, 4
    %v716 = vrot.slane %v561, 7
    %v717 = vrot.slane %v716, 4
    %v718 = vrot.slane %v562, 7
    %v719 = vsel %vm675, %v717, %v718
    %v720 = vrot.slane %v718, 4
    %v721 = vrot.slane %v563, 7
    %v722 = vrot.slane %v721, 4
    %v723 = vrot.slane %v564, 7
    %v724 = vsel %vm675, %v722, %v723
    %v725 = vrot.slane %v723, 4
    %v726 = vrot.slane %v565, 7
    %v727 = vrot.slane %v726, 4
    %v728 = vrot.slane %v566, 7
    %v729 = vsel %vm675, %v727, %v728
    %v730 = vrot.slane %v728, 4
    %v731 = vrot.slane %v567, 7
    %v732 = vrot.slane %v731, 4
    %v733 = vrot.slane %v568, 7
    %v734 = vsel %vm675, %v732, %v733
    %v735 = vrot.slane %v733, 4
    %v736 = vrot.slane %v569, 7
    %v737 = vrot.slane %v736, 4
    %v738 = vrot.slane %v570, 7
    %v739 = vsel %vm675, %v737, %v738
    %v740 = vrot.slane %v738, 4
    %v741 = vrot.slane %v571, 7
    %v742 = vrot.slane %v741, 4
    %v743 = vrot.slane %v572, 7
    %v744 = vsel %vm675, %v742, %v743
    %v745 = vrot.slane %v743, 4
    %v746 = vrot.slane %v573, 7
    %v747 = vrot.slane %v746, 4
    %v748 = vrot.slane %v574, 7
    %v749 = vsel %vm675, %v747, %v748
    %v750 = vrot.slane %v748, 4
    %v751 = vrot.slane %v575, 7
    %v752 = vrot.slane %v751, 4
    %v753 = vrot.slane %v576, 7
    %v754 = vsel %vm675, %v752, %v753
    %v755 = vrot.slane %v753, 4
    %v756 = vrot.slane %v577, 7
    %v757 = vrot.slane %v756, 4
    %v758 = vrot.slane %v578, 7
    %v759 = vsel %vm675, %v757, %v758
    %v760 = vrot.slane %v758, 4
    %v761 = vrot.slane %v579, 7
    %v762 = vrot.slane %v761, 4
    %v763 = vrot.slane %v580, 7
    %v764 = vsel %vm675, %v762, %v763
    %v765 = vrot.slane %v763, 4
    %v766 = vrot.slane %v581, 7
    %v767 = vrot.slane %v766, 4
    %v768 = vrot.slane %v582, 7
    %v769 = vsel %vm675, %v767, %v768
    %v770 = vrot.slane %v768, 4
    %v771 = vrot.slane %v583, 7
    %v772 = vrot.slane %v771, 4
    %v773 = vrot.slane %v584, 7
    %v774 = vsel %vm675, %v772, %v773
    %v775 = vrot.slane %v773, 4
    %v776 = vrot.slane %v585, 7
    %v777 = vrot.slane %v776, 4
    %v778 = vrot.slane %v586, 7
    %v779 = vsel %vm675, %v777, %v778
    %v780 = vrot.slane %v778, 4
    %v781 = vrot.slane %v587, 7
    %v782 = vrot.slane %v781, 4
    %v783 = vrot.slane %v588, 7
    %v784 = vsel %vm675, %v782, %v783
    %v785 = vrot.slane %v783, 4
    %v786 = vrot.slane %v589, 7
    %v787 = vrot.slane %v786, 4
    %v788 = vrot.slane %v590, 7
    %v789 = vsel %vm675, %v787, %v788
    %v790 = vrot.slane %v788, 4
    %v791 = vrot.slane %v591, 7
    %v792 = vrot.slane %v791, 4
    %v793 = vrot.slane %v592, 7
    %v794 = vsel %vm675, %v792, %v793
    %v795 = vrot.slane %v793, 4
    %v796 = vrot.slane %v593, 7
    %v797 = vrot.slane %v796, 4
    %v798 = vrot.slane %v594, 7
    %v799 = vsel %vm675, %v797, %v798
    %v800 = vrot.slane %v798, 4
    %v801 = vrot.slane %v595, 7
    %v802 = vrot.slane %v801, 4
    %v803 = vrot.slane %v596, 7
    %v804 = vsel %vm675, %v802, %v803
    %v805 = vrot.slane %v803, 4
    %v806 = vrot.slane %v597, 7
    %v807 = vrot.slane %v806, 4
    %v808 = vrot.slane %v598, 7
    %v809 = vsel %vm675, %v807, %v808
    %v810 = vrot.slane %v808, 4
    %v811 = vrot.slane %v599, 7
    %v812 = vrot.slane %v811, 4
    %v813 = vrot.slane %v600, 7
    %v814 = vsel %vm675, %v812, %v813
    %v815 = vrot.slane %v813, 4
    %v816 = vrot.slane %v601, 7
    %v817 = vrot.slane %v816, 4
    %v818 = vrot.slane %v602, 7
    %v819 = vsel %vm675, %v817, %v818
    %v820 = vrot.slane %v818, 4
    %v821 = vrot.slane %v603, 7
    %v822 = vrot.slane %v821, 4
    %v823 = vrot.slane %v604, 7
    %v824 = vsel %vm675, %v822, %v823
    %v825 = vrot.slane %v823, 4
    %v826 = vrot.slane %v605, 7
    %v827 = vrot.slane %v826, 4
    %v828 = vrot.slane %v606, 7
    %v829 = vsel %vm675, %v827, %v828
    %v830 = vrot.slane %v828, 4
    %v831 = vrot.slane %v607, 7
    %v832 = vrot.slane %v831, 4
    %v833 = vrot.slane %v608, 7
    %v834 = vsel %vm675, %v832, %v833
    %v835 = vrot.slane %v833, 4
    %s932 = scalar_lea.vmem [#allocation2], 24
    %933 = vst [vmem:[%s932] sm:$0xe] %v676
    %934 = vst [vmem:[%s932 + $0x4] sm:$0xf] %v679
    %935 = vst [vmem:[%s932 + $0x8] sm:$0x1] %v680
    %936 = vst [vmem:[%s932 + $0xc] sm:$0xe] %v681
    %937 = vst [vmem:[%s932 + $0x10] sm:$0xf] %v684
    %938 = vst [vmem:[%s932 + $0x14] sm:$0x1] %v685
    %939 = vst [vmem:[%s932 + $0x18] sm:$0xe] %v686
    %940 = vst [vmem:[%s932 + $0x1c] sm:$0xf] %v689
    %941 = vst [vmem:[%s932 + $0x20] sm:$0x1] %v690
    %942 = vst [vmem:[%s932 + $0x24] sm:$0xe] %v691
    %943 = vst [vmem:[%s932 + $0x28] sm:$0xf] %v694
    %944 = vst [vmem:[%s932 + $0x2c] sm:$0x1] %v695
    %945 = vst [vmem:[%s932 + $0x30] sm:$0xe] %v696
    %946 = vst [vmem:[%s932 + $0x34] sm:$0xf] %v699
    %947 = vst [vmem:[%s932 + $0x38] sm:$0x1] %v700
    %948 = vst [vmem:[%s932 + $0x3c] sm:$0xe] %v701
    %949 = vst [vmem:[%s932 + $0x40] sm:$0xf] %v704
    %950 = vst [vmem:[%s932 + $0x44] sm:$0x1] %v705
    %951 = vst [vmem:[%s932 + $0x48] sm:$0xe] %v706
    %952 = vst [vmem:[%s932 + $0x4c] sm:$0xf] %v709
    %953 = vst [vmem:[%s932 + $0x50] sm:$0x1] %v710
    %954 = vst [vmem:[%s932 + $0x54] sm:$0xe] %v711
    %955 = vst [vmem:[%s932 + $0x58] sm:$0xf] %v714
    %956 = vst [vmem:[%s932 + $0x5c] sm:$0x1] %v715
    %957 = vst [vmem:[%s932 + $0x60] sm:$0xe] %v716
    %958 = vst [vmem:[%s932 + $0x64] sm:$0xf] %v719
    %959 = vst [vmem:[%s932 + $0x68] sm:$0x1] %v720
    %960 = vst [vmem:[%s932 + $0x6c] sm:$0xe] %v721
    %961 = vst [vmem:[%s932 + $0x70] sm:$0xf] %v724
    %962 = vst [vmem:[%s932 + $0x74] sm:$0x1] %v725
    %963 = vst [vmem:[%s932 + $0x78] sm:$0xe] %v726
    %964 = vst [vmem:[%s932 + $0x7c] sm:$0xf] %v729
    %965 = vst [vmem:[%s932 + $0x80] sm:$0x1] %v730
    %966 = vst [vmem:[%s932 + $0x84] sm:$0xe] %v731
    %967 = vst [vmem:[%s932 + $0x88] sm:$0xf] %v734
    %968 = vst [vmem:[%s932 + $0x8c] sm:$0x1] %v735
    %969 = vst [vmem:[%s932 + $0x90] sm:$0xe] %v736
    %970 = vst [vmem:[%s932 + $0x94] sm:$0xf] %v739
    %971 = vst [vmem:[%s932 + $0x98] sm:$0x1] %v740
    %972 = vst [vmem:[%s932 + $0x9c] sm:$0xe] %v741
    %973 = vst [vmem:[%s932 + $0xa0] sm:$0xf] %v744
    %974 = vst [vmem:[%s932 + $0xa4] sm:$0x1] %v745
    %975 = vst [vmem:[%s932 + $0xa8] sm:$0xe] %v746
    %976 = vst [vmem:[%s932 + $0xac] sm:$0xf] %v749
    %977 = vst [vmem:[%s932 + $0xb0] sm:$0x1] %v750
    %978 = vst [vmem:[%s932 + $0xb4] sm:$0xe] %v751
    %979 = vst [vmem:[%s932 + $0xb8] sm:$0xf] %v754
    %980 = vst [vmem:[%s932 + $0xbc] sm:$0x1] %v755
    %981 = vst [vmem:[%s932 + $0xf0] sm:$0xe] %v756
    %982 = vst [vmem:[%s932 + $0xf4] sm:$0xf] %v759
    %983 = vst [vmem:[%s932 + $0xf8] sm:$0x1] %v760
    %984 = vst [vmem:[%s932 + $0xfc] sm:$0xe] %v761
    %985 = vst [vmem:[%s932 + $0x100] sm:$0xf] %v764
    %986 = vst [vmem:[%s932 + $0x104] sm:$0x1] %v765
    %987 = vst [vmem:[%s932 + $0x108] sm:$0xe] %v766
    %988 = vst [vmem:[%s932 + $0x10c] sm:$0xf] %v769
    %989 = vst [vmem:[%s932 + $0x110] sm:$0x1] %v770
    %990 = vst [vmem:[%s932 + $0x114] sm:$0xe] %v771
    %991 = vst [vmem:[%s932 + $0x118] sm:$0xf] %v774
    %992 = vst [vmem:[%s932 + $0x11c] sm:$0x1] %v775
    %993 = vst [vmem:[%s932 + $0x120] sm:$0xe] %v776
    %994 = vst [vmem:[%s932 + $0x124] sm:$0xf] %v779
    %995 = vst [vmem:[%s932 + $0x128] sm:$0x1] %v780
    %996 = vst [vmem:[%s932 + $0x12c] sm:$0xe] %v781
    %997 = vst [vmem:[%s932 + $0x130] sm:$0xf] %v784
    %998 = vst [vmem:[%s932 + $0x134] sm:$0x1] %v785
    %999 = vst [vmem:[%s932 + $0x138] sm:$0xe] %v786
    %1000 = vst [vmem:[%s932 + $0x13c] sm:$0xf] %v789
    %1001 = vst [vmem:[%s932 + $0x140] sm:$0x1] %v790
    %1002 = vst [vmem:[%s932 + $0x144] sm:$0xe] %v791
    %1003 = vst [vmem:[%s932 + $0x148] sm:$0xf] %v794
    %1004 = vst [vmem:[%s932 + $0x14c] sm:$0x1] %v795
    %1005 = vst [vmem:[%s932 + $0x150] sm:$0xe] %v796
    %1006 = vst [vmem:[%s932 + $0x154] sm:$0xf] %v799
    %1007 = vst [vmem:[%s932 + $0x158] sm:$0x1] %v800
    %1008 = vst [vmem:[%s932 + $0x15c] sm:$0xe] %v801
    %1009 = vst [vmem:[%s932 + $0x160] sm:$0xf] %v804
    %1010 = vst [vmem:[%s932 + $0x164] sm:$0x1] %v805
    %1011 = vst [vmem:[%s932 + $0x168] sm:$0xe] %v806
    %1012 = vst [vmem:[%s932 + $0x16c] sm:$0xf] %v809
    %1013 = vst [vmem:[%s932 + $0x170] sm:$0x1] %v810
    %1014 = vst [vmem:[%s932 + $0x174] sm:$0xe] %v811
    %1015 = vst [vmem:[%s932 + $0x178] sm:$0xf] %v814
    %1016 = vst [vmem:[%s932 + $0x17c] sm:$0x1] %v815
    %1017 = vst [vmem:[%s932 + $0x180] sm:$0xe] %v816
    %1018 = vst [vmem:[%s932 + $0x184] sm:$0xf] %v819
    %1019 = vst [vmem:[%s932 + $0x188] sm:$0x1] %v820
    %1020 = vst [vmem:[%s932 + $0x18c] sm:$0xe] %v821
    %1021 = vst [vmem:[%s932 + $0x190] sm:$0xf] %v824
    %1022 = vst [vmem:[%s932 + $0x194] sm:$0x1] %v825
    %1023 = vst [vmem:[%s932 + $0x198] sm:$0xe] %v826
    %1024 = vst [vmem:[%s932 + $0x19c] sm:$0xf] %v829
    %1025 = vst [vmem:[%s932 + $0x1a0] sm:$0x1] %v830
    %1026 = vst [vmem:[%s932 + $0x1a4] sm:$0xe] %v831
    %1027 = vst [vmem:[%s932 + $0x1a8] sm:$0xf] %v834
    %1028 = vst [vmem:[%s932 + $0x1ac] sm:$0x1] %v835
    %v1029 = vld [vmem:[#allocation2] sm:$0xf]
    %v1030 = vld [vmem:[#allocation2 + $0x4] sm:$0xf]
    %v1031 = vld [vmem:[#allocation2 + $0xc] sm:$0xf]
    %v1032 = vld [vmem:[#allocation2 + $0x10] sm:$0xf]
    %v1033 = vld [vmem:[#allocation2 + $0x18] sm:$0xf]
    %v1034 = vld [vmem:[#allocation2 + $0x1c] sm:$0xf]
    %v1035 = vld [vmem:[#allocation2 + $0x24] sm:$0xf]
    %v1036 = vld [vmem:[#allocation2 + $0x28] sm:$0xf]
    %v1037 = vld [vmem:[#allocation2 + $0x30] sm:$0xf]
    %v1038 = vld [vmem:[#allocation2 + $0x34] sm:$0xf]
    %v1039 = vld [vmem:[#allocation2 + $0x3c] sm:$0xf]
    %v1040 = vld [vmem:[#allocation2 + $0x40] sm:$0xf]
    %v1041 = vld [vmem:[#allocation2 + $0x48] sm:$0xf]
    %v1042 = vld [vmem:[#allocation2 + $0x4c] sm:$0xf]
    %v1043 = vld [vmem:[#allocation2 + $0x54] sm:$0xf]
    %v1044 = vld [vmem:[#allocation2 + $0x58] sm:$0xf]
    %v1045 = vld [vmem:[#allocation2 + $0x60] sm:$0xf]
    %v1046 = vld [vmem:[#allocation2 + $0x64] sm:$0xf]
    %v1047 = vld [vmem:[#allocation2 + $0x6c] sm:$0xf]
    %v1048 = vld [vmem:[#allocation2 + $0x70] sm:$0xf]
    %v1049 = vld [vmem:[#allocation2 + $0x78] sm:$0xf]
    %v1050 = vld [vmem:[#allocation2 + $0x7c] sm:$0xf]
    %v1051 = vld [vmem:[#allocation2 + $0x84] sm:$0xf]
    %v1052 = vld [vmem:[#allocation2 + $0x88] sm:$0xf]
    %v1053 = vld [vmem:[#allocation2 + $0x90] sm:$0xf]
    %v1054 = vld [vmem:[#allocation2 + $0x94] sm:$0xf]
    %v1055 = vld [vmem:[#allocation2 + $0x9c] sm:$0xf]
    %v1056 = vld [vmem:[#allocation2 + $0xa0] sm:$0xf]
    %v1057 = vld [vmem:[#allocation2 + $0xa8] sm:$0xf]
    %v1058 = vld [vmem:[#allocation2 + $0xac] sm:$0xf]
    %v1059 = vld [vmem:[#allocation2 + $0xb4] sm:$0xf]
    %v1060 = vld [vmem:[#allocation2 + $0xb8] sm:$0xf]
    %v1061 = vld [vmem:[#allocation2 + $0xf0] sm:$0xf]
    %v1062 = vld [vmem:[#allocation2 + $0xf4] sm:$0xf]
    %v1063 = vld [vmem:[#allocation2 + $0xfc] sm:$0xf]
    %v1064 = vld [vmem:[#allocation2 + $0x100] sm:$0xf]
    %v1065 = vld [vmem:[#allocation2 + $0x108] sm:$0xf]
    %v1066 = vld [vmem:[#allocation2 + $0x10c] sm:$0xf]
    %v1067 = vld [vmem:[#allocation2 + $0x114] sm:$0xf]
    %v1068 = vld [vmem:[#allocation2 + $0x118] sm:$0xf]
    %v1069 = vld [vmem:[#allocation2 + $0x120] sm:$0xf]
    %v1070 = vld [vmem:[#allocation2 + $0x124] sm:$0xf]
    %v1071 = vld [vmem:[#allocation2 + $0x12c] sm:$0xf]
    %v1072 = vld [vmem:[#allocation2 + $0x130] sm:$0xf]
    %v1073 = vld [vmem:[#allocation2 + $0x138] sm:$0xf]
    %v1074 = vld [vmem:[#allocation2 + $0x13c] sm:$0xf]
    %v1075 = vld [vmem:[#allocation2 + $0x144] sm:$0xf]
    %v1076 = vld [vmem:[#allocation2 + $0x148] sm:$0xf]
    %v1077 = vld [vmem:[#allocation2 + $0x150] sm:$0xf]
    %v1078 = vld [vmem:[#allocation2 + $0x154] sm:$0xf]
    %v1079 = vld [vmem:[#allocation2 + $0x15c] sm:$0xf]
    %v1080 = vld [vmem:[#allocation2 + $0x160] sm:$0xf]
    %v1081 = vld [vmem:[#allocation2 + $0x168] sm:$0xf]
    %v1082 = vld [vmem:[#allocation2 + $0x16c] sm:$0xf]
    %v1083 = vld [vmem:[#allocation2 + $0x174] sm:$0xf]
    %v1084 = vld [vmem:[#allocation2 + $0x178] sm:$0xf]
    %v1085 = vld [vmem:[#allocation2 + $0x180] sm:$0xf]
    %v1086 = vld [vmem:[#allocation2 + $0x184] sm:$0xf]
    %v1087 = vld [vmem:[#allocation2 + $0x18c] sm:$0xf]
    %v1088 = vld [vmem:[#allocation2 + $0x190] sm:$0xf]
    %v1089 = vld [vmem:[#allocation2 + $0x198] sm:$0xf]
    %v1090 = vld [vmem:[#allocation2 + $0x19c] sm:$0xf]
    %v1091 = vld [vmem:[#allocation2 + $0x1a4] sm:$0xf]
    %v1092 = vld [vmem:[#allocation2 + $0x1a8] sm:$0xf]
    %v1093 = vld [vmem:[#allocation2] sm:$0xe]
    %v1094 = vld [vmem:[#allocation2 + $0x8] sm:$0x1]
    %v1095 = vld [vmem:[#allocation2 + $0xc] sm:$0xe]
    %v1096 = vld [vmem:[#allocation2 + $0x14] sm:$0x1]
    %v1097 = vld [vmem:[#allocation2 + $0x18] sm:$0xe]
    %v1098 = vld [vmem:[#allocation2 + $0x20] sm:$0x1]
    %v1099 = vld [vmem:[#allocation2 + $0x24] sm:$0xe]
    %v1100 = vld [vmem:[#allocation2 + $0x2c] sm:$0x1]
    %v1101 = vld [vmem:[#allocation2 + $0x30] sm:$0xe]
    %v1102 = vld [vmem:[#allocation2 + $0x38] sm:$0x1]
    %v1103 = vld [vmem:[#allocation2 + $0x3c] sm:$0xe]
    %v1104 = vld [vmem:[#allocation2 + $0x44] sm:$0x1]
    %v1105 = vld [vmem:[#allocation2 + $0x48] sm:$0xe]
    %v1106 = vld [vmem:[#allocation2 + $0x50] sm:$0x1]
    %v1107 = vld [vmem:[#allocation2 + $0x54] sm:$0xe]
    %v1108 = vld [vmem:[#allocation2 + $0x5c] sm:$0x1]
    %v1109 = vld [vmem:[#allocation2 + $0x60] sm:$0xe]
    %v1110 = vld [vmem:[#allocation2 + $0x68] sm:$0x1]
    %v1111 = vld [vmem:[#allocation2 + $0x6c] sm:$0xe]
    %v1112 = vld [vmem:[#allocation2 + $0x74] sm:$0x1]
    %v1113 = vld [vmem:[#allocation2 + $0x78] sm:$0xe]
    %v1114 = vld [vmem:[#allocation2 + $0x80] sm:$0x1]
    %v1115 = vld [vmem:[#allocation2 + $0x84] sm:$0xe]
    %v1116 = vld [vmem:[#allocation2 + $0x8c] sm:$0x1]
    %v1117 = vld [vmem:[#allocation2 + $0x90] sm:$0xe]
    %v1118 = vld [vmem:[#allocation2 + $0x98] sm:$0x1]
    %v1119 = vld [vmem:[#allocation2 + $0x9c] sm:$0xe]
    %v1120 = vld [vmem:[#allocation2 + $0xa4] sm:$0x1]
    %v1121 = vld [vmem:[#allocation2 + $0xa8] sm:$0xe]
    %v1122 = vld [vmem:[#allocation2 + $0xb0] sm:$0x1]
    %v1123 = vld [vmem:[#allocation2 + $0xb4] sm:$0xe]
    %v1124 = vld [vmem:[#allocation2 + $0xbc] sm:$0x1]
    %v1125 = vld [vmem:[#allocation2 + $0xf0] sm:$0xe]
    %v1126 = vld [vmem:[#allocation2 + $0xf8] sm:$0x1]
    %v1127 = vld [vmem:[#allocation2 + $0xfc] sm:$0xe]
    %v1128 = vld [vmem:[#allocation2 + $0x104] sm:$0x1]
    %v1129 = vld [vmem:[#allocation2 + $0x108] sm:$0xe]
    %v1130 = vld [vmem:[#allocation2 + $0x110] sm:$0x1]
    %v1131 = vld [vmem:[#allocation2 + $0x114] sm:$0xe]
    %v1132 = vld [vmem:[#allocation2 + $0x11c] sm:$0x1]
    %v1133 = vld [vmem:[#allocation2 + $0x120] sm:$0xe]
    %v1134 = vld [vmem:[#allocation2 + $0x128] sm:$0x1]
    %v1135 = vld [vmem:[#allocation2 + $0x12c] sm:$0xe]
    %v1136 = vld [vmem:[#allocation2 + $0x134] sm:$0x1]
    %v1137 = vld [vmem:[#allocation2 + $0x138] sm:$0xe]
    %v1138 = vld [vmem:[#allocation2 + $0x140] sm:$0x1]
    %v1139 = vld [vmem:[#allocation2 + $0x144] sm:$0xe]
    %v1140 = vld [vmem:[#allocation2 + $0x14c] sm:$0x1]
    %v1141 = vld [vmem:[#allocation2 + $0x150] sm:$0xe]
    %v1142 = vld [vmem:[#allocation2 + $0x158] sm:$0x1]
    %v1143 = vld [vmem:[#allocation2 + $0x15c] sm:$0xe]
    %v1144 = vld [vmem:[#allocation2 + $0x164] sm:$0x1]
    %v1145 = vld [vmem:[#allocation2 + $0x168] sm:$0xe]
    %v1146 = vld [vmem:[#allocation2 + $0x170] sm:$0x1]
    %v1147 = vld [vmem:[#allocation2 + $0x174] sm:$0xe]
    %v1148 = vld [vmem:[#allocation2 + $0x17c] sm:$0x1]
    %v1149 = vld [vmem:[#allocation2 + $0x180] sm:$0xe]
    %v1150 = vld [vmem:[#allocation2 + $0x188] sm:$0x1]
    %v1151 = vld [vmem:[#allocation2 + $0x18c] sm:$0xe]
    %v1152 = vld [vmem:[#allocation2 + $0x194] sm:$0x1]
    %v1153 = vld [vmem:[#allocation2 + $0x198] sm:$0xe]
    %v1154 = vld [vmem:[#allocation2 + $0x1a0] sm:$0x1]
    %v1155 = vld [vmem:[#allocation2 + $0x1a4] sm:$0xe]
    %v1156 = vld [vmem:[#allocation2 + $0x1ac] sm:$0x1]
    %vm1253 = vcmask 1042432
    %vm1254 = vcmask 1046532
    %vm1255 = vmor %vm1253, %vm1254
    %v1256 = vrot.slane %v1093, 5
    %v1257 = vrot.slane %v1256, 4
    %v1258 = vrot.slane %v1030, 5
    %v1259 = vsel %vm1255, %v1257, %v1258
    %v1260 = vrot.slane %v1258, 4
    %v1261 = vrot.slane %v1094, 5
    %v1262 = vsel %vm1255, %v1260, %v1261
    %v1263 = vrot.slane %v1095, 5
    %v1264 = vrot.slane %v1263, 4
    %v1265 = vrot.slane %v1032, 5
    %v1266 = vsel %vm1255, %v1264, %v1265
    %v1267 = vrot.slane %v1265, 4
    %v1268 = vrot.slane %v1096, 5
    %v1269 = vsel %vm1255, %v1267, %v1268
    %v1270 = vrot.slane %v1097, 5
    %v1271 = vrot.slane %v1270, 4
    %v1272 = vrot.slane %v1034, 5
    %v1273 = vsel %vm1255, %v1271, %v1272
    %v1274 = vrot.slane %v1272, 4
    %v1275 = vrot.slane %v1098, 5
    %v1276 = vsel %vm1255, %v1274, %v1275
    %v1277 = vrot.slane %v1099, 5
    %v1278 = vrot.slane %v1277, 4
    %v1279 = vrot.slane %v1036, 5
    %v1280 = vsel %vm1255, %v1278, %v1279
    %v1281 = vrot.slane %v1279, 4
    %v1282 = vrot.slane %v1100, 5
    %v1283 = vsel %vm1255, %v1281, %v1282
    %v1284 = vrot.slane %v1101, 5
    %v1285 = vrot.slane %v1284, 4
    %v1286 = vrot.slane %v1038, 5
    %v1287 = vsel %vm1255, %v1285, %v1286
    %v1288 = vrot.slane %v1286, 4
    %v1289 = vrot.slane %v1102, 5
    %v1290 = vsel %vm1255, %v1288, %v1289
    %v1291 = vrot.slane %v1103, 5
    %v1292 = vrot.slane %v1291, 4
    %v1293 = vrot.slane %v1040, 5
    %v1294 = vsel %vm1255, %v1292, %v1293
    %v1295 = vrot.slane %v1293, 4
    %v1296 = vrot.slane %v1104, 5
    %v1297 = vsel %vm1255, %v1295, %v1296
    %v1298 = vrot.slane %v1105, 5
    %v1299 = vrot.slane %v1298, 4
    %v1300 = vrot.slane %v1042, 5
    %v1301 = vsel %vm1255, %v1299, %v1300
    %v1302 = vrot.slane %v1300, 4
    %v1303 = vrot.slane %v1106, 5
    %v1304 = vsel %vm1255, %v1302, %v1303
    %v1305 = vrot.slane %v1107, 5
    %v1306 = vrot.slane %v1305, 4
    %v1307 = vrot.slane %v1044, 5
    %v1308 = vsel %vm1255, %v1306, %v1307
    %v1309 = vrot.slane %v1307, 4
    %v1310 = vrot.slane %v1108, 5
    %v1311 = vsel %vm1255, %v1309, %v1310
    %v1312 = vrot.slane %v1109, 5
    %v1313 = vrot.slane %v1312, 4
    %v1314 = vrot.slane %v1046, 5
    %v1315 = vsel %vm1255, %v1313, %v1314
    %v1316 = vrot.slane %v1314, 4
    %v1317 = vrot.slane %v1110, 5
    %v1318 = vsel %vm1255, %v1316, %v1317
    %v1319 = vrot.slane %v1111, 5
    %v1320 = vrot.slane %v1319, 4
    %v1321 = vrot.slane %v1048, 5
    %v1322 = vsel %vm1255, %v1320, %v1321
    %v1323 = vrot.slane %v1321, 4
    %v1324 = vrot.slane %v1112, 5
    %v1325 = vsel %vm1255, %v1323, %v1324
    %v1326 = vrot.slane %v1113, 5
    %v1327 = vrot.slane %v1326, 4
    %v1328 = vrot.slane %v1050, 5
    %v1329 = vsel %vm1255, %v1327, %v1328
    %v1330 = vrot.slane %v1328, 4
    %v1331 = vrot.slane %v1114, 5
    %v1332 = vsel %vm1255, %v1330, %v1331
    %v1333 = vrot.slane %v1115, 5
    %v1334 = vrot.slane %v1333, 4
    %v1335 = vrot.slane %v1052, 5
    %v1336 = vsel %vm1255, %v1334, %v1335
    %v1337 = vrot.slane %v1335, 4
    %v1338 = vrot.slane %v1116, 5
    %v1339 = vsel %vm1255, %v1337, %v1338
    %v1340 = vrot.slane %v1117, 5
    %v1341 = vrot.slane %v1340, 4
    %v1342 = vrot.slane %v1054, 5
    %v1343 = vsel %vm1255, %v1341, %v1342
    %v1344 = vrot.slane %v1342, 4
    %v1345 = vrot.slane %v1118, 5
    %v1346 = vsel %vm1255, %v1344, %v1345
    %v1347 = vrot.slane %v1119, 5
    %v1348 = vrot.slane %v1347, 4
    %v1349 = vrot.slane %v1056, 5
    %v1350 = vsel %vm1255, %v1348, %v1349
    %v1351 = vrot.slane %v1349, 4
    %v1352 = vrot.slane %v1120, 5
    %v1353 = vsel %vm1255, %v1351, %v1352
    %v1354 = vrot.slane %v1121, 5
    %v1355 = vrot.slane %v1354, 4
    %v1356 = vrot.slane %v1058, 5
    %v1357 = vsel %vm1255, %v1355, %v1356
    %v1358 = vrot.slane %v1356, 4
    %v1359 = vrot.slane %v1122, 5
    %v1360 = vsel %vm1255, %v1358, %v1359
    %v1361 = vrot.slane %v1123, 5
    %v1362 = vrot.slane %v1361, 4
    %v1363 = vrot.slane %v1060, 5
    %v1364 = vsel %vm1255, %v1362, %v1363
    %v1365 = vrot.slane %v1363, 4
    %v1366 = vrot.slane %v1124, 5
    %v1367 = vsel %vm1255, %v1365, %v1366
    %v1368 = vrot.slane %v1125, 5
    %v1369 = vrot.slane %v1368, 4
    %v1370 = vrot.slane %v1062, 5
    %v1371 = vsel %vm1255, %v1369, %v1370
    %v1372 = vrot.slane %v1370, 4
    %v1373 = vrot.slane %v1126, 5
    %v1374 = vsel %vm1255, %v1372, %v1373
    %v1375 = vrot.slane %v1127, 5
    %v1376 = vrot.slane %v1375, 4
    %v1377 = vrot.slane %v1064, 5
    %v1378 = vsel %vm1255, %v1376, %v1377
    %v1379 = vrot.slane %v1377, 4
    %v1380 = vrot.slane %v1128, 5
    %v1381 = vsel %vm1255, %v1379, %v1380
    %v1382 = vrot.slane %v1129, 5
    %v1383 = vrot.slane %v1382, 4
    %v1384 = vrot.slane %v1066, 5
    %v1385 = vsel %vm1255, %v1383, %v1384
    %v1386 = vrot.slane %v1384, 4
    %v1387 = vrot.slane %v1130, 5
    %v1388 = vsel %vm1255, %v1386, %v1387
    %v1389 = vrot.slane %v1131, 5
    %v1390 = vrot.slane %v1389, 4
    %v1391 = vrot.slane %v1068, 5
    %v1392 = vsel %vm1255, %v1390, %v1391
    %v1393 = vrot.slane %v1391, 4
    %v1394 = vrot.slane %v1132, 5
    %v1395 = vsel %vm1255, %v1393, %v1394
    %v1396 = vrot.slane %v1133, 5
    %v1397 = vrot.slane %v1396, 4
    %v1398 = vrot.slane %v1070, 5
    %v1399 = vsel %vm1255, %v1397, %v1398
    %v1400 = vrot.slane %v1398, 4
    %v1401 = vrot.slane %v1134, 5
    %v1402 = vsel %vm1255, %v1400, %v1401
    %v1403 = vrot.slane %v1135, 5
    %v1404 = vrot.slane %v1403, 4
    %v1405 = vrot.slane %v1072, 5
    %v1406 = vsel %vm1255, %v1404, %v1405
    %v1407 = vrot.slane %v1405, 4
    %v1408 = vrot.slane %v1136, 5
    %v1409 = vsel %vm1255, %v1407, %v1408
    %v1410 = vrot.slane %v1137, 5
    %v1411 = vrot.slane %v1410, 4
    %v1412 = vrot.slane %v1074, 5
    %v1413 = vsel %vm1255, %v1411, %v1412
    %v1414 = vrot.slane %v1412, 4
    %v1415 = vrot.slane %v1138, 5
    %v1416 = vsel %vm1255, %v1414, %v1415
    %v1417 = vrot.slane %v1139, 5
    %v1418 = vrot.slane %v1417, 4
    %v1419 = vrot.slane %v1076, 5
    %v1420 = vsel %vm1255, %v1418, %v1419
    %v1421 = vrot.slane %v1419, 4
    %v1422 = vrot.slane %v1140, 5
    %v1423 = vsel %vm1255, %v1421, %v1422
    %v1424 = vrot.slane %v1141, 5
    %v1425 = vrot.slane %v1424, 4
    %v1426 = vrot.slane %v1078, 5
    %v1427 = vsel %vm1255, %v1425, %v1426
    %v1428 = vrot.slane %v1426, 4
    %v1429 = vrot.slane %v1142, 5
    %v1430 = vsel %vm1255, %v1428, %v1429
    %v1431 = vrot.slane %v1143, 5
    %v1432 = vrot.slane %v1431, 4
    %v1433 = vrot.slane %v1080, 5
    %v1434 = vsel %vm1255, %v1432, %v1433
    %v1435 = vrot.slane %v1433, 4
    %v1436 = vrot.slane %v1144, 5
    %v1437 = vsel %vm1255, %v1435, %v1436
    %v1438 = vrot.slane %v1145, 5
    %v1439 = vrot.slane %v1438, 4
    %v1440 = vrot.slane %v1082, 5
    %v1441 = vsel %vm1255, %v1439, %v1440
    %v1442 = vrot.slane %v1440, 4
    %v1443 = vrot.slane %v1146, 5
    %v1444 = vsel %vm1255, %v1442, %v1443
    %v1445 = vrot.slane %v1147, 5
    %v1446 = vrot.slane %v1445, 4
    %v1447 = vrot.slane %v1084, 5
    %v1448 = vsel %vm1255, %v1446, %v1447
    %v1449 = vrot.slane %v1447, 4
    %v1450 = vrot.slane %v1148, 5
    %v1451 = vsel %vm1255, %v1449, %v1450
    %v1452 = vrot.slane %v1149, 5
    %v1453 = vrot.slane %v1452, 4
    %v1454 = vrot.slane %v1086, 5
    %v1455 = vsel %vm1255, %v1453, %v1454
    %v1456 = vrot.slane %v1454, 4
    %v1457 = vrot.slane %v1150, 5
    %v1458 = vsel %vm1255, %v1456, %v1457
    %v1459 = vrot.slane %v1151, 5
    %v1460 = vrot.slane %v1459, 4
    %v1461 = vrot.slane %v1088, 5
    %v1462 = vsel %vm1255, %v1460, %v1461
    %v1463 = vrot.slane %v1461, 4
    %v1464 = vrot.slane %v1152, 5
    %v1465 = vsel %vm1255, %v1463, %v1464
    %v1466 = vrot.slane %v1153, 5
    %v1467 = vrot.slane %v1466, 4
    %v1468 = vrot.slane %v1090, 5
    %v1469 = vsel %vm1255, %v1467, %v1468
    %v1470 = vrot.slane %v1468, 4
    %v1471 = vrot.slane %v1154, 5
    %v1472 = vsel %vm1255, %v1470, %v1471
    %v1473 = vrot.slane %v1155, 5
    %v1474 = vrot.slane %v1473, 4
    %v1475 = vrot.slane %v1092, 5
    %v1476 = vsel %vm1255, %v1474, %v1475
    %v1477 = vrot.slane %v1475, 4
    %v1478 = vrot.slane %v1156, 5
    %v1479 = vsel %vm1255, %v1477, %v1478
    %v1480 = vld [vmem:[#allocation2] sm:$0xc]
    %v1481 = vld [vmem:[#allocation2 + $0x8] sm:$0x3]
    %v1482 = vld [vmem:[#allocation2 + $0xc] sm:$0xc]
    %v1483 = vld [vmem:[#allocation2 + $0x14] sm:$0x3]
    %v1484 = vld [vmem:[#allocation2 + $0x18] sm:$0xc]
    %v1485 = vld [vmem:[#allocation2 + $0x20] sm:$0x3]
    %v1486 = vld [vmem:[#allocation2 + $0x24] sm:$0xc]
    %v1487 = vld [vmem:[#allocation2 + $0x2c] sm:$0x3]
    %v1488 = vld [vmem:[#allocation2 + $0x30] sm:$0xc]
    %v1489 = vld [vmem:[#allocation2 + $0x38] sm:$0x3]
    %v1490 = vld [vmem:[#allocation2 + $0x3c] sm:$0xc]
    %v1491 = vld [vmem:[#allocation2 + $0x44] sm:$0x3]
    %v1492 = vld [vmem:[#allocation2 + $0x48] sm:$0xc]
    %v1493 = vld [vmem:[#allocation2 + $0x50] sm:$0x3]
    %v1494 = vld [vmem:[#allocation2 + $0x54] sm:$0xc]
    %v1495 = vld [vmem:[#allocation2 + $0x5c] sm:$0x3]
    %v1496 = vld [vmem:[#allocation2 + $0x60] sm:$0xc]
    %v1497 = vld [vmem:[#allocation2 + $0x68] sm:$0x3]
    %v1498 = vld [vmem:[#allocation2 + $0x6c] sm:$0xc]
    %v1499 = vld [vmem:[#allocation2 + $0x74] sm:$0x3]
    %v1500 = vld [vmem:[#allocation2 + $0x78] sm:$0xc]
    %v1501 = vld [vmem:[#allocation2 + $0x80] sm:$0x3]
    %v1502 = vld [vmem:[#allocation2 + $0x84] sm:$0xc]
    %v1503 = vld [vmem:[#allocation2 + $0x8c] sm:$0x3]
    %v1504 = vld [vmem:[#allocation2 + $0x90] sm:$0xc]
    %v1505 = vld [vmem:[#allocation2 + $0x98] sm:$0x3]
    %v1506 = vld [vmem:[#allocation2 + $0x9c] sm:$0xc]
    %v1507 = vld [vmem:[#allocation2 + $0xa4] sm:$0x3]
    %v1508 = vld [vmem:[#allocation2 + $0xa8] sm:$0xc]
    %v1509 = vld [vmem:[#allocation2 + $0xb0] sm:$0x3]
    %v1510 = vld [vmem:[#allocation2 + $0xb4] sm:$0xc]
    %v1511 = vld [vmem:[#allocation2 + $0xbc] sm:$0x3]
    %v1512 = vld [vmem:[#allocation2 + $0xf0] sm:$0xc]
    %v1513 = vld [vmem:[#allocation2 + $0xf8] sm:$0x3]
    %v1514 = vld [vmem:[#allocation2 + $0xfc] sm:$0xc]
    %v1515 = vld [vmem:[#allocation2 + $0x104] sm:$0x3]
    %v1516 = vld [vmem:[#allocation2 + $0x108] sm:$0xc]
    %v1517 = vld [vmem:[#allocation2 + $0x110] sm:$0x3]
    %v1518 = vld [vmem:[#allocation2 + $0x114] sm:$0xc]
    %v1519 = vld [vmem:[#allocation2 + $0x11c] sm:$0x3]
    %v1520 = vld [vmem:[#allocation2 + $0x120] sm:$0xc]
    %v1521 = vld [vmem:[#allocation2 + $0x128] sm:$0x3]
    %v1522 = vld [vmem:[#allocation2 + $0x12c] sm:$0xc]
    %v1523 = vld [vmem:[#allocation2 + $0x134] sm:$0x3]
    %v1524 = vld [vmem:[#allocation2 + $0x138] sm:$0xc]
    %v1525 = vld [vmem:[#allocation2 + $0x140] sm:$0x3]
    %v1526 = vld [vmem:[#allocation2 + $0x144] sm:$0xc]
    %v1527 = vld [vmem:[#allocation2 + $0x14c] sm:$0x3]
    %v1528 = vld [vmem:[#allocation2 + $0x150] sm:$0xc]
    %v1529 = vld [vmem:[#allocation2 + $0x158] sm:$0x3]
    %v1530 = vld [vmem:[#allocation2 + $0x15c] sm:$0xc]
    %v1531 = vld [vmem:[#allocation2 + $0x164] sm:$0x3]
    %v1532 = vld [vmem:[#allocation2 + $0x168] sm:$0xc]
    %v1533 = vld [vmem:[#allocation2 + $0x170] sm:$0x3]
    %v1534 = vld [vmem:[#allocation2 + $0x174] sm:$0xc]
    %v1535 = vld [vmem:[#allocation2 + $0x17c] sm:$0x3]
    %v1536 = vld [vmem:[#allocation2 + $0x180] sm:$0xc]
    %v1537 = vld [vmem:[#allocation2 + $0x188] sm:$0x3]
    %v1538 = vld [vmem:[#allocation2 + $0x18c] sm:$0xc]
    %v1539 = vld [vmem:[#allocation2 + $0x194] sm:$0x3]
    %v1540 = vld [vmem:[#allocation2 + $0x198] sm:$0xc]
    %v1541 = vld [vmem:[#allocation2 + $0x1a0] sm:$0x3]
    %v1542 = vld [vmem:[#allocation2 + $0x1a4] sm:$0xc]
    %v1543 = vld [vmem:[#allocation2 + $0x1ac] sm:$0x3]
    %vm1608 = vcmask 1041408
    %vm1609 = vcmask 1045508
    %vm1610 = vmor %vm1608, %vm1609
    %v1611 = vrot.slane %v1480, 6
    %v1612 = vrot.slane %v1611, 4
    %v1613 = vrot.slane %v1030, 6
    %v1614 = vsel %vm1610, %v1612, %v1613
    %v1615 = vrot.slane %v1613, 4
    %v1616 = vrot.slane %v1481, 6
    %v1617 = vsel %vm1610, %v1615, %v1616
    %v1618 = vrot.slane %v1482, 6
    %v1619 = vrot.slane %v1618, 4
    %v1620 = vrot.slane %v1032, 6
    %v1621 = vsel %vm1610, %v1619, %v1620
    %v1622 = vrot.slane %v1620, 4
    %v1623 = vrot.slane %v1483, 6
    %v1624 = vsel %vm1610, %v1622, %v1623
    %v1625 = vrot.slane %v1484, 6
    %v1626 = vrot.slane %v1625, 4
    %v1627 = vrot.slane %v1034, 6
    %v1628 = vsel %vm1610, %v1626, %v1627
    %v1629 = vrot.slane %v1627, 4
    %v1630 = vrot.slane %v1485, 6
    %v1631 = vsel %vm1610, %v1629, %v1630
    %v1632 = vrot.slane %v1486, 6
    %v1633 = vrot.slane %v1632, 4
    %v1634 = vrot.slane %v1036, 6
    %v1635 = vsel %vm1610, %v1633, %v1634
    %v1636 = vrot.slane %v1634, 4
    %v1637 = vrot.slane %v1487, 6
    %v1638 = vsel %vm1610, %v1636, %v1637
    %v1639 = vrot.slane %v1488, 6
    %v1640 = vrot.slane %v1639, 4
    %v1641 = vrot.slane %v1038, 6
    %v1642 = vsel %vm1610, %v1640, %v1641
    %v1643 = vrot.slane %v1641, 4
    %v1644 = vrot.slane %v1489, 6
    %v1645 = vsel %vm1610, %v1643, %v1644
    %v1646 = vrot.slane %v1490, 6
    %v1647 = vrot.slane %v1646, 4
    %v1648 = vrot.slane %v1040, 6
    %v1649 = vsel %vm1610, %v1647, %v1648
    %v1650 = vrot.slane %v1648, 4
    %v1651 = vrot.slane %v1491, 6
    %v1652 = vsel %vm1610, %v1650, %v1651
    %v1653 = vrot.slane %v1492, 6
    %v1654 = vrot.slane %v1653, 4
    %v1655 = vrot.slane %v1042, 6
    %v1656 = vsel %vm1610, %v1654, %v1655
    %v1657 = vrot.slane %v1655, 4
    %v1658 = vrot.slane %v1493, 6
    %v1659 = vsel %vm1610, %v1657, %v1658
    %v1660 = vrot.slane %v1494, 6
    %v1661 = vrot.slane %v1660, 4
    %v1662 = vrot.slane %v1044, 6
    %v1663 = vsel %vm1610, %v1661, %v1662
    %v1664 = vrot.slane %v1662, 4
    %v1665 = vrot.slane %v1495, 6
    %v1666 = vsel %vm1610, %v1664, %v1665
    %v1667 = vrot.slane %v1496, 6
    %v1668 = vrot.slane %v1667, 4
    %v1669 = vrot.slane %v1046, 6
    %v1670 = vsel %vm1610, %v1668, %v1669
    %v1671 = vrot.slane %v1669, 4
    %v1672 = vrot.slane %v1497, 6
    %v1673 = vsel %vm1610, %v1671, %v1672
    %v1674 = vrot.slane %v1498, 6
    %v1675 = vrot.slane %v1674, 4
    %v1676 = vrot.slane %v1048, 6
    %v1677 = vsel %vm1610, %v1675, %v1676
    %v1678 = vrot.slane %v1676, 4
    %v1679 = vrot.slane %v1499, 6
    %v1680 = vsel %vm1610, %v1678, %v1679
    %v1681 = vrot.slane %v1500, 6
    %v1682 = vrot.slane %v1681, 4
    %v1683 = vrot.slane %v1050, 6
    %v1684 = vsel %vm1610, %v1682, %v1683
    %v1685 = vrot.slane %v1683, 4
    %v1686 = vrot.slane %v1501, 6
    %v1687 = vsel %vm1610, %v1685, %v1686
    %v1688 = vrot.slane %v1502, 6
    %v1689 = vrot.slane %v1688, 4
    %v1690 = vrot.slane %v1052, 6
    %v1691 = vsel %vm1610, %v1689, %v1690
    %v1692 = vrot.slane %v1690, 4
    %v1693 = vrot.slane %v1503, 6
    %v1694 = vsel %vm1610, %v1692, %v1693
    %v1695 = vrot.slane %v1504, 6
    %v1696 = vrot.slane %v1695, 4
    %v1697 = vrot.slane %v1054, 6
    %v1698 = vsel %vm1610, %v1696, %v1697
    %v1699 = vrot.slane %v1697, 4
    %v1700 = vrot.slane %v1505, 6
    %v1701 = vsel %vm1610, %v1699, %v1700
    %v1702 = vrot.slane %v1506, 6
    %v1703 = vrot.slane %v1702, 4
    %v1704 = vrot.slane %v1056, 6
    %v1705 = vsel %vm1610, %v1703, %v1704
    %v1706 = vrot.slane %v1704, 4
    %v1707 = vrot.slane %v1507, 6
    %v1708 = vsel %vm1610, %v1706, %v1707
    %v1709 = vrot.slane %v1508, 6
    %v1710 = vrot.slane %v1709, 4
    %v1711 = vrot.slane %v1058, 6
    %v1712 = vsel %vm1610, %v1710, %v1711
    %v1713 = vrot.slane %v1711, 4
    %v1714 = vrot.slane %v1509, 6
    %v1715 = vsel %vm1610, %v1713, %v1714
    %v1716 = vrot.slane %v1510, 6
    %v1717 = vrot.slane %v1716, 4
    %v1718 = vrot.slane %v1060, 6
    %v1719 = vsel %vm1610, %v1717, %v1718
    %v1720 = vrot.slane %v1718, 4
    %v1721 = vrot.slane %v1511, 6
    %v1722 = vsel %vm1610, %v1720, %v1721
    %v1723 = vrot.slane %v1512, 6
    %v1724 = vrot.slane %v1723, 4
    %v1725 = vrot.slane %v1062, 6
    %v1726 = vsel %vm1610, %v1724, %v1725
    %v1727 = vrot.slane %v1725, 4
    %v1728 = vrot.slane %v1513, 6
    %v1729 = vsel %vm1610, %v1727, %v1728
    %v1730 = vrot.slane %v1514, 6
    %v1731 = vrot.slane %v1730, 4
    %v1732 = vrot.slane %v1064, 6
    %v1733 = vsel %vm1610, %v1731, %v1732
    %v1734 = vrot.slane %v1732, 4
    %v1735 = vrot.slane %v1515, 6
    %v1736 = vsel %vm1610, %v1734, %v1735
    %v1737 = vrot.slane %v1516, 6
    %v1738 = vrot.slane %v1737, 4
    %v1739 = vrot.slane %v1066, 6
    %v1740 = vsel %vm1610, %v1738, %v1739
    %v1741 = vrot.slane %v1739, 4
    %v1742 = vrot.slane %v1517, 6
    %v1743 = vsel %vm1610, %v1741, %v1742
    %v1744 = vrot.slane %v1518, 6
    %v1745 = vrot.slane %v1744, 4
    %v1746 = vrot.slane %v1068, 6
    %v1747 = vsel %vm1610, %v1745, %v1746
    %v1748 = vrot.slane %v1746, 4
    %v1749 = vrot.slane %v1519, 6
    %v1750 = vsel %vm1610, %v1748, %v1749
    %v1751 = vrot.slane %v1520, 6
    %v1752 = vrot.slane %v1751, 4
    %v1753 = vrot.slane %v1070, 6
    %v1754 = vsel %vm1610, %v1752, %v1753
    %v1755 = vrot.slane %v1753, 4
    %v1756 = vrot.slane %v1521, 6
    %v1757 = vsel %vm1610, %v1755, %v1756
    %v1758 = vrot.slane %v1522, 6
    %v1759 = vrot.slane %v1758, 4
    %v1760 = vrot.slane %v1072, 6
    %v1761 = vsel %vm1610, %v1759, %v1760
    %v1762 = vrot.slane %v1760, 4
    %v1763 = vrot.slane %v1523, 6
    %v1764 = vsel %vm1610, %v1762, %v1763
    %v1765 = vrot.slane %v1524, 6
    %v1766 = vrot.slane %v1765, 4
    %v1767 = vrot.slane %v1074, 6
    %v1768 = vsel %vm1610, %v1766, %v1767
    %v1769 = vrot.slane %v1767, 4
    %v1770 = vrot.slane %v1525, 6
    %v1771 = vsel %vm1610, %v1769, %v1770
    %v1772 = vrot.slane %v1526, 6
    %v1773 = vrot.slane %v1772, 4
    %v1774 = vrot.slane %v1076, 6
    %v1775 = vsel %vm1610, %v1773, %v1774
    %v1776 = vrot.slane %v1774, 4
    %v1777 = vrot.slane %v1527, 6
    %v1778 = vsel %vm1610, %v1776, %v1777
    %v1779 = vrot.slane %v1528, 6
    %v1780 = vrot.slane %v1779, 4
    %v1781 = vrot.slane %v1078, 6
    %v1782 = vsel %vm1610, %v1780, %v1781
    %v1783 = vrot.slane %v1781, 4
    %v1784 = vrot.slane %v1529, 6
    %v1785 = vsel %vm1610, %v1783, %v1784
    %v1786 = vrot.slane %v1530, 6
    %v1787 = vrot.slane %v1786, 4
    %v1788 = vrot.slane %v1080, 6
    %v1789 = vsel %vm1610, %v1787, %v1788
    %v1790 = vrot.slane %v1788, 4
    %v1791 = vrot.slane %v1531, 6
    %v1792 = vsel %vm1610, %v1790, %v1791
    %v1793 = vrot.slane %v1532, 6
    %v1794 = vrot.slane %v1793, 4
    %v1795 = vrot.slane %v1082, 6
    %v1796 = vsel %vm1610, %v1794, %v1795
    %v1797 = vrot.slane %v1795, 4
    %v1798 = vrot.slane %v1533, 6
    %v1799 = vsel %vm1610, %v1797, %v1798
    %v1800 = vrot.slane %v1534, 6
    %v1801 = vrot.slane %v1800, 4
    %v1802 = vrot.slane %v1084, 6
    %v1803 = vsel %vm1610, %v1801, %v1802
    %v1804 = vrot.slane %v1802, 4
    %v1805 = vrot.slane %v1535, 6
    %v1806 = vsel %vm1610, %v1804, %v1805
    %v1807 = vrot.slane %v1536, 6
    %v1808 = vrot.slane %v1807, 4
    %v1809 = vrot.slane %v1086, 6
    %v1810 = vsel %vm1610, %v1808, %v1809
    %v1811 = vrot.slane %v1809, 4
    %v1812 = vrot.slane %v1537, 6
    %v1813 = vsel %vm1610, %v1811, %v1812
    %v1814 = vrot.slane %v1538, 6
    %v1815 = vrot.slane %v1814, 4
    %v1816 = vrot.slane %v1088, 6
    %v1817 = vsel %vm1610, %v1815, %v1816
    %v1818 = vrot.slane %v1816, 4
    %v1819 = vrot.slane %v1539, 6
    %v1820 = vsel %vm1610, %v1818, %v1819
    %v1821 = vrot.slane %v1540, 6
    %v1822 = vrot.slane %v1821, 4
    %v1823 = vrot.slane %v1090, 6
    %v1824 = vsel %vm1610, %v1822, %v1823
    %v1825 = vrot.slane %v1823, 4
    %v1826 = vrot.slane %v1541, 6
    %v1827 = vsel %vm1610, %v1825, %v1826
    %v1828 = vrot.slane %v1542, 6
    %v1829 = vrot.slane %v1828, 4
    %v1830 = vrot.slane %v1092, 6
    %v1831 = vsel %vm1610, %v1829, %v1830
    %v1832 = vrot.slane %v1830, 4
    %v1833 = vrot.slane %v1543, 6
    %v1834 = vsel %vm1610, %v1832, %v1833
    %v1867 = vunpack.c.l.b16 %v1029
    %v1868 = vunpack.c.l.b16 %v1030
    %v1869 = vunpack.c.l.b16 %v1031
    %v1870 = vunpack.c.l.b16 %v1032
    %v1871 = vunpack.c.l.b16 %v1033
    %v1872 = vunpack.c.l.b16 %v1034
    %v1873 = vunpack.c.l.b16 %v1035
    %v1874 = vunpack.c.l.b16 %v1036
    %v1875 = vunpack.c.l.b16 %v1037
    %v1876 = vunpack.c.l.b16 %v1038
    %v1877 = vunpack.c.l.b16 %v1039
    %v1878 = vunpack.c.l.b16 %v1040
    %v1879 = vunpack.c.l.b16 %v1041
    %v1880 = vunpack.c.l.b16 %v1042
    %v1881 = vunpack.c.l.b16 %v1043
    %v1882 = vunpack.c.l.b16 %v1044
    %v1883 = vunpack.c.l.b16 %v1045
    %v1884 = vunpack.c.l.b16 %v1046
    %v1885 = vunpack.c.l.b16 %v1047
    %v1886 = vunpack.c.l.b16 %v1048
    %v1887 = vunpack.c.l.b16 %v1049
    %v1888 = vunpack.c.l.b16 %v1050
    %v1889 = vunpack.c.l.b16 %v1051
    %v1890 = vunpack.c.l.b16 %v1052
    %v1891 = vunpack.c.l.b16 %v1053
    %v1892 = vunpack.c.l.b16 %v1054
    %v1893 = vunpack.c.l.b16 %v1055
    %v1894 = vunpack.c.l.b16 %v1056
    %v1895 = vunpack.c.l.b16 %v1057
    %v1896 = vunpack.c.l.b16 %v1058
    %v1897 = vunpack.c.l.b16 %v1059
    %v1898 = vunpack.c.l.b16 %v1060
    %v1899 = vunpack.c.l.b16 %v1061
    %v1900 = vunpack.c.l.b16 %v1062
    %v1901 = vunpack.c.l.b16 %v1063
    %v1902 = vunpack.c.l.b16 %v1064
    %v1903 = vunpack.c.l.b16 %v1065
    %v1904 = vunpack.c.l.b16 %v1066
    %v1905 = vunpack.c.l.b16 %v1067
    %v1906 = vunpack.c.l.b16 %v1068
    %v1907 = vunpack.c.l.b16 %v1069
    %v1908 = vunpack.c.l.b16 %v1070
    %v1909 = vunpack.c.l.b16 %v1071
    %v1910 = vunpack.c.l.b16 %v1072
    %v1911 = vunpack.c.l.b16 %v1073
    %v1912 = vunpack.c.l.b16 %v1074
    %v1913 = vunpack.c.l.b16 %v1075
    %v1914 = vunpack.c.l.b16 %v1076
    %v1915 = vunpack.c.l.b16 %v1077
    %v1916 = vunpack.c.l.b16 %v1078
    %v1917 = vunpack.c.l.b16 %v1079
    %v1918 = vunpack.c.l.b16 %v1080
    %v1919 = vunpack.c.l.b16 %v1081
    %v1920 = vunpack.c.l.b16 %v1082
    %v1921 = vunpack.c.l.b16 %v1083
    %v1922 = vunpack.c.l.b16 %v1084
    %v1923 = vunpack.c.l.b16 %v1085
    %v1924 = vunpack.c.l.b16 %v1086
    %v1925 = vunpack.c.l.b16 %v1087
    %v1926 = vunpack.c.l.b16 %v1088
    %v1927 = vunpack.c.l.b16 %v1089
    %v1928 = vunpack.c.l.b16 %v1090
    %v1929 = vunpack.c.l.b16 %v1091
    %v1930 = vunpack.c.l.b16 %v1092
    %v1931 = vpack.c.b16 %v1868, %v1867
    %v1932 = vpack.c.b16 %v1870, %v1869
    %v1933 = vpack.c.b16 %v1872, %v1871
    %v1934 = vpack.c.b16 %v1874, %v1873
    %v1935 = vpack.c.b16 %v1876, %v1875
    %v1936 = vpack.c.b16 %v1878, %v1877
    %v1937 = vpack.c.b16 %v1880, %v1879
    %v1938 = vpack.c.b16 %v1882, %v1881
    %v1939 = vpack.c.b16 %v1884, %v1883
    %v1940 = vpack.c.b16 %v1886, %v1885
    %v1941 = vpack.c.b16 %v1888, %v1887
    %v1942 = vpack.c.b16 %v1890, %v1889
    %v1943 = vpack.c.b16 %v1892, %v1891
    %v1944 = vpack.c.b16 %v1894, %v1893
    %v1945 = vpack.c.b16 %v1896, %v1895
    %v1946 = vpack.c.b16 %v1898, %v1897
    %v1947 = vpack.c.b16 %v1900, %v1899
    %v1948 = vpack.c.b16 %v1902, %v1901
    %v1949 = vpack.c.b16 %v1904, %v1903
    %v1950 = vpack.c.b16 %v1906, %v1905
    %v1951 = vpack.c.b16 %v1908, %v1907
    %v1952 = vpack.c.b16 %v1910, %v1909
    %v1953 = vpack.c.b16 %v1912, %v1911
    %v1954 = vpack.c.b16 %v1914, %v1913
    %v1955 = vpack.c.b16 %v1916, %v1915
    %v1956 = vpack.c.b16 %v1918, %v1917
    %v1957 = vpack.c.b16 %v1920, %v1919
    %v1958 = vpack.c.b16 %v1922, %v1921
    %v1959 = vpack.c.b16 %v1924, %v1923
    %v1960 = vpack.c.b16 %v1926, %v1925
    %v1961 = vpack.c.b16 %v1928, %v1927
    %v1962 = vpack.c.b16 %v1930, %v1929
    %v1995 = vunpack.c.l.b16 %v1259
    %v1996 = vunpack.c.l.b16 %v1262
    %v1997 = vunpack.c.l.b16 %v1266
    %v1998 = vunpack.c.l.b16 %v1269
    %v1999 = vunpack.c.l.b16 %v1273
    %v2000 = vunpack.c.l.b16 %v1276
    %v2001 = vunpack.c.l.b16 %v1280
    %v2002 = vunpack.c.l.b16 %v1283
    %v2003 = vunpack.c.l.b16 %v1287
    %v2004 = vunpack.c.l.b16 %v1290
    %v2005 = vunpack.c.l.b16 %v1294
    %v2006 = vunpack.c.l.b16 %v1297
    %v2007 = vunpack.c.l.b16 %v1301
    %v2008 = vunpack.c.l.b16 %v1304
    %v2009 = vunpack.c.l.b16 %v1308
    %v2010 = vunpack.c.l.b16 %v1311
    %v2011 = vunpack.c.l.b16 %v1315
    %v2012 = vunpack.c.l.b16 %v1318
    %v2013 = vunpack.c.l.b16 %v1322
    %v2014 = vunpack.c.l.b16 %v1325
    %v2015 = vunpack.c.l.b16 %v1329
    %v2016 = vunpack.c.l.b16 %v1332
    %v2017 = vunpack.c.l.b16 %v1336
    %v2018 = vunpack.c.l.b16 %v1339
    %v2019 = vunpack.c.l.b16 %v1343
    %v2020 = vunpack.c.l.b16 %v1346
    %v2021 = vunpack.c.l.b16 %v1350
    %v2022 = vunpack.c.l.b16 %v1353
    %v2023 = vunpack.c.l.b16 %v1357
    %v2024 = vunpack.c.l.b16 %v1360
    %v2025 = vunpack.c.l.b16 %v1364
    %v2026 = vunpack.c.l.b16 %v1367
    %v2027 = vunpack.c.l.b16 %v1371
    %v2028 = vunpack.c.l.b16 %v1374
    %v2029 = vunpack.c.l.b16 %v1378
    %v2030 = vunpack.c.l.b16 %v1381
    %v2031 = vunpack.c.l.b16 %v1385
    %v2032 = vunpack.c.l.b16 %v1388
    %v2033 = vunpack.c.l.b16 %v1392
    %v2034 = vunpack.c.l.b16 %v1395
    %v2035 = vunpack.c.l.b16 %v1399
    %v2036 = vunpack.c.l.b16 %v1402
    %v2037 = vunpack.c.l.b16 %v1406
    %v2038 = vunpack.c.l.b16 %v1409
    %v2039 = vunpack.c.l.b16 %v1413
    %v2040 = vunpack.c.l.b16 %v1416
    %v2041 = vunpack.c.l.b16 %v1420
    %v2042 = vunpack.c.l.b16 %v1423
    %v2043 = vunpack.c.l.b16 %v1427
    %v2044 = vunpack.c.l.b16 %v1430
    %v2045 = vunpack.c.l.b16 %v1434
    %v2046 = vunpack.c.l.b16 %v1437
    %v2047 = vunpack.c.l.b16 %v1441
    %v2048 = vunpack.c.l.b16 %v1444
    %v2049 = vunpack.c.l.b16 %v1448
    %v2050 = vunpack.c.l.b16 %v1451
    %v2051 = vunpack.c.l.b16 %v1455
    %v2052 = vunpack.c.l.b16 %v1458
    %v2053 = vunpack.c.l.b16 %v1462
    %v2054 = vunpack.c.l.b16 %v1465
    %v2055 = vunpack.c.l.b16 %v1469
    %v2056 = vunpack.c.l.b16 %v1472
    %v2057 = vunpack.c.l.b16 %v1476
    %v2058 = vunpack.c.l.b16 %v1479
    %v2059 = vpack.c.b16 %v1996, %v1995
    %v2060 = vpack.c.b16 %v1998, %v1997
    %v2061 = vpack.c.b16 %v2000, %v1999
    %v2062 = vpack.c.b16 %v2002, %v2001
    %v2063 = vpack.c.b16 %v2004, %v2003
    %v2064 = vpack.c.b16 %v2006, %v2005
    %v2065 = vpack.c.b16 %v2008, %v2007
    %v2066 = vpack.c.b16 %v2010, %v2009
    %v2067 = vpack.c.b16 %v2012, %v2011
    %v2068 = vpack.c.b16 %v2014, %v2013
    %v2069 = vpack.c.b16 %v2016, %v2015
    %v2070 = vpack.c.b16 %v2018, %v2017
    %v2071 = vpack.c.b16 %v2020, %v2019
    %v2072 = vpack.c.b16 %v2022, %v2021
    %v2073 = vpack.c.b16 %v2024, %v2023
    %v2074 = vpack.c.b16 %v2026, %v2025
    %v2075 = vpack.c.b16 %v2028, %v2027
    %v2076 = vpack.c.b16 %v2030, %v2029
    %v2077 = vpack.c.b16 %v2032, %v2031
    %v2078 = vpack.c.b16 %v2034, %v2033
    %v2079 = vpack.c.b16 %v2036, %v2035
    %v2080 = vpack.c.b16 %v2038, %v2037
    %v2081 = vpack.c.b16 %v2040, %v2039
    %v2082 = vpack.c.b16 %v2042, %v2041
    %v2083 = vpack.c.b16 %v2044, %v2043
    %v2084 = vpack.c.b16 %v2046, %v2045
    %v2085 = vpack.c.b16 %v2048, %v2047
    %v2086 = vpack.c.b16 %v2050, %v2049
    %v2087 = vpack.c.b16 %v2052, %v2051
    %v2088 = vpack.c.b16 %v2054, %v2053
    %v2089 = vpack.c.b16 %v2056, %v2055
    %v2090 = vpack.c.b16 %v2058, %v2057
    %v2123 = vunpack.c.l.b16 %v1614
    %v2124 = vunpack.c.l.b16 %v1617
    %v2125 = vunpack.c.l.b16 %v1621
    %v2126 = vunpack.c.l.b16 %v1624
    %v2127 = vunpack.c.l.b16 %v1628
    %v2128 = vunpack.c.l.b16 %v1631
    %v2129 = vunpack.c.l.b16 %v1635
    %v2130 = vunpack.c.l.b16 %v1638
    %v2131 = vunpack.c.l.b16 %v1642
    %v2132 = vunpack.c.l.b16 %v1645
    %v2133 = vunpack.c.l.b16 %v1649
    %v2134 = vunpack.c.l.b16 %v1652
    %v2135 = vunpack.c.l.b16 %v1656
    %v2136 = vunpack.c.l.b16 %v1659
    %v2137 = vunpack.c.l.b16 %v1663
    %v2138 = vunpack.c.l.b16 %v1666
    %v2139 = vunpack.c.l.b16 %v1670
    %v2140 = vunpack.c.l.b16 %v1673
    %v2141 = vunpack.c.l.b16 %v1677
    %v2142 = vunpack.c.l.b16 %v1680
    %v2143 = vunpack.c.l.b16 %v1684
    %v2144 = vunpack.c.l.b16 %v1687
    %v2145 = vunpack.c.l.b16 %v1691
    %v2146 = vunpack.c.l.b16 %v1694
    %v2147 = vunpack.c.l.b16 %v1698
    %v2148 = vunpack.c.l.b16 %v1701
    %v2149 = vunpack.c.l.b16 %v1705
    %v2150 = vunpack.c.l.b16 %v1708
    %v2151 = vunpack.c.l.b16 %v1712
    %v2152 = vunpack.c.l.b16 %v1715
    %v2153 = vunpack.c.l.b16 %v1719
    %v2154 = vunpack.c.l.b16 %v1722
    %v2155 = vunpack.c.l.b16 %v1726
    %v2156 = vunpack.c.l.b16 %v1729
    %v2157 = vunpack.c.l.b16 %v1733
    %v2158 = vunpack.c.l.b16 %v1736
    %v2159 = vunpack.c.l.b16 %v1740
    %v2160 = vunpack.c.l.b16 %v1743
    %v2161 = vunpack.c.l.b16 %v1747
    %v2162 = vunpack.c.l.b16 %v1750
    %v2163 = vunpack.c.l.b16 %v1754
    %v2164 = vunpack.c.l.b16 %v1757
    %v2165 = vunpack.c.l.b16 %v1761
    %v2166 = vunpack.c.l.b16 %v1764
    %v2167 = vunpack.c.l.b16 %v1768
    %v2168 = vunpack.c.l.b16 %v1771
    %v2169 = vunpack.c.l.b16 %v1775
    %v2170 = vunpack.c.l.b16 %v1778
    %v2171 = vunpack.c.l.b16 %v1782
    %v2172 = vunpack.c.l.b16 %v1785
    %v2173 = vunpack.c.l.b16 %v1789
    %v2174 = vunpack.c.l.b16 %v1792
    %v2175 = vunpack.c.l.b16 %v1796
    %v2176 = vunpack.c.l.b16 %v1799
    %v2177 = vunpack.c.l.b16 %v1803
    %v2178 = vunpack.c.l.b16 %v1806
    %v2179 = vunpack.c.l.b16 %v1810
    %v2180 = vunpack.c.l.b16 %v1813
    %v2181 = vunpack.c.l.b16 %v1817
    %v2182 = vunpack.c.l.b16 %v1820
    %v2183 = vunpack.c.l.b16 %v1824
    %v2184 = vunpack.c.l.b16 %v1827
    %v2185 = vunpack.c.l.b16 %v1831
    %v2186 = vunpack.c.l.b16 %v1834
    %v2187 = vpack.c.b16 %v2124, %v2123
    %v2188 = vpack.c.b16 %v2126, %v2125
    %v2189 = vpack.c.b16 %v2128, %v2127
    %v2190 = vpack.c.b16 %v2130, %v2129
    %v2191 = vpack.c.b16 %v2132, %v2131
    %v2192 = vpack.c.b16 %v2134, %v2133
    %v2193 = vpack.c.b16 %v2136, %v2135
    %v2194 = vpack.c.b16 %v2138, %v2137
    %v2195 = vpack.c.b16 %v2140, %v2139
    %v2196 = vpack.c.b16 %v2142, %v2141
    %v2197 = vpack.c.b16 %v2144, %v2143
    %v2198 = vpack.c.b16 %v2146, %v2145
    %v2199 = vpack.c.b16 %v2148, %v2147
    %v2200 = vpack.c.b16 %v2150, %v2149
    %v2201 = vpack.c.b16 %v2152, %v2151
    %v2202 = vpack.c.b16 %v2154, %v2153
    %v2203 = vpack.c.b16 %v2156, %v2155
    %v2204 = vpack.c.b16 %v2158, %v2157
    %v2205 = vpack.c.b16 %v2160, %v2159
    %v2206 = vpack.c.b16 %v2162, %v2161
    %v2207 = vpack.c.b16 %v2164, %v2163
    %v2208 = vpack.c.b16 %v2166, %v2165
    %v2209 = vpack.c.b16 %v2168, %v2167
    %v2210 = vpack.c.b16 %v2170, %v2169
    %v2211 = vpack.c.b16 %v2172, %v2171
    %v2212 = vpack.c.b16 %v2174, %v2173
    %v2213 = vpack.c.b16 %v2176, %v2175
    %v2214 = vpack.c.b16 %v2178, %v2177
    %v2215 = vpack.c.b16 %v2180, %v2179
    %v2216 = vpack.c.b16 %v2182, %v2181
    %v2217 = vpack.c.b16 %v2184, %v2183
    %v2218 = vpack.c.b16 %v2186, %v2185
    %v2251 = vld [vmem:[%s3] sm:$0xf]
    %v2252 = vld [vmem:[%s3 + $0x4] sm:$0xf]
    %v2253 = vld [vmem:[%s3 + $0x8] sm:$0xf]
    %v2254 = vld [vmem:[%s3 + $0xc] sm:$0xf]
    %v2255 = vld [vmem:[%s3 + $0x10] sm:$0xf]
    %v2256 = vld [vmem:[%s3 + $0x14] sm:$0xf]
    %v2257 = vld [vmem:[%s3 + $0x18] sm:$0xf]
    %v2258 = vld [vmem:[%s3 + $0x1c] sm:$0xf]
    %v2259 = vld [vmem:[%s3 + $0x20] sm:$0xf]
    %v2260 = vld [vmem:[%s3 + $0x24] sm:$0xf]
    %v2261 = vld [vmem:[%s3 + $0x28] sm:$0xf]
    %v2262 = vld [vmem:[%s3 + $0x2c] sm:$0xf]
    %v2263 = vld [vmem:[%s3 + $0x30] sm:$0xf]
    %v2264 = vld [vmem:[%s3 + $0x34] sm:$0xf]
    %v2265 = vld [vmem:[%s3 + $0x38] sm:$0xf]
    %v2266 = vld [vmem:[%s3 + $0x3c] sm:$0xf]
    %v2267 = vld [vmem:[%s3 + $0x40] sm:$0xf]
    %v2268 = vld [vmem:[%s3 + $0x44] sm:$0xf]
    %v2269 = vld [vmem:[%s3 + $0x48] sm:$0xf]
    %v2270 = vld [vmem:[%s3 + $0x4c] sm:$0xf]
    %v2271 = vld [vmem:[%s3 + $0x50] sm:$0xf]
    %v2272 = vld [vmem:[%s3 + $0x54] sm:$0xf]
    %v2273 = vld [vmem:[%s3 + $0x58] sm:$0xf]
    %v2274 = vld [vmem:[%s3 + $0x5c] sm:$0xf]
    %v2275 = vld [vmem:[%s3 + $0x60] sm:$0xf]
    %v2276 = vld [vmem:[%s3 + $0x64] sm:$0xf]
    %v2277 = vld [vmem:[%s3 + $0x68] sm:$0xf]
    %v2278 = vld [vmem:[%s3 + $0x6c] sm:$0xf]
    %v2279 = vld [vmem:[%s3 + $0x70] sm:$0xf]
    %v2280 = vld [vmem:[%s3 + $0x74] sm:$0xf]
    %v2281 = vld [vmem:[%s3 + $0x78] sm:$0xf]
    %v2282 = vld [vmem:[%s3 + $0x7c] sm:$0xf]
    %v2283 = vld [vmem:[%s3 + $0x80] sm:$0xf]
    %v2284 = vld [vmem:[%s3 + $0x84] sm:$0xf]
    %v2285 = vld [vmem:[%s3 + $0x88] sm:$0xf]
    %v2286 = vld [vmem:[%s3 + $0x8c] sm:$0xf]
    %v2287 = vld [vmem:[%s3 + $0x90] sm:$0xf]
    %v2288 = vld [vmem:[%s3 + $0x94] sm:$0xf]
    %v2289 = vld [vmem:[%s3 + $0x98] sm:$0xf]
    %v2290 = vld [vmem:[%s3 + $0x9c] sm:$0xf]
    %v2291 = vld [vmem:[%s3 + $0xa0] sm:$0xf]
    %v2292 = vld [vmem:[%s3 + $0xa4] sm:$0xf]
    %v2293 = vld [vmem:[%s3 + $0xa8] sm:$0xf]
    %v2294 = vld [vmem:[%s3 + $0xac] sm:$0xf]
    %v2295 = vld [vmem:[%s3 + $0xb0] sm:$0xf]
    %v2296 = vld [vmem:[%s3 + $0xb4] sm:$0xf]
    %v2297 = vld [vmem:[%s3 + $0xb8] sm:$0xf]
    %v2298 = vld [vmem:[%s3 + $0xbc] sm:$0xf]
    %v2299 = vld [vmem:[%s932] sm:$0xf]
    %v2300 = vld [vmem:[%s932 + $0x4] sm:$0xf]
    %v2301 = vld [vmem:[%s932 + $0xc] sm:$0xf]
    %v2302 = vld [vmem:[%s932 + $0x10] sm:$0xf]
    %v2303 = vld [vmem:[%s932 + $0x18] sm:$0xf]
    %v2304 = vld [vmem:[%s932 + $0x1c] sm:$0xf]
    %v2305 = vld [vmem:[%s932 + $0x24] sm:$0xf]
    %v2306 = vld [vmem:[%s932 + $0x28] sm:$0xf]
    %v2307 = vld [vmem:[%s932 + $0x30] sm:$0xf]
    %v2308 = vld [vmem:[%s932 + $0x34] sm:$0xf]
    %v2309 = vld [vmem:[%s932 + $0x3c] sm:$0xf]
    %v2310 = vld [vmem:[%s932 + $0x40] sm:$0xf]
    %v2311 = vld [vmem:[%s932 + $0x48] sm:$0xf]
    %v2312 = vld [vmem:[%s932 + $0x4c] sm:$0xf]
    %v2313 = vld [vmem:[%s932 + $0x54] sm:$0xf]
    %v2314 = vld [vmem:[%s932 + $0x58] sm:$0xf]
    %v2315 = vld [vmem:[%s932 + $0x60] sm:$0xf]
    %v2316 = vld [vmem:[%s932 + $0x64] sm:$0xf]
    %v2317 = vld [vmem:[%s932 + $0x6c] sm:$0xf]
    %v2318 = vld [vmem:[%s932 + $0x70] sm:$0xf]
    %v2319 = vld [vmem:[%s932 + $0x78] sm:$0xf]
    %v2320 = vld [vmem:[%s932 + $0x7c] sm:$0xf]
    %v2321 = vld [vmem:[%s932 + $0x84] sm:$0xf]
    %v2322 = vld [vmem:[%s932 + $0x88] sm:$0xf]
    %v2323 = vld [vmem:[%s932 + $0x90] sm:$0xf]
    %v2324 = vld [vmem:[%s932 + $0x94] sm:$0xf]
    %v2325 = vld [vmem:[%s932 + $0x9c] sm:$0xf]
    %v2326 = vld [vmem:[%s932 + $0xa0] sm:$0xf]
    %v2327 = vld [vmem:[%s932 + $0xa8] sm:$0xf]
    %v2328 = vld [vmem:[%s932 + $0xac] sm:$0xf]
    %v2329 = vld [vmem:[%s932 + $0xb4] sm:$0xf]
    %v2330 = vld [vmem:[%s932 + $0xb8] sm:$0xf]
    %v2331 = vld [vmem:[%s932 + $0xf0] sm:$0xf]
    %v2332 = vld [vmem:[%s932 + $0xf4] sm:$0xf]
    %v2333 = vld [vmem:[%s932 + $0xfc] sm:$0xf]
    %v2334 = vld [vmem:[%s932 + $0x100] sm:$0xf]
    %v2335 = vld [vmem:[%s932 + $0x108] sm:$0xf]
    %v2336 = vld [vmem:[%s932 + $0x10c] sm:$0xf]
    %v2337 = vld [vmem:[%s932 + $0x114] sm:$0xf]
    %v2338 = vld [vmem:[%s932 + $0x118] sm:$0xf]
    %v2339 = vld [vmem:[%s932 + $0x120] sm:$0xf]
    %v2340 = vld [vmem:[%s932 + $0x124] sm:$0xf]
    %v2341 = vld [vmem:[%s932 + $0x12c] sm:$0xf]
    %v2342 = vld [vmem:[%s932 + $0x130] sm:$0xf]
    %v2343 = vld [vmem:[%s932 + $0x138] sm:$0xf]
    %v2344 = vld [vmem:[%s932 + $0x13c] sm:$0xf]
    %v2345 = vld [vmem:[%s932 + $0x144] sm:$0xf]
    %v2346 = vld [vmem:[%s932 + $0x148] sm:$0xf]
    %v2347 = vld [vmem:[%s932 + $0x150] sm:$0xf]
    %v2348 = vld [vmem:[%s932 + $0x154] sm:$0xf]
    %v2349 = vld [vmem:[%s932 + $0x15c] sm:$0xf]
    %v2350 = vld [vmem:[%s932 + $0x160] sm:$0xf]
    %v2351 = vld [vmem:[%s932 + $0x168] sm:$0xf]
    %v2352 = vld [vmem:[%s932 + $0x16c] sm:$0xf]
    %v2353 = vld [vmem:[%s932 + $0x174] sm:$0xf]
    %v2354 = vld [vmem:[%s932 + $0x178] sm:$0xf]
    %v2355 = vld [vmem:[%s932 + $0x180] sm:$0xf]
    %v2356 = vld [vmem:[%s932 + $0x184] sm:$0xf]
    %v2357 = vld [vmem:[%s932 + $0x18c] sm:$0xf]
    %v2358 = vld [vmem:[%s932 + $0x190] sm:$0xf]
    %v2359 = vld [vmem:[%s932 + $0x198] sm:$0xf]
    %v2360 = vld [vmem:[%s932 + $0x19c] sm:$0xf]
    %v2361 = vld [vmem:[%s932 + $0x1a4] sm:$0xf]
    %v2362 = vld [vmem:[%s932 + $0x1a8] sm:$0xf]
    %v2363 = vld [vmem:[%s932] sm:$0xe]
    %v2364 = vld [vmem:[%s932 + $0x8] sm:$0x1]
    %v2365 = vld [vmem:[%s932 + $0xc] sm:$0xe]
    %v2366 = vld [vmem:[%s932 + $0x14] sm:$0x1]
    %v2367 = vld [vmem:[%s932 + $0x18] sm:$0xe]
    %v2368 = vld [vmem:[%s932 + $0x20] sm:$0x1]
    %v2369 = vld [vmem:[%s932 + $0x24] sm:$0xe]
    %v2370 = vld [vmem:[%s932 + $0x2c] sm:$0x1]
    %v2371 = vld [vmem:[%s932 + $0x30] sm:$0xe]
    %v2372 = vld [vmem:[%s932 + $0x38] sm:$0x1]
    %v2373 = vld [vmem:[%s932 + $0x3c] sm:$0xe]
    %v2374 = vld [vmem:[%s932 + $0x44] sm:$0x1]
    %v2375 = vld [vmem:[%s932 + $0x48] sm:$0xe]
    %v2376 = vld [vmem:[%s932 + $0x50] sm:$0x1]
    %v2377 = vld [vmem:[%s932 + $0x54] sm:$0xe]
    %v2378 = vld [vmem:[%s932 + $0x5c] sm:$0x1]
    %v2379 = vld [vmem:[%s932 + $0x60] sm:$0xe]
    %v2380 = vld [vmem:[%s932 + $0x68] sm:$0x1]
    %v2381 = vld [vmem:[%s932 + $0x6c] sm:$0xe]
    %v2382 = vld [vmem:[%s932 + $0x74] sm:$0x1]
    %v2383 = vld [vmem:[%s932 + $0x78] sm:$0xe]
    %v2384 = vld [vmem:[%s932 + $0x80] sm:$0x1]
    %v2385 = vld [vmem:[%s932 + $0x84] sm:$0xe]
    %v2386 = vld [vmem:[%s932 + $0x8c] sm:$0x1]
    %v2387 = vld [vmem:[%s932 + $0x90] sm:$0xe]
    %v2388 = vld [vmem:[%s932 + $0x98] sm:$0x1]
    %v2389 = vld [vmem:[%s932 + $0x9c] sm:$0xe]
    %v2390 = vld [vmem:[%s932 + $0xa4] sm:$0x1]
    %v2391 = vld [vmem:[%s932 + $0xa8] sm:$0xe]
    %v2392 = vld [vmem:[%s932 + $0xb0] sm:$0x1]
    %v2393 = vld [vmem:[%s932 + $0xb4] sm:$0xe]
    %v2394 = vld [vmem:[%s932 + $0xbc] sm:$0x1]
    %v2395 = vld [vmem:[%s932 + $0xf0] sm:$0xe]
    %v2396 = vld [vmem:[%s932 + $0xf8] sm:$0x1]
    %v2397 = vld [vmem:[%s932 + $0xfc] sm:$0xe]
    %v2398 = vld [vmem:[%s932 + $0x104] sm:$0x1]
    %v2399 = vld [vmem:[%s932 + $0x108] sm:$0xe]
    %v2400 = vld [vmem:[%s932 + $0x110] sm:$0x1]
    %v2401 = vld [vmem:[%s932 + $0x114] sm:$0xe]
    %v2402 = vld [vmem:[%s932 + $0x11c] sm:$0x1]
    %v2403 = vld [vmem:[%s932 + $0x120] sm:$0xe]
    %v2404 = vld [vmem:[%s932 + $0x128] sm:$0x1]
    %v2405 = vld [vmem:[%s932 + $0x12c] sm:$0xe]
    %v2406 = vld [vmem:[%s932 + $0x134] sm:$0x1]
    %v2407 = vld [vmem:[%s932 + $0x138] sm:$0xe]
    %v2408 = vld [vmem:[%s932 + $0x140] sm:$0x1]
    %v2409 = vld [vmem:[%s932 + $0x144] sm:$0xe]
    %v2410 = vld [vmem:[%s932 + $0x14c] sm:$0x1]
    %v2411 = vld [vmem:[%s932 + $0x150] sm:$0xe]
    %v2412 = vld [vmem:[%s932 + $0x158] sm:$0x1]
    %v2413 = vld [vmem:[%s932 + $0x15c] sm:$0xe]
    %v2414 = vld [vmem:[%s932 + $0x164] sm:$0x1]
    %v2415 = vld [vmem:[%s932 + $0x168] sm:$0xe]
    %v2416 = vld [vmem:[%s932 + $0x170] sm:$0x1]
    %v2417 = vld [vmem:[%s932 + $0x174] sm:$0xe]
    %v2418 = vld [vmem:[%s932 + $0x17c] sm:$0x1]
    %v2419 = vld [vmem:[%s932 + $0x180] sm:$0xe]
    %v2420 = vld [vmem:[%s932 + $0x188] sm:$0x1]
    %v2421 = vld [vmem:[%s932 + $0x18c] sm:$0xe]
    %v2422 = vld [vmem:[%s932 + $0x194] sm:$0x1]
    %v2423 = vld [vmem:[%s932 + $0x198] sm:$0xe]
    %v2424 = vld [vmem:[%s932 + $0x1a0] sm:$0x1]
    %v2425 = vld [vmem:[%s932 + $0x1a4] sm:$0xe]
    %v2426 = vld [vmem:[%s932 + $0x1ac] sm:$0x1]
    %v2523 = vrot.slane %v2363, 5
    %v2524 = vrot.slane %v2523, 4
    %v2525 = vrot.slane %v2300, 5
    %v2526 = vsel %vm1255, %v2524, %v2525
    %v2527 = vrot.slane %v2525, 4
    %v2528 = vrot.slane %v2364, 5
    %v2529 = vsel %vm1255, %v2527, %v2528
    %v2530 = vrot.slane %v2365, 5
    %v2531 = vrot.slane %v2530, 4
    %v2532 = vrot.slane %v2302, 5
    %v2533 = vsel %vm1255, %v2531, %v2532
    %v2534 = vrot.slane %v2532, 4
    %v2535 = vrot.slane %v2366, 5
    %v2536 = vsel %vm1255, %v2534, %v2535
    %v2537 = vrot.slane %v2367, 5
    %v2538 = vrot.slane %v2537, 4
    %v2539 = vrot.slane %v2304, 5
    %v2540 = vsel %vm1255, %v2538, %v2539
    %v2541 = vrot.slane %v2539, 4
    %v2542 = vrot.slane %v2368, 5
    %v2543 = vsel %vm1255, %v2541, %v2542
    %v2544 = vrot.slane %v2369, 5
    %v2545 = vrot.slane %v2544, 4
    %v2546 = vrot.slane %v2306, 5
    %v2547 = vsel %vm1255, %v2545, %v2546
    %v2548 = vrot.slane %v2546, 4
    %v2549 = vrot.slane %v2370, 5
    %v2550 = vsel %vm1255, %v2548, %v2549
    %v2551 = vrot.slane %v2371, 5
    %v2552 = vrot.slane %v2551, 4
    %v2553 = vrot.slane %v2308, 5
    %v2554 = vsel %vm1255, %v2552, %v2553
    %v2555 = vrot.slane %v2553, 4
    %v2556 = vrot.slane %v2372, 5
    %v2557 = vsel %vm1255, %v2555, %v2556
    %v2558 = vrot.slane %v2373, 5
    %v2559 = vrot.slane %v2558, 4
    %v2560 = vrot.slane %v2310, 5
    %v2561 = vsel %vm1255, %v2559, %v2560
    %v2562 = vrot.slane %v2560, 4
    %v2563 = vrot.slane %v2374, 5
    %v2564 = vsel %vm1255, %v2562, %v2563
    %v2565 = vrot.slane %v2375, 5
    %v2566 = vrot.slane %v2565, 4
    %v2567 = vrot.slane %v2312, 5
    %v2568 = vsel %vm1255, %v2566, %v2567
    %v2569 = vrot.slane %v2567, 4
    %v2570 = vrot.slane %v2376, 5
    %v2571 = vsel %vm1255, %v2569, %v2570
    %v2572 = vrot.slane %v2377, 5
    %v2573 = vrot.slane %v2572, 4
    %v2574 = vrot.slane %v2314, 5
    %v2575 = vsel %vm1255, %v2573, %v2574
    %v2576 = vrot.slane %v2574, 4
    %v2577 = vrot.slane %v2378, 5
    %v2578 = vsel %vm1255, %v2576, %v2577
    %v2579 = vrot.slane %v2379, 5
    %v2580 = vrot.slane %v2579, 4
    %v2581 = vrot.slane %v2316, 5
    %v2582 = vsel %vm1255, %v2580, %v2581
    %v2583 = vrot.slane %v2581, 4
    %v2584 = vrot.slane %v2380, 5
    %v2585 = vsel %vm1255, %v2583, %v2584
    %v2586 = vrot.slane %v2381, 5
    %v2587 = vrot.slane %v2586, 4
    %v2588 = vrot.slane %v2318, 5
    %v2589 = vsel %vm1255, %v2587, %v2588
    %v2590 = vrot.slane %v2588, 4
    %v2591 = vrot.slane %v2382, 5
    %v2592 = vsel %vm1255, %v2590, %v2591
    %v2593 = vrot.slane %v2383, 5
    %v2594 = vrot.slane %v2593, 4
    %v2595 = vrot.slane %v2320, 5
    %v2596 = vsel %vm1255, %v2594, %v2595
    %v2597 = vrot.slane %v2595, 4
    %v2598 = vrot.slane %v2384, 5
    %v2599 = vsel %vm1255, %v2597, %v2598
    %v2600 = vrot.slane %v2385, 5
    %v2601 = vrot.slane %v2600, 4
    %v2602 = vrot.slane %v2322, 5
    %v2603 = vsel %vm1255, %v2601, %v2602
    %v2604 = vrot.slane %v2602, 4
    %v2605 = vrot.slane %v2386, 5
    %v2606 = vsel %vm1255, %v2604, %v2605
    %v2607 = vrot.slane %v2387, 5
    %v2608 = vrot.slane %v2607, 4
    %v2609 = vrot.slane %v2324, 5
    %v2610 = vsel %vm1255, %v2608, %v2609
    %v2611 = vrot.slane %v2609, 4
    %v2612 = vrot.slane %v2388, 5
    %v2613 = vsel %vm1255, %v2611, %v2612
    %v2614 = vrot.slane %v2389, 5
    %v2615 = vrot.slane %v2614, 4
    %v2616 = vrot.slane %v2326, 5
    %v2617 = vsel %vm1255, %v2615, %v2616
    %v2618 = vrot.slane %v2616, 4
    %v2619 = vrot.slane %v2390, 5
    %v2620 = vsel %vm1255, %v2618, %v2619
    %v2621 = vrot.slane %v2391, 5
    %v2622 = vrot.slane %v2621, 4
    %v2623 = vrot.slane %v2328, 5
    %v2624 = vsel %vm1255, %v2622, %v2623
    %v2625 = vrot.slane %v2623, 4
    %v2626 = vrot.slane %v2392, 5
    %v2627 = vsel %vm1255, %v2625, %v2626
    %v2628 = vrot.slane %v2393, 5
    %v2629 = vrot.slane %v2628, 4
    %v2630 = vrot.slane %v2330, 5
    %v2631 = vsel %vm1255, %v2629, %v2630
    %v2632 = vrot.slane %v2630, 4
    %v2633 = vrot.slane %v2394, 5
    %v2634 = vsel %vm1255, %v2632, %v2633
    %v2635 = vrot.slane %v2395, 5
    %v2636 = vrot.slane %v2635, 4
    %v2637 = vrot.slane %v2332, 5
    %v2638 = vsel %vm1255, %v2636, %v2637
    %v2639 = vrot.slane %v2637, 4
    %v2640 = vrot.slane %v2396, 5
    %v2641 = vsel %vm1255, %v2639, %v2640
    %v2642 = vrot.slane %v2397, 5
    %v2643 = vrot.slane %v2642, 4
    %v2644 = vrot.slane %v2334, 5
    %v2645 = vsel %vm1255, %v2643, %v2644
    %v2646 = vrot.slane %v2644, 4
    %v2647 = vrot.slane %v2398, 5
    %v2648 = vsel %vm1255, %v2646, %v2647
    %v2649 = vrot.slane %v2399, 5
    %v2650 = vrot.slane %v2649, 4
    %v2651 = vrot.slane %v2336, 5
    %v2652 = vsel %vm1255, %v2650, %v2651
    %v2653 = vrot.slane %v2651, 4
    %v2654 = vrot.slane %v2400, 5
    %v2655 = vsel %vm1255, %v2653, %v2654
    %v2656 = vrot.slane %v2401, 5
    %v2657 = vrot.slane %v2656, 4
    %v2658 = vrot.slane %v2338, 5
    %v2659 = vsel %vm1255, %v2657, %v2658
    %v2660 = vrot.slane %v2658, 4
    %v2661 = vrot.slane %v2402, 5
    %v2662 = vsel %vm1255, %v2660, %v2661
    %v2663 = vrot.slane %v2403, 5
    %v2664 = vrot.slane %v2663, 4
    %v2665 = vrot.slane %v2340, 5
    %v2666 = vsel %vm1255, %v2664, %v2665
    %v2667 = vrot.slane %v2665, 4
    %v2668 = vrot.slane %v2404, 5
    %v2669 = vsel %vm1255, %v2667, %v2668
    %v2670 = vrot.slane %v2405, 5
    %v2671 = vrot.slane %v2670, 4
    %v2672 = vrot.slane %v2342, 5
    %v2673 = vsel %vm1255, %v2671, %v2672
    %v2674 = vrot.slane %v2672, 4
    %v2675 = vrot.slane %v2406, 5
    %v2676 = vsel %vm1255, %v2674, %v2675
    %v2677 = vrot.slane %v2407, 5
    %v2678 = vrot.slane %v2677, 4
    %v2679 = vrot.slane %v2344, 5
    %v2680 = vsel %vm1255, %v2678, %v2679
    %v2681 = vrot.slane %v2679, 4
    %v2682 = vrot.slane %v2408, 5
    %v2683 = vsel %vm1255, %v2681, %v2682
    %v2684 = vrot.slane %v2409, 5
    %v2685 = vrot.slane %v2684, 4
    %v2686 = vrot.slane %v2346, 5
    %v2687 = vsel %vm1255, %v2685, %v2686
    %v2688 = vrot.slane %v2686, 4
    %v2689 = vrot.slane %v2410, 5
    %v2690 = vsel %vm1255, %v2688, %v2689
    %v2691 = vrot.slane %v2411, 5
    %v2692 = vrot.slane %v2691, 4
    %v2693 = vrot.slane %v2348, 5
    %v2694 = vsel %vm1255, %v2692, %v2693
    %v2695 = vrot.slane %v2693, 4
    %v2696 = vrot.slane %v2412, 5
    %v2697 = vsel %vm1255, %v2695, %v2696
    %v2698 = vrot.slane %v2413, 5
    %v2699 = vrot.slane %v2698, 4
    %v2700 = vrot.slane %v2350, 5
    %v2701 = vsel %vm1255, %v2699, %v2700
    %v2702 = vrot.slane %v2700, 4
    %v2703 = vrot.slane %v2414, 5
    %v2704 = vsel %vm1255, %v2702, %v2703
    %v2705 = vrot.slane %v2415, 5
    %v2706 = vrot.slane %v2705, 4
    %v2707 = vrot.slane %v2352, 5
    %v2708 = vsel %vm1255, %v2706, %v2707
    %v2709 = vrot.slane %v2707, 4
    %v2710 = vrot.slane %v2416, 5
    %v2711 = vsel %vm1255, %v2709, %v2710
    %v2712 = vrot.slane %v2417, 5
    %v2713 = vrot.slane %v2712, 4
    %v2714 = vrot.slane %v2354, 5
    %v2715 = vsel %vm1255, %v2713, %v2714
    %v2716 = vrot.slane %v2714, 4
    %v2717 = vrot.slane %v2418, 5
    %v2718 = vsel %vm1255, %v2716, %v2717
    %v2719 = vrot.slane %v2419, 5
    %v2720 = vrot.slane %v2719, 4
    %v2721 = vrot.slane %v2356, 5
    %v2722 = vsel %vm1255, %v2720, %v2721
    %v2723 = vrot.slane %v2721, 4
    %v2724 = vrot.slane %v2420, 5
    %v2725 = vsel %vm1255, %v2723, %v2724
    %v2726 = vrot.slane %v2421, 5
    %v2727 = vrot.slane %v2726, 4
    %v2728 = vrot.slane %v2358, 5
    %v2729 = vsel %vm1255, %v2727, %v2728
    %v2730 = vrot.slane %v2728, 4
    %v2731 = vrot.slane %v2422, 5
    %v2732 = vsel %vm1255, %v2730, %v2731
    %v2733 = vrot.slane %v2423, 5
    %v2734 = vrot.slane %v2733, 4
    %v2735 = vrot.slane %v2360, 5
    %v2736 = vsel %vm1255, %v2734, %v2735
    %v2737 = vrot.slane %v2735, 4
    %v2738 = vrot.slane %v2424, 5
    %v2739 = vsel %vm1255, %v2737, %v2738
    %v2740 = vrot.slane %v2425, 5
    %v2741 = vrot.slane %v2740, 4
    %v2742 = vrot.slane %v2362, 5
    %v2743 = vsel %vm1255, %v2741, %v2742
    %v2744 = vrot.slane %v2742, 4
    %v2745 = vrot.slane %v2426, 5
    %v2746 = vsel %vm1255, %v2744, %v2745
    %v2747 = vld [vmem:[%s932] sm:$0xc]
    %v2748 = vld [vmem:[%s932 + $0x8] sm:$0x3]
    %v2749 = vld [vmem:[%s932 + $0xc] sm:$0xc]
    %v2750 = vld [vmem:[%s932 + $0x14] sm:$0x3]
    %v2751 = vld [vmem:[%s932 + $0x18] sm:$0xc]
    %v2752 = vld [vmem:[%s932 + $0x20] sm:$0x3]
    %v2753 = vld [vmem:[%s932 + $0x24] sm:$0xc]
    %v2754 = vld [vmem:[%s932 + $0x2c] sm:$0x3]
    %v2755 = vld [vmem:[%s932 + $0x30] sm:$0xc]
    %v2756 = vld [vmem:[%s932 + $0x38] sm:$0x3]
    %v2757 = vld [vmem:[%s932 + $0x3c] sm:$0xc]
    %v2758 = vld [vmem:[%s932 + $0x44] sm:$0x3]
    %v2759 = vld [vmem:[%s932 + $0x48] sm:$0xc]
    %v2760 = vld [vmem:[%s932 + $0x50] sm:$0x3]
    %v2761 = vld [vmem:[%s932 + $0x54] sm:$0xc]
    %v2762 = vld [vmem:[%s932 + $0x5c] sm:$0x3]
    %v2763 = vld [vmem:[%s932 + $0x60] sm:$0xc]
    %v2764 = vld [vmem:[%s932 + $0x68] sm:$0x3]
    %v2765 = vld [vmem:[%s932 + $0x6c] sm:$0xc]
    %v2766 = vld [vmem:[%s932 + $0x74] sm:$0x3]
    %v2767 = vld [vmem:[%s932 + $0x78] sm:$0xc]
    %v2768 = vld [vmem:[%s932 + $0x80] sm:$0x3]
    %v2769 = vld [vmem:[%s932 + $0x84] sm:$0xc]
    %v2770 = vld [vmem:[%s932 + $0x8c] sm:$0x3]
    %v2771 = vld [vmem:[%s932 + $0x90] sm:$0xc]
    %v2772 = vld [vmem:[%s932 + $0x98] sm:$0x3]
    %v2773 = vld [vmem:[%s932 + $0x9c] sm:$0xc]
    %v2774 = vld [vmem:[%s932 + $0xa4] sm:$0x3]
    %v2775 = vld [vmem:[%s932 + $0xa8] sm:$0xc]
    %v2776 = vld [vmem:[%s932 + $0xb0] sm:$0x3]
    %v2777 = vld [vmem:[%s932 + $0xb4] sm:$0xc]
    %v2778 = vld [vmem:[%s932 + $0xbc] sm:$0x3]
    %v2779 = vld [vmem:[%s932 + $0xf0] sm:$0xc]
    %v2780 = vld [vmem:[%s932 + $0xf8] sm:$0x3]
    %v2781 = vld [vmem:[%s932 + $0xfc] sm:$0xc]
    %v2782 = vld [vmem:[%s932 + $0x104] sm:$0x3]
    %v2783 = vld [vmem:[%s932 + $0x108] sm:$0xc]
    %v2784 = vld [vmem:[%s932 + $0x110] sm:$0x3]
    %v2785 = vld [vmem:[%s932 + $0x114] sm:$0xc]
    %v2786 = vld [vmem:[%s932 + $0x11c] sm:$0x3]
    %v2787 = vld [vmem:[%s932 + $0x120] sm:$0xc]
    %v2788 = vld [vmem:[%s932 + $0x128] sm:$0x3]
    %v2789 = vld [vmem:[%s932 + $0x12c] sm:$0xc]
    %v2790 = vld [vmem:[%s932 + $0x134] sm:$0x3]
    %v2791 = vld [vmem:[%s932 + $0x138] sm:$0xc]
    %v2792 = vld [vmem:[%s932 + $0x140] sm:$0x3]
    %v2793 = vld [vmem:[%s932 + $0x144] sm:$0xc]
    %v2794 = vld [vmem:[%s932 + $0x14c] sm:$0x3]
    %v2795 = vld [vmem:[%s932 + $0x150] sm:$0xc]
    %v2796 = vld [vmem:[%s932 + $0x158] sm:$0x3]
    %v2797 = vld [vmem:[%s932 + $0x15c] sm:$0xc]
    %v2798 = vld [vmem:[%s932 + $0x164] sm:$0x3]
    %v2799 = vld [vmem:[%s932 + $0x168] sm:$0xc]
    %v2800 = vld [vmem:[%s932 + $0x170] sm:$0x3]
    %v2801 = vld [vmem:[%s932 + $0x174] sm:$0xc]
    %v2802 = vld [vmem:[%s932 + $0x17c] sm:$0x3]
    %v2803 = vld [vmem:[%s932 + $0x180] sm:$0xc]
    %v2804 = vld [vmem:[%s932 + $0x188] sm:$0x3]
    %v2805 = vld [vmem:[%s932 + $0x18c] sm:$0xc]
    %v2806 = vld [vmem:[%s932 + $0x194] sm:$0x3]
    %v2807 = vld [vmem:[%s932 + $0x198] sm:$0xc]
    %v2808 = vld [vmem:[%s932 + $0x1a0] sm:$0x3]
    %v2809 = vld [vmem:[%s932 + $0x1a4] sm:$0xc]
    %v2810 = vld [vmem:[%s932 + $0x1ac] sm:$0x3]
    %v2875 = vrot.slane %v2747, 6
    %v2876 = vrot.slane %v2875, 4
    %v2877 = vrot.slane %v2300, 6
    %v2878 = vsel %vm1610, %v2876, %v2877
    %v2879 = vrot.slane %v2877, 4
    %v2880 = vrot.slane %v2748, 6
    %v2881 = vsel %vm1610, %v2879, %v2880
    %v2882 = vrot.slane %v2749, 6
    %v2883 = vrot.slane %v2882, 4
    %v2884 = vrot.slane %v2302, 6
    %v2885 = vsel %vm1610, %v2883, %v2884
    %v2886 = vrot.slane %v2884, 4
    %v2887 = vrot.slane %v2750, 6
    %v2888 = vsel %vm1610, %v2886, %v2887
    %v2889 = vrot.slane %v2751, 6
    %v2890 = vrot.slane %v2889, 4
    %v2891 = vrot.slane %v2304, 6
    %v2892 = vsel %vm1610, %v2890, %v2891
    %v2893 = vrot.slane %v2891, 4
    %v2894 = vrot.slane %v2752, 6
    %v2895 = vsel %vm1610, %v2893, %v2894
    %v2896 = vrot.slane %v2753, 6
    %v2897 = vrot.slane %v2896, 4
    %v2898 = vrot.slane %v2306, 6
    %v2899 = vsel %vm1610, %v2897, %v2898
    %v2900 = vrot.slane %v2898, 4
    %v2901 = vrot.slane %v2754, 6
    %v2902 = vsel %vm1610, %v2900, %v2901
    %v2903 = vrot.slane %v2755, 6
    %v2904 = vrot.slane %v2903, 4
    %v2905 = vrot.slane %v2308, 6
    %v2906 = vsel %vm1610, %v2904, %v2905
    %v2907 = vrot.slane %v2905, 4
    %v2908 = vrot.slane %v2756, 6
    %v2909 = vsel %vm1610, %v2907, %v2908
    %v2910 = vrot.slane %v2757, 6
    %v2911 = vrot.slane %v2910, 4
    %v2912 = vrot.slane %v2310, 6
    %v2913 = vsel %vm1610, %v2911, %v2912
    %v2914 = vrot.slane %v2912, 4
    %v2915 = vrot.slane %v2758, 6
    %v2916 = vsel %vm1610, %v2914, %v2915
    %v2917 = vrot.slane %v2759, 6
    %v2918 = vrot.slane %v2917, 4
    %v2919 = vrot.slane %v2312, 6
    %v2920 = vsel %vm1610, %v2918, %v2919
    %v2921 = vrot.slane %v2919, 4
    %v2922 = vrot.slane %v2760, 6
    %v2923 = vsel %vm1610, %v2921, %v2922
    %v2924 = vrot.slane %v2761, 6
    %v2925 = vrot.slane %v2924, 4
    %v2926 = vrot.slane %v2314, 6
    %v2927 = vsel %vm1610, %v2925, %v2926
    %v2928 = vrot.slane %v2926, 4
    %v2929 = vrot.slane %v2762, 6
    %v2930 = vsel %vm1610, %v2928, %v2929
    %v2931 = vrot.slane %v2763, 6
    %v2932 = vrot.slane %v2931, 4
    %v2933 = vrot.slane %v2316, 6
    %v2934 = vsel %vm1610, %v2932, %v2933
    %v2935 = vrot.slane %v2933, 4
    %v2936 = vrot.slane %v2764, 6
    %v2937 = vsel %vm1610, %v2935, %v2936
    %v2938 = vrot.slane %v2765, 6
    %v2939 = vrot.slane %v2938, 4
    %v2940 = vrot.slane %v2318, 6
    %v2941 = vsel %vm1610, %v2939, %v2940
    %v2942 = vrot.slane %v2940, 4
    %v2943 = vrot.slane %v2766, 6
    %v2944 = vsel %vm1610, %v2942, %v2943
    %v2945 = vrot.slane %v2767, 6
    %v2946 = vrot.slane %v2945, 4
    %v2947 = vrot.slane %v2320, 6
    %v2948 = vsel %vm1610, %v2946, %v2947
    %v2949 = vrot.slane %v2947, 4
    %v2950 = vrot.slane %v2768, 6
    %v2951 = vsel %vm1610, %v2949, %v2950
    %v2952 = vrot.slane %v2769, 6
    %v2953 = vrot.slane %v2952, 4
    %v2954 = vrot.slane %v2322, 6
    %v2955 = vsel %vm1610, %v2953, %v2954
    %v2956 = vrot.slane %v2954, 4
    %v2957 = vrot.slane %v2770, 6
    %v2958 = vsel %vm1610, %v2956, %v2957
    %v2959 = vrot.slane %v2771, 6
    %v2960 = vrot.slane %v2959, 4
    %v2961 = vrot.slane %v2324, 6
    %v2962 = vsel %vm1610, %v2960, %v2961
    %v2963 = vrot.slane %v2961, 4
    %v2964 = vrot.slane %v2772, 6
    %v2965 = vsel %vm1610, %v2963, %v2964
    %v2966 = vrot.slane %v2773, 6
    %v2967 = vrot.slane %v2966, 4
    %v2968 = vrot.slane %v2326, 6
    %v2969 = vsel %vm1610, %v2967, %v2968
    %v2970 = vrot.slane %v2968, 4
    %v2971 = vrot.slane %v2774, 6
    %v2972 = vsel %vm1610, %v2970, %v2971
    %v2973 = vrot.slane %v2775, 6
    %v2974 = vrot.slane %v2973, 4
    %v2975 = vrot.slane %v2328, 6
    %v2976 = vsel %vm1610, %v2974, %v2975
    %v2977 = vrot.slane %v2975, 4
    %v2978 = vrot.slane %v2776, 6
    %v2979 = vsel %vm1610, %v2977, %v2978
    %v2980 = vrot.slane %v2777, 6
    %v2981 = vrot.slane %v2980, 4
    %v2982 = vrot.slane %v2330, 6
    %v2983 = vsel %vm1610, %v2981, %v2982
    %v2984 = vrot.slane %v2982, 4
    %v2985 = vrot.slane %v2778, 6
    %v2986 = vsel %vm1610, %v2984, %v2985
    %v2987 = vrot.slane %v2779, 6
    %v2988 = vrot.slane %v2987, 4
    %v2989 = vrot.slane %v2332, 6
    %v2990 = vsel %vm1610, %v2988, %v2989
    %v2991 = vrot.slane %v2989, 4
    %v2992 = vrot.slane %v2780, 6
    %v2993 = vsel %vm1610, %v2991, %v2992
    %v2994 = vrot.slane %v2781, 6
    %v2995 = vrot.slane %v2994, 4
    %v2996 = vrot.slane %v2334, 6
    %v2997 = vsel %vm1610, %v2995, %v2996
    %v2998 = vrot.slane %v2996, 4
    %v2999 = vrot.slane %v2782, 6
    %v3000 = vsel %vm1610, %v2998, %v2999
    %v3001 = vrot.slane %v2783, 6
    %v3002 = vrot.slane %v3001, 4
    %v3003 = vrot.slane %v2336, 6
    %v3004 = vsel %vm1610, %v3002, %v3003
    %v3005 = vrot.slane %v3003, 4
    %v3006 = vrot.slane %v2784, 6
    %v3007 = vsel %vm1610, %v3005, %v3006
    %v3008 = vrot.slane %v2785, 6
    %v3009 = vrot.slane %v3008, 4
    %v3010 = vrot.slane %v2338, 6
    %v3011 = vsel %vm1610, %v3009, %v3010
    %v3012 = vrot.slane %v3010, 4
    %v3013 = vrot.slane %v2786, 6
    %v3014 = vsel %vm1610, %v3012, %v3013
    %v3015 = vrot.slane %v2787, 6
    %v3016 = vrot.slane %v3015, 4
    %v3017 = vrot.slane %v2340, 6
    %v3018 = vsel %vm1610, %v3016, %v3017
    %v3019 = vrot.slane %v3017, 4
    %v3020 = vrot.slane %v2788, 6
    %v3021 = vsel %vm1610, %v3019, %v3020
    %v3022 = vrot.slane %v2789, 6
    %v3023 = vrot.slane %v3022, 4
    %v3024 = vrot.slane %v2342, 6
    %v3025 = vsel %vm1610, %v3023, %v3024
    %v3026 = vrot.slane %v3024, 4
    %v3027 = vrot.slane %v2790, 6
    %v3028 = vsel %vm1610, %v3026, %v3027
    %v3029 = vrot.slane %v2791, 6
    %v3030 = vrot.slane %v3029, 4
    %v3031 = vrot.slane %v2344, 6
    %v3032 = vsel %vm1610, %v3030, %v3031
    %v3033 = vrot.slane %v3031, 4
    %v3034 = vrot.slane %v2792, 6
    %v3035 = vsel %vm1610, %v3033, %v3034
    %v3036 = vrot.slane %v2793, 6
    %v3037 = vrot.slane %v3036, 4
    %v3038 = vrot.slane %v2346, 6
    %v3039 = vsel %vm1610, %v3037, %v3038
    %v3040 = vrot.slane %v3038, 4
    %v3041 = vrot.slane %v2794, 6
    %v3042 = vsel %vm1610, %v3040, %v3041
    %v3043 = vrot.slane %v2795, 6
    %v3044 = vrot.slane %v3043, 4
    %v3045 = vrot.slane %v2348, 6
    %v3046 = vsel %vm1610, %v3044, %v3045
    %v3047 = vrot.slane %v3045, 4
    %v3048 = vrot.slane %v2796, 6
    %v3049 = vsel %vm1610, %v3047, %v3048
    %v3050 = vrot.slane %v2797, 6
    %v3051 = vrot.slane %v3050, 4
    %v3052 = vrot.slane %v2350, 6
    %v3053 = vsel %vm1610, %v3051, %v3052
    %v3054 = vrot.slane %v3052, 4
    %v3055 = vrot.slane %v2798, 6
    %v3056 = vsel %vm1610, %v3054, %v3055
    %v3057 = vrot.slane %v2799, 6
    %v3058 = vrot.slane %v3057, 4
    %v3059 = vrot.slane %v2352, 6
    %v3060 = vsel %vm1610, %v3058, %v3059
    %v3061 = vrot.slane %v3059, 4
    %v3062 = vrot.slane %v2800, 6
    %v3063 = vsel %vm1610, %v3061, %v3062
    %v3064 = vrot.slane %v2801, 6
    %v3065 = vrot.slane %v3064, 4
    %v3066 = vrot.slane %v2354, 6
    %v3067 = vsel %vm1610, %v3065, %v3066
    %v3068 = vrot.slane %v3066, 4
    %v3069 = vrot.slane %v2802, 6
    %v3070 = vsel %vm1610, %v3068, %v3069
    %v3071 = vrot.slane %v2803, 6
    %v3072 = vrot.slane %v3071, 4
    %v3073 = vrot.slane %v2356, 6
    %v3074 = vsel %vm1610, %v3072, %v3073
    %v3075 = vrot.slane %v3073, 4
    %v3076 = vrot.slane %v2804, 6
    %v3077 = vsel %vm1610, %v3075, %v3076
    %v3078 = vrot.slane %v2805, 6
    %v3079 = vrot.slane %v3078, 4
    %v3080 = vrot.slane %v2358, 6
    %v3081 = vsel %vm1610, %v3079, %v3080
    %v3082 = vrot.slane %v3080, 4
    %v3083 = vrot.slane %v2806, 6
    %v3084 = vsel %vm1610, %v3082, %v3083
    %v3085 = vrot.slane %v2807, 6
    %v3086 = vrot.slane %v3085, 4
    %v3087 = vrot.slane %v2360, 6
    %v3088 = vsel %vm1610, %v3086, %v3087
    %v3089 = vrot.slane %v3087, 4
    %v3090 = vrot.slane %v2808, 6
    %v3091 = vsel %vm1610, %v3089, %v3090
    %v3092 = vrot.slane %v2809, 6
    %v3093 = vrot.slane %v3092, 4
    %v3094 = vrot.slane %v2362, 6
    %v3095 = vsel %vm1610, %v3093, %v3094
    %v3096 = vrot.slane %v3094, 4
    %v3097 = vrot.slane %v2810, 6
    %v3098 = vsel %vm1610, %v3096, %v3097
    %v3131 = vunpack.c.l.b16 %v2299
    %v3132 = vunpack.c.l.b16 %v2300
    %v3133 = vunpack.c.l.b16 %v2301
    %v3134 = vunpack.c.l.b16 %v2302
    %v3135 = vunpack.c.l.b16 %v2303
    %v3136 = vunpack.c.l.b16 %v2304
    %v3137 = vunpack.c.l.b16 %v2305
    %v3138 = vunpack.c.l.b16 %v2306
    %v3139 = vunpack.c.l.b16 %v2307
    %v3140 = vunpack.c.l.b16 %v2308
    %v3141 = vunpack.c.l.b16 %v2309
    %v3142 = vunpack.c.l.b16 %v2310
    %v3143 = vunpack.c.l.b16 %v2311
    %v3144 = vunpack.c.l.b16 %v2312
    %v3145 = vunpack.c.l.b16 %v2313
    %v3146 = vunpack.c.l.b16 %v2314
    %v3147 = vunpack.c.l.b16 %v2315
    %v3148 = vunpack.c.l.b16 %v2316
    %v3149 = vunpack.c.l.b16 %v2317
    %v3150 = vunpack.c.l.b16 %v2318
    %v3151 = vunpack.c.l.b16 %v2319
    %v3152 = vunpack.c.l.b16 %v2320
    %v3153 = vunpack.c.l.b16 %v2321
    %v3154 = vunpack.c.l.b16 %v2322
    %v3155 = vunpack.c.l.b16 %v2323
    %v3156 = vunpack.c.l.b16 %v2324
    %v3157 = vunpack.c.l.b16 %v2325
    %v3158 = vunpack.c.l.b16 %v2326
    %v3159 = vunpack.c.l.b16 %v2327
    %v3160 = vunpack.c.l.b16 %v2328
    %v3161 = vunpack.c.l.b16 %v2329
    %v3162 = vunpack.c.l.b16 %v2330
    %v3163 = vunpack.c.l.b16 %v2331
    %v3164 = vunpack.c.l.b16 %v2332
    %v3165 = vunpack.c.l.b16 %v2333
    %v3166 = vunpack.c.l.b16 %v2334
    %v3167 = vunpack.c.l.b16 %v2335
    %v3168 = vunpack.c.l.b16 %v2336
    %v3169 = vunpack.c.l.b16 %v2337
    %v3170 = vunpack.c.l.b16 %v2338
    %v3171 = vunpack.c.l.b16 %v2339
    %v3172 = vunpack.c.l.b16 %v2340
    %v3173 = vunpack.c.l.b16 %v2341
    %v3174 = vunpack.c.l.b16 %v2342
    %v3175 = vunpack.c.l.b16 %v2343
    %v3176 = vunpack.c.l.b16 %v2344
    %v3177 = vunpack.c.l.b16 %v2345
    %v3178 = vunpack.c.l.b16 %v2346
    %v3179 = vunpack.c.l.b16 %v2347
    %v3180 = vunpack.c.l.b16 %v2348
    %v3181 = vunpack.c.l.b16 %v2349
    %v3182 = vunpack.c.l.b16 %v2350
    %v3183 = vunpack.c.l.b16 %v2351
    %v3184 = vunpack.c.l.b16 %v2352
    %v3185 = vunpack.c.l.b16 %v2353
    %v3186 = vunpack.c.l.b16 %v2354
    %v3187 = vunpack.c.l.b16 %v2355
    %v3188 = vunpack.c.l.b16 %v2356
    %v3189 = vunpack.c.l.b16 %v2357
    %v3190 = vunpack.c.l.b16 %v2358
    %v3191 = vunpack.c.l.b16 %v2359
    %v3192 = vunpack.c.l.b16 %v2360
    %v3193 = vunpack.c.l.b16 %v2361
    %v3194 = vunpack.c.l.b16 %v2362
    %v3195 = vpack.c.b16 %v3132, %v3131
    %v3196 = vpack.c.b16 %v3134, %v3133
    %v3197 = vpack.c.b16 %v3136, %v3135
    %v3198 = vpack.c.b16 %v3138, %v3137
    %v3199 = vpack.c.b16 %v3140, %v3139
    %v3200 = vpack.c.b16 %v3142, %v3141
    %v3201 = vpack.c.b16 %v3144, %v3143
    %v3202 = vpack.c.b16 %v3146, %v3145
    %v3203 = vpack.c.b16 %v3148, %v3147
    %v3204 = vpack.c.b16 %v3150, %v3149
    %v3205 = vpack.c.b16 %v3152, %v3151
    %v3206 = vpack.c.b16 %v3154, %v3153
    %v3207 = vpack.c.b16 %v3156, %v3155
    %v3208 = vpack.c.b16 %v3158, %v3157
    %v3209 = vpack.c.b16 %v3160, %v3159
    %v3210 = vpack.c.b16 %v3162, %v3161
    %v3211 = vpack.c.b16 %v3164, %v3163
    %v3212 = vpack.c.b16 %v3166, %v3165
    %v3213 = vpack.c.b16 %v3168, %v3167
    %v3214 = vpack.c.b16 %v3170, %v3169
    %v3215 = vpack.c.b16 %v3172, %v3171
    %v3216 = vpack.c.b16 %v3174, %v3173
    %v3217 = vpack.c.b16 %v3176, %v3175
    %v3218 = vpack.c.b16 %v3178, %v3177
    %v3219 = vpack.c.b16 %v3180, %v3179
    %v3220 = vpack.c.b16 %v3182, %v3181
    %v3221 = vpack.c.b16 %v3184, %v3183
    %v3222 = vpack.c.b16 %v3186, %v3185
    %v3223 = vpack.c.b16 %v3188, %v3187
    %v3224 = vpack.c.b16 %v3190, %v3189
    %v3225 = vpack.c.b16 %v3192, %v3191
    %v3226 = vpack.c.b16 %v3194, %v3193
    %v3259 = vunpack.c.l.b16 %v2526
    %v3260 = vunpack.c.l.b16 %v2529
    %v3261 = vunpack.c.l.b16 %v2533
    %v3262 = vunpack.c.l.b16 %v2536
    %v3263 = vunpack.c.l.b16 %v2540
    %v3264 = vunpack.c.l.b16 %v2543
    %v3265 = vunpack.c.l.b16 %v2547
    %v3266 = vunpack.c.l.b16 %v2550
    %v3267 = vunpack.c.l.b16 %v2554
    %v3268 = vunpack.c.l.b16 %v2557
    %v3269 = vunpack.c.l.b16 %v2561
    %v3270 = vunpack.c.l.b16 %v2564
    %v3271 = vunpack.c.l.b16 %v2568
    %v3272 = vunpack.c.l.b16 %v2571
    %v3273 = vunpack.c.l.b16 %v2575
    %v3274 = vunpack.c.l.b16 %v2578
    %v3275 = vunpack.c.l.b16 %v2582
    %v3276 = vunpack.c.l.b16 %v2585
    %v3277 = vunpack.c.l.b16 %v2589
    %v3278 = vunpack.c.l.b16 %v2592
    %v3279 = vunpack.c.l.b16 %v2596
    %v3280 = vunpack.c.l.b16 %v2599
    %v3281 = vunpack.c.l.b16 %v2603
    %v3282 = vunpack.c.l.b16 %v2606
    %v3283 = vunpack.c.l.b16 %v2610
    %v3284 = vunpack.c.l.b16 %v2613
    %v3285 = vunpack.c.l.b16 %v2617
    %v3286 = vunpack.c.l.b16 %v2620
    %v3287 = vunpack.c.l.b16 %v2624
    %v3288 = vunpack.c.l.b16 %v2627
    %v3289 = vunpack.c.l.b16 %v2631
    %v3290 = vunpack.c.l.b16 %v2634
    %v3291 = vunpack.c.l.b16 %v2638
    %v3292 = vunpack.c.l.b16 %v2641
    %v3293 = vunpack.c.l.b16 %v2645
    %v3294 = vunpack.c.l.b16 %v2648
    %v3295 = vunpack.c.l.b16 %v2652
    %v3296 = vunpack.c.l.b16 %v2655
    %v3297 = vunpack.c.l.b16 %v2659
    %v3298 = vunpack.c.l.b16 %v2662
    %v3299 = vunpack.c.l.b16 %v2666
    %v3300 = vunpack.c.l.b16 %v2669
    %v3301 = vunpack.c.l.b16 %v2673
    %v3302 = vunpack.c.l.b16 %v2676
    %v3303 = vunpack.c.l.b16 %v2680
    %v3304 = vunpack.c.l.b16 %v2683
    %v3305 = vunpack.c.l.b16 %v2687
    %v3306 = vunpack.c.l.b16 %v2690
    %v3307 = vunpack.c.l.b16 %v2694
    %v3308 = vunpack.c.l.b16 %v2697
    %v3309 = vunpack.c.l.b16 %v2701
    %v3310 = vunpack.c.l.b16 %v2704
    %v3311 = vunpack.c.l.b16 %v2708
    %v3312 = vunpack.c.l.b16 %v2711
    %v3313 = vunpack.c.l.b16 %v2715
    %v3314 = vunpack.c.l.b16 %v2718
    %v3315 = vunpack.c.l.b16 %v2722
    %v3316 = vunpack.c.l.b16 %v2725
    %v3317 = vunpack.c.l.b16 %v2729
    %v3318 = vunpack.c.l.b16 %v2732
    %v3319 = vunpack.c.l.b16 %v2736
    %v3320 = vunpack.c.l.b16 %v2739
    %v3321 = vunpack.c.l.b16 %v2743
    %v3322 = vunpack.c.l.b16 %v2746
    %v3323 = vpack.c.b16 %v3260, %v3259
    %v3324 = vpack.c.b16 %v3262, %v3261
    %v3325 = vpack.c.b16 %v3264, %v3263
    %v3326 = vpack.c.b16 %v3266, %v3265
    %v3327 = vpack.c.b16 %v3268, %v3267
    %v3328 = vpack.c.b16 %v3270, %v3269
    %v3329 = vpack.c.b16 %v3272, %v3271
    %v3330 = vpack.c.b16 %v3274, %v3273
    %v3331 = vpack.c.b16 %v3276, %v3275
    %v3332 = vpack.c.b16 %v3278, %v3277
    %v3333 = vpack.c.b16 %v3280, %v3279
    %v3334 = vpack.c.b16 %v3282, %v3281
    %v3335 = vpack.c.b16 %v3284, %v3283
    %v3336 = vpack.c.b16 %v3286, %v3285
    %v3337 = vpack.c.b16 %v3288, %v3287
    %v3338 = vpack.c.b16 %v3290, %v3289
    %v3339 = vpack.c.b16 %v3292, %v3291
    %v3340 = vpack.c.b16 %v3294, %v3293
    %v3341 = vpack.c.b16 %v3296, %v3295
    %v3342 = vpack.c.b16 %v3298, %v3297
    %v3343 = vpack.c.b16 %v3300, %v3299
    %v3344 = vpack.c.b16 %v3302, %v3301
    %v3345 = vpack.c.b16 %v3304, %v3303
    %v3346 = vpack.c.b16 %v3306, %v3305
    %v3347 = vpack.c.b16 %v3308, %v3307
    %v3348 = vpack.c.b16 %v3310, %v3309
    %v3349 = vpack.c.b16 %v3312, %v3311
    %v3350 = vpack.c.b16 %v3314, %v3313
    %v3351 = vpack.c.b16 %v3316, %v3315
    %v3352 = vpack.c.b16 %v3318, %v3317
    %v3353 = vpack.c.b16 %v3320, %v3319
    %v3354 = vpack.c.b16 %v3322, %v3321
    %v3387 = vunpack.c.l.b16 %v2878
    %v3388 = vunpack.c.l.b16 %v2881
    %v3389 = vunpack.c.l.b16 %v2885
    %v3390 = vunpack.c.l.b16 %v2888
    %v3391 = vunpack.c.l.b16 %v2892
    %v3392 = vunpack.c.l.b16 %v2895
    %v3393 = vunpack.c.l.b16 %v2899
    %v3394 = vunpack.c.l.b16 %v2902
    %v3395 = vunpack.c.l.b16 %v2906
    %v3396 = vunpack.c.l.b16 %v2909
    %v3397 = vunpack.c.l.b16 %v2913
    %v3398 = vunpack.c.l.b16 %v2916
    %v3399 = vunpack.c.l.b16 %v2920
    %v3400 = vunpack.c.l.b16 %v2923
    %v3401 = vunpack.c.l.b16 %v2927
    %v3402 = vunpack.c.l.b16 %v2930
    %v3403 = vunpack.c.l.b16 %v2934
    %v3404 = vunpack.c.l.b16 %v2937
    %v3405 = vunpack.c.l.b16 %v2941
    %v3406 = vunpack.c.l.b16 %v2944
    %v3407 = vunpack.c.l.b16 %v2948
    %v3408 = vunpack.c.l.b16 %v2951
    %v3409 = vunpack.c.l.b16 %v2955
    %v3410 = vunpack.c.l.b16 %v2958
    %v3411 = vunpack.c.l.b16 %v2962
    %v3412 = vunpack.c.l.b16 %v2965
    %v3413 = vunpack.c.l.b16 %v2969
    %v3414 = vunpack.c.l.b16 %v2972
    %v3415 = vunpack.c.l.b16 %v2976
    %v3416 = vunpack.c.l.b16 %v2979
    %v3417 = vunpack.c.l.b16 %v2983
    %v3418 = vunpack.c.l.b16 %v2986
    %v3419 = vunpack.c.l.b16 %v2990
    %v3420 = vunpack.c.l.b16 %v2993
    %v3421 = vunpack.c.l.b16 %v2997
    %v3422 = vunpack.c.l.b16 %v3000
    %v3423 = vunpack.c.l.b16 %v3004
    %v3424 = vunpack.c.l.b16 %v3007
    %v3425 = vunpack.c.l.b16 %v3011
    %v3426 = vunpack.c.l.b16 %v3014
    %v3427 = vunpack.c.l.b16 %v3018
    %v3428 = vunpack.c.l.b16 %v3021
    %v3429 = vunpack.c.l.b16 %v3025
    %v3430 = vunpack.c.l.b16 %v3028
    %v3431 = vunpack.c.l.b16 %v3032
    %v3432 = vunpack.c.l.b16 %v3035
    %v3433 = vunpack.c.l.b16 %v3039
    %v3434 = vunpack.c.l.b16 %v3042
    %v3435 = vunpack.c.l.b16 %v3046
    %v3436 = vunpack.c.l.b16 %v3049
    %v3437 = vunpack.c.l.b16 %v3053
    %v3438 = vunpack.c.l.b16 %v3056
    %v3439 = vunpack.c.l.b16 %v3060
    %v3440 = vunpack.c.l.b16 %v3063
    %v3441 = vunpack.c.l.b16 %v3067
    %v3442 = vunpack.c.l.b16 %v3070
    %v3443 = vunpack.c.l.b16 %v3074
    %v3444 = vunpack.c.l.b16 %v3077
    %v3445 = vunpack.c.l.b16 %v3081
    %v3446 = vunpack.c.l.b16 %v3084
    %v3447 = vunpack.c.l.b16 %v3088
    %v3448 = vunpack.c.l.b16 %v3091
    %v3449 = vunpack.c.l.b16 %v3095
    %v3450 = vunpack.c.l.b16 %v3098
    %v3451 = vpack.c.b16 %v3388, %v3387
    %v3452 = vpack.c.b16 %v3390, %v3389
    %v3453 = vpack.c.b16 %v3392, %v3391
    %v3454 = vpack.c.b16 %v3394, %v3393
    %v3455 = vpack.c.b16 %v3396, %v3395
    %v3456 = vpack.c.b16 %v3398, %v3397
    %v3457 = vpack.c.b16 %v3400, %v3399
    %v3458 = vpack.c.b16 %v3402, %v3401
    %v3459 = vpack.c.b16 %v3404, %v3403
    %v3460 = vpack.c.b16 %v3406, %v3405
    %v3461 = vpack.c.b16 %v3408, %v3407
    %v3462 = vpack.c.b16 %v3410, %v3409
    %v3463 = vpack.c.b16 %v3412, %v3411
    %v3464 = vpack.c.b16 %v3414, %v3413
    %v3465 = vpack.c.b16 %v3416, %v3415
    %v3466 = vpack.c.b16 %v3418, %v3417
    %v3467 = vpack.c.b16 %v3420, %v3419
    %v3468 = vpack.c.b16 %v3422, %v3421
    %v3469 = vpack.c.b16 %v3424, %v3423
    %v3470 = vpack.c.b16 %v3426, %v3425
    %v3471 = vpack.c.b16 %v3428, %v3427
    %v3472 = vpack.c.b16 %v3430, %v3429
    %v3473 = vpack.c.b16 %v3432, %v3431
    %v3474 = vpack.c.b16 %v3434, %v3433
    %v3475 = vpack.c.b16 %v3436, %v3435
    %v3476 = vpack.c.b16 %v3438, %v3437
    %v3477 = vpack.c.b16 %v3440, %v3439
    %v3478 = vpack.c.b16 %v3442, %v3441
    %v3479 = vpack.c.b16 %v3444, %v3443
    %v3480 = vpack.c.b16 %v3446, %v3445
    %v3481 = vpack.c.b16 %v3448, %v3447
    %v3482 = vpack.c.b16 %v3450, %v3449
    %s3515 = scalar_lea.vmem %s3, 192
    %v3516 = vld [vmem:[%s3515] sm:$0xf]
    %v3517 = vld [vmem:[%s3515 + $0x4] sm:$0xf]
    %v3518 = vld [vmem:[%s3515 + $0x8] sm:$0xf]
    %v3519 = vld [vmem:[%s3515 + $0xc] sm:$0xf]
    %v3520 = vld [vmem:[%s3515 + $0x10] sm:$0xf]
    %v3521 = vld [vmem:[%s3515 + $0x14] sm:$0xf]
    %v3522 = vld [vmem:[%s3515 + $0x18] sm:$0xf]
    %v3523 = vld [vmem:[%s3515 + $0x1c] sm:$0xf]
    %v3524 = vld [vmem:[%s3515 + $0x20] sm:$0xf]
    %v3525 = vld [vmem:[%s3515 + $0x24] sm:$0xf]
    %v3526 = vld [vmem:[%s3515 + $0x28] sm:$0xf]
    %v3527 = vld [vmem:[%s3515 + $0x2c] sm:$0xf]
    %v3528 = vld [vmem:[%s3515 + $0x30] sm:$0xf]
    %v3529 = vld [vmem:[%s3515 + $0x34] sm:$0xf]
    %v3530 = vld [vmem:[%s3515 + $0x38] sm:$0xf]
    %v3531 = vld [vmem:[%s3515 + $0x3c] sm:$0xf]
    %v3532 = vld [vmem:[%s3515 + $0x40] sm:$0xf]
    %v3533 = vld [vmem:[%s3515 + $0x44] sm:$0xf]
    %v3534 = vld [vmem:[%s3515 + $0x48] sm:$0xf]
    %v3535 = vld [vmem:[%s3515 + $0x4c] sm:$0xf]
    %v3536 = vld [vmem:[%s3515 + $0x50] sm:$0xf]
    %v3537 = vld [vmem:[%s3515 + $0x54] sm:$0xf]
    %v3538 = vld [vmem:[%s3515 + $0x58] sm:$0xf]
    %v3539 = vld [vmem:[%s3515 + $0x5c] sm:$0xf]
    %v3540 = vld [vmem:[%s3515 + $0x60] sm:$0xf]
    %v3541 = vld [vmem:[%s3515 + $0x64] sm:$0xf]
    %v3542 = vld [vmem:[%s3515 + $0x68] sm:$0xf]
    %v3543 = vld [vmem:[%s3515 + $0x6c] sm:$0xf]
    %v3544 = vld [vmem:[%s3515 + $0x70] sm:$0xf]
    %v3545 = vld [vmem:[%s3515 + $0x74] sm:$0xf]
    %v3546 = vld [vmem:[%s3515 + $0x78] sm:$0xf]
    %v3547 = vld [vmem:[%s3515 + $0x7c] sm:$0xf]
    %v3548 = vld [vmem:[%s3515 + $0x80] sm:$0xf]
    %v3549 = vld [vmem:[%s3515 + $0x84] sm:$0xf]
    %v3550 = vld [vmem:[%s3515 + $0x88] sm:$0xf]
    %v3551 = vld [vmem:[%s3515 + $0x8c] sm:$0xf]
    %v3552 = vld [vmem:[%s3515 + $0x90] sm:$0xf]
    %v3553 = vld [vmem:[%s3515 + $0x94] sm:$0xf]
    %v3554 = vld [vmem:[%s3515 + $0x98] sm:$0xf]
    %v3555 = vld [vmem:[%s3515 + $0x9c] sm:$0xf]
    %v3556 = vld [vmem:[%s3515 + $0xa0] sm:$0xf]
    %v3557 = vld [vmem:[%s3515 + $0xa4] sm:$0xf]
    %v3558 = vld [vmem:[%s3515 + $0xa8] sm:$0xf]
    %v3559 = vld [vmem:[%s3515 + $0xac] sm:$0xf]
    %v3560 = vld [vmem:[%s3515 + $0xb0] sm:$0xf]
    %v3561 = vld [vmem:[%s3515 + $0xb4] sm:$0xf]
    %v3562 = vld [vmem:[%s3515 + $0xb8] sm:$0xf]
    %v3563 = vld [vmem:[%s3515 + $0xbc] sm:$0xf]
    %v3612 = vunpack.c.l.b16 %v3516
    %v3613 = vunpack.c.l.b16 %v3517
    %v3614 = vunpack.c.l.b16 %v3518
    %v3615 = vunpack.c.l.b16 %v3519
    %v3616 = vunpack.c.l.b16 %v3520
    %v3617 = vunpack.c.l.b16 %v3521
    %v3618 = vunpack.c.l.b16 %v3522
    %v3619 = vunpack.c.l.b16 %v3523
    %v3620 = vunpack.c.l.b16 %v3524
    %v3621 = vunpack.c.l.b16 %v3525
    %v3622 = vunpack.c.l.b16 %v3526
    %v3623 = vunpack.c.l.b16 %v3527
    %v3624 = vunpack.c.l.b16 %v3528
    %v3625 = vunpack.c.l.b16 %v3529
    %v3626 = vunpack.c.l.b16 %v3530
    %v3627 = vunpack.c.l.b16 %v3531
    %v3628 = vunpack.c.l.b16 %v3532
    %v3629 = vunpack.c.l.b16 %v3533
    %v3630 = vunpack.c.l.b16 %v3534
    %v3631 = vunpack.c.l.b16 %v3535
    %v3632 = vunpack.c.l.b16 %v3536
    %v3633 = vunpack.c.l.b16 %v3537
    %v3634 = vunpack.c.l.b16 %v3538
    %v3635 = vunpack.c.l.b16 %v3539
    %v3636 = vunpack.c.l.b16 %v3540
    %v3637 = vunpack.c.l.b16 %v3541
    %v3638 = vunpack.c.l.b16 %v3542
    %v3639 = vunpack.c.l.b16 %v3543
    %v3640 = vunpack.c.l.b16 %v3544
    %v3641 = vunpack.c.l.b16 %v3545
    %v3642 = vunpack.c.l.b16 %v3546
    %v3643 = vunpack.c.l.b16 %v3547
    %v3644 = vunpack.c.l.b16 %v3548
    %v3645 = vunpack.c.l.b16 %v3549
    %v3646 = vunpack.c.l.b16 %v3550
    %v3647 = vunpack.c.l.b16 %v3551
    %v3648 = vunpack.c.l.b16 %v3552
    %v3649 = vunpack.c.l.b16 %v3553
    %v3650 = vunpack.c.l.b16 %v3554
    %v3651 = vunpack.c.l.b16 %v3555
    %v3652 = vunpack.c.l.b16 %v3556
    %v3653 = vunpack.c.l.b16 %v3557
    %v3654 = vunpack.c.l.b16 %v3558
    %v3655 = vunpack.c.l.b16 %v3559
    %v3656 = vunpack.c.l.b16 %v3560
    %v3657 = vunpack.c.l.b16 %v3561
    %v3658 = vunpack.c.l.b16 %v3562
    %v3659 = vunpack.c.l.b16 %v3563
    %v3660 = vpack.c.b16 %v3613, %v3612
    %v3661 = vpack.c.b16 %v3615, %v3614
    %v3662 = vpack.c.b16 %v3617, %v3616
    %v3663 = vpack.c.b16 %v3619, %v3618
    %v3664 = vpack.c.b16 %v3621, %v3620
    %v3665 = vpack.c.b16 %v3623, %v3622
    %v3666 = vpack.c.b16 %v3625, %v3624
    %v3667 = vpack.c.b16 %v3627, %v3626
    %v3668 = vpack.c.b16 %v3629, %v3628
    %v3669 = vpack.c.b16 %v3631, %v3630
    %v3670 = vpack.c.b16 %v3633, %v3632
    %v3671 = vpack.c.b16 %v3635, %v3634
    %v3672 = vpack.c.b16 %v3637, %v3636
    %v3673 = vpack.c.b16 %v3639, %v3638
    %v3674 = vpack.c.b16 %v3641, %v3640
    %v3675 = vpack.c.b16 %v3643, %v3642
    %v3676 = vpack.c.b16 %v3645, %v3644
    %v3677 = vpack.c.b16 %v3647, %v3646
    %v3678 = vpack.c.b16 %v3649, %v3648
    %v3679 = vpack.c.b16 %v3651, %v3650
    %v3680 = vpack.c.b16 %v3653, %v3652
    %v3681 = vpack.c.b16 %v3655, %v3654
    %v3682 = vpack.c.b16 %v3657, %v3656
    %v3683 = vpack.c.b16 %v3659, %v3658
    %3708 = vmatpush.bf16.msra.mxu0 %v3667
    %3709 = vmatpush.bf16.msra.mxu0 %v3666
    %3710 = vmatpush.bf16.msra.mxu0 %v3665
    %3711 = vmatpush.bf16.msra.mxu0 %v3664
    %3712 = vmatpush.bf16.msra.mxu0 %v3663
    %3713 = vmatpush.bf16.msra.mxu0 %v3662
    %3714 = vmatpush.bf16.msra.mxu0 %v3661
    %3715 = vmatpush.bf16.msra.mxu0 %v3660
    %3716 = vmatmul.bf16.gmra.mxu0 %v3195
    %v3717 = vpop.f32.mrf.mxu0
    %v3718 = vadd.f32 0.0, %v3717
    %v3719 = vpop.f32.mrf.mxu0
    %v3720 = vadd.f32 0.0, %v3719
    %3721 = vmatmul.bf16.gmra.mxu0 %v3196
    %v3722 = vpop.f32.mrf.mxu0
    %v3723 = vadd.f32 0.0, %v3722
    %v3724 = vpop.f32.mrf.mxu0
    %v3725 = vadd.f32 0.0, %v3724
    %3726 = vmatmul.bf16.gmra.mxu0 %v3197
    %v3727 = vpop.f32.mrf.mxu0
    %v3728 = vadd.f32 0.0, %v3727
    %v3729 = vpop.f32.mrf.mxu0
    %v3730 = vadd.f32 0.0, %v3729
    %3731 = vmatmul.bf16.gmra.mxu0 %v3198
    %v3732 = vpop.f32.mrf.mxu0
    %v3733 = vadd.f32 0.0, %v3732
    %v3734 = vpop.f32.mrf.mxu0
    %v3735 = vadd.f32 0.0, %v3734
    %3736 = vmatmul.bf16.gmra.mxu0 %v3199
    %v3737 = vpop.f32.mrf.mxu0
    %v3738 = vadd.f32 0.0, %v3737
    %v3739 = vpop.f32.mrf.mxu0
    %v3740 = vadd.f32 0.0, %v3739
    %3741 = vmatmul.bf16.gmra.mxu0 %v3200
    %v3742 = vpop.f32.mrf.mxu0
    %v3743 = vadd.f32 0.0, %v3742
    %v3744 = vpop.f32.mrf.mxu0
    %v3745 = vadd.f32 0.0, %v3744
    %3746 = vmatmul.bf16.gmra.mxu0 %v3201
    %v3747 = vpop.f32.mrf.mxu0
    %v3748 = vadd.f32 0.0, %v3747
    %v3749 = vpop.f32.mrf.mxu0
    %v3750 = vadd.f32 0.0, %v3749
    %3751 = vmatmul.bf16.gmra.mxu0 %v3202
    %v3752 = vpop.f32.mrf.mxu0
    %v3753 = vadd.f32 0.0, %v3752
    %v3754 = vpop.f32.mrf.mxu0
    %v3755 = vadd.f32 0.0, %v3754
    %3756 = vmatmul.bf16.gmra.mxu0 %v3203
    %v3757 = vpop.f32.mrf.mxu0
    %v3758 = vadd.f32 0.0, %v3757
    %v3759 = vpop.f32.mrf.mxu0
    %v3760 = vadd.f32 0.0, %v3759
    %3761 = vmatmul.bf16.gmra.mxu0 %v3204
    %v3762 = vpop.f32.mrf.mxu0
    %v3763 = vadd.f32 0.0, %v3762
    %v3764 = vpop.f32.mrf.mxu0
    %v3765 = vadd.f32 0.0, %v3764
    %3766 = vmatmul.bf16.gmra.mxu0 %v3205
    %v3767 = vpop.f32.mrf.mxu0
    %v3768 = vadd.f32 0.0, %v3767
    %v3769 = vpop.f32.mrf.mxu0
    %v3770 = vadd.f32 0.0, %v3769
    %3771 = vmatmul.bf16.gmra.mxu0 %v3206
    %v3772 = vpop.f32.mrf.mxu0
    %v3773 = vadd.f32 0.0, %v3772
    %v3774 = vpop.f32.mrf.mxu0
    %v3775 = vadd.f32 0.0, %v3774
    %3776 = vmatmul.bf16.gmra.mxu0 %v3207
    %v3777 = vpop.f32.mrf.mxu0
    %v3778 = vadd.f32 0.0, %v3777
    %v3779 = vpop.f32.mrf.mxu0
    %v3780 = vadd.f32 0.0, %v3779
    %3781 = vmatmul.bf16.gmra.mxu0 %v3208
    %v3782 = vpop.f32.mrf.mxu0
    %v3783 = vadd.f32 0.0, %v3782
    %v3784 = vpop.f32.mrf.mxu0
    %v3785 = vadd.f32 0.0, %v3784
    %3786 = vmatmul.bf16.gmra.mxu0 %v3209
    %v3787 = vpop.f32.mrf.mxu0
    %v3788 = vadd.f32 0.0, %v3787
    %v3789 = vpop.f32.mrf.mxu0
    %v3790 = vadd.f32 0.0, %v3789
    %3791 = vmatmul.bf16.gmra.mxu0 %v3210
    %v3792 = vpop.f32.mrf.mxu0
    %v3793 = vadd.f32 0.0, %v3792
    %v3794 = vpop.f32.mrf.mxu0
    %v3795 = vadd.f32 0.0, %v3794
    %3796 = vmatmul.bf16.gmra.mxu0 %v3211
    %v3797 = vpop.f32.mrf.mxu0
    %v3798 = vadd.f32 0.0, %v3797
    %v3799 = vpop.f32.mrf.mxu0
    %v3800 = vadd.f32 0.0, %v3799
    %3801 = vmatmul.bf16.gmra.mxu0 %v3212
    %v3802 = vpop.f32.mrf.mxu0
    %v3803 = vadd.f32 0.0, %v3802
    %v3804 = vpop.f32.mrf.mxu0
    %v3805 = vadd.f32 0.0, %v3804
    %3806 = vmatmul.bf16.gmra.mxu0 %v3213
    %v3807 = vpop.f32.mrf.mxu0
    %v3808 = vadd.f32 0.0, %v3807
    %v3809 = vpop.f32.mrf.mxu0
    %v3810 = vadd.f32 0.0, %v3809
    %3811 = vmatmul.bf16.gmra.mxu0 %v3214
    %v3812 = vpop.f32.mrf.mxu0
    %v3813 = vadd.f32 0.0, %v3812
    %v3814 = vpop.f32.mrf.mxu0
    %v3815 = vadd.f32 0.0, %v3814
    %3816 = vmatmul.bf16.gmra.mxu0 %v3215
    %v3817 = vpop.f32.mrf.mxu0
    %v3818 = vadd.f32 0.0, %v3817
    %v3819 = vpop.f32.mrf.mxu0
    %v3820 = vadd.f32 0.0, %v3819
    %3821 = vmatmul.bf16.gmra.mxu0 %v3216
    %v3822 = vpop.f32.mrf.mxu0
    %v3823 = vadd.f32 0.0, %v3822
    %v3824 = vpop.f32.mrf.mxu0
    %v3825 = vadd.f32 0.0, %v3824
    %3826 = vmatmul.bf16.gmra.mxu0 %v3217
    %v3827 = vpop.f32.mrf.mxu0
    %v3828 = vadd.f32 0.0, %v3827
    %v3829 = vpop.f32.mrf.mxu0
    %v3830 = vadd.f32 0.0, %v3829
    %3831 = vmatmul.bf16.gmra.mxu0 %v3218
    %v3832 = vpop.f32.mrf.mxu0
    %v3833 = vadd.f32 0.0, %v3832
    %v3834 = vpop.f32.mrf.mxu0
    %v3835 = vadd.f32 0.0, %v3834
    %3836 = vmatmul.bf16.gmra.mxu0 %v3219
    %v3837 = vpop.f32.mrf.mxu0
    %v3838 = vadd.f32 0.0, %v3837
    %v3839 = vpop.f32.mrf.mxu0
    %v3840 = vadd.f32 0.0, %v3839
    %3841 = vmatmul.bf16.gmra.mxu0 %v3220
    %v3842 = vpop.f32.mrf.mxu0
    %v3843 = vadd.f32 0.0, %v3842
    %v3844 = vpop.f32.mrf.mxu0
    %v3845 = vadd.f32 0.0, %v3844
    %3846 = vmatmul.bf16.gmra.mxu0 %v3221
    %v3847 = vpop.f32.mrf.mxu0
    %v3848 = vadd.f32 0.0, %v3847
    %v3849 = vpop.f32.mrf.mxu0
    %v3850 = vadd.f32 0.0, %v3849
    %3851 = vmatmul.bf16.gmra.mxu0 %v3222
    %v3852 = vpop.f32.mrf.mxu0
    %v3853 = vadd.f32 0.0, %v3852
    %v3854 = vpop.f32.mrf.mxu0
    %v3855 = vadd.f32 0.0, %v3854
    %3856 = vmatmul.bf16.gmra.mxu0 %v3223
    %v3857 = vpop.f32.mrf.mxu0
    %v3858 = vadd.f32 0.0, %v3857
    %v3859 = vpop.f32.mrf.mxu0
    %v3860 = vadd.f32 0.0, %v3859
    %3861 = vmatmul.bf16.gmra.mxu0 %v3224
    %v3862 = vpop.f32.mrf.mxu0
    %v3863 = vadd.f32 0.0, %v3862
    %v3864 = vpop.f32.mrf.mxu0
    %v3865 = vadd.f32 0.0, %v3864
    %3866 = vmatmul.bf16.gmra.mxu0 %v3225
    %v3867 = vpop.f32.mrf.mxu0
    %v3868 = vadd.f32 0.0, %v3867
    %v3869 = vpop.f32.mrf.mxu0
    %v3870 = vadd.f32 0.0, %v3869
    %3871 = vmatmul.bf16.gmra.mxu0 %v3226
    %v3872 = vpop.f32.mrf.mxu0
    %v3873 = vadd.f32 0.0, %v3872
    %v3874 = vpop.f32.mrf.mxu0
    %v3875 = vadd.f32 0.0, %v3874
    %3876 = vdwg.mxu0
    %3877 = vmatpush.bf16.msra.mxu0 %v3675
    %3878 = vmatpush.bf16.msra.mxu0 %v3674
    %3879 = vmatpush.bf16.msra.mxu0 %v3673
    %3880 = vmatpush.bf16.msra.mxu0 %v3672
    %3881 = vmatpush.bf16.msra.mxu0 %v3671
    %3882 = vmatpush.bf16.msra.mxu0 %v3670
    %3883 = vmatpush.bf16.msra.mxu0 %v3669
    %3884 = vmatpush.bf16.msra.mxu0 %v3668
    %3885 = vmatmul.bf16.gmra.mxu0 %v3323
    %v3886 = vpop.f32.mrf.mxu0
    %v3887 = vadd.f32 %v3718, %v3886
    %v3888 = vpop.f32.mrf.mxu0
    %v3889 = vadd.f32 %v3720, %v3888
    %3890 = vmatmul.bf16.gmra.mxu0 %v3324
    %v3891 = vpop.f32.mrf.mxu0
    %v3892 = vadd.f32 %v3723, %v3891
    %v3893 = vpop.f32.mrf.mxu0
    %v3894 = vadd.f32 %v3725, %v3893
    %3895 = vmatmul.bf16.gmra.mxu0 %v3325
    %v3896 = vpop.f32.mrf.mxu0
    %v3897 = vadd.f32 %v3728, %v3896
    %v3898 = vpop.f32.mrf.mxu0
    %v3899 = vadd.f32 %v3730, %v3898
    %3900 = vmatmul.bf16.gmra.mxu0 %v3326
    %v3901 = vpop.f32.mrf.mxu0
    %v3902 = vadd.f32 %v3733, %v3901
    %v3903 = vpop.f32.mrf.mxu0
    %v3904 = vadd.f32 %v3735, %v3903
    %3905 = vmatmul.bf16.gmra.mxu0 %v3327
    %v3906 = vpop.f32.mrf.mxu0
    %v3907 = vadd.f32 %v3738, %v3906
    %v3908 = vpop.f32.mrf.mxu0
    %v3909 = vadd.f32 %v3740, %v3908
    %3910 = vmatmul.bf16.gmra.mxu0 %v3328
    %v3911 = vpop.f32.mrf.mxu0
    %v3912 = vadd.f32 %v3743, %v3911
    %v3913 = vpop.f32.mrf.mxu0
    %v3914 = vadd.f32 %v3745, %v3913
    %3915 = vmatmul.bf16.gmra.mxu0 %v3329
    %v3916 = vpop.f32.mrf.mxu0
    %v3917 = vadd.f32 %v3748, %v3916
    %v3918 = vpop.f32.mrf.mxu0
    %v3919 = vadd.f32 %v3750, %v3918
    %3920 = vmatmul.bf16.gmra.mxu0 %v3330
    %v3921 = vpop.f32.mrf.mxu0
    %v3922 = vadd.f32 %v3753, %v3921
    %v3923 = vpop.f32.mrf.mxu0
    %v3924 = vadd.f32 %v3755, %v3923
    %3925 = vmatmul.bf16.gmra.mxu0 %v3331
    %v3926 = vpop.f32.mrf.mxu0
    %v3927 = vadd.f32 %v3758, %v3926
    %v3928 = vpop.f32.mrf.mxu0
    %v3929 = vadd.f32 %v3760, %v3928
    %3930 = vmatmul.bf16.gmra.mxu0 %v3332
    %v3931 = vpop.f32.mrf.mxu0
    %v3932 = vadd.f32 %v3763, %v3931
    %v3933 = vpop.f32.mrf.mxu0
    %v3934 = vadd.f32 %v3765, %v3933
    %3935 = vmatmul.bf16.gmra.mxu0 %v3333
    %v3936 = vpop.f32.mrf.mxu0
    %v3937 = vadd.f32 %v3768, %v3936
    %v3938 = vpop.f32.mrf.mxu0
    %v3939 = vadd.f32 %v3770, %v3938
    %3940 = vmatmul.bf16.gmra.mxu0 %v3334
    %v3941 = vpop.f32.mrf.mxu0
    %v3942 = vadd.f32 %v3773, %v3941
    %v3943 = vpop.f32.mrf.mxu0
    %v3944 = vadd.f32 %v3775, %v3943
    %3945 = vmatmul.bf16.gmra.mxu0 %v3335
    %v3946 = vpop.f32.mrf.mxu0
    %v3947 = vadd.f32 %v3778, %v3946
    %v3948 = vpop.f32.mrf.mxu0
    %v3949 = vadd.f32 %v3780, %v3948
    %3950 = vmatmul.bf16.gmra.mxu0 %v3336
    %v3951 = vpop.f32.mrf.mxu0
    %v3952 = vadd.f32 %v3783, %v3951
    %v3953 = vpop.f32.mrf.mxu0
    %v3954 = vadd.f32 %v3785, %v3953
    %3955 = vmatmul.bf16.gmra.mxu0 %v3337
    %v3956 = vpop.f32.mrf.mxu0
    %v3957 = vadd.f32 %v3788, %v3956
    %v3958 = vpop.f32.mrf.mxu0
    %v3959 = vadd.f32 %v3790, %v3958
    %3960 = vmatmul.bf16.gmra.mxu0 %v3338
    %v3961 = vpop.f32.mrf.mxu0
    %v3962 = vadd.f32 %v3793, %v3961
    %v3963 = vpop.f32.mrf.mxu0
    %v3964 = vadd.f32 %v3795, %v3963
    %3965 = vmatmul.bf16.gmra.mxu0 %v3339
    %v3966 = vpop.f32.mrf.mxu0
    %v3967 = vadd.f32 %v3798, %v3966
    %v3968 = vpop.f32.mrf.mxu0
    %v3969 = vadd.f32 %v3800, %v3968
    %3970 = vmatmul.bf16.gmra.mxu0 %v3340
    %v3971 = vpop.f32.mrf.mxu0
    %v3972 = vadd.f32 %v3803, %v3971
    %v3973 = vpop.f32.mrf.mxu0
    %v3974 = vadd.f32 %v3805, %v3973
    %3975 = vmatmul.bf16.gmra.mxu0 %v3341
    %v3976 = vpop.f32.mrf.mxu0
    %v3977 = vadd.f32 %v3808, %v3976
    %v3978 = vpop.f32.mrf.mxu0
    %v3979 = vadd.f32 %v3810, %v3978
    %3980 = vmatmul.bf16.gmra.mxu0 %v3342
    %v3981 = vpop.f32.mrf.mxu0
    %v3982 = vadd.f32 %v3813, %v3981
    %v3983 = vpop.f32.mrf.mxu0
    %v3984 = vadd.f32 %v3815, %v3983
    %3985 = vmatmul.bf16.gmra.mxu0 %v3343
    %v3986 = vpop.f32.mrf.mxu0
    %v3987 = vadd.f32 %v3818, %v3986
    %v3988 = vpop.f32.mrf.mxu0
    %v3989 = vadd.f32 %v3820, %v3988
    %3990 = vmatmul.bf16.gmra.mxu0 %v3344
    %v3991 = vpop.f32.mrf.mxu0
    %v3992 = vadd.f32 %v3823, %v3991
    %v3993 = vpop.f32.mrf.mxu0
    %v3994 = vadd.f32 %v3825, %v3993
    %3995 = vmatmul.bf16.gmra.mxu0 %v3345
    %v3996 = vpop.f32.mrf.mxu0
    %v3997 = vadd.f32 %v3828, %v3996
    %v3998 = vpop.f32.mrf.mxu0
    %v3999 = vadd.f32 %v3830, %v3998
    %4000 = vmatmul.bf16.gmra.mxu0 %v3346
    %v4001 = vpop.f32.mrf.mxu0
    %v4002 = vadd.f32 %v3833, %v4001
    %v4003 = vpop.f32.mrf.mxu0
    %v4004 = vadd.f32 %v3835, %v4003
    %4005 = vmatmul.bf16.gmra.mxu0 %v3347
    %v4006 = vpop.f32.mrf.mxu0
    %v4007 = vadd.f32 %v3838, %v4006
    %v4008 = vpop.f32.mrf.mxu0
    %v4009 = vadd.f32 %v3840, %v4008
    %4010 = vmatmul.bf16.gmra.mxu0 %v3348
    %v4011 = vpop.f32.mrf.mxu0
    %v4012 = vadd.f32 %v3843, %v4011
    %v4013 = vpop.f32.mrf.mxu0
    %v4014 = vadd.f32 %v3845, %v4013
    %4015 = vmatmul.bf16.gmra.mxu0 %v3349
    %v4016 = vpop.f32.mrf.mxu0
    %v4017 = vadd.f32 %v3848, %v4016
    %v4018 = vpop.f32.mrf.mxu0
    %v4019 = vadd.f32 %v3850, %v4018
    %4020 = vmatmul.bf16.gmra.mxu0 %v3350
    %v4021 = vpop.f32.mrf.mxu0
    %v4022 = vadd.f32 %v3853, %v4021
    %v4023 = vpop.f32.mrf.mxu0
    %v4024 = vadd.f32 %v3855, %v4023
    %4025 = vmatmul.bf16.gmra.mxu0 %v3351
    %v4026 = vpop.f32.mrf.mxu0
    %v4027 = vadd.f32 %v3858, %v4026
    %v4028 = vpop.f32.mrf.mxu0
    %v4029 = vadd.f32 %v3860, %v4028
    %4030 = vmatmul.bf16.gmra.mxu0 %v3352
    %v4031 = vpop.f32.mrf.mxu0
    %v4032 = vadd.f32 %v3863, %v4031
    %v4033 = vpop.f32.mrf.mxu0
    %v4034 = vadd.f32 %v3865, %v4033
    %4035 = vmatmul.bf16.gmra.mxu0 %v3353
    %v4036 = vpop.f32.mrf.mxu0
    %v4037 = vadd.f32 %v3868, %v4036
    %v4038 = vpop.f32.mrf.mxu0
    %v4039 = vadd.f32 %v3870, %v4038
    %4040 = vmatmul.bf16.gmra.mxu0 %v3354
    %v4041 = vpop.f32.mrf.mxu0
    %v4042 = vadd.f32 %v3873, %v4041
    %v4043 = vpop.f32.mrf.mxu0
    %v4044 = vadd.f32 %v3875, %v4043
    %4045 = vdwg.mxu0
    %4046 = vmatpush.bf16.msra.mxu0 %v3683
    %4047 = vmatpush.bf16.msra.mxu0 %v3682
    %4048 = vmatpush.bf16.msra.mxu0 %v3681
    %4049 = vmatpush.bf16.msra.mxu0 %v3680
    %4050 = vmatpush.bf16.msra.mxu0 %v3679
    %4051 = vmatpush.bf16.msra.mxu0 %v3678
    %4052 = vmatpush.bf16.msra.mxu0 %v3677
    %4053 = vmatpush.bf16.msra.mxu0 %v3676
    %4054 = vmatmul.bf16.gmra.mxu0 %v3451
    %v4055 = vpop.f32.mrf.mxu0
    %v4056 = vadd.f32 %v3887, %v4055
    %v4057 = vpop.f32.mrf.mxu0
    %v4058 = vadd.f32 %v3889, %v4057
    %4059 = vmatmul.bf16.gmra.mxu0 %v3452
    %v4060 = vpop.f32.mrf.mxu0
    %v4061 = vadd.f32 %v3892, %v4060
    %v4062 = vpop.f32.mrf.mxu0
    %v4063 = vadd.f32 %v3894, %v4062
    %4064 = vmatmul.bf16.gmra.mxu0 %v3453
    %v4065 = vpop.f32.mrf.mxu0
    %v4066 = vadd.f32 %v3897, %v4065
    %v4067 = vpop.f32.mrf.mxu0
    %v4068 = vadd.f32 %v3899, %v4067
    %4069 = vmatmul.bf16.gmra.mxu0 %v3454
    %v4070 = vpop.f32.mrf.mxu0
    %v4071 = vadd.f32 %v3902, %v4070
    %v4072 = vpop.f32.mrf.mxu0
    %v4073 = vadd.f32 %v3904, %v4072
    %4074 = vmatmul.bf16.gmra.mxu0 %v3455
    %v4075 = vpop.f32.mrf.mxu0
    %v4076 = vadd.f32 %v3907, %v4075
    %v4077 = vpop.f32.mrf.mxu0
    %v4078 = vadd.f32 %v3909, %v4077
    %4079 = vmatmul.bf16.gmra.mxu0 %v3456
    %v4080 = vpop.f32.mrf.mxu0
    %v4081 = vadd.f32 %v3912, %v4080
    %v4082 = vpop.f32.mrf.mxu0
    %v4083 = vadd.f32 %v3914, %v4082
    %4084 = vmatmul.bf16.gmra.mxu0 %v3457
    %v4085 = vpop.f32.mrf.mxu0
    %v4086 = vadd.f32 %v3917, %v4085
    %v4087 = vpop.f32.mrf.mxu0
    %v4088 = vadd.f32 %v3919, %v4087
    %4089 = vmatmul.bf16.gmra.mxu0 %v3458
    %v4090 = vpop.f32.mrf.mxu0
    %v4091 = vadd.f32 %v3922, %v4090
    %v4092 = vpop.f32.mrf.mxu0
    %v4093 = vadd.f32 %v3924, %v4092
    %4094 = vmatmul.bf16.gmra.mxu0 %v3459
    %v4095 = vpop.f32.mrf.mxu0
    %v4096 = vadd.f32 %v3927, %v4095
    %v4097 = vpop.f32.mrf.mxu0
    %v4098 = vadd.f32 %v3929, %v4097
    %4099 = vmatmul.bf16.gmra.mxu0 %v3460
    %v4100 = vpop.f32.mrf.mxu0
    %v4101 = vadd.f32 %v3932, %v4100
    %v4102 = vpop.f32.mrf.mxu0
    %v4103 = vadd.f32 %v3934, %v4102
    %4104 = vmatmul.bf16.gmra.mxu0 %v3461
    %v4105 = vpop.f32.mrf.mxu0
    %v4106 = vadd.f32 %v3937, %v4105
    %v4107 = vpop.f32.mrf.mxu0
    %v4108 = vadd.f32 %v3939, %v4107
    %4109 = vmatmul.bf16.gmra.mxu0 %v3462
    %v4110 = vpop.f32.mrf.mxu0
    %v4111 = vadd.f32 %v3942, %v4110
    %v4112 = vpop.f32.mrf.mxu0
    %v4113 = vadd.f32 %v3944, %v4112
    %4114 = vmatmul.bf16.gmra.mxu0 %v3463
    %v4115 = vpop.f32.mrf.mxu0
    %v4116 = vadd.f32 %v3947, %v4115
    %v4117 = vpop.f32.mrf.mxu0
    %v4118 = vadd.f32 %v3949, %v4117
    %4119 = vmatmul.bf16.gmra.mxu0 %v3464
    %v4120 = vpop.f32.mrf.mxu0
    %v4121 = vadd.f32 %v3952, %v4120
    %v4122 = vpop.f32.mrf.mxu0
    %v4123 = vadd.f32 %v3954, %v4122
    %4124 = vmatmul.bf16.gmra.mxu0 %v3465
    %v4125 = vpop.f32.mrf.mxu0
    %v4126 = vadd.f32 %v3957, %v4125
    %v4127 = vpop.f32.mrf.mxu0
    %v4128 = vadd.f32 %v3959, %v4127
    %4129 = vmatmul.bf16.gmra.mxu0 %v3466
    %v4130 = vpop.f32.mrf.mxu0
    %v4131 = vadd.f32 %v3962, %v4130
    %v4132 = vpop.f32.mrf.mxu0
    %v4133 = vadd.f32 %v3964, %v4132
    %4134 = vmatmul.bf16.gmra.mxu0 %v3467
    %v4135 = vpop.f32.mrf.mxu0
    %v4136 = vadd.f32 %v3967, %v4135
    %v4137 = vpop.f32.mrf.mxu0
    %v4138 = vadd.f32 %v3969, %v4137
    %4139 = vmatmul.bf16.gmra.mxu0 %v3468
    %v4140 = vpop.f32.mrf.mxu0
    %v4141 = vadd.f32 %v3972, %v4140
    %v4142 = vpop.f32.mrf.mxu0
    %v4143 = vadd.f32 %v3974, %v4142
    %4144 = vmatmul.bf16.gmra.mxu0 %v3469
    %v4145 = vpop.f32.mrf.mxu0
    %v4146 = vadd.f32 %v3977, %v4145
    %v4147 = vpop.f32.mrf.mxu0
    %v4148 = vadd.f32 %v3979, %v4147
    %4149 = vmatmul.bf16.gmra.mxu0 %v3470
    %v4150 = vpop.f32.mrf.mxu0
    %v4151 = vadd.f32 %v3982, %v4150
    %v4152 = vpop.f32.mrf.mxu0
    %v4153 = vadd.f32 %v3984, %v4152
    %4154 = vmatmul.bf16.gmra.mxu0 %v3471
    %v4155 = vpop.f32.mrf.mxu0
    %v4156 = vadd.f32 %v3987, %v4155
    %v4157 = vpop.f32.mrf.mxu0
    %v4158 = vadd.f32 %v3989, %v4157
    %4159 = vmatmul.bf16.gmra.mxu0 %v3472
    %v4160 = vpop.f32.mrf.mxu0
    %v4161 = vadd.f32 %v3992, %v4160
    %v4162 = vpop.f32.mrf.mxu0
    %v4163 = vadd.f32 %v3994, %v4162
    %4164 = vmatmul.bf16.gmra.mxu0 %v3473
    %v4165 = vpop.f32.mrf.mxu0
    %v4166 = vadd.f32 %v3997, %v4165
    %v4167 = vpop.f32.mrf.mxu0
    %v4168 = vadd.f32 %v3999, %v4167
    %4169 = vmatmul.bf16.gmra.mxu0 %v3474
    %v4170 = vpop.f32.mrf.mxu0
    %v4171 = vadd.f32 %v4002, %v4170
    %v4172 = vpop.f32.mrf.mxu0
    %v4173 = vadd.f32 %v4004, %v4172
    %4174 = vmatmul.bf16.gmra.mxu0 %v3475
    %v4175 = vpop.f32.mrf.mxu0
    %v4176 = vadd.f32 %v4007, %v4175
    %v4177 = vpop.f32.mrf.mxu0
    %v4178 = vadd.f32 %v4009, %v4177
    %4179 = vmatmul.bf16.gmra.mxu0 %v3476
    %v4180 = vpop.f32.mrf.mxu0
    %v4181 = vadd.f32 %v4012, %v4180
    %v4182 = vpop.f32.mrf.mxu0
    %v4183 = vadd.f32 %v4014, %v4182
    %4184 = vmatmul.bf16.gmra.mxu0 %v3477
    %v4185 = vpop.f32.mrf.mxu0
    %v4186 = vadd.f32 %v4017, %v4185
    %v4187 = vpop.f32.mrf.mxu0
    %v4188 = vadd.f32 %v4019, %v4187
    %4189 = vmatmul.bf16.gmra.mxu0 %v3478
    %v4190 = vpop.f32.mrf.mxu0
    %v4191 = vadd.f32 %v4022, %v4190
    %v4192 = vpop.f32.mrf.mxu0
    %v4193 = vadd.f32 %v4024, %v4192
    %4194 = vmatmul.bf16.gmra.mxu0 %v3479
    %v4195 = vpop.f32.mrf.mxu0
    %v4196 = vadd.f32 %v4027, %v4195
    %v4197 = vpop.f32.mrf.mxu0
    %v4198 = vadd.f32 %v4029, %v4197
    %4199 = vmatmul.bf16.gmra.mxu0 %v3480
    %v4200 = vpop.f32.mrf.mxu0
    %v4201 = vadd.f32 %v4032, %v4200
    %v4202 = vpop.f32.mrf.mxu0
    %v4203 = vadd.f32 %v4034, %v4202
    %4204 = vmatmul.bf16.gmra.mxu0 %v3481
    %v4205 = vpop.f32.mrf.mxu0
    %v4206 = vadd.f32 %v4037, %v4205
    %v4207 = vpop.f32.mrf.mxu0
    %v4208 = vadd.f32 %v4039, %v4207
    %4209 = vmatmul.bf16.gmra.mxu0 %v3482
    %v4210 = vpop.f32.mrf.mxu0
    %v4211 = vadd.f32 %v4042, %v4210
    %v4212 = vpop.f32.mrf.mxu0
    %v4213 = vadd.f32 %v4044, %v4212
    %4214 = vdwg.mxu0
    %v4263 = vunpack.c.l.b16 %v2251
    %v4264 = vunpack.c.l.b16 %v2252
    %v4265 = vunpack.c.l.b16 %v2253
    %v4266 = vunpack.c.l.b16 %v2254
    %v4267 = vunpack.c.l.b16 %v2255
    %v4268 = vunpack.c.l.b16 %v2256
    %v4269 = vunpack.c.l.b16 %v2257
    %v4270 = vunpack.c.l.b16 %v2258
    %v4271 = vunpack.c.l.b16 %v2259
    %v4272 = vunpack.c.l.b16 %v2260
    %v4273 = vunpack.c.l.b16 %v2261
    %v4274 = vunpack.c.l.b16 %v2262
    %v4275 = vunpack.c.l.b16 %v2263
    %v4276 = vunpack.c.l.b16 %v2264
    %v4277 = vunpack.c.l.b16 %v2265
    %v4278 = vunpack.c.l.b16 %v2266
    %v4279 = vunpack.c.l.b16 %v2267
    %v4280 = vunpack.c.l.b16 %v2268
    %v4281 = vunpack.c.l.b16 %v2269
    %v4282 = vunpack.c.l.b16 %v2270
    %v4283 = vunpack.c.l.b16 %v2271
    %v4284 = vunpack.c.l.b16 %v2272
    %v4285 = vunpack.c.l.b16 %v2273
    %v4286 = vunpack.c.l.b16 %v2274
    %v4287 = vunpack.c.l.b16 %v2275
    %v4288 = vunpack.c.l.b16 %v2276
    %v4289 = vunpack.c.l.b16 %v2277
    %v4290 = vunpack.c.l.b16 %v2278
    %v4291 = vunpack.c.l.b16 %v2279
    %v4292 = vunpack.c.l.b16 %v2280
    %v4293 = vunpack.c.l.b16 %v2281
    %v4294 = vunpack.c.l.b16 %v2282
    %v4295 = vunpack.c.l.b16 %v2283
    %v4296 = vunpack.c.l.b16 %v2284
    %v4297 = vunpack.c.l.b16 %v2285
    %v4298 = vunpack.c.l.b16 %v2286
    %v4299 = vunpack.c.l.b16 %v2287
    %v4300 = vunpack.c.l.b16 %v2288
    %v4301 = vunpack.c.l.b16 %v2289
    %v4302 = vunpack.c.l.b16 %v2290
    %v4303 = vunpack.c.l.b16 %v2291
    %v4304 = vunpack.c.l.b16 %v2292
    %v4305 = vunpack.c.l.b16 %v2293
    %v4306 = vunpack.c.l.b16 %v2294
    %v4307 = vunpack.c.l.b16 %v2295
    %v4308 = vunpack.c.l.b16 %v2296
    %v4309 = vunpack.c.l.b16 %v2297
    %v4310 = vunpack.c.l.b16 %v2298
    %v4311 = vpack.c.b16 %v4264, %v4263
    %v4312 = vpack.c.b16 %v4266, %v4265
    %v4313 = vpack.c.b16 %v4268, %v4267
    %v4314 = vpack.c.b16 %v4270, %v4269
    %v4315 = vpack.c.b16 %v4272, %v4271
    %v4316 = vpack.c.b16 %v4274, %v4273
    %v4317 = vpack.c.b16 %v4276, %v4275
    %v4318 = vpack.c.b16 %v4278, %v4277
    %v4319 = vpack.c.b16 %v4280, %v4279
    %v4320 = vpack.c.b16 %v4282, %v4281
    %v4321 = vpack.c.b16 %v4284, %v4283
    %v4322 = vpack.c.b16 %v4286, %v4285
    %v4323 = vpack.c.b16 %v4288, %v4287
    %v4324 = vpack.c.b16 %v4290, %v4289
    %v4325 = vpack.c.b16 %v4292, %v4291
    %v4326 = vpack.c.b16 %v4294, %v4293
    %v4327 = vpack.c.b16 %v4296, %v4295
    %v4328 = vpack.c.b16 %v4298, %v4297
    %v4329 = vpack.c.b16 %v4300, %v4299
    %v4330 = vpack.c.b16 %v4302, %v4301
    %v4331 = vpack.c.b16 %v4304, %v4303
    %v4332 = vpack.c.b16 %v4306, %v4305
    %v4333 = vpack.c.b16 %v4308, %v4307
    %v4334 = vpack.c.b16 %v4310, %v4309
    %4359 = vmatpush.bf16.msra.mxu0 %v4318
    %4360 = vmatpush.bf16.msra.mxu0 %v4317
    %4361 = vmatpush.bf16.msra.mxu0 %v4316
    %4362 = vmatpush.bf16.msra.mxu0 %v4315
    %4363 = vmatpush.bf16.msra.mxu0 %v4314
    %4364 = vmatpush.bf16.msra.mxu0 %v4313
    %4365 = vmatpush.bf16.msra.mxu0 %v4312
    %4366 = vmatpush.bf16.msra.mxu0 %v4311
    %4367 = vmatmul.bf16.gmra.mxu0 %v1931
    %v4368 = vpop.f32.mrf.mxu0
    %v4369 = vadd.f32 %v4056, %v4368
    %v4370 = vpop.f32.mrf.mxu0
    %v4371 = vadd.f32 %v4058, %v4370
    %4372 = vmatmul.bf16.gmra.mxu0 %v1932
    %v4373 = vpop.f32.mrf.mxu0
    %v4374 = vadd.f32 %v4061, %v4373
    %v4375 = vpop.f32.mrf.mxu0
    %v4376 = vadd.f32 %v4063, %v4375
    %4377 = vmatmul.bf16.gmra.mxu0 %v1933
    %v4378 = vpop.f32.mrf.mxu0
    %v4379 = vadd.f32 %v4066, %v4378
    %v4380 = vpop.f32.mrf.mxu0
    %v4381 = vadd.f32 %v4068, %v4380
    %4382 = vmatmul.bf16.gmra.mxu0 %v1934
    %v4383 = vpop.f32.mrf.mxu0
    %v4384 = vadd.f32 %v4071, %v4383
    %v4385 = vpop.f32.mrf.mxu0
    %v4386 = vadd.f32 %v4073, %v4385
    %4387 = vmatmul.bf16.gmra.mxu0 %v1935
    %v4388 = vpop.f32.mrf.mxu0
    %v4389 = vadd.f32 %v4076, %v4388
    %v4390 = vpop.f32.mrf.mxu0
    %v4391 = vadd.f32 %v4078, %v4390
    %4392 = vmatmul.bf16.gmra.mxu0 %v1936
    %v4393 = vpop.f32.mrf.mxu0
    %v4394 = vadd.f32 %v4081, %v4393
    %v4395 = vpop.f32.mrf.mxu0
    %v4396 = vadd.f32 %v4083, %v4395
    %4397 = vmatmul.bf16.gmra.mxu0 %v1937
    %v4398 = vpop.f32.mrf.mxu0
    %v4399 = vadd.f32 %v4086, %v4398
    %v4400 = vpop.f32.mrf.mxu0
    %v4401 = vadd.f32 %v4088, %v4400
    %4402 = vmatmul.bf16.gmra.mxu0 %v1938
    %v4403 = vpop.f32.mrf.mxu0
    %v4404 = vadd.f32 %v4091, %v4403
    %v4405 = vpop.f32.mrf.mxu0
    %v4406 = vadd.f32 %v4093, %v4405
    %4407 = vmatmul.bf16.gmra.mxu0 %v1939
    %v4408 = vpop.f32.mrf.mxu0
    %v4409 = vadd.f32 %v4096, %v4408
    %v4410 = vpop.f32.mrf.mxu0
    %v4411 = vadd.f32 %v4098, %v4410
    %4412 = vmatmul.bf16.gmra.mxu0 %v1940
    %v4413 = vpop.f32.mrf.mxu0
    %v4414 = vadd.f32 %v4101, %v4413
    %v4415 = vpop.f32.mrf.mxu0
    %v4416 = vadd.f32 %v4103, %v4415
    %4417 = vmatmul.bf16.gmra.mxu0 %v1941
    %v4418 = vpop.f32.mrf.mxu0
    %v4419 = vadd.f32 %v4106, %v4418
    %v4420 = vpop.f32.mrf.mxu0
    %v4421 = vadd.f32 %v4108, %v4420
    %4422 = vmatmul.bf16.gmra.mxu0 %v1942
    %v4423 = vpop.f32.mrf.mxu0
    %v4424 = vadd.f32 %v4111, %v4423
    %v4425 = vpop.f32.mrf.mxu0
    %v4426 = vadd.f32 %v4113, %v4425
    %4427 = vmatmul.bf16.gmra.mxu0 %v1943
    %v4428 = vpop.f32.mrf.mxu0
    %v4429 = vadd.f32 %v4116, %v4428
    %v4430 = vpop.f32.mrf.mxu0
    %v4431 = vadd.f32 %v4118, %v4430
    %4432 = vmatmul.bf16.gmra.mxu0 %v1944
    %v4433 = vpop.f32.mrf.mxu0
    %v4434 = vadd.f32 %v4121, %v4433
    %v4435 = vpop.f32.mrf.mxu0
    %v4436 = vadd.f32 %v4123, %v4435
    %4437 = vmatmul.bf16.gmra.mxu0 %v1945
    %v4438 = vpop.f32.mrf.mxu0
    %v4439 = vadd.f32 %v4126, %v4438
    %v4440 = vpop.f32.mrf.mxu0
    %v4441 = vadd.f32 %v4128, %v4440
    %4442 = vmatmul.bf16.gmra.mxu0 %v1946
    %v4443 = vpop.f32.mrf.mxu0
    %v4444 = vadd.f32 %v4131, %v4443
    %v4445 = vpop.f32.mrf.mxu0
    %v4446 = vadd.f32 %v4133, %v4445
    %4447 = vmatmul.bf16.gmra.mxu0 %v1947
    %v4448 = vpop.f32.mrf.mxu0
    %v4449 = vadd.f32 %v4136, %v4448
    %v4450 = vpop.f32.mrf.mxu0
    %v4451 = vadd.f32 %v4138, %v4450
    %4452 = vmatmul.bf16.gmra.mxu0 %v1948
    %v4453 = vpop.f32.mrf.mxu0
    %v4454 = vadd.f32 %v4141, %v4453
    %v4455 = vpop.f32.mrf.mxu0
    %v4456 = vadd.f32 %v4143, %v4455
    %4457 = vmatmul.bf16.gmra.mxu0 %v1949
    %v4458 = vpop.f32.mrf.mxu0
    %v4459 = vadd.f32 %v4146, %v4458
    %v4460 = vpop.f32.mrf.mxu0
    %v4461 = vadd.f32 %v4148, %v4460
    %4462 = vmatmul.bf16.gmra.mxu0 %v1950
    %v4463 = vpop.f32.mrf.mxu0
    %v4464 = vadd.f32 %v4151, %v4463
    %v4465 = vpop.f32.mrf.mxu0
    %v4466 = vadd.f32 %v4153, %v4465
    %4467 = vmatmul.bf16.gmra.mxu0 %v1951
    %v4468 = vpop.f32.mrf.mxu0
    %v4469 = vadd.f32 %v4156, %v4468
    %v4470 = vpop.f32.mrf.mxu0
    %v4471 = vadd.f32 %v4158, %v4470
    %4472 = vmatmul.bf16.gmra.mxu0 %v1952
    %v4473 = vpop.f32.mrf.mxu0
    %v4474 = vadd.f32 %v4161, %v4473
    %v4475 = vpop.f32.mrf.mxu0
    %v4476 = vadd.f32 %v4163, %v4475
    %4477 = vmatmul.bf16.gmra.mxu0 %v1953
    %v4478 = vpop.f32.mrf.mxu0
    %v4479 = vadd.f32 %v4166, %v4478
    %v4480 = vpop.f32.mrf.mxu0
    %v4481 = vadd.f32 %v4168, %v4480
    %4482 = vmatmul.bf16.gmra.mxu0 %v1954
    %v4483 = vpop.f32.mrf.mxu0
    %v4484 = vadd.f32 %v4171, %v4483
    %v4485 = vpop.f32.mrf.mxu0
    %v4486 = vadd.f32 %v4173, %v4485
    %4487 = vmatmul.bf16.gmra.mxu0 %v1955
    %v4488 = vpop.f32.mrf.mxu0
    %v4489 = vadd.f32 %v4176, %v4488
    %v4490 = vpop.f32.mrf.mxu0
    %v4491 = vadd.f32 %v4178, %v4490
    %4492 = vmatmul.bf16.gmra.mxu0 %v1956
    %v4493 = vpop.f32.mrf.mxu0
    %v4494 = vadd.f32 %v4181, %v4493
    %v4495 = vpop.f32.mrf.mxu0
    %v4496 = vadd.f32 %v4183, %v4495
    %4497 = vmatmul.bf16.gmra.mxu0 %v1957
    %v4498 = vpop.f32.mrf.mxu0
    %v4499 = vadd.f32 %v4186, %v4498
    %v4500 = vpop.f32.mrf.mxu0
    %v4501 = vadd.f32 %v4188, %v4500
    %4502 = vmatmul.bf16.gmra.mxu0 %v1958
    %v4503 = vpop.f32.mrf.mxu0
    %v4504 = vadd.f32 %v4191, %v4503
    %v4505 = vpop.f32.mrf.mxu0
    %v4506 = vadd.f32 %v4193, %v4505
    %4507 = vmatmul.bf16.gmra.mxu0 %v1959
    %v4508 = vpop.f32.mrf.mxu0
    %v4509 = vadd.f32 %v4196, %v4508
    %v4510 = vpop.f32.mrf.mxu0
    %v4511 = vadd.f32 %v4198, %v4510
    %4512 = vmatmul.bf16.gmra.mxu0 %v1960
    %v4513 = vpop.f32.mrf.mxu0
    %v4514 = vadd.f32 %v4201, %v4513
    %v4515 = vpop.f32.mrf.mxu0
    %v4516 = vadd.f32 %v4203, %v4515
    %4517 = vmatmul.bf16.gmra.mxu0 %v1961
    %v4518 = vpop.f32.mrf.mxu0
    %v4519 = vadd.f32 %v4206, %v4518
    %v4520 = vpop.f32.mrf.mxu0
    %v4521 = vadd.f32 %v4208, %v4520
    %4522 = vmatmul.bf16.gmra.mxu0 %v1962
    %v4523 = vpop.f32.mrf.mxu0
    %v4524 = vadd.f32 %v4211, %v4523
    %v4525 = vpop.f32.mrf.mxu0
    %v4526 = vadd.f32 %v4213, %v4525
    %4527 = vdwg.mxu0
    %4528 = vmatpush.bf16.msra.mxu0 %v4326
    %4529 = vmatpush.bf16.msra.mxu0 %v4325
    %4530 = vmatpush.bf16.msra.mxu0 %v4324
    %4531 = vmatpush.bf16.msra.mxu0 %v4323
    %4532 = vmatpush.bf16.msra.mxu0 %v4322
    %4533 = vmatpush.bf16.msra.mxu0 %v4321
    %4534 = vmatpush.bf16.msra.mxu0 %v4320
    %4535 = vmatpush.bf16.msra.mxu0 %v4319
    %4536 = vmatmul.bf16.gmra.mxu0 %v2059
    %v4537 = vpop.f32.mrf.mxu0
    %v4538 = vadd.f32 %v4369, %v4537
    %v4539 = vpop.f32.mrf.mxu0
    %v4540 = vadd.f32 %v4371, %v4539
    %4541 = vmatmul.bf16.gmra.mxu0 %v2060
    %v4542 = vpop.f32.mrf.mxu0
    %v4543 = vadd.f32 %v4374, %v4542
    %v4544 = vpop.f32.mrf.mxu0
    %v4545 = vadd.f32 %v4376, %v4544
    %4546 = vmatmul.bf16.gmra.mxu0 %v2061
    %v4547 = vpop.f32.mrf.mxu0
    %v4548 = vadd.f32 %v4379, %v4547
    %v4549 = vpop.f32.mrf.mxu0
    %v4550 = vadd.f32 %v4381, %v4549
    %4551 = vmatmul.bf16.gmra.mxu0 %v2062
    %v4552 = vpop.f32.mrf.mxu0
    %v4553 = vadd.f32 %v4384, %v4552
    %v4554 = vpop.f32.mrf.mxu0
    %v4555 = vadd.f32 %v4386, %v4554
    %4556 = vmatmul.bf16.gmra.mxu0 %v2063
    %v4557 = vpop.f32.mrf.mxu0
    %v4558 = vadd.f32 %v4389, %v4557
    %v4559 = vpop.f32.mrf.mxu0
    %v4560 = vadd.f32 %v4391, %v4559
    %4561 = vmatmul.bf16.gmra.mxu0 %v2064
    %v4562 = vpop.f32.mrf.mxu0
    %v4563 = vadd.f32 %v4394, %v4562
    %v4564 = vpop.f32.mrf.mxu0
    %v4565 = vadd.f32 %v4396, %v4564
    %4566 = vmatmul.bf16.gmra.mxu0 %v2065
    %v4567 = vpop.f32.mrf.mxu0
    %v4568 = vadd.f32 %v4399, %v4567
    %v4569 = vpop.f32.mrf.mxu0
    %v4570 = vadd.f32 %v4401, %v4569
    %4571 = vmatmul.bf16.gmra.mxu0 %v2066
    %v4572 = vpop.f32.mrf.mxu0
    %v4573 = vadd.f32 %v4404, %v4572
    %v4574 = vpop.f32.mrf.mxu0
    %v4575 = vadd.f32 %v4406, %v4574
    %4576 = vmatmul.bf16.gmra.mxu0 %v2067
    %v4577 = vpop.f32.mrf.mxu0
    %v4578 = vadd.f32 %v4409, %v4577
    %v4579 = vpop.f32.mrf.mxu0
    %v4580 = vadd.f32 %v4411, %v4579
    %4581 = vmatmul.bf16.gmra.mxu0 %v2068
    %v4582 = vpop.f32.mrf.mxu0
    %v4583 = vadd.f32 %v4414, %v4582
    %v4584 = vpop.f32.mrf.mxu0
    %v4585 = vadd.f32 %v4416, %v4584
    %4586 = vmatmul.bf16.gmra.mxu0 %v2069
    %v4587 = vpop.f32.mrf.mxu0
    %v4588 = vadd.f32 %v4419, %v4587
    %v4589 = vpop.f32.mrf.mxu0
    %v4590 = vadd.f32 %v4421, %v4589
    %4591 = vmatmul.bf16.gmra.mxu0 %v2070
    %v4592 = vpop.f32.mrf.mxu0
    %v4593 = vadd.f32 %v4424, %v4592
    %v4594 = vpop.f32.mrf.mxu0
    %v4595 = vadd.f32 %v4426, %v4594
    %4596 = vmatmul.bf16.gmra.mxu0 %v2071
    %v4597 = vpop.f32.mrf.mxu0
    %v4598 = vadd.f32 %v4429, %v4597
    %v4599 = vpop.f32.mrf.mxu0
    %v4600 = vadd.f32 %v4431, %v4599
    %4601 = vmatmul.bf16.gmra.mxu0 %v2072
    %v4602 = vpop.f32.mrf.mxu0
    %v4603 = vadd.f32 %v4434, %v4602
    %v4604 = vpop.f32.mrf.mxu0
    %v4605 = vadd.f32 %v4436, %v4604
    %4606 = vmatmul.bf16.gmra.mxu0 %v2073
    %v4607 = vpop.f32.mrf.mxu0
    %v4608 = vadd.f32 %v4439, %v4607
    %v4609 = vpop.f32.mrf.mxu0
    %v4610 = vadd.f32 %v4441, %v4609
    %4611 = vmatmul.bf16.gmra.mxu0 %v2074
    %v4612 = vpop.f32.mrf.mxu0
    %v4613 = vadd.f32 %v4444, %v4612
    %v4614 = vpop.f32.mrf.mxu0
    %v4615 = vadd.f32 %v4446, %v4614
    %4616 = vmatmul.bf16.gmra.mxu0 %v2075
    %v4617 = vpop.f32.mrf.mxu0
    %v4618 = vadd.f32 %v4449, %v4617
    %v4619 = vpop.f32.mrf.mxu0
    %v4620 = vadd.f32 %v4451, %v4619
    %4621 = vmatmul.bf16.gmra.mxu0 %v2076
    %v4622 = vpop.f32.mrf.mxu0
    %v4623 = vadd.f32 %v4454, %v4622
    %v4624 = vpop.f32.mrf.mxu0
    %v4625 = vadd.f32 %v4456, %v4624
    %4626 = vmatmul.bf16.gmra.mxu0 %v2077
    %v4627 = vpop.f32.mrf.mxu0
    %v4628 = vadd.f32 %v4459, %v4627
    %v4629 = vpop.f32.mrf.mxu0
    %v4630 = vadd.f32 %v4461, %v4629
    %4631 = vmatmul.bf16.gmra.mxu0 %v2078
    %v4632 = vpop.f32.mrf.mxu0
    %v4633 = vadd.f32 %v4464, %v4632
    %v4634 = vpop.f32.mrf.mxu0
    %v4635 = vadd.f32 %v4466, %v4634
    %4636 = vmatmul.bf16.gmra.mxu0 %v2079
    %v4637 = vpop.f32.mrf.mxu0
    %v4638 = vadd.f32 %v4469, %v4637
    %v4639 = vpop.f32.mrf.mxu0
    %v4640 = vadd.f32 %v4471, %v4639
    %4641 = vmatmul.bf16.gmra.mxu0 %v2080
    %v4642 = vpop.f32.mrf.mxu0
    %v4643 = vadd.f32 %v4474, %v4642
    %v4644 = vpop.f32.mrf.mxu0
    %v4645 = vadd.f32 %v4476, %v4644
    %4646 = vmatmul.bf16.gmra.mxu0 %v2081
    %v4647 = vpop.f32.mrf.mxu0
    %v4648 = vadd.f32 %v4479, %v4647
    %v4649 = vpop.f32.mrf.mxu0
    %v4650 = vadd.f32 %v4481, %v4649
    %4651 = vmatmul.bf16.gmra.mxu0 %v2082
    %v4652 = vpop.f32.mrf.mxu0
    %v4653 = vadd.f32 %v4484, %v4652
    %v4654 = vpop.f32.mrf.mxu0
    %v4655 = vadd.f32 %v4486, %v4654
    %4656 = vmatmul.bf16.gmra.mxu0 %v2083
    %v4657 = vpop.f32.mrf.mxu0
    %v4658 = vadd.f32 %v4489, %v4657
    %v4659 = vpop.f32.mrf.mxu0
    %v4660 = vadd.f32 %v4491, %v4659
    %4661 = vmatmul.bf16.gmra.mxu0 %v2084
    %v4662 = vpop.f32.mrf.mxu0
    %v4663 = vadd.f32 %v4494, %v4662
    %v4664 = vpop.f32.mrf.mxu0
    %v4665 = vadd.f32 %v4496, %v4664
    %4666 = vmatmul.bf16.gmra.mxu0 %v2085
    %v4667 = vpop.f32.mrf.mxu0
    %v4668 = vadd.f32 %v4499, %v4667
    %v4669 = vpop.f32.mrf.mxu0
    %v4670 = vadd.f32 %v4501, %v4669
    %4671 = vmatmul.bf16.gmra.mxu0 %v2086
    %v4672 = vpop.f32.mrf.mxu0
    %v4673 = vadd.f32 %v4504, %v4672
    %v4674 = vpop.f32.mrf.mxu0
    %v4675 = vadd.f32 %v4506, %v4674
    %4676 = vmatmul.bf16.gmra.mxu0 %v2087
    %v4677 = vpop.f32.mrf.mxu0
    %v4678 = vadd.f32 %v4509, %v4677
    %v4679 = vpop.f32.mrf.mxu0
    %v4680 = vadd.f32 %v4511, %v4679
    %4681 = vmatmul.bf16.gmra.mxu0 %v2088
    %v4682 = vpop.f32.mrf.mxu0
    %v4683 = vadd.f32 %v4514, %v4682
    %v4684 = vpop.f32.mrf.mxu0
    %v4685 = vadd.f32 %v4516, %v4684
    %4686 = vmatmul.bf16.gmra.mxu0 %v2089
    %v4687 = vpop.f32.mrf.mxu0
    %v4688 = vadd.f32 %v4519, %v4687
    %v4689 = vpop.f32.mrf.mxu0
    %v4690 = vadd.f32 %v4521, %v4689
    %4691 = vmatmul.bf16.gmra.mxu0 %v2090
    %v4692 = vpop.f32.mrf.mxu0
    %v4693 = vadd.f32 %v4524, %v4692
    %v4694 = vpop.f32.mrf.mxu0
    %v4695 = vadd.f32 %v4526, %v4694
    %4696 = vdwg.mxu0
    %4697 = vmatpush.bf16.msra.mxu0 %v4334
    %4698 = vmatpush.bf16.msra.mxu0 %v4333
    %4699 = vmatpush.bf16.msra.mxu0 %v4332
    %4700 = vmatpush.bf16.msra.mxu0 %v4331
    %4701 = vmatpush.bf16.msra.mxu0 %v4330
    %4702 = vmatpush.bf16.msra.mxu0 %v4329
    %4703 = vmatpush.bf16.msra.mxu0 %v4328
    %4704 = vmatpush.bf16.msra.mxu0 %v4327
    %4705 = vmatmul.bf16.gmra.mxu0 %v2187
    %v4706 = vpop.f32.mrf.mxu0
    %v4707 = vadd.f32 %v4538, %v4706
    %v4708 = vpop.f32.mrf.mxu0
    %v4709 = vadd.f32 %v4540, %v4708
    %4710 = vmatmul.bf16.gmra.mxu0 %v2188
    %v4711 = vpop.f32.mrf.mxu0
    %v4712 = vadd.f32 %v4543, %v4711
    %v4713 = vpop.f32.mrf.mxu0
    %v4714 = vadd.f32 %v4545, %v4713
    %4715 = vmatmul.bf16.gmra.mxu0 %v2189
    %v4716 = vpop.f32.mrf.mxu0
    %v4717 = vadd.f32 %v4548, %v4716
    %v4718 = vpop.f32.mrf.mxu0
    %v4719 = vadd.f32 %v4550, %v4718
    %4720 = vmatmul.bf16.gmra.mxu0 %v2190
    %v4721 = vpop.f32.mrf.mxu0
    %v4722 = vadd.f32 %v4553, %v4721
    %v4723 = vpop.f32.mrf.mxu0
    %v4724 = vadd.f32 %v4555, %v4723
    %4725 = vmatmul.bf16.gmra.mxu0 %v2191
    %v4726 = vpop.f32.mrf.mxu0
    %v4727 = vadd.f32 %v4558, %v4726
    %v4728 = vpop.f32.mrf.mxu0
    %v4729 = vadd.f32 %v4560, %v4728
    %4730 = vmatmul.bf16.gmra.mxu0 %v2192
    %v4731 = vpop.f32.mrf.mxu0
    %v4732 = vadd.f32 %v4563, %v4731
    %v4733 = vpop.f32.mrf.mxu0
    %v4734 = vadd.f32 %v4565, %v4733
    %4735 = vmatmul.bf16.gmra.mxu0 %v2193
    %v4736 = vpop.f32.mrf.mxu0
    %v4737 = vadd.f32 %v4568, %v4736
    %v4738 = vpop.f32.mrf.mxu0
    %v4739 = vadd.f32 %v4570, %v4738
    %4740 = vmatmul.bf16.gmra.mxu0 %v2194
    %v4741 = vpop.f32.mrf.mxu0
    %v4742 = vadd.f32 %v4573, %v4741
    %v4743 = vpop.f32.mrf.mxu0
    %v4744 = vadd.f32 %v4575, %v4743
    %4745 = vmatmul.bf16.gmra.mxu0 %v2195
    %v4746 = vpop.f32.mrf.mxu0
    %v4747 = vadd.f32 %v4578, %v4746
    %v4748 = vpop.f32.mrf.mxu0
    %v4749 = vadd.f32 %v4580, %v4748
    %4750 = vmatmul.bf16.gmra.mxu0 %v2196
    %v4751 = vpop.f32.mrf.mxu0
    %v4752 = vadd.f32 %v4583, %v4751
    %v4753 = vpop.f32.mrf.mxu0
    %v4754 = vadd.f32 %v4585, %v4753
    %4755 = vmatmul.bf16.gmra.mxu0 %v2197
    %v4756 = vpop.f32.mrf.mxu0
    %v4757 = vadd.f32 %v4588, %v4756
    %v4758 = vpop.f32.mrf.mxu0
    %v4759 = vadd.f32 %v4590, %v4758
    %4760 = vmatmul.bf16.gmra.mxu0 %v2198
    %v4761 = vpop.f32.mrf.mxu0
    %v4762 = vadd.f32 %v4593, %v4761
    %v4763 = vpop.f32.mrf.mxu0
    %v4764 = vadd.f32 %v4595, %v4763
    %4765 = vmatmul.bf16.gmra.mxu0 %v2199
    %v4766 = vpop.f32.mrf.mxu0
    %v4767 = vadd.f32 %v4598, %v4766
    %v4768 = vpop.f32.mrf.mxu0
    %v4769 = vadd.f32 %v4600, %v4768
    %4770 = vmatmul.bf16.gmra.mxu0 %v2200
    %v4771 = vpop.f32.mrf.mxu0
    %v4772 = vadd.f32 %v4603, %v4771
    %v4773 = vpop.f32.mrf.mxu0
    %v4774 = vadd.f32 %v4605, %v4773
    %4775 = vmatmul.bf16.gmra.mxu0 %v2201
    %v4776 = vpop.f32.mrf.mxu0
    %v4777 = vadd.f32 %v4608, %v4776
    %v4778 = vpop.f32.mrf.mxu0
    %v4779 = vadd.f32 %v4610, %v4778
    %4780 = vmatmul.bf16.gmra.mxu0 %v2202
    %v4781 = vpop.f32.mrf.mxu0
    %v4782 = vadd.f32 %v4613, %v4781
    %v4783 = vpop.f32.mrf.mxu0
    %v4784 = vadd.f32 %v4615, %v4783
    %4785 = vmatmul.bf16.gmra.mxu0 %v2203
    %v4786 = vpop.f32.mrf.mxu0
    %v4787 = vadd.f32 %v4618, %v4786
    %v4788 = vpop.f32.mrf.mxu0
    %v4789 = vadd.f32 %v4620, %v4788
    %4790 = vmatmul.bf16.gmra.mxu0 %v2204
    %v4791 = vpop.f32.mrf.mxu0
    %v4792 = vadd.f32 %v4623, %v4791
    %v4793 = vpop.f32.mrf.mxu0
    %v4794 = vadd.f32 %v4625, %v4793
    %4795 = vmatmul.bf16.gmra.mxu0 %v2205
    %v4796 = vpop.f32.mrf.mxu0
    %v4797 = vadd.f32 %v4628, %v4796
    %v4798 = vpop.f32.mrf.mxu0
    %v4799 = vadd.f32 %v4630, %v4798
    %4800 = vmatmul.bf16.gmra.mxu0 %v2206
    %v4801 = vpop.f32.mrf.mxu0
    %v4802 = vadd.f32 %v4633, %v4801
    %v4803 = vpop.f32.mrf.mxu0
    %v4804 = vadd.f32 %v4635, %v4803
    %4805 = vmatmul.bf16.gmra.mxu0 %v2207
    %v4806 = vpop.f32.mrf.mxu0
    %v4807 = vadd.f32 %v4638, %v4806
    %v4808 = vpop.f32.mrf.mxu0
    %v4809 = vadd.f32 %v4640, %v4808
    %4810 = vmatmul.bf16.gmra.mxu0 %v2208
    %v4811 = vpop.f32.mrf.mxu0
    %v4812 = vadd.f32 %v4643, %v4811
    %v4813 = vpop.f32.mrf.mxu0
    %v4814 = vadd.f32 %v4645, %v4813
    %4815 = vmatmul.bf16.gmra.mxu0 %v2209
    %v4816 = vpop.f32.mrf.mxu0
    %v4817 = vadd.f32 %v4648, %v4816
    %v4818 = vpop.f32.mrf.mxu0
    %v4819 = vadd.f32 %v4650, %v4818
    %4820 = vmatmul.bf16.gmra.mxu0 %v2210
    %v4821 = vpop.f32.mrf.mxu0
    %v4822 = vadd.f32 %v4653, %v4821
    %v4823 = vpop.f32.mrf.mxu0
    %v4824 = vadd.f32 %v4655, %v4823
    %4825 = vmatmul.bf16.gmra.mxu0 %v2211
    %v4826 = vpop.f32.mrf.mxu0
    %v4827 = vadd.f32 %v4658, %v4826
    %v4828 = vpop.f32.mrf.mxu0
    %v4829 = vadd.f32 %v4660, %v4828
    %4830 = vmatmul.bf16.gmra.mxu0 %v2212
    %v4831 = vpop.f32.mrf.mxu0
    %v4832 = vadd.f32 %v4663, %v4831
    %v4833 = vpop.f32.mrf.mxu0
    %v4834 = vadd.f32 %v4665, %v4833
    %4835 = vmatmul.bf16.gmra.mxu0 %v2213
    %v4836 = vpop.f32.mrf.mxu0
    %v4837 = vadd.f32 %v4668, %v4836
    %v4838 = vpop.f32.mrf.mxu0
    %v4839 = vadd.f32 %v4670, %v4838
    %4840 = vmatmul.bf16.gmra.mxu0 %v2214
    %v4841 = vpop.f32.mrf.mxu0
    %v4842 = vadd.f32 %v4673, %v4841
    %v4843 = vpop.f32.mrf.mxu0
    %v4844 = vadd.f32 %v4675, %v4843
    %4845 = vmatmul.bf16.gmra.mxu0 %v2215
    %v4846 = vpop.f32.mrf.mxu0
    %v4847 = vadd.f32 %v4678, %v4846
    %v4848 = vpop.f32.mrf.mxu0
    %v4849 = vadd.f32 %v4680, %v4848
    %4850 = vmatmul.bf16.gmra.mxu0 %v2216
    %v4851 = vpop.f32.mrf.mxu0
    %v4852 = vadd.f32 %v4683, %v4851
    %v4853 = vpop.f32.mrf.mxu0
    %v4854 = vadd.f32 %v4685, %v4853
    %4855 = vmatmul.bf16.gmra.mxu0 %v2217
    %v4856 = vpop.f32.mrf.mxu0
    %v4857 = vadd.f32 %v4688, %v4856
    %v4858 = vpop.f32.mrf.mxu0
    %v4859 = vadd.f32 %v4690, %v4858
    %4860 = vmatmul.bf16.gmra.mxu0 %v2218
    %v4861 = vpop.f32.mrf.mxu0
    %v4862 = vadd.f32 %v4693, %v4861
    %v4863 = vpop.f32.mrf.mxu0
    %v4864 = vadd.f32 %v4695, %v4863
    %4865 = vdwg.mxu0
    %s4866 = scalar_lea.vmem [#allocation2], 48
    %v4867 = vld [vmem:[%s4866] sm:$0xf]
    %v4868 = vld [vmem:[%s4866 + $0x4] sm:$0xf]
    %v4869 = vld [vmem:[%s4866 + $0xc] sm:$0xf]
    %v4870 = vld [vmem:[%s4866 + $0x10] sm:$0xf]
    %v4871 = vld [vmem:[%s4866 + $0x18] sm:$0xf]
    %v4872 = vld [vmem:[%s4866 + $0x1c] sm:$0xf]
    %v4873 = vld [vmem:[%s4866 + $0x24] sm:$0xf]
    %v4874 = vld [vmem:[%s4866 + $0x28] sm:$0xf]
    %v4875 = vld [vmem:[%s4866 + $0x30] sm:$0xf]
    %v4876 = vld [vmem:[%s4866 + $0x34] sm:$0xf]
    %v4877 = vld [vmem:[%s4866 + $0x3c] sm:$0xf]
    %v4878 = vld [vmem:[%s4866 + $0x40] sm:$0xf]
    %v4879 = vld [vmem:[%s4866 + $0x48] sm:$0xf]
    %v4880 = vld [vmem:[%s4866 + $0x4c] sm:$0xf]
    %v4881 = vld [vmem:[%s4866 + $0x54] sm:$0xf]
    %v4882 = vld [vmem:[%s4866 + $0x58] sm:$0xf]
    %v4883 = vld [vmem:[%s4866 + $0x60] sm:$0xf]
    %v4884 = vld [vmem:[%s4866 + $0x64] sm:$0xf]
    %v4885 = vld [vmem:[%s4866 + $0x6c] sm:$0xf]
    %v4886 = vld [vmem:[%s4866 + $0x70] sm:$0xf]
    %v4887 = vld [vmem:[%s4866 + $0x78] sm:$0xf]
    %v4888 = vld [vmem:[%s4866 + $0x7c] sm:$0xf]
    %v4889 = vld [vmem:[%s4866 + $0x84] sm:$0xf]
    %v4890 = vld [vmem:[%s4866 + $0x88] sm:$0xf]
    %v4891 = vld [vmem:[%s4866 + $0x90] sm:$0xf]
    %v4892 = vld [vmem:[%s4866 + $0x94] sm:$0xf]
    %v4893 = vld [vmem:[%s4866 + $0x9c] sm:$0xf]
    %v4894 = vld [vmem:[%s4866 + $0xa0] sm:$0xf]
    %v4895 = vld [vmem:[%s4866 + $0xa8] sm:$0xf]
    %v4896 = vld [vmem:[%s4866 + $0xac] sm:$0xf]
    %v4897 = vld [vmem:[%s4866 + $0xb4] sm:$0xf]
    %v4898 = vld [vmem:[%s4866 + $0xb8] sm:$0xf]
    %v4899 = vld [vmem:[%s4866 + $0xf0] sm:$0xf]
    %v4900 = vld [vmem:[%s4866 + $0xf4] sm:$0xf]
    %v4901 = vld [vmem:[%s4866 + $0xfc] sm:$0xf]
    %v4902 = vld [vmem:[%s4866 + $0x100] sm:$0xf]
    %v4903 = vld [vmem:[%s4866 + $0x108] sm:$0xf]
    %v4904 = vld [vmem:[%s4866 + $0x10c] sm:$0xf]
    %v4905 = vld [vmem:[%s4866 + $0x114] sm:$0xf]
    %v4906 = vld [vmem:[%s4866 + $0x118] sm:$0xf]
    %v4907 = vld [vmem:[%s4866 + $0x120] sm:$0xf]
    %v4908 = vld [vmem:[%s4866 + $0x124] sm:$0xf]
    %v4909 = vld [vmem:[%s4866 + $0x12c] sm:$0xf]
    %v4910 = vld [vmem:[%s4866 + $0x130] sm:$0xf]
    %v4911 = vld [vmem:[%s4866 + $0x138] sm:$0xf]
    %v4912 = vld [vmem:[%s4866 + $0x13c] sm:$0xf]
    %v4913 = vld [vmem:[%s4866 + $0x144] sm:$0xf]
    %v4914 = vld [vmem:[%s4866 + $0x148] sm:$0xf]
    %v4915 = vld [vmem:[%s4866 + $0x150] sm:$0xf]
    %v4916 = vld [vmem:[%s4866 + $0x154] sm:$0xf]
    %v4917 = vld [vmem:[%s4866 + $0x15c] sm:$0xf]
    %v4918 = vld [vmem:[%s4866 + $0x160] sm:$0xf]
    %v4919 = vld [vmem:[%s4866 + $0x168] sm:$0xf]
    %v4920 = vld [vmem:[%s4866 + $0x16c] sm:$0xf]
    %v4921 = vld [vmem:[%s4866 + $0x174] sm:$0xf]
    %v4922 = vld [vmem:[%s4866 + $0x178] sm:$0xf]
    %v4923 = vld [vmem:[%s4866 + $0x180] sm:$0xf]
    %v4924 = vld [vmem:[%s4866 + $0x184] sm:$0xf]
    %v4925 = vld [vmem:[%s4866 + $0x18c] sm:$0xf]
    %v4926 = vld [vmem:[%s4866 + $0x190] sm:$0xf]
    %v4927 = vld [vmem:[%s4866 + $0x198] sm:$0xf]
    %v4928 = vld [vmem:[%s4866 + $0x19c] sm:$0xf]
    %v4929 = vld [vmem:[%s4866 + $0x1a4] sm:$0xf]
    %v4930 = vld [vmem:[%s4866 + $0x1a8] sm:$0xf]
    %v4931 = vld [vmem:[%s4866] sm:$0xe]
    %v4932 = vld [vmem:[%s4866 + $0x8] sm:$0x1]
    %v4933 = vld [vmem:[%s4866 + $0xc] sm:$0xe]
    %v4934 = vld [vmem:[%s4866 + $0x14] sm:$0x1]
    %v4935 = vld [vmem:[%s4866 + $0x18] sm:$0xe]
    %v4936 = vld [vmem:[%s4866 + $0x20] sm:$0x1]
    %v4937 = vld [vmem:[%s4866 + $0x24] sm:$0xe]
    %v4938 = vld [vmem:[%s4866 + $0x2c] sm:$0x1]
    %v4939 = vld [vmem:[%s4866 + $0x30] sm:$0xe]
    %v4940 = vld [vmem:[%s4866 + $0x38] sm:$0x1]
    %v4941 = vld [vmem:[%s4866 + $0x3c] sm:$0xe]
    %v4942 = vld [vmem:[%s4866 + $0x44] sm:$0x1]
    %v4943 = vld [vmem:[%s4866 + $0x48] sm:$0xe]
    %v4944 = vld [vmem:[%s4866 + $0x50] sm:$0x1]
    %v4945 = vld [vmem:[%s4866 + $0x54] sm:$0xe]
    %v4946 = vld [vmem:[%s4866 + $0x5c] sm:$0x1]
    %v4947 = vld [vmem:[%s4866 + $0x60] sm:$0xe]
    %v4948 = vld [vmem:[%s4866 + $0x68] sm:$0x1]
    %v4949 = vld [vmem:[%s4866 + $0x6c] sm:$0xe]
    %v4950 = vld [vmem:[%s4866 + $0x74] sm:$0x1]
    %v4951 = vld [vmem:[%s4866 + $0x78] sm:$0xe]
    %v4952 = vld [vmem:[%s4866 + $0x80] sm:$0x1]
    %v4953 = vld [vmem:[%s4866 + $0x84] sm:$0xe]
    %v4954 = vld [vmem:[%s4866 + $0x8c] sm:$0x1]
    %v4955 = vld [vmem:[%s4866 + $0x90] sm:$0xe]
    %v4956 = vld [vmem:[%s4866 + $0x98] sm:$0x1]
    %v4957 = vld [vmem:[%s4866 + $0x9c] sm:$0xe]
    %v4958 = vld [vmem:[%s4866 + $0xa4] sm:$0x1]
    %v4959 = vld [vmem:[%s4866 + $0xa8] sm:$0xe]
    %v4960 = vld [vmem:[%s4866 + $0xb0] sm:$0x1]
    %v4961 = vld [vmem:[%s4866 + $0xb4] sm:$0xe]
    %v4962 = vld [vmem:[%s4866 + $0xbc] sm:$0x1]
    %v4963 = vld [vmem:[%s4866 + $0xf0] sm:$0xe]
    %v4964 = vld [vmem:[%s4866 + $0xf8] sm:$0x1]
    %v4965 = vld [vmem:[%s4866 + $0xfc] sm:$0xe]
    %v4966 = vld [vmem:[%s4866 + $0x104] sm:$0x1]
    %v4967 = vld [vmem:[%s4866 + $0x108] sm:$0xe]
    %v4968 = vld [vmem:[%s4866 + $0x110] sm:$0x1]
    %v4969 = vld [vmem:[%s4866 + $0x114] sm:$0xe]
    %v4970 = vld [vmem:[%s4866 + $0x11c] sm:$0x1]
    %v4971 = vld [vmem:[%s4866 + $0x120] sm:$0xe]
    %v4972 = vld [vmem:[%s4866 + $0x128] sm:$0x1]
    %v4973 = vld [vmem:[%s4866 + $0x12c] sm:$0xe]
    %v4974 = vld [vmem:[%s4866 + $0x134] sm:$0x1]
    %v4975 = vld [vmem:[%s4866 + $0x138] sm:$0xe]
    %v4976 = vld [vmem:[%s4866 + $0x140] sm:$0x1]
    %v4977 = vld [vmem:[%s4866 + $0x144] sm:$0xe]
    %v4978 = vld [vmem:[%s4866 + $0x14c] sm:$0x1]
    %v4979 = vld [vmem:[%s4866 + $0x150] sm:$0xe]
    %v4980 = vld [vmem:[%s4866 + $0x158] sm:$0x1]
    %v4981 = vld [vmem:[%s4866 + $0x15c] sm:$0xe]
    %v4982 = vld [vmem:[%s4866 + $0x164] sm:$0x1]
    %v4983 = vld [vmem:[%s4866 + $0x168] sm:$0xe]
    %v4984 = vld [vmem:[%s4866 + $0x170] sm:$0x1]
    %v4985 = vld [vmem:[%s4866 + $0x174] sm:$0xe]
    %v4986 = vld [vmem:[%s4866 + $0x17c] sm:$0x1]
    %v4987 = vld [vmem:[%s4866 + $0x180] sm:$0xe]
    %v4988 = vld [vmem:[%s4866 + $0x188] sm:$0x1]
    %v4989 = vld [vmem:[%s4866 + $0x18c] sm:$0xe]
    %v4990 = vld [vmem:[%s4866 + $0x194] sm:$0x1]
    %v4991 = vld [vmem:[%s4866 + $0x198] sm:$0xe]
    %v4992 = vld [vmem:[%s4866 + $0x1a0] sm:$0x1]
    %v4993 = vld [vmem:[%s4866 + $0x1a4] sm:$0xe]
    %v4994 = vld [vmem:[%s4866 + $0x1ac] sm:$0x1]
    %v5091 = vrot.slane %v4931, 5
    %v5092 = vrot.slane %v5091, 4
    %v5093 = vrot.slane %v4868, 5
    %v5094 = vsel %vm1255, %v5092, %v5093
    %v5095 = vrot.slane %v5093, 4
    %v5096 = vrot.slane %v4932, 5
    %v5097 = vsel %vm1255, %v5095, %v5096
    %v5098 = vrot.slane %v4933, 5
    %v5099 = vrot.slane %v5098, 4
    %v5100 = vrot.slane %v4870, 5
    %v5101 = vsel %vm1255, %v5099, %v5100
    %v5102 = vrot.slane %v5100, 4
    %v5103 = vrot.slane %v4934, 5
    %v5104 = vsel %vm1255, %v5102, %v5103
    %v5105 = vrot.slane %v4935, 5
    %v5106 = vrot.slane %v5105, 4
    %v5107 = vrot.slane %v4872, 5
    %v5108 = vsel %vm1255, %v5106, %v5107
    %v5109 = vrot.slane %v5107, 4
    %v5110 = vrot.slane %v4936, 5
    %v5111 = vsel %vm1255, %v5109, %v5110
    %v5112 = vrot.slane %v4937, 5
    %v5113 = vrot.slane %v5112, 4
    %v5114 = vrot.slane %v4874, 5
    %v5115 = vsel %vm1255, %v5113, %v5114
    %v5116 = vrot.slane %v5114, 4
    %v5117 = vrot.slane %v4938, 5
    %v5118 = vsel %vm1255, %v5116, %v5117
    %v5119 = vrot.slane %v4939, 5
    %v5120 = vrot.slane %v5119, 4
    %v5121 = vrot.slane %v4876, 5
    %v5122 = vsel %vm1255, %v5120, %v5121
    %v5123 = vrot.slane %v5121, 4
    %v5124 = vrot.slane %v4940, 5
    %v5125 = vsel %vm1255, %v5123, %v5124
    %v5126 = vrot.slane %v4941, 5
    %v5127 = vrot.slane %v5126, 4
    %v5128 = vrot.slane %v4878, 5
    %v5129 = vsel %vm1255, %v5127, %v5128
    %v5130 = vrot.slane %v5128, 4
    %v5131 = vrot.slane %v4942, 5
    %v5132 = vsel %vm1255, %v5130, %v5131
    %v5133 = vrot.slane %v4943, 5
    %v5134 = vrot.slane %v5133, 4
    %v5135 = vrot.slane %v4880, 5
    %v5136 = vsel %vm1255, %v5134, %v5135
    %v5137 = vrot.slane %v5135, 4
    %v5138 = vrot.slane %v4944, 5
    %v5139 = vsel %vm1255, %v5137, %v5138
    %v5140 = vrot.slane %v4945, 5
    %v5141 = vrot.slane %v5140, 4
    %v5142 = vrot.slane %v4882, 5
    %v5143 = vsel %vm1255, %v5141, %v5142
    %v5144 = vrot.slane %v5142, 4
    %v5145 = vrot.slane %v4946, 5
    %v5146 = vsel %vm1255, %v5144, %v5145
    %v5147 = vrot.slane %v4947, 5
    %v5148 = vrot.slane %v5147, 4
    %v5149 = vrot.slane %v4884, 5
    %v5150 = vsel %vm1255, %v5148, %v5149
    %v5151 = vrot.slane %v5149, 4
    %v5152 = vrot.slane %v4948, 5
    %v5153 = vsel %vm1255, %v5151, %v5152
    %v5154 = vrot.slane %v4949, 5
    %v5155 = vrot.slane %v5154, 4
    %v5156 = vrot.slane %v4886, 5
    %v5157 = vsel %vm1255, %v5155, %v5156
    %v5158 = vrot.slane %v5156, 4
    %v5159 = vrot.slane %v4950, 5
    %v5160 = vsel %vm1255, %v5158, %v5159
    %v5161 = vrot.slane %v4951, 5
    %v5162 = vrot.slane %v5161, 4
    %v5163 = vrot.slane %v4888, 5
    %v5164 = vsel %vm1255, %v5162, %v5163
    %v5165 = vrot.slane %v5163, 4
    %v5166 = vrot.slane %v4952, 5
    %v5167 = vsel %vm1255, %v5165, %v5166
    %v5168 = vrot.slane %v4953, 5
    %v5169 = vrot.slane %v5168, 4
    %v5170 = vrot.slane %v4890, 5
    %v5171 = vsel %vm1255, %v5169, %v5170
    %v5172 = vrot.slane %v5170, 4
    %v5173 = vrot.slane %v4954, 5
    %v5174 = vsel %vm1255, %v5172, %v5173
    %v5175 = vrot.slane %v4955, 5
    %v5176 = vrot.slane %v5175, 4
    %v5177 = vrot.slane %v4892, 5
    %v5178 = vsel %vm1255, %v5176, %v5177
    %v5179 = vrot.slane %v5177, 4
    %v5180 = vrot.slane %v4956, 5
    %v5181 = vsel %vm1255, %v5179, %v5180
    %v5182 = vrot.slane %v4957, 5
    %v5183 = vrot.slane %v5182, 4
    %v5184 = vrot.slane %v4894, 5
    %v5185 = vsel %vm1255, %v5183, %v5184
    %v5186 = vrot.slane %v5184, 4
    %v5187 = vrot.slane %v4958, 5
    %v5188 = vsel %vm1255, %v5186, %v5187
    %v5189 = vrot.slane %v4959, 5
    %v5190 = vrot.slane %v5189, 4
    %v5191 = vrot.slane %v4896, 5
    %v5192 = vsel %vm1255, %v5190, %v5191
    %v5193 = vrot.slane %v5191, 4
    %v5194 = vrot.slane %v4960, 5
    %v5195 = vsel %vm1255, %v5193, %v5194
    %v5196 = vrot.slane %v4961, 5
    %v5197 = vrot.slane %v5196, 4
    %v5198 = vrot.slane %v4898, 5
    %v5199 = vsel %vm1255, %v5197, %v5198
    %v5200 = vrot.slane %v5198, 4
    %v5201 = vrot.slane %v4962, 5
    %v5202 = vsel %vm1255, %v5200, %v5201
    %v5203 = vrot.slane %v4963, 5
    %v5204 = vrot.slane %v5203, 4
    %v5205 = vrot.slane %v4900, 5
    %v5206 = vsel %vm1255, %v5204, %v5205
    %v5207 = vrot.slane %v5205, 4
    %v5208 = vrot.slane %v4964, 5
    %v5209 = vsel %vm1255, %v5207, %v5208
    %v5210 = vrot.slane %v4965, 5
    %v5211 = vrot.slane %v5210, 4
    %v5212 = vrot.slane %v4902, 5
    %v5213 = vsel %vm1255, %v5211, %v5212
    %v5214 = vrot.slane %v5212, 4
    %v5215 = vrot.slane %v4966, 5
    %v5216 = vsel %vm1255, %v5214, %v5215
    %v5217 = vrot.slane %v4967, 5
    %v5218 = vrot.slane %v5217, 4
    %v5219 = vrot.slane %v4904, 5
    %v5220 = vsel %vm1255, %v5218, %v5219
    %v5221 = vrot.slane %v5219, 4
    %v5222 = vrot.slane %v4968, 5
    %v5223 = vsel %vm1255, %v5221, %v5222
    %v5224 = vrot.slane %v4969, 5
    %v5225 = vrot.slane %v5224, 4
    %v5226 = vrot.slane %v4906, 5
    %v5227 = vsel %vm1255, %v5225, %v5226
    %v5228 = vrot.slane %v5226, 4
    %v5229 = vrot.slane %v4970, 5
    %v5230 = vsel %vm1255, %v5228, %v5229
    %v5231 = vrot.slane %v4971, 5
    %v5232 = vrot.slane %v5231, 4
    %v5233 = vrot.slane %v4908, 5
    %v5234 = vsel %vm1255, %v5232, %v5233
    %v5235 = vrot.slane %v5233, 4
    %v5236 = vrot.slane %v4972, 5
    %v5237 = vsel %vm1255, %v5235, %v5236
    %v5238 = vrot.slane %v4973, 5
    %v5239 = vrot.slane %v5238, 4
    %v5240 = vrot.slane %v4910, 5
    %v5241 = vsel %vm1255, %v5239, %v5240
    %v5242 = vrot.slane %v5240, 4
    %v5243 = vrot.slane %v4974, 5
    %v5244 = vsel %vm1255, %v5242, %v5243
    %v5245 = vrot.slane %v4975, 5
    %v5246 = vrot.slane %v5245, 4
    %v5247 = vrot.slane %v4912, 5
    %v5248 = vsel %vm1255, %v5246, %v5247
    %v5249 = vrot.slane %v5247, 4
    %v5250 = vrot.slane %v4976, 5
    %v5251 = vsel %vm1255, %v5249, %v5250
    %v5252 = vrot.slane %v4977, 5
    %v5253 = vrot.slane %v5252, 4
    %v5254 = vrot.slane %v4914, 5
    %v5255 = vsel %vm1255, %v5253, %v5254
    %v5256 = vrot.slane %v5254, 4
    %v5257 = vrot.slane %v4978, 5
    %v5258 = vsel %vm1255, %v5256, %v5257
    %v5259 = vrot.slane %v4979, 5
    %v5260 = vrot.slane %v5259, 4
    %v5261 = vrot.slane %v4916, 5
    %v5262 = vsel %vm1255, %v5260, %v5261
    %v5263 = vrot.slane %v5261, 4
    %v5264 = vrot.slane %v4980, 5
    %v5265 = vsel %vm1255, %v5263, %v5264
    %v5266 = vrot.slane %v4981, 5
    %v5267 = vrot.slane %v5266, 4
    %v5268 = vrot.slane %v4918, 5
    %v5269 = vsel %vm1255, %v5267, %v5268
    %v5270 = vrot.slane %v5268, 4
    %v5271 = vrot.slane %v4982, 5
    %v5272 = vsel %vm1255, %v5270, %v5271
    %v5273 = vrot.slane %v4983, 5
    %v5274 = vrot.slane %v5273, 4
    %v5275 = vrot.slane %v4920, 5
    %v5276 = vsel %vm1255, %v5274, %v5275
    %v5277 = vrot.slane %v5275, 4
    %v5278 = vrot.slane %v4984, 5
    %v5279 = vsel %vm1255, %v5277, %v5278
    %v5280 = vrot.slane %v4985, 5
    %v5281 = vrot.slane %v5280, 4
    %v5282 = vrot.slane %v4922, 5
    %v5283 = vsel %vm1255, %v5281, %v5282
    %v5284 = vrot.slane %v5282, 4
    %v5285 = vrot.slane %v4986, 5
    %v5286 = vsel %vm1255, %v5284, %v5285
    %v5287 = vrot.slane %v4987, 5
    %v5288 = vrot.slane %v5287, 4
    %v5289 = vrot.slane %v4924, 5
    %v5290 = vsel %vm1255, %v5288, %v5289
    %v5291 = vrot.slane %v5289, 4
    %v5292 = vrot.slane %v4988, 5
    %v5293 = vsel %vm1255, %v5291, %v5292
    %v5294 = vrot.slane %v4989, 5
    %v5295 = vrot.slane %v5294, 4
    %v5296 = vrot.slane %v4926, 5
    %v5297 = vsel %vm1255, %v5295, %v5296
    %v5298 = vrot.slane %v5296, 4
    %v5299 = vrot.slane %v4990, 5
    %v5300 = vsel %vm1255, %v5298, %v5299
    %v5301 = vrot.slane %v4991, 5
    %v5302 = vrot.slane %v5301, 4
    %v5303 = vrot.slane %v4928, 5
    %v5304 = vsel %vm1255, %v5302, %v5303
    %v5305 = vrot.slane %v5303, 4
    %v5306 = vrot.slane %v4992, 5
    %v5307 = vsel %vm1255, %v5305, %v5306
    %v5308 = vrot.slane %v4993, 5
    %v5309 = vrot.slane %v5308, 4
    %v5310 = vrot.slane %v4930, 5
    %v5311 = vsel %vm1255, %v5309, %v5310
    %v5312 = vrot.slane %v5310, 4
    %v5313 = vrot.slane %v4994, 5
    %v5314 = vsel %vm1255, %v5312, %v5313
    %v5315 = vld [vmem:[%s4866] sm:$0xc]
    %v5316 = vld [vmem:[%s4866 + $0x8] sm:$0x3]
    %v5317 = vld [vmem:[%s4866 + $0xc] sm:$0xc]
    %v5318 = vld [vmem:[%s4866 + $0x14] sm:$0x3]
    %v5319 = vld [vmem:[%s4866 + $0x18] sm:$0xc]
    %v5320 = vld [vmem:[%s4866 + $0x20] sm:$0x3]
    %v5321 = vld [vmem:[%s4866 + $0x24] sm:$0xc]
    %v5322 = vld [vmem:[%s4866 + $0x2c] sm:$0x3]
    %v5323 = vld [vmem:[%s4866 + $0x30] sm:$0xc]
    %v5324 = vld [vmem:[%s4866 + $0x38] sm:$0x3]
    %v5325 = vld [vmem:[%s4866 + $0x3c] sm:$0xc]
    %v5326 = vld [vmem:[%s4866 + $0x44] sm:$0x3]
    %v5327 = vld [vmem:[%s4866 + $0x48] sm:$0xc]
    %v5328 = vld [vmem:[%s4866 + $0x50] sm:$0x3]
    %v5329 = vld [vmem:[%s4866 + $0x54] sm:$0xc]
    %v5330 = vld [vmem:[%s4866 + $0x5c] sm:$0x3]
    %v5331 = vld [vmem:[%s4866 + $0x60] sm:$0xc]
    %v5332 = vld [vmem:[%s4866 + $0x68] sm:$0x3]
    %v5333 = vld [vmem:[%s4866 + $0x6c] sm:$0xc]
    %v5334 = vld [vmem:[%s4866 + $0x74] sm:$0x3]
    %v5335 = vld [vmem:[%s4866 + $0x78] sm:$0xc]
    %v5336 = vld [vmem:[%s4866 + $0x80] sm:$0x3]
    %v5337 = vld [vmem:[%s4866 + $0x84] sm:$0xc]
    %v5338 = vld [vmem:[%s4866 + $0x8c] sm:$0x3]
    %v5339 = vld [vmem:[%s4866 + $0x90] sm:$0xc]
    %v5340 = vld [vmem:[%s4866 + $0x98] sm:$0x3]
    %v5341 = vld [vmem:[%s4866 + $0x9c] sm:$0xc]
    %v5342 = vld [vmem:[%s4866 + $0xa4] sm:$0x3]
    %v5343 = vld [vmem:[%s4866 + $0xa8] sm:$0xc]
    %v5344 = vld [vmem:[%s4866 + $0xb0] sm:$0x3]
    %v5345 = vld [vmem:[%s4866 + $0xb4] sm:$0xc]
    %v5346 = vld [vmem:[%s4866 + $0xbc] sm:$0x3]
    %v5347 = vld [vmem:[%s4866 + $0xf0] sm:$0xc]
    %v5348 = vld [vmem:[%s4866 + $0xf8] sm:$0x3]
    %v5349 = vld [vmem:[%s4866 + $0xfc] sm:$0xc]
    %v5350 = vld [vmem:[%s4866 + $0x104] sm:$0x3]
    %v5351 = vld [vmem:[%s4866 + $0x108] sm:$0xc]
    %v5352 = vld [vmem:[%s4866 + $0x110] sm:$0x3]
    %v5353 = vld [vmem:[%s4866 + $0x114] sm:$0xc]
    %v5354 = vld [vmem:[%s4866 + $0x11c] sm:$0x3]
    %v5355 = vld [vmem:[%s4866 + $0x120] sm:$0xc]
    %v5356 = vld [vmem:[%s4866 + $0x128] sm:$0x3]
    %v5357 = vld [vmem:[%s4866 + $0x12c] sm:$0xc]
    %v5358 = vld [vmem:[%s4866 + $0x134] sm:$0x3]
    %v5359 = vld [vmem:[%s4866 + $0x138] sm:$0xc]
    %v5360 = vld [vmem:[%s4866 + $0x140] sm:$0x3]
    %v5361 = vld [vmem:[%s4866 + $0x144] sm:$0xc]
    %v5362 = vld [vmem:[%s4866 + $0x14c] sm:$0x3]
    %v5363 = vld [vmem:[%s4866 + $0x150] sm:$0xc]
    %v5364 = vld [vmem:[%s4866 + $0x158] sm:$0x3]
    %v5365 = vld [vmem:[%s4866 + $0x15c] sm:$0xc]
    %v5366 = vld [vmem:[%s4866 + $0x164] sm:$0x3]
    %v5367 = vld [vmem:[%s4866 + $0x168] sm:$0xc]
    %v5368 = vld [vmem:[%s4866 + $0x170] sm:$0x3]
    %v5369 = vld [vmem:[%s4866 + $0x174] sm:$0xc]
    %v5370 = vld [vmem:[%s4866 + $0x17c] sm:$0x3]
    %v5371 = vld [vmem:[%s4866 + $0x180] sm:$0xc]
    %v5372 = vld [vmem:[%s4866 + $0x188] sm:$0x3]
    %v5373 = vld [vmem:[%s4866 + $0x18c] sm:$0xc]
    %v5374 = vld [vmem:[%s4866 + $0x194] sm:$0x3]
    %v5375 = vld [vmem:[%s4866 + $0x198] sm:$0xc]
    %v5376 = vld [vmem:[%s4866 + $0x1a0] sm:$0x3]
    %v5377 = vld [vmem:[%s4866 + $0x1a4] sm:$0xc]
    %v5378 = vld [vmem:[%s4866 + $0x1ac] sm:$0x3]
    %v5443 = vrot.slane %v5315, 6
    %v5444 = vrot.slane %v5443, 4
    %v5445 = vrot.slane %v4868, 6
    %v5446 = vsel %vm1610, %v5444, %v5445
    %v5447 = vrot.slane %v5445, 4
    %v5448 = vrot.slane %v5316, 6
    %v5449 = vsel %vm1610, %v5447, %v5448
    %v5450 = vrot.slane %v5317, 6
    %v5451 = vrot.slane %v5450, 4
    %v5452 = vrot.slane %v4870, 6
    %v5453 = vsel %vm1610, %v5451, %v5452
    %v5454 = vrot.slane %v5452, 4
    %v5455 = vrot.slane %v5318, 6
    %v5456 = vsel %vm1610, %v5454, %v5455
    %v5457 = vrot.slane %v5319, 6
    %v5458 = vrot.slane %v5457, 4
    %v5459 = vrot.slane %v4872, 6
    %v5460 = vsel %vm1610, %v5458, %v5459
    %v5461 = vrot.slane %v5459, 4
    %v5462 = vrot.slane %v5320, 6
    %v5463 = vsel %vm1610, %v5461, %v5462
    %v5464 = vrot.slane %v5321, 6
    %v5465 = vrot.slane %v5464, 4
    %v5466 = vrot.slane %v4874, 6
    %v5467 = vsel %vm1610, %v5465, %v5466
    %v5468 = vrot.slane %v5466, 4
    %v5469 = vrot.slane %v5322, 6
    %v5470 = vsel %vm1610, %v5468, %v5469
    %v5471 = vrot.slane %v5323, 6
    %v5472 = vrot.slane %v5471, 4
    %v5473 = vrot.slane %v4876, 6
    %v5474 = vsel %vm1610, %v5472, %v5473
    %v5475 = vrot.slane %v5473, 4
    %v5476 = vrot.slane %v5324, 6
    %v5477 = vsel %vm1610, %v5475, %v5476
    %v5478 = vrot.slane %v5325, 6
    %v5479 = vrot.slane %v5478, 4
    %v5480 = vrot.slane %v4878, 6
    %v5481 = vsel %vm1610, %v5479, %v5480
    %v5482 = vrot.slane %v5480, 4
    %v5483 = vrot.slane %v5326, 6
    %v5484 = vsel %vm1610, %v5482, %v5483
    %v5485 = vrot.slane %v5327, 6
    %v5486 = vrot.slane %v5485, 4
    %v5487 = vrot.slane %v4880, 6
    %v5488 = vsel %vm1610, %v5486, %v5487
    %v5489 = vrot.slane %v5487, 4
    %v5490 = vrot.slane %v5328, 6
    %v5491 = vsel %vm1610, %v5489, %v5490
    %v5492 = vrot.slane %v5329, 6
    %v5493 = vrot.slane %v5492, 4
    %v5494 = vrot.slane %v4882, 6
    %v5495 = vsel %vm1610, %v5493, %v5494
    %v5496 = vrot.slane %v5494, 4
    %v5497 = vrot.slane %v5330, 6
    %v5498 = vsel %vm1610, %v5496, %v5497
    %v5499 = vrot.slane %v5331, 6
    %v5500 = vrot.slane %v5499, 4
    %v5501 = vrot.slane %v4884, 6
    %v5502 = vsel %vm1610, %v5500, %v5501
    %v5503 = vrot.slane %v5501, 4
    %v5504 = vrot.slane %v5332, 6
    %v5505 = vsel %vm1610, %v5503, %v5504
    %v5506 = vrot.slane %v5333, 6
    %v5507 = vrot.slane %v5506, 4
    %v5508 = vrot.slane %v4886, 6
    %v5509 = vsel %vm1610, %v5507, %v5508
    %v5510 = vrot.slane %v5508, 4
    %v5511 = vrot.slane %v5334, 6
    %v5512 = vsel %vm1610, %v5510, %v5511
    %v5513 = vrot.slane %v5335, 6
    %v5514 = vrot.slane %v5513, 4
    %v5515 = vrot.slane %v4888, 6
    %v5516 = vsel %vm1610, %v5514, %v5515
    %v5517 = vrot.slane %v5515, 4
    %v5518 = vrot.slane %v5336, 6
    %v5519 = vsel %vm1610, %v5517, %v5518
    %v5520 = vrot.slane %v5337, 6
    %v5521 = vrot.slane %v5520, 4
    %v5522 = vrot.slane %v4890, 6
    %v5523 = vsel %vm1610, %v5521, %v5522
    %v5524 = vrot.slane %v5522, 4
    %v5525 = vrot.slane %v5338, 6
    %v5526 = vsel %vm1610, %v5524, %v5525
    %v5527 = vrot.slane %v5339, 6
    %v5528 = vrot.slane %v5527, 4
    %v5529 = vrot.slane %v4892, 6
    %v5530 = vsel %vm1610, %v5528, %v5529
    %v5531 = vrot.slane %v5529, 4
    %v5532 = vrot.slane %v5340, 6
    %v5533 = vsel %vm1610, %v5531, %v5532
    %v5534 = vrot.slane %v5341, 6
    %v5535 = vrot.slane %v5534, 4
    %v5536 = vrot.slane %v4894, 6
    %v5537 = vsel %vm1610, %v5535, %v5536
    %v5538 = vrot.slane %v5536, 4
    %v5539 = vrot.slane %v5342, 6
    %v5540 = vsel %vm1610, %v5538, %v5539
    %v5541 = vrot.slane %v5343, 6
    %v5542 = vrot.slane %v5541, 4
    %v5543 = vrot.slane %v4896, 6
    %v5544 = vsel %vm1610, %v5542, %v5543
    %v5545 = vrot.slane %v5543, 4
    %v5546 = vrot.slane %v5344, 6
    %v5547 = vsel %vm1610, %v5545, %v5546
    %v5548 = vrot.slane %v5345, 6
    %v5549 = vrot.slane %v5548, 4
    %v5550 = vrot.slane %v4898, 6
    %v5551 = vsel %vm1610, %v5549, %v5550
    %v5552 = vrot.slane %v5550, 4
    %v5553 = vrot.slane %v5346, 6
    %v5554 = vsel %vm1610, %v5552, %v5553
    %v5555 = vrot.slane %v5347, 6
    %v5556 = vrot.slane %v5555, 4
    %v5557 = vrot.slane %v4900, 6
    %v5558 = vsel %vm1610, %v5556, %v5557
    %v5559 = vrot.slane %v5557, 4
    %v5560 = vrot.slane %v5348, 6
    %v5561 = vsel %vm1610, %v5559, %v5560
    %v5562 = vrot.slane %v5349, 6
    %v5563 = vrot.slane %v5562, 4
    %v5564 = vrot.slane %v4902, 6
    %v5565 = vsel %vm1610, %v5563, %v5564
    %v5566 = vrot.slane %v5564, 4
    %v5567 = vrot.slane %v5350, 6
    %v5568 = vsel %vm1610, %v5566, %v5567
    %v5569 = vrot.slane %v5351, 6
    %v5570 = vrot.slane %v5569, 4
    %v5571 = vrot.slane %v4904, 6
    %v5572 = vsel %vm1610, %v5570, %v5571
    %v5573 = vrot.slane %v5571, 4
    %v5574 = vrot.slane %v5352, 6
    %v5575 = vsel %vm1610, %v5573, %v5574
    %v5576 = vrot.slane %v5353, 6
    %v5577 = vrot.slane %v5576, 4
    %v5578 = vrot.slane %v4906, 6
    %v5579 = vsel %vm1610, %v5577, %v5578
    %v5580 = vrot.slane %v5578, 4
    %v5581 = vrot.slane %v5354, 6
    %v5582 = vsel %vm1610, %v5580, %v5581
    %v5583 = vrot.slane %v5355, 6
    %v5584 = vrot.slane %v5583, 4
    %v5585 = vrot.slane %v4908, 6
    %v5586 = vsel %vm1610, %v5584, %v5585
    %v5587 = vrot.slane %v5585, 4
    %v5588 = vrot.slane %v5356, 6
    %v5589 = vsel %vm1610, %v5587, %v5588
    %v5590 = vrot.slane %v5357, 6
    %v5591 = vrot.slane %v5590, 4
    %v5592 = vrot.slane %v4910, 6
    %v5593 = vsel %vm1610, %v5591, %v5592
    %v5594 = vrot.slane %v5592, 4
    %v5595 = vrot.slane %v5358, 6
    %v5596 = vsel %vm1610, %v5594, %v5595
    %v5597 = vrot.slane %v5359, 6
    %v5598 = vrot.slane %v5597, 4
    %v5599 = vrot.slane %v4912, 6
    %v5600 = vsel %vm1610, %v5598, %v5599
    %v5601 = vrot.slane %v5599, 4
    %v5602 = vrot.slane %v5360, 6
    %v5603 = vsel %vm1610, %v5601, %v5602
    %v5604 = vrot.slane %v5361, 6
    %v5605 = vrot.slane %v5604, 4
    %v5606 = vrot.slane %v4914, 6
    %v5607 = vsel %vm1610, %v5605, %v5606
    %v5608 = vrot.slane %v5606, 4
    %v5609 = vrot.slane %v5362, 6
    %v5610 = vsel %vm1610, %v5608, %v5609
    %v5611 = vrot.slane %v5363, 6
    %v5612 = vrot.slane %v5611, 4
    %v5613 = vrot.slane %v4916, 6
    %v5614 = vsel %vm1610, %v5612, %v5613
    %v5615 = vrot.slane %v5613, 4
    %v5616 = vrot.slane %v5364, 6
    %v5617 = vsel %vm1610, %v5615, %v5616
    %v5618 = vrot.slane %v5365, 6
    %v5619 = vrot.slane %v5618, 4
    %v5620 = vrot.slane %v4918, 6
    %v5621 = vsel %vm1610, %v5619, %v5620
    %v5622 = vrot.slane %v5620, 4
    %v5623 = vrot.slane %v5366, 6
    %v5624 = vsel %vm1610, %v5622, %v5623
    %v5625 = vrot.slane %v5367, 6
    %v5626 = vrot.slane %v5625, 4
    %v5627 = vrot.slane %v4920, 6
    %v5628 = vsel %vm1610, %v5626, %v5627
    %v5629 = vrot.slane %v5627, 4
    %v5630 = vrot.slane %v5368, 6
    %v5631 = vsel %vm1610, %v5629, %v5630
    %v5632 = vrot.slane %v5369, 6
    %v5633 = vrot.slane %v5632, 4
    %v5634 = vrot.slane %v4922, 6
    %v5635 = vsel %vm1610, %v5633, %v5634
    %v5636 = vrot.slane %v5634, 4
    %v5637 = vrot.slane %v5370, 6
    %v5638 = vsel %vm1610, %v5636, %v5637
    %v5639 = vrot.slane %v5371, 6
    %v5640 = vrot.slane %v5639, 4
    %v5641 = vrot.slane %v4924, 6
    %v5642 = vsel %vm1610, %v5640, %v5641
    %v5643 = vrot.slane %v5641, 4
    %v5644 = vrot.slane %v5372, 6
    %v5645 = vsel %vm1610, %v5643, %v5644
    %v5646 = vrot.slane %v5373, 6
    %v5647 = vrot.slane %v5646, 4
    %v5648 = vrot.slane %v4926, 6
    %v5649 = vsel %vm1610, %v5647, %v5648
    %v5650 = vrot.slane %v5648, 4
    %v5651 = vrot.slane %v5374, 6
    %v5652 = vsel %vm1610, %v5650, %v5651
    %v5653 = vrot.slane %v5375, 6
    %v5654 = vrot.slane %v5653, 4
    %v5655 = vrot.slane %v4928, 6
    %v5656 = vsel %vm1610, %v5654, %v5655
    %v5657 = vrot.slane %v5655, 4
    %v5658 = vrot.slane %v5376, 6
    %v5659 = vsel %vm1610, %v5657, %v5658
    %v5660 = vrot.slane %v5377, 6
    %v5661 = vrot.slane %v5660, 4
    %v5662 = vrot.slane %v4930, 6
    %v5663 = vsel %vm1610, %v5661, %v5662
    %v5664 = vrot.slane %v5662, 4
    %v5665 = vrot.slane %v5378, 6
    %v5666 = vsel %vm1610, %v5664, %v5665
    %v5699 = vunpack.c.l.b16 %v4867
    %v5700 = vunpack.c.l.b16 %v4868
    %v5701 = vunpack.c.l.b16 %v4869
    %v5702 = vunpack.c.l.b16 %v4870
    %v5703 = vunpack.c.l.b16 %v4871
    %v5704 = vunpack.c.l.b16 %v4872
    %v5705 = vunpack.c.l.b16 %v4873
    %v5706 = vunpack.c.l.b16 %v4874
    %v5707 = vunpack.c.l.b16 %v4875
    %v5708 = vunpack.c.l.b16 %v4876
    %v5709 = vunpack.c.l.b16 %v4877
    %v5710 = vunpack.c.l.b16 %v4878
    %v5711 = vunpack.c.l.b16 %v4879
    %v5712 = vunpack.c.l.b16 %v4880
    %v5713 = vunpack.c.l.b16 %v4881
    %v5714 = vunpack.c.l.b16 %v4882
    %v5715 = vunpack.c.l.b16 %v4883
    %v5716 = vunpack.c.l.b16 %v4884
    %v5717 = vunpack.c.l.b16 %v4885
    %v5718 = vunpack.c.l.b16 %v4886
    %v5719 = vunpack.c.l.b16 %v4887
    %v5720 = vunpack.c.l.b16 %v4888
    %v5721 = vunpack.c.l.b16 %v4889
    %v5722 = vunpack.c.l.b16 %v4890
    %v5723 = vunpack.c.l.b16 %v4891
    %v5724 = vunpack.c.l.b16 %v4892
    %v5725 = vunpack.c.l.b16 %v4893
    %v5726 = vunpack.c.l.b16 %v4894
    %v5727 = vunpack.c.l.b16 %v4895
    %v5728 = vunpack.c.l.b16 %v4896
    %v5729 = vunpack.c.l.b16 %v4897
    %v5730 = vunpack.c.l.b16 %v4898
    %v5731 = vunpack.c.l.b16 %v4899
    %v5732 = vunpack.c.l.b16 %v4900
    %v5733 = vunpack.c.l.b16 %v4901
    %v5734 = vunpack.c.l.b16 %v4902
    %v5735 = vunpack.c.l.b16 %v4903
    %v5736 = vunpack.c.l.b16 %v4904
    %v5737 = vunpack.c.l.b16 %v4905
    %v5738 = vunpack.c.l.b16 %v4906
    %v5739 = vunpack.c.l.b16 %v4907
    %v5740 = vunpack.c.l.b16 %v4908
    %v5741 = vunpack.c.l.b16 %v4909
    %v5742 = vunpack.c.l.b16 %v4910
    %v5743 = vunpack.c.l.b16 %v4911
    %v5744 = vunpack.c.l.b16 %v4912
    %v5745 = vunpack.c.l.b16 %v4913
    %v5746 = vunpack.c.l.b16 %v4914
    %v5747 = vunpack.c.l.b16 %v4915
    %v5748 = vunpack.c.l.b16 %v4916
    %v5749 = vunpack.c.l.b16 %v4917
    %v5750 = vunpack.c.l.b16 %v4918
    %v5751 = vunpack.c.l.b16 %v4919
    %v5752 = vunpack.c.l.b16 %v4920
    %v5753 = vunpack.c.l.b16 %v4921
    %v5754 = vunpack.c.l.b16 %v4922
    %v5755 = vunpack.c.l.b16 %v4923
    %v5756 = vunpack.c.l.b16 %v4924
    %v5757 = vunpack.c.l.b16 %v4925
    %v5758 = vunpack.c.l.b16 %v4926
    %v5759 = vunpack.c.l.b16 %v4927
    %v5760 = vunpack.c.l.b16 %v4928
    %v5761 = vunpack.c.l.b16 %v4929
    %v5762 = vunpack.c.l.b16 %v4930
    %v5763 = vpack.c.b16 %v5700, %v5699
    %v5764 = vpack.c.b16 %v5702, %v5701
    %v5765 = vpack.c.b16 %v5704, %v5703
    %v5766 = vpack.c.b16 %v5706, %v5705
    %v5767 = vpack.c.b16 %v5708, %v5707
    %v5768 = vpack.c.b16 %v5710, %v5709
    %v5769 = vpack.c.b16 %v5712, %v5711
    %v5770 = vpack.c.b16 %v5714, %v5713
    %v5771 = vpack.c.b16 %v5716, %v5715
    %v5772 = vpack.c.b16 %v5718, %v5717
    %v5773 = vpack.c.b16 %v5720, %v5719
    %v5774 = vpack.c.b16 %v5722, %v5721
    %v5775 = vpack.c.b16 %v5724, %v5723
    %v5776 = vpack.c.b16 %v5726, %v5725
    %v5777 = vpack.c.b16 %v5728, %v5727
    %v5778 = vpack.c.b16 %v5730, %v5729
    %v5779 = vpack.c.b16 %v5732, %v5731
    %v5780 = vpack.c.b16 %v5734, %v5733
    %v5781 = vpack.c.b16 %v5736, %v5735
    %v5782 = vpack.c.b16 %v5738, %v5737
    %v5783 = vpack.c.b16 %v5740, %v5739
    %v5784 = vpack.c.b16 %v5742, %v5741
    %v5785 = vpack.c.b16 %v5744, %v5743
    %v5786 = vpack.c.b16 %v5746, %v5745
    %v5787 = vpack.c.b16 %v5748, %v5747
    %v5788 = vpack.c.b16 %v5750, %v5749
    %v5789 = vpack.c.b16 %v5752, %v5751
    %v5790 = vpack.c.b16 %v5754, %v5753
    %v5791 = vpack.c.b16 %v5756, %v5755
    %v5792 = vpack.c.b16 %v5758, %v5757
    %v5793 = vpack.c.b16 %v5760, %v5759
    %v5794 = vpack.c.b16 %v5762, %v5761
    %v5827 = vunpack.c.l.b16 %v5094
    %v5828 = vunpack.c.l.b16 %v5097
    %v5829 = vunpack.c.l.b16 %v5101
    %v5830 = vunpack.c.l.b16 %v5104
    %v5831 = vunpack.c.l.b16 %v5108
    %v5832 = vunpack.c.l.b16 %v5111
    %v5833 = vunpack.c.l.b16 %v5115
    %v5834 = vunpack.c.l.b16 %v5118
    %v5835 = vunpack.c.l.b16 %v5122
    %v5836 = vunpack.c.l.b16 %v5125
    %v5837 = vunpack.c.l.b16 %v5129
    %v5838 = vunpack.c.l.b16 %v5132
    %v5839 = vunpack.c.l.b16 %v5136
    %v5840 = vunpack.c.l.b16 %v5139
    %v5841 = vunpack.c.l.b16 %v5143
    %v5842 = vunpack.c.l.b16 %v5146
    %v5843 = vunpack.c.l.b16 %v5150
    %v5844 = vunpack.c.l.b16 %v5153
    %v5845 = vunpack.c.l.b16 %v5157
    %v5846 = vunpack.c.l.b16 %v5160
    %v5847 = vunpack.c.l.b16 %v5164
    %v5848 = vunpack.c.l.b16 %v5167
    %v5849 = vunpack.c.l.b16 %v5171
    %v5850 = vunpack.c.l.b16 %v5174
    %v5851 = vunpack.c.l.b16 %v5178
    %v5852 = vunpack.c.l.b16 %v5181
    %v5853 = vunpack.c.l.b16 %v5185
    %v5854 = vunpack.c.l.b16 %v5188
    %v5855 = vunpack.c.l.b16 %v5192
    %v5856 = vunpack.c.l.b16 %v5195
    %v5857 = vunpack.c.l.b16 %v5199
    %v5858 = vunpack.c.l.b16 %v5202
    %v5859 = vunpack.c.l.b16 %v5206
    %v5860 = vunpack.c.l.b16 %v5209
    %v5861 = vunpack.c.l.b16 %v5213
    %v5862 = vunpack.c.l.b16 %v5216
    %v5863 = vunpack.c.l.b16 %v5220
    %v5864 = vunpack.c.l.b16 %v5223
    %v5865 = vunpack.c.l.b16 %v5227
    %v5866 = vunpack.c.l.b16 %v5230
    %v5867 = vunpack.c.l.b16 %v5234
    %v5868 = vunpack.c.l.b16 %v5237
    %v5869 = vunpack.c.l.b16 %v5241
    %v5870 = vunpack.c.l.b16 %v5244
    %v5871 = vunpack.c.l.b16 %v5248
    %v5872 = vunpack.c.l.b16 %v5251
    %v5873 = vunpack.c.l.b16 %v5255
    %v5874 = vunpack.c.l.b16 %v5258
    %v5875 = vunpack.c.l.b16 %v5262
    %v5876 = vunpack.c.l.b16 %v5265
    %v5877 = vunpack.c.l.b16 %v5269
    %v5878 = vunpack.c.l.b16 %v5272
    %v5879 = vunpack.c.l.b16 %v5276
    %v5880 = vunpack.c.l.b16 %v5279
    %v5881 = vunpack.c.l.b16 %v5283
    %v5882 = vunpack.c.l.b16 %v5286
    %v5883 = vunpack.c.l.b16 %v5290
    %v5884 = vunpack.c.l.b16 %v5293
    %v5885 = vunpack.c.l.b16 %v5297
    %v5886 = vunpack.c.l.b16 %v5300
    %v5887 = vunpack.c.l.b16 %v5304
    %v5888 = vunpack.c.l.b16 %v5307
    %v5889 = vunpack.c.l.b16 %v5311
    %v5890 = vunpack.c.l.b16 %v5314
    %v5891 = vpack.c.b16 %v5828, %v5827
    %v5892 = vpack.c.b16 %v5830, %v5829
    %v5893 = vpack.c.b16 %v5832, %v5831
    %v5894 = vpack.c.b16 %v5834, %v5833
    %v5895 = vpack.c.b16 %v5836, %v5835
    %v5896 = vpack.c.b16 %v5838, %v5837
    %v5897 = vpack.c.b16 %v5840, %v5839
    %v5898 = vpack.c.b16 %v5842, %v5841
    %v5899 = vpack.c.b16 %v5844, %v5843
    %v5900 = vpack.c.b16 %v5846, %v5845
    %v5901 = vpack.c.b16 %v5848, %v5847
    %v5902 = vpack.c.b16 %v5850, %v5849
    %v5903 = vpack.c.b16 %v5852, %v5851
    %v5904 = vpack.c.b16 %v5854, %v5853
    %v5905 = vpack.c.b16 %v5856, %v5855
    %v5906 = vpack.c.b16 %v5858, %v5857
    %v5907 = vpack.c.b16 %v5860, %v5859
    %v5908 = vpack.c.b16 %v5862, %v5861
    %v5909 = vpack.c.b16 %v5864, %v5863
    %v5910 = vpack.c.b16 %v5866, %v5865
    %v5911 = vpack.c.b16 %v5868, %v5867
    %v5912 = vpack.c.b16 %v5870, %v5869
    %v5913 = vpack.c.b16 %v5872, %v5871
    %v5914 = vpack.c.b16 %v5874, %v5873
    %v5915 = vpack.c.b16 %v5876, %v5875
    %v5916 = vpack.c.b16 %v5878, %v5877
    %v5917 = vpack.c.b16 %v5880, %v5879
    %v5918 = vpack.c.b16 %v5882, %v5881
    %v5919 = vpack.c.b16 %v5884, %v5883
    %v5920 = vpack.c.b16 %v5886, %v5885
    %v5921 = vpack.c.b16 %v5888, %v5887
    %v5922 = vpack.c.b16 %v5890, %v5889
    %v5955 = vunpack.c.l.b16 %v5446
    %v5956 = vunpack.c.l.b16 %v5449
    %v5957 = vunpack.c.l.b16 %v5453
    %v5958 = vunpack.c.l.b16 %v5456
    %v5959 = vunpack.c.l.b16 %v5460
    %v5960 = vunpack.c.l.b16 %v5463
    %v5961 = vunpack.c.l.b16 %v5467
    %v5962 = vunpack.c.l.b16 %v5470
    %v5963 = vunpack.c.l.b16 %v5474
    %v5964 = vunpack.c.l.b16 %v5477
    %v5965 = vunpack.c.l.b16 %v5481
    %v5966 = vunpack.c.l.b16 %v5484
    %v5967 = vunpack.c.l.b16 %v5488
    %v5968 = vunpack.c.l.b16 %v5491
    %v5969 = vunpack.c.l.b16 %v5495
    %v5970 = vunpack.c.l.b16 %v5498
    %v5971 = vunpack.c.l.b16 %v5502
    %v5972 = vunpack.c.l.b16 %v5505
    %v5973 = vunpack.c.l.b16 %v5509
    %v5974 = vunpack.c.l.b16 %v5512
    %v5975 = vunpack.c.l.b16 %v5516
    %v5976 = vunpack.c.l.b16 %v5519
    %v5977 = vunpack.c.l.b16 %v5523
    %v5978 = vunpack.c.l.b16 %v5526
    %v5979 = vunpack.c.l.b16 %v5530
    %v5980 = vunpack.c.l.b16 %v5533
    %v5981 = vunpack.c.l.b16 %v5537
    %v5982 = vunpack.c.l.b16 %v5540
    %v5983 = vunpack.c.l.b16 %v5544
    %v5984 = vunpack.c.l.b16 %v5547
    %v5985 = vunpack.c.l.b16 %v5551
    %v5986 = vunpack.c.l.b16 %v5554
    %v5987 = vunpack.c.l.b16 %v5558
    %v5988 = vunpack.c.l.b16 %v5561
    %v5989 = vunpack.c.l.b16 %v5565
    %v5990 = vunpack.c.l.b16 %v5568
    %v5991 = vunpack.c.l.b16 %v5572
    %v5992 = vunpack.c.l.b16 %v5575
    %v5993 = vunpack.c.l.b16 %v5579
    %v5994 = vunpack.c.l.b16 %v5582
    %v5995 = vunpack.c.l.b16 %v5586
    %v5996 = vunpack.c.l.b16 %v5589
    %v5997 = vunpack.c.l.b16 %v5593
    %v5998 = vunpack.c.l.b16 %v5596
    %v5999 = vunpack.c.l.b16 %v5600
    %v6000 = vunpack.c.l.b16 %v5603
    %v6001 = vunpack.c.l.b16 %v5607
    %v6002 = vunpack.c.l.b16 %v5610
    %v6003 = vunpack.c.l.b16 %v5614
    %v6004 = vunpack.c.l.b16 %v5617
    %v6005 = vunpack.c.l.b16 %v5621
    %v6006 = vunpack.c.l.b16 %v5624
    %v6007 = vunpack.c.l.b16 %v5628
    %v6008 = vunpack.c.l.b16 %v5631
    %v6009 = vunpack.c.l.b16 %v5635
    %v6010 = vunpack.c.l.b16 %v5638
    %v6011 = vunpack.c.l.b16 %v5642
    %v6012 = vunpack.c.l.b16 %v5645
    %v6013 = vunpack.c.l.b16 %v5649
    %v6014 = vunpack.c.l.b16 %v5652
    %v6015 = vunpack.c.l.b16 %v5656
    %v6016 = vunpack.c.l.b16 %v5659
    %v6017 = vunpack.c.l.b16 %v5663
    %v6018 = vunpack.c.l.b16 %v5666
    %v6019 = vpack.c.b16 %v5956, %v5955
    %v6020 = vpack.c.b16 %v5958, %v5957
    %v6021 = vpack.c.b16 %v5960, %v5959
    %v6022 = vpack.c.b16 %v5962, %v5961
    %v6023 = vpack.c.b16 %v5964, %v5963
    %v6024 = vpack.c.b16 %v5966, %v5965
    %v6025 = vpack.c.b16 %v5968, %v5967
    %v6026 = vpack.c.b16 %v5970, %v5969
    %v6027 = vpack.c.b16 %v5972, %v5971
    %v6028 = vpack.c.b16 %v5974, %v5973
    %v6029 = vpack.c.b16 %v5976, %v5975
    %v6030 = vpack.c.b16 %v5978, %v5977
    %v6031 = vpack.c.b16 %v5980, %v5979
    %v6032 = vpack.c.b16 %v5982, %v5981
    %v6033 = vpack.c.b16 %v5984, %v5983
    %v6034 = vpack.c.b16 %v5986, %v5985
    %v6035 = vpack.c.b16 %v5988, %v5987
    %v6036 = vpack.c.b16 %v5990, %v5989
    %v6037 = vpack.c.b16 %v5992, %v5991
    %v6038 = vpack.c.b16 %v5994, %v5993
    %v6039 = vpack.c.b16 %v5996, %v5995
    %v6040 = vpack.c.b16 %v5998, %v5997
    %v6041 = vpack.c.b16 %v6000, %v5999
    %v6042 = vpack.c.b16 %v6002, %v6001
    %v6043 = vpack.c.b16 %v6004, %v6003
    %v6044 = vpack.c.b16 %v6006, %v6005
    %v6045 = vpack.c.b16 %v6008, %v6007
    %v6046 = vpack.c.b16 %v6010, %v6009
    %v6047 = vpack.c.b16 %v6012, %v6011
    %v6048 = vpack.c.b16 %v6014, %v6013
    %v6049 = vpack.c.b16 %v6016, %v6015
    %v6050 = vpack.c.b16 %v6018, %v6017
    %s6083 = scalar_lea.vmem %s3, 384
    %v6084 = vld [vmem:[%s6083] sm:$0xf]
    %v6085 = vld [vmem:[%s6083 + $0x4] sm:$0xf]
    %v6086 = vld [vmem:[%s6083 + $0x8] sm:$0xf]
    %v6087 = vld [vmem:[%s6083 + $0xc] sm:$0xf]
    %v6088 = vld [vmem:[%s6083 + $0x10] sm:$0xf]
    %v6089 = vld [vmem:[%s6083 + $0x14] sm:$0xf]
    %v6090 = vld [vmem:[%s6083 + $0x18] sm:$0xf]
    %v6091 = vld [vmem:[%s6083 + $0x1c] sm:$0xf]
    %v6092 = vld [vmem:[%s6083 + $0x20] sm:$0xf]
    %v6093 = vld [vmem:[%s6083 + $0x24] sm:$0xf]
    %v6094 = vld [vmem:[%s6083 + $0x28] sm:$0xf]
    %v6095 = vld [vmem:[%s6083 + $0x2c] sm:$0xf]
    %v6096 = vld [vmem:[%s6083 + $0x30] sm:$0xf]
    %v6097 = vld [vmem:[%s6083 + $0x34] sm:$0xf]
    %v6098 = vld [vmem:[%s6083 + $0x38] sm:$0xf]
    %v6099 = vld [vmem:[%s6083 + $0x3c] sm:$0xf]
    %v6100 = vld [vmem:[%s6083 + $0x40] sm:$0xf]
    %v6101 = vld [vmem:[%s6083 + $0x44] sm:$0xf]
    %v6102 = vld [vmem:[%s6083 + $0x48] sm:$0xf]
    %v6103 = vld [vmem:[%s6083 + $0x4c] sm:$0xf]
    %v6104 = vld [vmem:[%s6083 + $0x50] sm:$0xf]
    %v6105 = vld [vmem:[%s6083 + $0x54] sm:$0xf]
    %v6106 = vld [vmem:[%s6083 + $0x58] sm:$0xf]
    %v6107 = vld [vmem:[%s6083 + $0x5c] sm:$0xf]
    %v6108 = vld [vmem:[%s6083 + $0x60] sm:$0xf]
    %v6109 = vld [vmem:[%s6083 + $0x64] sm:$0xf]
    %v6110 = vld [vmem:[%s6083 + $0x68] sm:$0xf]
    %v6111 = vld [vmem:[%s6083 + $0x6c] sm:$0xf]
    %v6112 = vld [vmem:[%s6083 + $0x70] sm:$0xf]
    %v6113 = vld [vmem:[%s6083 + $0x74] sm:$0xf]
    %v6114 = vld [vmem:[%s6083 + $0x78] sm:$0xf]
    %v6115 = vld [vmem:[%s6083 + $0x7c] sm:$0xf]
    %v6116 = vld [vmem:[%s6083 + $0x80] sm:$0xf]
    %v6117 = vld [vmem:[%s6083 + $0x84] sm:$0xf]
    %v6118 = vld [vmem:[%s6083 + $0x88] sm:$0xf]
    %v6119 = vld [vmem:[%s6083 + $0x8c] sm:$0xf]
    %v6120 = vld [vmem:[%s6083 + $0x90] sm:$0xf]
    %v6121 = vld [vmem:[%s6083 + $0x94] sm:$0xf]
    %v6122 = vld [vmem:[%s6083 + $0x98] sm:$0xf]
    %v6123 = vld [vmem:[%s6083 + $0x9c] sm:$0xf]
    %v6124 = vld [vmem:[%s6083 + $0xa0] sm:$0xf]
    %v6125 = vld [vmem:[%s6083 + $0xa4] sm:$0xf]
    %v6126 = vld [vmem:[%s6083 + $0xa8] sm:$0xf]
    %v6127 = vld [vmem:[%s6083 + $0xac] sm:$0xf]
    %v6128 = vld [vmem:[%s6083 + $0xb0] sm:$0xf]
    %v6129 = vld [vmem:[%s6083 + $0xb4] sm:$0xf]
    %v6130 = vld [vmem:[%s6083 + $0xb8] sm:$0xf]
    %v6131 = vld [vmem:[%s6083 + $0xbc] sm:$0xf]
    %v6180 = vunpack.c.l.b16 %v6084
    %v6181 = vunpack.c.l.b16 %v6085
    %v6182 = vunpack.c.l.b16 %v6086
    %v6183 = vunpack.c.l.b16 %v6087
    %v6184 = vunpack.c.l.b16 %v6088
    %v6185 = vunpack.c.l.b16 %v6089
    %v6186 = vunpack.c.l.b16 %v6090
    %v6187 = vunpack.c.l.b16 %v6091
    %v6188 = vunpack.c.l.b16 %v6092
    %v6189 = vunpack.c.l.b16 %v6093
    %v6190 = vunpack.c.l.b16 %v6094
    %v6191 = vunpack.c.l.b16 %v6095
    %v6192 = vunpack.c.l.b16 %v6096
    %v6193 = vunpack.c.l.b16 %v6097
    %v6194 = vunpack.c.l.b16 %v6098
    %v6195 = vunpack.c.l.b16 %v6099
    %v6196 = vunpack.c.l.b16 %v6100
    %v6197 = vunpack.c.l.b16 %v6101
    %v6198 = vunpack.c.l.b16 %v6102
    %v6199 = vunpack.c.l.b16 %v6103
    %v6200 = vunpack.c.l.b16 %v6104
    %v6201 = vunpack.c.l.b16 %v6105
    %v6202 = vunpack.c.l.b16 %v6106
    %v6203 = vunpack.c.l.b16 %v6107
    %v6204 = vunpack.c.l.b16 %v6108
    %v6205 = vunpack.c.l.b16 %v6109
    %v6206 = vunpack.c.l.b16 %v6110
    %v6207 = vunpack.c.l.b16 %v6111
    %v6208 = vunpack.c.l.b16 %v6112
    %v6209 = vunpack.c.l.b16 %v6113
    %v6210 = vunpack.c.l.b16 %v6114
    %v6211 = vunpack.c.l.b16 %v6115
    %v6212 = vunpack.c.l.b16 %v6116
    %v6213 = vunpack.c.l.b16 %v6117
    %v6214 = vunpack.c.l.b16 %v6118
    %v6215 = vunpack.c.l.b16 %v6119
    %v6216 = vunpack.c.l.b16 %v6120
    %v6217 = vunpack.c.l.b16 %v6121
    %v6218 = vunpack.c.l.b16 %v6122
    %v6219 = vunpack.c.l.b16 %v6123
    %v6220 = vunpack.c.l.b16 %v6124
    %v6221 = vunpack.c.l.b16 %v6125
    %v6222 = vunpack.c.l.b16 %v6126
    %v6223 = vunpack.c.l.b16 %v6127
    %v6224 = vunpack.c.l.b16 %v6128
    %v6225 = vunpack.c.l.b16 %v6129
    %v6226 = vunpack.c.l.b16 %v6130
    %v6227 = vunpack.c.l.b16 %v6131
    %v6228 = vpack.c.b16 %v6181, %v6180
    %v6229 = vpack.c.b16 %v6183, %v6182
    %v6230 = vpack.c.b16 %v6185, %v6184
    %v6231 = vpack.c.b16 %v6187, %v6186
    %v6232 = vpack.c.b16 %v6189, %v6188
    %v6233 = vpack.c.b16 %v6191, %v6190
    %v6234 = vpack.c.b16 %v6193, %v6192
    %v6235 = vpack.c.b16 %v6195, %v6194
    %v6236 = vpack.c.b16 %v6197, %v6196
    %v6237 = vpack.c.b16 %v6199, %v6198
    %v6238 = vpack.c.b16 %v6201, %v6200
    %v6239 = vpack.c.b16 %v6203, %v6202
    %v6240 = vpack.c.b16 %v6205, %v6204
    %v6241 = vpack.c.b16 %v6207, %v6206
    %v6242 = vpack.c.b16 %v6209, %v6208
    %v6243 = vpack.c.b16 %v6211, %v6210
    %v6244 = vpack.c.b16 %v6213, %v6212
    %v6245 = vpack.c.b16 %v6215, %v6214
    %v6246 = vpack.c.b16 %v6217, %v6216
    %v6247 = vpack.c.b16 %v6219, %v6218
    %v6248 = vpack.c.b16 %v6221, %v6220
    %v6249 = vpack.c.b16 %v6223, %v6222
    %v6250 = vpack.c.b16 %v6225, %v6224
    %v6251 = vpack.c.b16 %v6227, %v6226
    %6276 = vmatpush.bf16.msra.mxu0 %v6235
    %6277 = vmatpush.bf16.msra.mxu0 %v6234
    %6278 = vmatpush.bf16.msra.mxu0 %v6233
    %6279 = vmatpush.bf16.msra.mxu0 %v6232
    %6280 = vmatpush.bf16.msra.mxu0 %v6231
    %6281 = vmatpush.bf16.msra.mxu0 %v6230
    %6282 = vmatpush.bf16.msra.mxu0 %v6229
    %6283 = vmatpush.bf16.msra.mxu0 %v6228
    %6284 = vmatmul.bf16.gmra.mxu0 %v5763
    %v6285 = vpop.f32.mrf.mxu0
    %v6286 = vadd.f32 0.0, %v6285
    %v6287 = vpop.f32.mrf.mxu0
    %v6288 = vadd.f32 0.0, %v6287
    %6289 = vmatmul.bf16.gmra.mxu0 %v5764
    %v6290 = vpop.f32.mrf.mxu0
    %v6291 = vadd.f32 0.0, %v6290
    %v6292 = vpop.f32.mrf.mxu0
    %v6293 = vadd.f32 0.0, %v6292
    %6294 = vmatmul.bf16.gmra.mxu0 %v5765
    %v6295 = vpop.f32.mrf.mxu0
    %v6296 = vadd.f32 0.0, %v6295
    %v6297 = vpop.f32.mrf.mxu0
    %v6298 = vadd.f32 0.0, %v6297
    %6299 = vmatmul.bf16.gmra.mxu0 %v5766
    %v6300 = vpop.f32.mrf.mxu0
    %v6301 = vadd.f32 0.0, %v6300
    %v6302 = vpop.f32.mrf.mxu0
    %v6303 = vadd.f32 0.0, %v6302
    %6304 = vmatmul.bf16.gmra.mxu0 %v5767
    %v6305 = vpop.f32.mrf.mxu0
    %v6306 = vadd.f32 0.0, %v6305
    %v6307 = vpop.f32.mrf.mxu0
    %v6308 = vadd.f32 0.0, %v6307
    %6309 = vmatmul.bf16.gmra.mxu0 %v5768
    %v6310 = vpop.f32.mrf.mxu0
    %v6311 = vadd.f32 0.0, %v6310
    %v6312 = vpop.f32.mrf.mxu0
    %v6313 = vadd.f32 0.0, %v6312
    %6314 = vmatmul.bf16.gmra.mxu0 %v5769
    %v6315 = vpop.f32.mrf.mxu0
    %v6316 = vadd.f32 0.0, %v6315
    %v6317 = vpop.f32.mrf.mxu0
    %v6318 = vadd.f32 0.0, %v6317
    %6319 = vmatmul.bf16.gmra.mxu0 %v5770
    %v6320 = vpop.f32.mrf.mxu0
    %v6321 = vadd.f32 0.0, %v6320
    %v6322 = vpop.f32.mrf.mxu0
    %v6323 = vadd.f32 0.0, %v6322
    %6324 = vmatmul.bf16.gmra.mxu0 %v5771
    %v6325 = vpop.f32.mrf.mxu0
    %v6326 = vadd.f32 0.0, %v6325
    %v6327 = vpop.f32.mrf.mxu0
    %v6328 = vadd.f32 0.0, %v6327
    %6329 = vmatmul.bf16.gmra.mxu0 %v5772
    %v6330 = vpop.f32.mrf.mxu0
    %v6331 = vadd.f32 0.0, %v6330
    %v6332 = vpop.f32.mrf.mxu0
    %v6333 = vadd.f32 0.0, %v6332
    %6334 = vmatmul.bf16.gmra.mxu0 %v5773
    %v6335 = vpop.f32.mrf.mxu0
    %v6336 = vadd.f32 0.0, %v6335
    %v6337 = vpop.f32.mrf.mxu0
    %v6338 = vadd.f32 0.0, %v6337
    %6339 = vmatmul.bf16.gmra.mxu0 %v5774
    %v6340 = vpop.f32.mrf.mxu0
    %v6341 = vadd.f32 0.0, %v6340
    %v6342 = vpop.f32.mrf.mxu0
    %v6343 = vadd.f32 0.0, %v6342
    %6344 = vmatmul.bf16.gmra.mxu0 %v5775
    %v6345 = vpop.f32.mrf.mxu0
    %v6346 = vadd.f32 0.0, %v6345
    %v6347 = vpop.f32.mrf.mxu0
    %v6348 = vadd.f32 0.0, %v6347
    %6349 = vmatmul.bf16.gmra.mxu0 %v5776
    %v6350 = vpop.f32.mrf.mxu0
    %v6351 = vadd.f32 0.0, %v6350
    %v6352 = vpop.f32.mrf.mxu0
    %v6353 = vadd.f32 0.0, %v6352
    %6354 = vmatmul.bf16.gmra.mxu0 %v5777
    %v6355 = vpop.f32.mrf.mxu0
    %v6356 = vadd.f32 0.0, %v6355
    %v6357 = vpop.f32.mrf.mxu0
    %v6358 = vadd.f32 0.0, %v6357
    %6359 = vmatmul.bf16.gmra.mxu0 %v5778
    %v6360 = vpop.f32.mrf.mxu0
    %v6361 = vadd.f32 0.0, %v6360
    %v6362 = vpop.f32.mrf.mxu0
    %v6363 = vadd.f32 0.0, %v6362
    %6364 = vmatmul.bf16.gmra.mxu0 %v5779
    %v6365 = vpop.f32.mrf.mxu0
    %v6366 = vadd.f32 0.0, %v6365
    %v6367 = vpop.f32.mrf.mxu0
    %v6368 = vadd.f32 0.0, %v6367
    %6369 = vmatmul.bf16.gmra.mxu0 %v5780
    %v6370 = vpop.f32.mrf.mxu0
    %v6371 = vadd.f32 0.0, %v6370
    %v6372 = vpop.f32.mrf.mxu0
    %v6373 = vadd.f32 0.0, %v6372
    %6374 = vmatmul.bf16.gmra.mxu0 %v5781
    %v6375 = vpop.f32.mrf.mxu0
    %v6376 = vadd.f32 0.0, %v6375
    %v6377 = vpop.f32.mrf.mxu0
    %v6378 = vadd.f32 0.0, %v6377
    %6379 = vmatmul.bf16.gmra.mxu0 %v5782
    %v6380 = vpop.f32.mrf.mxu0
    %v6381 = vadd.f32 0.0, %v6380
    %v6382 = vpop.f32.mrf.mxu0
    %v6383 = vadd.f32 0.0, %v6382
    %6384 = vmatmul.bf16.gmra.mxu0 %v5783
    %v6385 = vpop.f32.mrf.mxu0
    %v6386 = vadd.f32 0.0, %v6385
    %v6387 = vpop.f32.mrf.mxu0
    %v6388 = vadd.f32 0.0, %v6387
    %6389 = vmatmul.bf16.gmra.mxu0 %v5784
    %v6390 = vpop.f32.mrf.mxu0
    %v6391 = vadd.f32 0.0, %v6390
    %v6392 = vpop.f32.mrf.mxu0
    %v6393 = vadd.f32 0.0, %v6392
    %6394 = vmatmul.bf16.gmra.mxu0 %v5785
    %v6395 = vpop.f32.mrf.mxu0
    %v6396 = vadd.f32 0.0, %v6395
    %v6397 = vpop.f32.mrf.mxu0
    %v6398 = vadd.f32 0.0, %v6397
    %6399 = vmatmul.bf16.gmra.mxu0 %v5786
    %v6400 = vpop.f32.mrf.mxu0
    %v6401 = vadd.f32 0.0, %v6400
    %v6402 = vpop.f32.mrf.mxu0
    %v6403 = vadd.f32 0.0, %v6402
    %6404 = vmatmul.bf16.gmra.mxu0 %v5787
    %v6405 = vpop.f32.mrf.mxu0
    %v6406 = vadd.f32 0.0, %v6405
    %v6407 = vpop.f32.mrf.mxu0
    %v6408 = vadd.f32 0.0, %v6407
    %6409 = vmatmul.bf16.gmra.mxu0 %v5788
    %v6410 = vpop.f32.mrf.mxu0
    %v6411 = vadd.f32 0.0, %v6410
    %v6412 = vpop.f32.mrf.mxu0
    %v6413 = vadd.f32 0.0, %v6412
    %6414 = vmatmul.bf16.gmra.mxu0 %v5789
    %v6415 = vpop.f32.mrf.mxu0
    %v6416 = vadd.f32 0.0, %v6415
    %v6417 = vpop.f32.mrf.mxu0
    %v6418 = vadd.f32 0.0, %v6417
    %6419 = vmatmul.bf16.gmra.mxu0 %v5790
    %v6420 = vpop.f32.mrf.mxu0
    %v6421 = vadd.f32 0.0, %v6420
    %v6422 = vpop.f32.mrf.mxu0
    %v6423 = vadd.f32 0.0, %v6422
    %6424 = vmatmul.bf16.gmra.mxu0 %v5791
    %v6425 = vpop.f32.mrf.mxu0
    %v6426 = vadd.f32 0.0, %v6425
    %v6427 = vpop.f32.mrf.mxu0
    %v6428 = vadd.f32 0.0, %v6427
    %6429 = vmatmul.bf16.gmra.mxu0 %v5792
    %v6430 = vpop.f32.mrf.mxu0
    %v6431 = vadd.f32 0.0, %v6430
    %v6432 = vpop.f32.mrf.mxu0
    %v6433 = vadd.f32 0.0, %v6432
    %6434 = vmatmul.bf16.gmra.mxu0 %v5793
    %v6435 = vpop.f32.mrf.mxu0
    %v6436 = vadd.f32 0.0, %v6435
    %v6437 = vpop.f32.mrf.mxu0
    %v6438 = vadd.f32 0.0, %v6437
    %6439 = vmatmul.bf16.gmra.mxu0 %v5794
    %v6440 = vpop.f32.mrf.mxu0
    %v6441 = vadd.f32 0.0, %v6440
    %v6442 = vpop.f32.mrf.mxu0
    %v6443 = vadd.f32 0.0, %v6442
    %6444 = vdwg.mxu0
    %6445 = vmatpush.bf16.msra.mxu0 %v6243
    %6446 = vmatpush.bf16.msra.mxu0 %v6242
    %6447 = vmatpush.bf16.msra.mxu0 %v6241
    %6448 = vmatpush.bf16.msra.mxu0 %v6240
    %6449 = vmatpush.bf16.msra.mxu0 %v6239
    %6450 = vmatpush.bf16.msra.mxu0 %v6238
    %6451 = vmatpush.bf16.msra.mxu0 %v6237
    %6452 = vmatpush.bf16.msra.mxu0 %v6236
    %6453 = vmatmul.bf16.gmra.mxu0 %v5891
    %v6454 = vpop.f32.mrf.mxu0
    %v6455 = vadd.f32 %v6286, %v6454
    %v6456 = vpop.f32.mrf.mxu0
    %v6457 = vadd.f32 %v6288, %v6456
    %6458 = vmatmul.bf16.gmra.mxu0 %v5892
    %v6459 = vpop.f32.mrf.mxu0
    %v6460 = vadd.f32 %v6291, %v6459
    %v6461 = vpop.f32.mrf.mxu0
    %v6462 = vadd.f32 %v6293, %v6461
    %6463 = vmatmul.bf16.gmra.mxu0 %v5893
    %v6464 = vpop.f32.mrf.mxu0
    %v6465 = vadd.f32 %v6296, %v6464
    %v6466 = vpop.f32.mrf.mxu0
    %v6467 = vadd.f32 %v6298, %v6466
    %6468 = vmatmul.bf16.gmra.mxu0 %v5894
    %v6469 = vpop.f32.mrf.mxu0
    %v6470 = vadd.f32 %v6301, %v6469
    %v6471 = vpop.f32.mrf.mxu0
    %v6472 = vadd.f32 %v6303, %v6471
    %6473 = vmatmul.bf16.gmra.mxu0 %v5895
    %v6474 = vpop.f32.mrf.mxu0
    %v6475 = vadd.f32 %v6306, %v6474
    %v6476 = vpop.f32.mrf.mxu0
    %v6477 = vadd.f32 %v6308, %v6476
    %6478 = vmatmul.bf16.gmra.mxu0 %v5896
    %v6479 = vpop.f32.mrf.mxu0
    %v6480 = vadd.f32 %v6311, %v6479
    %v6481 = vpop.f32.mrf.mxu0
    %v6482 = vadd.f32 %v6313, %v6481
    %6483 = vmatmul.bf16.gmra.mxu0 %v5897
    %v6484 = vpop.f32.mrf.mxu0
    %v6485 = vadd.f32 %v6316, %v6484
    %v6486 = vpop.f32.mrf.mxu0
    %v6487 = vadd.f32 %v6318, %v6486
    %6488 = vmatmul.bf16.gmra.mxu0 %v5898
    %v6489 = vpop.f32.mrf.mxu0
    %v6490 = vadd.f32 %v6321, %v6489
    %v6491 = vpop.f32.mrf.mxu0
    %v6492 = vadd.f32 %v6323, %v6491
    %6493 = vmatmul.bf16.gmra.mxu0 %v5899
    %v6494 = vpop.f32.mrf.mxu0
    %v6495 = vadd.f32 %v6326, %v6494
    %v6496 = vpop.f32.mrf.mxu0
    %v6497 = vadd.f32 %v6328, %v6496
    %6498 = vmatmul.bf16.gmra.mxu0 %v5900
    %v6499 = vpop.f32.mrf.mxu0
    %v6500 = vadd.f32 %v6331, %v6499
    %v6501 = vpop.f32.mrf.mxu0
    %v6502 = vadd.f32 %v6333, %v6501
    %6503 = vmatmul.bf16.gmra.mxu0 %v5901
    %v6504 = vpop.f32.mrf.mxu0
    %v6505 = vadd.f32 %v6336, %v6504
    %v6506 = vpop.f32.mrf.mxu0
    %v6507 = vadd.f32 %v6338, %v6506
    %6508 = vmatmul.bf16.gmra.mxu0 %v5902
    %v6509 = vpop.f32.mrf.mxu0
    %v6510 = vadd.f32 %v6341, %v6509
    %v6511 = vpop.f32.mrf.mxu0
    %v6512 = vadd.f32 %v6343, %v6511
    %6513 = vmatmul.bf16.gmra.mxu0 %v5903
    %v6514 = vpop.f32.mrf.mxu0
    %v6515 = vadd.f32 %v6346, %v6514
    %v6516 = vpop.f32.mrf.mxu0
    %v6517 = vadd.f32 %v6348, %v6516
    %6518 = vmatmul.bf16.gmra.mxu0 %v5904
    %v6519 = vpop.f32.mrf.mxu0
    %v6520 = vadd.f32 %v6351, %v6519
    %v6521 = vpop.f32.mrf.mxu0
    %v6522 = vadd.f32 %v6353, %v6521
    %6523 = vmatmul.bf16.gmra.mxu0 %v5905
    %v6524 = vpop.f32.mrf.mxu0
    %v6525 = vadd.f32 %v6356, %v6524
    %v6526 = vpop.f32.mrf.mxu0
    %v6527 = vadd.f32 %v6358, %v6526
    %6528 = vmatmul.bf16.gmra.mxu0 %v5906
    %v6529 = vpop.f32.mrf.mxu0
    %v6530 = vadd.f32 %v6361, %v6529
    %v6531 = vpop.f32.mrf.mxu0
    %v6532 = vadd.f32 %v6363, %v6531
    %6533 = vmatmul.bf16.gmra.mxu0 %v5907
    %v6534 = vpop.f32.mrf.mxu0
    %v6535 = vadd.f32 %v6366, %v6534
    %v6536 = vpop.f32.mrf.mxu0
    %v6537 = vadd.f32 %v6368, %v6536
    %6538 = vmatmul.bf16.gmra.mxu0 %v5908
    %v6539 = vpop.f32.mrf.mxu0
    %v6540 = vadd.f32 %v6371, %v6539
    %v6541 = vpop.f32.mrf.mxu0
    %v6542 = vadd.f32 %v6373, %v6541
    %6543 = vmatmul.bf16.gmra.mxu0 %v5909
    %v6544 = vpop.f32.mrf.mxu0
    %v6545 = vadd.f32 %v6376, %v6544
    %v6546 = vpop.f32.mrf.mxu0
    %v6547 = vadd.f32 %v6378, %v6546
    %6548 = vmatmul.bf16.gmra.mxu0 %v5910
    %v6549 = vpop.f32.mrf.mxu0
    %v6550 = vadd.f32 %v6381, %v6549
    %v6551 = vpop.f32.mrf.mxu0
    %v6552 = vadd.f32 %v6383, %v6551
    %6553 = vmatmul.bf16.gmra.mxu0 %v5911
    %v6554 = vpop.f32.mrf.mxu0
    %v6555 = vadd.f32 %v6386, %v6554
    %v6556 = vpop.f32.mrf.mxu0
    %v6557 = vadd.f32 %v6388, %v6556
    %6558 = vmatmul.bf16.gmra.mxu0 %v5912
    %v6559 = vpop.f32.mrf.mxu0
    %v6560 = vadd.f32 %v6391, %v6559
    %v6561 = vpop.f32.mrf.mxu0
    %v6562 = vadd.f32 %v6393, %v6561
    %6563 = vmatmul.bf16.gmra.mxu0 %v5913
    %v6564 = vpop.f32.mrf.mxu0
    %v6565 = vadd.f32 %v6396, %v6564
    %v6566 = vpop.f32.mrf.mxu0
    %v6567 = vadd.f32 %v6398, %v6566
    %6568 = vmatmul.bf16.gmra.mxu0 %v5914
    %v6569 = vpop.f32.mrf.mxu0
    %v6570 = vadd.f32 %v6401, %v6569
    %v6571 = vpop.f32.mrf.mxu0
    %v6572 = vadd.f32 %v6403, %v6571
    %6573 = vmatmul.bf16.gmra.mxu0 %v5915
    %v6574 = vpop.f32.mrf.mxu0
    %v6575 = vadd.f32 %v6406, %v6574
    %v6576 = vpop.f32.mrf.mxu0
    %v6577 = vadd.f32 %v6408, %v6576
    %6578 = vmatmul.bf16.gmra.mxu0 %v5916
    %v6579 = vpop.f32.mrf.mxu0
    %v6580 = vadd.f32 %v6411, %v6579
    %v6581 = vpop.f32.mrf.mxu0
    %v6582 = vadd.f32 %v6413, %v6581
    %6583 = vmatmul.bf16.gmra.mxu0 %v5917
    %v6584 = vpop.f32.mrf.mxu0
    %v6585 = vadd.f32 %v6416, %v6584
    %v6586 = vpop.f32.mrf.mxu0
    %v6587 = vadd.f32 %v6418, %v6586
    %6588 = vmatmul.bf16.gmra.mxu0 %v5918
    %v6589 = vpop.f32.mrf.mxu0
    %v6590 = vadd.f32 %v6421, %v6589
    %v6591 = vpop.f32.mrf.mxu0
    %v6592 = vadd.f32 %v6423, %v6591
    %6593 = vmatmul.bf16.gmra.mxu0 %v5919
    %v6594 = vpop.f32.mrf.mxu0
    %v6595 = vadd.f32 %v6426, %v6594
    %v6596 = vpop.f32.mrf.mxu0
    %v6597 = vadd.f32 %v6428, %v6596
    %6598 = vmatmul.bf16.gmra.mxu0 %v5920
    %v6599 = vpop.f32.mrf.mxu0
    %v6600 = vadd.f32 %v6431, %v6599
    %v6601 = vpop.f32.mrf.mxu0
    %v6602 = vadd.f32 %v6433, %v6601
    %6603 = vmatmul.bf16.gmra.mxu0 %v5921
    %v6604 = vpop.f32.mrf.mxu0
    %v6605 = vadd.f32 %v6436, %v6604
    %v6606 = vpop.f32.mrf.mxu0
    %v6607 = vadd.f32 %v6438, %v6606
    %6608 = vmatmul.bf16.gmra.mxu0 %v5922
    %v6609 = vpop.f32.mrf.mxu0
    %v6610 = vadd.f32 %v6441, %v6609
    %v6611 = vpop.f32.mrf.mxu0
    %v6612 = vadd.f32 %v6443, %v6611
    %6613 = vdwg.mxu0
    %6614 = vmatpush.bf16.msra.mxu0 %v6251
    %6615 = vmatpush.bf16.msra.mxu0 %v6250
    %6616 = vmatpush.bf16.msra.mxu0 %v6249
    %6617 = vmatpush.bf16.msra.mxu0 %v6248
    %6618 = vmatpush.bf16.msra.mxu0 %v6247
    %6619 = vmatpush.bf16.msra.mxu0 %v6246
    %6620 = vmatpush.bf16.msra.mxu0 %v6245
    %6621 = vmatpush.bf16.msra.mxu0 %v6244
    %6622 = vmatmul.bf16.gmra.mxu0 %v6019
    %v6623 = vpop.f32.mrf.mxu0
    %v6624 = vadd.f32 %v6455, %v6623
    %v6625 = vpop.f32.mrf.mxu0
    %v6626 = vadd.f32 %v6457, %v6625
    %6627 = vmatmul.bf16.gmra.mxu0 %v6020
    %v6628 = vpop.f32.mrf.mxu0
    %v6629 = vadd.f32 %v6460, %v6628
    %v6630 = vpop.f32.mrf.mxu0
    %v6631 = vadd.f32 %v6462, %v6630
    %6632 = vmatmul.bf16.gmra.mxu0 %v6021
    %v6633 = vpop.f32.mrf.mxu0
    %v6634 = vadd.f32 %v6465, %v6633
    %v6635 = vpop.f32.mrf.mxu0
    %v6636 = vadd.f32 %v6467, %v6635
    %6637 = vmatmul.bf16.gmra.mxu0 %v6022
    %v6638 = vpop.f32.mrf.mxu0
    %v6639 = vadd.f32 %v6470, %v6638
    %v6640 = vpop.f32.mrf.mxu0
    %v6641 = vadd.f32 %v6472, %v6640
    %6642 = vmatmul.bf16.gmra.mxu0 %v6023
    %v6643 = vpop.f32.mrf.mxu0
    %v6644 = vadd.f32 %v6475, %v6643
    %v6645 = vpop.f32.mrf.mxu0
    %v6646 = vadd.f32 %v6477, %v6645
    %6647 = vmatmul.bf16.gmra.mxu0 %v6024
    %v6648 = vpop.f32.mrf.mxu0
    %v6649 = vadd.f32 %v6480, %v6648
    %v6650 = vpop.f32.mrf.mxu0
    %v6651 = vadd.f32 %v6482, %v6650
    %6652 = vmatmul.bf16.gmra.mxu0 %v6025
    %v6653 = vpop.f32.mrf.mxu0
    %v6654 = vadd.f32 %v6485, %v6653
    %v6655 = vpop.f32.mrf.mxu0
    %v6656 = vadd.f32 %v6487, %v6655
    %6657 = vmatmul.bf16.gmra.mxu0 %v6026
    %v6658 = vpop.f32.mrf.mxu0
    %v6659 = vadd.f32 %v6490, %v6658
    %v6660 = vpop.f32.mrf.mxu0
    %v6661 = vadd.f32 %v6492, %v6660
    %6662 = vmatmul.bf16.gmra.mxu0 %v6027
    %v6663 = vpop.f32.mrf.mxu0
    %v6664 = vadd.f32 %v6495, %v6663
    %v6665 = vpop.f32.mrf.mxu0
    %v6666 = vadd.f32 %v6497, %v6665
    %6667 = vmatmul.bf16.gmra.mxu0 %v6028
    %v6668 = vpop.f32.mrf.mxu0
    %v6669 = vadd.f32 %v6500, %v6668
    %v6670 = vpop.f32.mrf.mxu0
    %v6671 = vadd.f32 %v6502, %v6670
    %6672 = vmatmul.bf16.gmra.mxu0 %v6029
    %v6673 = vpop.f32.mrf.mxu0
    %v6674 = vadd.f32 %v6505, %v6673
    %v6675 = vpop.f32.mrf.mxu0
    %v6676 = vadd.f32 %v6507, %v6675
    %6677 = vmatmul.bf16.gmra.mxu0 %v6030
    %v6678 = vpop.f32.mrf.mxu0
    %v6679 = vadd.f32 %v6510, %v6678
    %v6680 = vpop.f32.mrf.mxu0
    %v6681 = vadd.f32 %v6512, %v6680
    %6682 = vmatmul.bf16.gmra.mxu0 %v6031
    %v6683 = vpop.f32.mrf.mxu0
    %v6684 = vadd.f32 %v6515, %v6683
    %v6685 = vpop.f32.mrf.mxu0
    %v6686 = vadd.f32 %v6517, %v6685
    %6687 = vmatmul.bf16.gmra.mxu0 %v6032
    %v6688 = vpop.f32.mrf.mxu0
    %v6689 = vadd.f32 %v6520, %v6688
    %v6690 = vpop.f32.mrf.mxu0
    %v6691 = vadd.f32 %v6522, %v6690
    %6692 = vmatmul.bf16.gmra.mxu0 %v6033
    %v6693 = vpop.f32.mrf.mxu0
    %v6694 = vadd.f32 %v6525, %v6693
    %v6695 = vpop.f32.mrf.mxu0
    %v6696 = vadd.f32 %v6527, %v6695
    %6697 = vmatmul.bf16.gmra.mxu0 %v6034
    %v6698 = vpop.f32.mrf.mxu0
    %v6699 = vadd.f32 %v6530, %v6698
    %v6700 = vpop.f32.mrf.mxu0
    %v6701 = vadd.f32 %v6532, %v6700
    %6702 = vmatmul.bf16.gmra.mxu0 %v6035
    %v6703 = vpop.f32.mrf.mxu0
    %v6704 = vadd.f32 %v6535, %v6703
    %v6705 = vpop.f32.mrf.mxu0
    %v6706 = vadd.f32 %v6537, %v6705
    %6707 = vmatmul.bf16.gmra.mxu0 %v6036
    %v6708 = vpop.f32.mrf.mxu0
    %v6709 = vadd.f32 %v6540, %v6708
    %v6710 = vpop.f32.mrf.mxu0
    %v6711 = vadd.f32 %v6542, %v6710
    %6712 = vmatmul.bf16.gmra.mxu0 %v6037
    %v6713 = vpop.f32.mrf.mxu0
    %v6714 = vadd.f32 %v6545, %v6713
    %v6715 = vpop.f32.mrf.mxu0
    %v6716 = vadd.f32 %v6547, %v6715
    %6717 = vmatmul.bf16.gmra.mxu0 %v6038
    %v6718 = vpop.f32.mrf.mxu0
    %v6719 = vadd.f32 %v6550, %v6718
    %v6720 = vpop.f32.mrf.mxu0
    %v6721 = vadd.f32 %v6552, %v6720
    %6722 = vmatmul.bf16.gmra.mxu0 %v6039
    %v6723 = vpop.f32.mrf.mxu0
    %v6724 = vadd.f32 %v6555, %v6723
    %v6725 = vpop.f32.mrf.mxu0
    %v6726 = vadd.f32 %v6557, %v6725
    %6727 = vmatmul.bf16.gmra.mxu0 %v6040
    %v6728 = vpop.f32.mrf.mxu0
    %v6729 = vadd.f32 %v6560, %v6728
    %v6730 = vpop.f32.mrf.mxu0
    %v6731 = vadd.f32 %v6562, %v6730
    %6732 = vmatmul.bf16.gmra.mxu0 %v6041
    %v6733 = vpop.f32.mrf.mxu0
    %v6734 = vadd.f32 %v6565, %v6733
    %v6735 = vpop.f32.mrf.mxu0
    %v6736 = vadd.f32 %v6567, %v6735
    %6737 = vmatmul.bf16.gmra.mxu0 %v6042
    %v6738 = vpop.f32.mrf.mxu0
    %v6739 = vadd.f32 %v6570, %v6738
    %v6740 = vpop.f32.mrf.mxu0
    %v6741 = vadd.f32 %v6572, %v6740
    %6742 = vmatmul.bf16.gmra.mxu0 %v6043
    %v6743 = vpop.f32.mrf.mxu0
    %v6744 = vadd.f32 %v6575, %v6743
    %v6745 = vpop.f32.mrf.mxu0
    %v6746 = vadd.f32 %v6577, %v6745
    %6747 = vmatmul.bf16.gmra.mxu0 %v6044
    %v6748 = vpop.f32.mrf.mxu0
    %v6749 = vadd.f32 %v6580, %v6748
    %v6750 = vpop.f32.mrf.mxu0
    %v6751 = vadd.f32 %v6582, %v6750
    %6752 = vmatmul.bf16.gmra.mxu0 %v6045
    %v6753 = vpop.f32.mrf.mxu0
    %v6754 = vadd.f32 %v6585, %v6753
    %v6755 = vpop.f32.mrf.mxu0
    %v6756 = vadd.f32 %v6587, %v6755
    %6757 = vmatmul.bf16.gmra.mxu0 %v6046
    %v6758 = vpop.f32.mrf.mxu0
    %v6759 = vadd.f32 %v6590, %v6758
    %v6760 = vpop.f32.mrf.mxu0
    %v6761 = vadd.f32 %v6592, %v6760
    %6762 = vmatmul.bf16.gmra.mxu0 %v6047
    %v6763 = vpop.f32.mrf.mxu0
    %v6764 = vadd.f32 %v6595, %v6763
    %v6765 = vpop.f32.mrf.mxu0
    %v6766 = vadd.f32 %v6597, %v6765
    %6767 = vmatmul.bf16.gmra.mxu0 %v6048
    %v6768 = vpop.f32.mrf.mxu0
    %v6769 = vadd.f32 %v6600, %v6768
    %v6770 = vpop.f32.mrf.mxu0
    %v6771 = vadd.f32 %v6602, %v6770
    %6772 = vmatmul.bf16.gmra.mxu0 %v6049
    %v6773 = vpop.f32.mrf.mxu0
    %v6774 = vadd.f32 %v6605, %v6773
    %v6775 = vpop.f32.mrf.mxu0
    %v6776 = vadd.f32 %v6607, %v6775
    %6777 = vmatmul.bf16.gmra.mxu0 %v6050
    %v6778 = vpop.f32.mrf.mxu0
    %v6779 = vadd.f32 %v6610, %v6778
    %v6780 = vpop.f32.mrf.mxu0
    %v6781 = vadd.f32 %v6612, %v6780
    %6782 = vdwg.mxu0
    %v6783 = vadd.f32 %v4707, %v6624
    %v6784 = vadd.f32 %v4709, %v6626
    %v6785 = vadd.f32 %v4712, %v6629
    %v6786 = vadd.f32 %v4714, %v6631
    %v6787 = vadd.f32 %v4717, %v6634
    %v6788 = vadd.f32 %v4719, %v6636
    %v6789 = vadd.f32 %v4722, %v6639
    %v6790 = vadd.f32 %v4724, %v6641
    %v6791 = vadd.f32 %v4727, %v6644
    %v6792 = vadd.f32 %v4729, %v6646
    %v6793 = vadd.f32 %v4732, %v6649
    %v6794 = vadd.f32 %v4734, %v6651
    %v6795 = vadd.f32 %v4737, %v6654
    %v6796 = vadd.f32 %v4739, %v6656
    %v6797 = vadd.f32 %v4742, %v6659
    %v6798 = vadd.f32 %v4744, %v6661
    %v6799 = vadd.f32 %v4747, %v6664
    %v6800 = vadd.f32 %v4749, %v6666
    %v6801 = vadd.f32 %v4752, %v6669
    %v6802 = vadd.f32 %v4754, %v6671
    %v6803 = vadd.f32 %v4757, %v6674
    %v6804 = vadd.f32 %v4759, %v6676
    %v6805 = vadd.f32 %v4762, %v6679
    %v6806 = vadd.f32 %v4764, %v6681
    %v6807 = vadd.f32 %v4767, %v6684
    %v6808 = vadd.f32 %v4769, %v6686
    %v6809 = vadd.f32 %v4772, %v6689
    %v6810 = vadd.f32 %v4774, %v6691
    %v6811 = vadd.f32 %v4777, %v6694
    %v6812 = vadd.f32 %v4779, %v6696
    %v6813 = vadd.f32 %v4782, %v6699
    %v6814 = vadd.f32 %v4784, %v6701
    %v6815 = vadd.f32 %v4787, %v6704
    %v6816 = vadd.f32 %v4789, %v6706
    %v6817 = vadd.f32 %v4792, %v6709
    %v6818 = vadd.f32 %v4794, %v6711
    %v6819 = vadd.f32 %v4797, %v6714
    %v6820 = vadd.f32 %v4799, %v6716
    %v6821 = vadd.f32 %v4802, %v6719
    %v6822 = vadd.f32 %v4804, %v6721
    %v6823 = vadd.f32 %v4807, %v6724
    %v6824 = vadd.f32 %v4809, %v6726
    %v6825 = vadd.f32 %v4812, %v6729
    %v6826 = vadd.f32 %v4814, %v6731
    %v6827 = vadd.f32 %v4817, %v6734
    %v6828 = vadd.f32 %v4819, %v6736
    %v6829 = vadd.f32 %v4822, %v6739
    %v6830 = vadd.f32 %v4824, %v6741
    %v6831 = vadd.f32 %v4827, %v6744
    %v6832 = vadd.f32 %v4829, %v6746
    %v6833 = vadd.f32 %v4832, %v6749
    %v6834 = vadd.f32 %v4834, %v6751
    %v6835 = vadd.f32 %v4837, %v6754
    %v6836 = vadd.f32 %v4839, %v6756
    %v6837 = vadd.f32 %v4842, %v6759
    %v6838 = vadd.f32 %v4844, %v6761
    %v6839 = vadd.f32 %v4847, %v6764
    %v6840 = vadd.f32 %v4849, %v6766
    %v6841 = vadd.f32 %v4852, %v6769
    %v6842 = vadd.f32 %v4854, %v6771
    %v6843 = vadd.f32 %v4857, %v6774
    %v6844 = vadd.f32 %v4859, %v6776
    %v6845 = vadd.f32 %v4862, %v6779
    %v6846 = vadd.f32 %v4864, %v6781
    %v6847 = vld [vmem:[%s4] sm:$0x1]
    %v6849 = vperm.slane %v6847, 0
    %v6851 = vadd.f32 %v6783, %v6849
    %v6852 = vadd.f32 %v6784, %v6849
    %v6853 = vadd.f32 %v6785, %v6849
    %v6854 = vadd.f32 %v6786, %v6849
    %v6855 = vadd.f32 %v6787, %v6849
    %v6856 = vadd.f32 %v6788, %v6849
    %v6857 = vadd.f32 %v6789, %v6849
    %v6858 = vadd.f32 %v6790, %v6849
    %v6859 = vadd.f32 %v6791, %v6849
    %v6860 = vadd.f32 %v6792, %v6849
    %v6861 = vadd.f32 %v6793, %v6849
    %v6862 = vadd.f32 %v6794, %v6849
    %v6863 = vadd.f32 %v6795, %v6849
    %v6864 = vadd.f32 %v6796, %v6849
    %v6865 = vadd.f32 %v6797, %v6849
    %v6866 = vadd.f32 %v6798, %v6849
    %v6867 = vadd.f32 %v6799, %v6849
    %v6868 = vadd.f32 %v6800, %v6849
    %v6869 = vadd.f32 %v6801, %v6849
    %v6870 = vadd.f32 %v6802, %v6849
    %v6871 = vadd.f32 %v6803, %v6849
    %v6872 = vadd.f32 %v6804, %v6849
    %v6873 = vadd.f32 %v6805, %v6849
    %v6874 = vadd.f32 %v6806, %v6849
    %v6875 = vadd.f32 %v6807, %v6849
    %v6876 = vadd.f32 %v6808, %v6849
    %v6877 = vadd.f32 %v6809, %v6849
    %v6878 = vadd.f32 %v6810, %v6849
    %v6879 = vadd.f32 %v6811, %v6849
    %v6880 = vadd.f32 %v6812, %v6849
    %v6881 = vadd.f32 %v6813, %v6849
    %v6882 = vadd.f32 %v6814, %v6849
    %v6883 = vadd.f32 %v6815, %v6849
    %v6884 = vadd.f32 %v6816, %v6849
    %v6885 = vadd.f32 %v6817, %v6849
    %v6886 = vadd.f32 %v6818, %v6849
    %v6887 = vadd.f32 %v6819, %v6849
    %v6888 = vadd.f32 %v6820, %v6849
    %v6889 = vadd.f32 %v6821, %v6849
    %v6890 = vadd.f32 %v6822, %v6849
    %v6891 = vadd.f32 %v6823, %v6849
    %v6892 = vadd.f32 %v6824, %v6849
    %v6893 = vadd.f32 %v6825, %v6849
    %v6894 = vadd.f32 %v6826, %v6849
    %v6895 = vadd.f32 %v6827, %v6849
    %v6896 = vadd.f32 %v6828, %v6849
    %v6897 = vadd.f32 %v6829, %v6849
    %v6898 = vadd.f32 %v6830, %v6849
    %v6899 = vadd.f32 %v6831, %v6849
    %v6900 = vadd.f32 %v6832, %v6849
    %v6901 = vadd.f32 %v6833, %v6849
    %v6902 = vadd.f32 %v6834, %v6849
    %v6903 = vadd.f32 %v6835, %v6849
    %v6904 = vadd.f32 %v6836, %v6849
    %v6905 = vadd.f32 %v6837, %v6849
    %v6906 = vadd.f32 %v6838, %v6849
    %v6907 = vadd.f32 %v6839, %v6849
    %v6908 = vadd.f32 %v6840, %v6849
    %v6909 = vadd.f32 %v6841, %v6849
    %v6910 = vadd.f32 %v6842, %v6849
    %v6911 = vadd.f32 %v6843, %v6849
    %v6912 = vadd.f32 %v6844, %v6849
    %v6913 = vadd.f32 %v6845, %v6849
    %v6914 = vadd.f32 %v6846, %v6849
    %v6915 = vmax.f32 %v6851, 0.0
    %v6916 = vmax.f32 %v6852, 0.0
    %v6917 = vmax.f32 %v6853, 0.0
    %v6918 = vmax.f32 %v6854, 0.0
    %v6919 = vmax.f32 %v6855, 0.0
    %v6920 = vmax.f32 %v6856, 0.0
    %v6921 = vmax.f32 %v6857, 0.0
    %v6922 = vmax.f32 %v6858, 0.0
    %v6923 = vmax.f32 %v6859, 0.0
    %v6924 = vmax.f32 %v6860, 0.0
    %v6925 = vmax.f32 %v6861, 0.0
    %v6926 = vmax.f32 %v6862, 0.0
    %v6927 = vmax.f32 %v6863, 0.0
    %v6928 = vmax.f32 %v6864, 0.0
    %v6929 = vmax.f32 %v6865, 0.0
    %v6930 = vmax.f32 %v6866, 0.0
    %v6931 = vmax.f32 %v6867, 0.0
    %v6932 = vmax.f32 %v6868, 0.0
    %v6933 = vmax.f32 %v6869, 0.0
    %v6934 = vmax.f32 %v6870, 0.0
    %v6935 = vmax.f32 %v6871, 0.0
    %v6936 = vmax.f32 %v6872, 0.0
    %v6937 = vmax.f32 %v6873, 0.0
    %v6938 = vmax.f32 %v6874, 0.0
    %v6939 = vmax.f32 %v6875, 0.0
    %v6940 = vmax.f32 %v6876, 0.0
    %v6941 = vmax.f32 %v6877, 0.0
    %v6942 = vmax.f32 %v6878, 0.0
    %v6943 = vmax.f32 %v6879, 0.0
    %v6944 = vmax.f32 %v6880, 0.0
    %v6945 = vmax.f32 %v6881, 0.0
    %v6946 = vmax.f32 %v6882, 0.0
    %v6947 = vmax.f32 %v6883, 0.0
    %v6948 = vmax.f32 %v6884, 0.0
    %v6949 = vmax.f32 %v6885, 0.0
    %v6950 = vmax.f32 %v6886, 0.0
    %v6951 = vmax.f32 %v6887, 0.0
    %v6952 = vmax.f32 %v6888, 0.0
    %v6953 = vmax.f32 %v6889, 0.0
    %v6954 = vmax.f32 %v6890, 0.0
    %v6955 = vmax.f32 %v6891, 0.0
    %v6956 = vmax.f32 %v6892, 0.0
    %v6957 = vmax.f32 %v6893, 0.0
    %v6958 = vmax.f32 %v6894, 0.0
    %v6959 = vmax.f32 %v6895, 0.0
    %v6960 = vmax.f32 %v6896, 0.0
    %v6961 = vmax.f32 %v6897, 0.0
    %v6962 = vmax.f32 %v6898, 0.0
    %v6963 = vmax.f32 %v6899, 0.0
    %v6964 = vmax.f32 %v6900, 0.0
    %v6965 = vmax.f32 %v6901, 0.0
    %v6966 = vmax.f32 %v6902, 0.0
    %v6967 = vmax.f32 %v6903, 0.0
    %v6968 = vmax.f32 %v6904, 0.0
    %v6969 = vmax.f32 %v6905, 0.0
    %v6970 = vmax.f32 %v6906, 0.0
    %v6971 = vmax.f32 %v6907, 0.0
    %v6972 = vmax.f32 %v6908, 0.0
    %v6973 = vmax.f32 %v6909, 0.0
    %v6974 = vmax.f32 %v6910, 0.0
    %v6975 = vmax.f32 %v6911, 0.0
    %v6976 = vmax.f32 %v6912, 0.0
    %v6977 = vmax.f32 %v6913, 0.0
    %v6978 = vmax.f32 %v6914, 0.0
    %v6979 = vpack.c.bf16 %v6916, %v6915
    %v6980 = vpack.c.bf16 %v6918, %v6917
    %v6981 = vpack.c.bf16 %v6920, %v6919
    %v6982 = vpack.c.bf16 %v6922, %v6921
    %v6983 = vpack.c.bf16 %v6924, %v6923
    %v6984 = vpack.c.bf16 %v6926, %v6925
    %v6985 = vpack.c.bf16 %v6928, %v6927
    %v6986 = vpack.c.bf16 %v6930, %v6929
    %v6987 = vpack.c.bf16 %v6932, %v6931
    %v6988 = vpack.c.bf16 %v6934, %v6933
    %v6989 = vpack.c.bf16 %v6936, %v6935
    %v6990 = vpack.c.bf16 %v6938, %v6937
    %v6991 = vpack.c.bf16 %v6940, %v6939
    %v6992 = vpack.c.bf16 %v6942, %v6941
    %v6993 = vpack.c.bf16 %v6944, %v6943
    %v6994 = vpack.c.bf16 %v6946, %v6945
    %v6995 = vpack.c.bf16 %v6948, %v6947
    %v6996 = vpack.c.bf16 %v6950, %v6949
    %v6997 = vpack.c.bf16 %v6952, %v6951
    %v6998 = vpack.c.bf16 %v6954, %v6953
    %v6999 = vpack.c.bf16 %v6956, %v6955
    %v7000 = vpack.c.bf16 %v6958, %v6957
    %v7001 = vpack.c.bf16 %v6960, %v6959
    %v7002 = vpack.c.bf16 %v6962, %v6961
    %v7003 = vpack.c.bf16 %v6964, %v6963
    %v7004 = vpack.c.bf16 %v6966, %v6965
    %v7005 = vpack.c.bf16 %v6968, %v6967
    %v7006 = vpack.c.bf16 %v6970, %v6969
    %v7007 = vpack.c.bf16 %v6972, %v6971
    %v7008 = vpack.c.bf16 %v6974, %v6973
    %v7009 = vpack.c.bf16 %v6976, %v6975
    %v7010 = vpack.c.bf16 %v6978, %v6977
    %v7011 = vld [vmem:[%s5] sm:$0xf]
    %v7012 = vld [vmem:[%s5 + $0x4] sm:$0xf]
    %v7013 = vld [vmem:[%s5 + $0x8] sm:$0xf]
    %v7014 = vld [vmem:[%s5 + $0xc] sm:$0xf]
    %v7015 = vld [vmem:[%s5 + $0x10] sm:$0xf]
    %v7016 = vld [vmem:[%s5 + $0x14] sm:$0xf]
    %v7017 = vld [vmem:[%s5 + $0x18] sm:$0xf]
    %v7018 = vld [vmem:[%s5 + $0x1c] sm:$0xf]
    %v7019 = vld [vmem:[%s5 + $0x20] sm:$0xf]
    %v7020 = vld [vmem:[%s5 + $0x24] sm:$0xf]
    %v7021 = vld [vmem:[%s5 + $0x28] sm:$0xf]
    %v7022 = vld [vmem:[%s5 + $0x2c] sm:$0xf]
    %v7023 = vld [vmem:[%s5 + $0x30] sm:$0xf]
    %v7024 = vld [vmem:[%s5 + $0x34] sm:$0xf]
    %v7025 = vld [vmem:[%s5 + $0x38] sm:$0xf]
    %v7026 = vld [vmem:[%s5 + $0x3c] sm:$0xf]
    %v7027 = vld [vmem:[%s6] sm:$0x1]
    %v7029 = vperm.slane %v7027, 0
    %v7047 = vunpack.c.l.b16 %v7011
    %v7048 = vunpack.c.l.b16 %v7012
    %v7049 = vunpack.c.l.b16 %v7013
    %v7050 = vunpack.c.l.b16 %v7014
    %v7051 = vunpack.c.l.b16 %v7015
    %v7052 = vunpack.c.l.b16 %v7016
    %v7053 = vunpack.c.l.b16 %v7017
    %v7054 = vunpack.c.l.b16 %v7018
    %v7055 = vunpack.c.l.b16 %v7019
    %v7056 = vunpack.c.l.b16 %v7020
    %v7057 = vunpack.c.l.b16 %v7021
    %v7058 = vunpack.c.l.b16 %v7022
    %v7059 = vunpack.c.l.b16 %v7023
    %v7060 = vunpack.c.l.b16 %v7024
    %v7061 = vunpack.c.l.b16 %v7025
    %v7062 = vunpack.c.l.b16 %v7026
    %v7063 = vpack.c.b16 %v7048, %v7047
    %v7064 = vpack.c.b16 %v7050, %v7049
    %v7065 = vpack.c.b16 %v7052, %v7051
    %v7066 = vpack.c.b16 %v7054, %v7053
    %v7067 = vpack.c.b16 %v7056, %v7055
    %v7068 = vpack.c.b16 %v7058, %v7057
    %v7069 = vpack.c.b16 %v7060, %v7059
    %v7070 = vpack.c.b16 %v7062, %v7061
    %7079 = vmatpush.bf16.msra.mxu0 %v7070
    %7080 = vmatpush.bf16.msra.mxu0 %v7069
    %7081 = vmatpush.bf16.msra.mxu0 %v7068
    %7082 = vmatpush.bf16.msra.mxu0 %v7067
    %7083 = vmatpush.bf16.msra.mxu0 %v7066
    %7084 = vmatpush.bf16.msra.mxu0 %v7065
    %7085 = vmatpush.bf16.msra.mxu0 %v7064
    %7086 = vmatpush.bf16.msra.mxu0 %v7063
    %7087 = vmatmul.bf16.gmra.mxu0 %v6979
    %v7088 = vpop.f32.mrf.mxu0
    %v7089 = vadd.f32 %v7029, %v7088
    %v7090 = vpop.f32.mrf.mxu0
    %v7091 = vadd.f32 %v7029, %v7090
    %7092 = vmatmul.bf16.gmra.mxu0 %v6980
    %v7093 = vpop.f32.mrf.mxu0
    %v7094 = vadd.f32 %v7029, %v7093
    %v7095 = vpop.f32.mrf.mxu0
    %v7096 = vadd.f32 %v7029, %v7095
    %7097 = vmatmul.bf16.gmra.mxu0 %v6981
    %v7098 = vpop.f32.mrf.mxu0
    %v7099 = vadd.f32 %v7029, %v7098
    %v7100 = vpop.f32.mrf.mxu0
    %v7101 = vadd.f32 %v7029, %v7100
    %7102 = vmatmul.bf16.gmra.mxu0 %v6982
    %v7103 = vpop.f32.mrf.mxu0
    %v7104 = vadd.f32 %v7029, %v7103
    %v7105 = vpop.f32.mrf.mxu0
    %v7106 = vadd.f32 %v7029, %v7105
    %7107 = vmatmul.bf16.gmra.mxu0 %v6983
    %v7108 = vpop.f32.mrf.mxu0
    %v7109 = vadd.f32 %v7029, %v7108
    %v7110 = vpop.f32.mrf.mxu0
    %v7111 = vadd.f32 %v7029, %v7110
    %7112 = vmatmul.bf16.gmra.mxu0 %v6984
    %v7113 = vpop.f32.mrf.mxu0
    %v7114 = vadd.f32 %v7029, %v7113
    %v7115 = vpop.f32.mrf.mxu0
    %v7116 = vadd.f32 %v7029, %v7115
    %7117 = vmatmul.bf16.gmra.mxu0 %v6985
    %v7118 = vpop.f32.mrf.mxu0
    %v7119 = vadd.f32 %v7029, %v7118
    %v7120 = vpop.f32.mrf.mxu0
    %v7121 = vadd.f32 %v7029, %v7120
    %7122 = vmatmul.bf16.gmra.mxu0 %v6986
    %v7123 = vpop.f32.mrf.mxu0
    %v7124 = vadd.f32 %v7029, %v7123
    %v7125 = vpop.f32.mrf.mxu0
    %v7126 = vadd.f32 %v7029, %v7125
    %7127 = vmatmul.bf16.gmra.mxu0 %v6987
    %v7128 = vpop.f32.mrf.mxu0
    %v7129 = vadd.f32 %v7029, %v7128
    %v7130 = vpop.f32.mrf.mxu0
    %v7131 = vadd.f32 %v7029, %v7130
    %7132 = vmatmul.bf16.gmra.mxu0 %v6988
    %v7133 = vpop.f32.mrf.mxu0
    %v7134 = vadd.f32 %v7029, %v7133
    %v7135 = vpop.f32.mrf.mxu0
    %v7136 = vadd.f32 %v7029, %v7135
    %7137 = vmatmul.bf16.gmra.mxu0 %v6989
    %v7138 = vpop.f32.mrf.mxu0
    %v7139 = vadd.f32 %v7029, %v7138
    %v7140 = vpop.f32.mrf.mxu0
    %v7141 = vadd.f32 %v7029, %v7140
    %7142 = vmatmul.bf16.gmra.mxu0 %v6990
    %v7143 = vpop.f32.mrf.mxu0
    %v7144 = vadd.f32 %v7029, %v7143
    %v7145 = vpop.f32.mrf.mxu0
    %v7146 = vadd.f32 %v7029, %v7145
    %7147 = vmatmul.bf16.gmra.mxu0 %v6991
    %v7148 = vpop.f32.mrf.mxu0
    %v7149 = vadd.f32 %v7029, %v7148
    %v7150 = vpop.f32.mrf.mxu0
    %v7151 = vadd.f32 %v7029, %v7150
    %7152 = vmatmul.bf16.gmra.mxu0 %v6992
    %v7153 = vpop.f32.mrf.mxu0
    %v7154 = vadd.f32 %v7029, %v7153
    %v7155 = vpop.f32.mrf.mxu0
    %v7156 = vadd.f32 %v7029, %v7155
    %7157 = vmatmul.bf16.gmra.mxu0 %v6993
    %v7158 = vpop.f32.mrf.mxu0
    %v7159 = vadd.f32 %v7029, %v7158
    %v7160 = vpop.f32.mrf.mxu0
    %v7161 = vadd.f32 %v7029, %v7160
    %7162 = vmatmul.bf16.gmra.mxu0 %v6994
    %v7163 = vpop.f32.mrf.mxu0
    %v7164 = vadd.f32 %v7029, %v7163
    %v7165 = vpop.f32.mrf.mxu0
    %v7166 = vadd.f32 %v7029, %v7165
    %7167 = vmatmul.bf16.gmra.mxu0 %v6995
    %v7168 = vpop.f32.mrf.mxu0
    %v7169 = vadd.f32 %v7029, %v7168
    %v7170 = vpop.f32.mrf.mxu0
    %v7171 = vadd.f32 %v7029, %v7170
    %7172 = vmatmul.bf16.gmra.mxu0 %v6996
    %v7173 = vpop.f32.mrf.mxu0
    %v7174 = vadd.f32 %v7029, %v7173
    %v7175 = vpop.f32.mrf.mxu0
    %v7176 = vadd.f32 %v7029, %v7175
    %7177 = vmatmul.bf16.gmra.mxu0 %v6997
    %v7178 = vpop.f32.mrf.mxu0
    %v7179 = vadd.f32 %v7029, %v7178
    %v7180 = vpop.f32.mrf.mxu0
    %v7181 = vadd.f32 %v7029, %v7180
    %7182 = vmatmul.bf16.gmra.mxu0 %v6998
    %v7183 = vpop.f32.mrf.mxu0
    %v7184 = vadd.f32 %v7029, %v7183
    %v7185 = vpop.f32.mrf.mxu0
    %v7186 = vadd.f32 %v7029, %v7185
    %7187 = vmatmul.bf16.gmra.mxu0 %v6999
    %v7188 = vpop.f32.mrf.mxu0
    %v7189 = vadd.f32 %v7029, %v7188
    %v7190 = vpop.f32.mrf.mxu0
    %v7191 = vadd.f32 %v7029, %v7190
    %7192 = vmatmul.bf16.gmra.mxu0 %v7000
    %v7193 = vpop.f32.mrf.mxu0
    %v7194 = vadd.f32 %v7029, %v7193
    %v7195 = vpop.f32.mrf.mxu0
    %v7196 = vadd.f32 %v7029, %v7195
    %7197 = vmatmul.bf16.gmra.mxu0 %v7001
    %v7198 = vpop.f32.mrf.mxu0
    %v7199 = vadd.f32 %v7029, %v7198
    %v7200 = vpop.f32.mrf.mxu0
    %v7201 = vadd.f32 %v7029, %v7200
    %7202 = vmatmul.bf16.gmra.mxu0 %v7002
    %v7203 = vpop.f32.mrf.mxu0
    %v7204 = vadd.f32 %v7029, %v7203
    %v7205 = vpop.f32.mrf.mxu0
    %v7206 = vadd.f32 %v7029, %v7205
    %7207 = vmatmul.bf16.gmra.mxu0 %v7003
    %v7208 = vpop.f32.mrf.mxu0
    %v7209 = vadd.f32 %v7029, %v7208
    %v7210 = vpop.f32.mrf.mxu0
    %v7211 = vadd.f32 %v7029, %v7210
    %7212 = vmatmul.bf16.gmra.mxu0 %v7004
    %v7213 = vpop.f32.mrf.mxu0
    %v7214 = vadd.f32 %v7029, %v7213
    %v7215 = vpop.f32.mrf.mxu0
    %v7216 = vadd.f32 %v7029, %v7215
    %7217 = vmatmul.bf16.gmra.mxu0 %v7005
    %v7218 = vpop.f32.mrf.mxu0
    %v7219 = vadd.f32 %v7029, %v7218
    %v7220 = vpop.f32.mrf.mxu0
    %v7221 = vadd.f32 %v7029, %v7220
    %7222 = vmatmul.bf16.gmra.mxu0 %v7006
    %v7223 = vpop.f32.mrf.mxu0
    %v7224 = vadd.f32 %v7029, %v7223
    %v7225 = vpop.f32.mrf.mxu0
    %v7226 = vadd.f32 %v7029, %v7225
    %7227 = vmatmul.bf16.gmra.mxu0 %v7007
    %v7228 = vpop.f32.mrf.mxu0
    %v7229 = vadd.f32 %v7029, %v7228
    %v7230 = vpop.f32.mrf.mxu0
    %v7231 = vadd.f32 %v7029, %v7230
    %7232 = vmatmul.bf16.gmra.mxu0 %v7008
    %v7233 = vpop.f32.mrf.mxu0
    %v7234 = vadd.f32 %v7029, %v7233
    %v7235 = vpop.f32.mrf.mxu0
    %v7236 = vadd.f32 %v7029, %v7235
    %7237 = vmatmul.bf16.gmra.mxu0 %v7009
    %v7238 = vpop.f32.mrf.mxu0
    %v7239 = vadd.f32 %v7029, %v7238
    %v7240 = vpop.f32.mrf.mxu0
    %v7241 = vadd.f32 %v7029, %v7240
    %7242 = vmatmul.bf16.gmra.mxu0 %v7010
    %v7243 = vpop.f32.mrf.mxu0
    %v7244 = vadd.f32 %v7029, %v7243
    %v7245 = vpop.f32.mrf.mxu0
    %v7246 = vadd.f32 %v7029, %v7245
    %7247 = vdwg.mxu0
    %v7248 = vmax.f32 %v7089, 0.0
    %v7249 = vmax.f32 %v7091, 0.0
    %v7250 = vmax.f32 %v7094, 0.0
    %v7251 = vmax.f32 %v7096, 0.0
    %v7252 = vmax.f32 %v7099, 0.0
    %v7253 = vmax.f32 %v7101, 0.0
    %v7254 = vmax.f32 %v7104, 0.0
    %v7255 = vmax.f32 %v7106, 0.0
    %v7256 = vmax.f32 %v7109, 0.0
    %v7257 = vmax.f32 %v7111, 0.0
    %v7258 = vmax.f32 %v7114, 0.0
    %v7259 = vmax.f32 %v7116, 0.0
    %v7260 = vmax.f32 %v7119, 0.0
    %v7261 = vmax.f32 %v7121, 0.0
    %v7262 = vmax.f32 %v7124, 0.0
    %v7263 = vmax.f32 %v7126, 0.0
    %v7264 = vmax.f32 %v7129, 0.0
    %v7265 = vmax.f32 %v7131, 0.0
    %v7266 = vmax.f32 %v7134, 0.0
    %v7267 = vmax.f32 %v7136, 0.0
    %v7268 = vmax.f32 %v7139, 0.0
    %v7269 = vmax.f32 %v7141, 0.0
    %v7270 = vmax.f32 %v7144, 0.0
    %v7271 = vmax.f32 %v7146, 0.0
    %v7272 = vmax.f32 %v7149, 0.0
    %v7273 = vmax.f32 %v7151, 0.0
    %v7274 = vmax.f32 %v7154, 0.0
    %v7275 = vmax.f32 %v7156, 0.0
    %v7276 = vmax.f32 %v7159, 0.0
    %v7277 = vmax.f32 %v7161, 0.0
    %v7278 = vmax.f32 %v7164, 0.0
    %v7279 = vmax.f32 %v7166, 0.0
    %v7280 = vmax.f32 %v7169, 0.0
    %v7281 = vmax.f32 %v7171, 0.0
    %v7282 = vmax.f32 %v7174, 0.0
    %v7283 = vmax.f32 %v7176, 0.0
    %v7284 = vmax.f32 %v7179, 0.0
    %v7285 = vmax.f32 %v7181, 0.0
    %v7286 = vmax.f32 %v7184, 0.0
    %v7287 = vmax.f32 %v7186, 0.0
    %v7288 = vmax.f32 %v7189, 0.0
    %v7289 = vmax.f32 %v7191, 0.0
    %v7290 = vmax.f32 %v7194, 0.0
    %v7291 = vmax.f32 %v7196, 0.0
    %v7292 = vmax.f32 %v7199, 0.0
    %v7293 = vmax.f32 %v7201, 0.0
    %v7294 = vmax.f32 %v7204, 0.0
    %v7295 = vmax.f32 %v7206, 0.0
    %v7296 = vmax.f32 %v7209, 0.0
    %v7297 = vmax.f32 %v7211, 0.0
    %v7298 = vmax.f32 %v7214, 0.0
    %v7299 = vmax.f32 %v7216, 0.0
    %v7300 = vmax.f32 %v7219, 0.0
    %v7301 = vmax.f32 %v7221, 0.0
    %v7302 = vmax.f32 %v7224, 0.0
    %v7303 = vmax.f32 %v7226, 0.0
    %v7304 = vmax.f32 %v7229, 0.0
    %v7305 = vmax.f32 %v7231, 0.0
    %v7306 = vmax.f32 %v7234, 0.0
    %v7307 = vmax.f32 %v7236, 0.0
    %v7308 = vmax.f32 %v7239, 0.0
    %v7309 = vmax.f32 %v7241, 0.0
    %v7310 = vmax.f32 %v7244, 0.0
    %v7311 = vmax.f32 %v7246, 0.0
    %v7312 = vadd.f32 %v148, %v7248
    %v7313 = vadd.f32 %v149, %v7249
    %v7314 = vadd.f32 %v150, %v7250
    %v7315 = vadd.f32 %v151, %v7251
    %v7316 = vadd.f32 %v152, %v7252
    %v7317 = vadd.f32 %v153, %v7253
    %v7318 = vadd.f32 %v154, %v7254
    %v7319 = vadd.f32 %v155, %v7255
    %v7320 = vadd.f32 %v156, %v7256
    %v7321 = vadd.f32 %v157, %v7257
    %v7322 = vadd.f32 %v158, %v7258
    %v7323 = vadd.f32 %v159, %v7259
    %v7324 = vadd.f32 %v160, %v7260
    %v7325 = vadd.f32 %v161, %v7261
    %v7326 = vadd.f32 %v162, %v7262
    %v7327 = vadd.f32 %v163, %v7263
    %v7328 = vadd.f32 %v164, %v7264
    %v7329 = vadd.f32 %v165, %v7265
    %v7330 = vadd.f32 %v166, %v7266
    %v7331 = vadd.f32 %v167, %v7267
    %v7332 = vadd.f32 %v168, %v7268
    %v7333 = vadd.f32 %v169, %v7269
    %v7334 = vadd.f32 %v170, %v7270
    %v7335 = vadd.f32 %v171, %v7271
    %v7336 = vadd.f32 %v172, %v7272
    %v7337 = vadd.f32 %v173, %v7273
    %v7338 = vadd.f32 %v174, %v7274
    %v7339 = vadd.f32 %v175, %v7275
    %v7340 = vadd.f32 %v176, %v7276
    %v7341 = vadd.f32 %v177, %v7277
    %v7342 = vadd.f32 %v178, %v7278
    %v7343 = vadd.f32 %v179, %v7279
    %v7344 = vadd.f32 %v180, %v7280
    %v7345 = vadd.f32 %v181, %v7281
    %v7346 = vadd.f32 %v182, %v7282
    %v7347 = vadd.f32 %v183, %v7283
    %v7348 = vadd.f32 %v184, %v7284
    %v7349 = vadd.f32 %v185, %v7285
    %v7350 = vadd.f32 %v186, %v7286
    %v7351 = vadd.f32 %v187, %v7287
    %v7352 = vadd.f32 %v188, %v7288
    %v7353 = vadd.f32 %v189, %v7289
    %v7354 = vadd.f32 %v190, %v7290
    %v7355 = vadd.f32 %v191, %v7291
    %v7356 = vadd.f32 %v192, %v7292
    %v7357 = vadd.f32 %v193, %v7293
    %v7358 = vadd.f32 %v194, %v7294
    %v7359 = vadd.f32 %v195, %v7295
    %v7360 = vadd.f32 %v196, %v7296
    %v7361 = vadd.f32 %v197, %v7297
    %v7362 = vadd.f32 %v198, %v7298
    %v7363 = vadd.f32 %v199, %v7299
    %v7364 = vadd.f32 %v200, %v7300
    %v7365 = vadd.f32 %v201, %v7301
    %v7366 = vadd.f32 %v202, %v7302
    %v7367 = vadd.f32 %v203, %v7303
    %v7368 = vadd.f32 %v204, %v7304
    %v7369 = vadd.f32 %v205, %v7305
    %v7370 = vadd.f32 %v206, %v7306
    %v7371 = vadd.f32 %v207, %v7307
    %v7372 = vadd.f32 %v208, %v7308
    %v7373 = vadd.f32 %v209, %v7309
    %v7374 = vadd.f32 %v210, %v7310
    %v7375 = vadd.f32 %v211, %v7311
    %v7376 = vmax.f32 %v7312, 0.0
    %v7377 = vmax.f32 %v7313, 0.0
    %v7378 = vmax.f32 %v7314, 0.0
    %v7379 = vmax.f32 %v7315, 0.0
    %v7380 = vmax.f32 %v7316, 0.0
    %v7381 = vmax.f32 %v7317, 0.0
    %v7382 = vmax.f32 %v7318, 0.0
    %v7383 = vmax.f32 %v7319, 0.0
    %v7384 = vmax.f32 %v7320, 0.0
    %v7385 = vmax.f32 %v7321, 0.0
    %v7386 = vmax.f32 %v7322, 0.0
    %v7387 = vmax.f32 %v7323, 0.0
    %v7388 = vmax.f32 %v7324, 0.0
    %v7389 = vmax.f32 %v7325, 0.0
    %v7390 = vmax.f32 %v7326, 0.0
    %v7391 = vmax.f32 %v7327, 0.0
    %v7392 = vmax.f32 %v7328, 0.0
    %v7393 = vmax.f32 %v7329, 0.0
    %v7394 = vmax.f32 %v7330, 0.0
    %v7395 = vmax.f32 %v7331, 0.0
    %v7396 = vmax.f32 %v7332, 0.0
    %v7397 = vmax.f32 %v7333, 0.0
    %v7398 = vmax.f32 %v7334, 0.0
    %v7399 = vmax.f32 %v7335, 0.0
    %v7400 = vmax.f32 %v7336, 0.0
    %v7401 = vmax.f32 %v7337, 0.0
    %v7402 = vmax.f32 %v7338, 0.0
    %v7403 = vmax.f32 %v7339, 0.0
    %v7404 = vmax.f32 %v7340, 0.0
    %v7405 = vmax.f32 %v7341, 0.0
    %v7406 = vmax.f32 %v7342, 0.0
    %v7407 = vmax.f32 %v7343, 0.0
    %v7408 = vmax.f32 %v7344, 0.0
    %v7409 = vmax.f32 %v7345, 0.0
    %v7410 = vmax.f32 %v7346, 0.0
    %v7411 = vmax.f32 %v7347, 0.0
    %v7412 = vmax.f32 %v7348, 0.0
    %v7413 = vmax.f32 %v7349, 0.0
    %v7414 = vmax.f32 %v7350, 0.0
    %v7415 = vmax.f32 %v7351, 0.0
    %v7416 = vmax.f32 %v7352, 0.0
    %v7417 = vmax.f32 %v7353, 0.0
    %v7418 = vmax.f32 %v7354, 0.0
    %v7419 = vmax.f32 %v7355, 0.0
    %v7420 = vmax.f32 %v7356, 0.0
    %v7421 = vmax.f32 %v7357, 0.0
    %v7422 = vmax.f32 %v7358, 0.0
    %v7423 = vmax.f32 %v7359, 0.0
    %v7424 = vmax.f32 %v7360, 0.0
    %v7425 = vmax.f32 %v7361, 0.0
    %v7426 = vmax.f32 %v7362, 0.0
    %v7427 = vmax.f32 %v7363, 0.0
    %v7428 = vmax.f32 %v7364, 0.0
    %v7429 = vmax.f32 %v7365, 0.0
    %v7430 = vmax.f32 %v7366, 0.0
    %v7431 = vmax.f32 %v7367, 0.0
    %v7432 = vmax.f32 %v7368, 0.0
    %v7433 = vmax.f32 %v7369, 0.0
    %v7434 = vmax.f32 %v7370, 0.0
    %v7435 = vmax.f32 %v7371, 0.0
    %v7436 = vmax.f32 %v7372, 0.0
    %v7437 = vmax.f32 %v7373, 0.0
    %v7438 = vmax.f32 %v7374, 0.0
    %v7439 = vmax.f32 %v7375, 0.0
    %7440 = vst [vmem:[#allocation3] sm:$0xff] %v7376
    %7441 = vst [vmem:[#allocation3 + $0x8] sm:$0xff] %v7377
    %7442 = vst [vmem:[#allocation3 + $0x10] sm:$0xff] %v7378
    %7443 = vst [vmem:[#allocation3 + $0x18] sm:$0xff] %v7379
    %7444 = vst [vmem:[#allocation3 + $0x20] sm:$0xff] %v7380
    %7445 = vst [vmem:[#allocation3 + $0x28] sm:$0xff] %v7381
    %7446 = vst [vmem:[#allocation3 + $0x30] sm:$0xff] %v7382
    %7447 = vst [vmem:[#allocation3 + $0x38] sm:$0xff] %v7383
    %7448 = vst [vmem:[#allocation3 + $0x40] sm:$0xff] %v7384
    %7449 = vst [vmem:[#allocation3 + $0x48] sm:$0xff] %v7385
    %7450 = vst [vmem:[#allocation3 + $0x50] sm:$0xff] %v7386
    %7451 = vst [vmem:[#allocation3 + $0x58] sm:$0xff] %v7387
    %7452 = vst [vmem:[#allocation3 + $0x60] sm:$0xff] %v7388
    %7453 = vst [vmem:[#allocation3 + $0x68] sm:$0xff] %v7389
    %7454 = vst [vmem:[#allocation3 + $0x70] sm:$0xff] %v7390
    %7455 = vst [vmem:[#allocation3 + $0x78] sm:$0xff] %v7391
    %7456 = vst [vmem:[#allocation3 + $0x80] sm:$0xff] %v7392
    %7457 = vst [vmem:[#allocation3 + $0x88] sm:$0xff] %v7393
    %7458 = vst [vmem:[#allocation3 + $0x90] sm:$0xff] %v7394
    %7459 = vst [vmem:[#allocation3 + $0x98] sm:$0xff] %v7395
    %7460 = vst [vmem:[#allocation3 + $0xa0] sm:$0xff] %v7396
    %7461 = vst [vmem:[#allocation3 + $0xa8] sm:$0xff] %v7397
    %7462 = vst [vmem:[#allocation3 + $0xb0] sm:$0xff] %v7398
    %7463 = vst [vmem:[#allocation3 + $0xb8] sm:$0xff] %v7399
    %7464 = vst [vmem:[#allocation3 + $0xc0] sm:$0xff] %v7400
    %7465 = vst [vmem:[#allocation3 + $0xc8] sm:$0xff] %v7401
    %7466 = vst [vmem:[#allocation3 + $0xd0] sm:$0xff] %v7402
    %7467 = vst [vmem:[#allocation3 + $0xd8] sm:$0xff] %v7403
    %7468 = vst [vmem:[#allocation3 + $0xe0] sm:$0xff] %v7404
    %7469 = vst [vmem:[#allocation3 + $0xe8] sm:$0xff] %v7405
    %7470 = vst [vmem:[#allocation3 + $0xf0] sm:$0xff] %v7406
    %7471 = vst [vmem:[#allocation3 + $0xf8] sm:$0xff] %v7407
    %7472 = vst [vmem:[#allocation3 + $0x100] sm:$0xff] %v7408
    %7473 = vst [vmem:[#allocation3 + $0x108] sm:$0xff] %v7409
    %7474 = vst [vmem:[#allocation3 + $0x110] sm:$0xff] %v7410
    %7475 = vst [vmem:[#allocation3 + $0x118] sm:$0xff] %v7411
    %7476 = vst [vmem:[#allocation3 + $0x120] sm:$0xff] %v7412
    %7477 = vst [vmem:[#allocation3 + $0x128] sm:$0xff] %v7413
    %7478 = vst [vmem:[#allocation3 + $0x130] sm:$0xff] %v7414
    %7479 = vst [vmem:[#allocation3 + $0x138] sm:$0xff] %v7415
    %7480 = vst [vmem:[#allocation3 + $0x140] sm:$0xff] %v7416
    %7481 = vst [vmem:[#allocation3 + $0x148] sm:$0xff] %v7417
    %7482 = vst [vmem:[#allocation3 + $0x150] sm:$0xff] %v7418
    %7483 = vst [vmem:[#allocation3 + $0x158] sm:$0xff] %v7419
    %7484 = vst [vmem:[#allocation3 + $0x160] sm:$0xff] %v7420
    %7485 = vst [vmem:[#allocation3 + $0x168] sm:$0xff] %v7421
    %7486 = vst [vmem:[#allocation3 + $0x170] sm:$0xff] %v7422
    %7487 = vst [vmem:[#allocation3 + $0x178] sm:$0xff] %v7423
    %7488 = vst [vmem:[#allocation3 + $0x180] sm:$0xff] %v7424
    %7489 = vst [vmem:[#allocation3 + $0x188] sm:$0xff] %v7425
    %7490 = vst [vmem:[#allocation3 + $0x190] sm:$0xff] %v7426
    %7491 = vst [vmem:[#allocation3 + $0x198] sm:$0xff] %v7427
    %7492 = vst [vmem:[#allocation3 + $0x1a0] sm:$0xff] %v7428
    %7493 = vst [vmem:[#allocation3 + $0x1a8] sm:$0xff] %v7429
    %7494 = vst [vmem:[#allocation3 + $0x1b0] sm:$0xff] %v7430
    %7495 = vst [vmem:[#allocation3 + $0x1b8] sm:$0xff] %v7431
    %7496 = vst [vmem:[#allocation3 + $0x1c0] sm:$0xff] %v7432
    %7497 = vst [vmem:[#allocation3 + $0x1c8] sm:$0xff] %v7433
    %7498 = vst [vmem:[#allocation3 + $0x1d0] sm:$0xff] %v7434
    %7499 = vst [vmem:[#allocation3 + $0x1d8] sm:$0xff] %v7435
    %7500 = vst [vmem:[#allocation3 + $0x1e0] sm:$0xff] %v7436
    %7501 = vst [vmem:[#allocation3 + $0x1e8] sm:$0xff] %v7437
    %7502 = vst [vmem:[#allocation3 + $0x1f0] sm:$0xff] %v7438
    %7503 = vst [vmem:[#allocation3 + $0x1f8] sm:$0xff] %v7439
    // Predicated region
    $region30: #{refine_block_forward.1} parent=1 // pred_check
      _
    $region31: #{refine_block_forward.1} parent=1 // pred_check_branch
      %7505 = sbr.rel (0) target = $region33
    $region32: #{refine_block_forward.1} parent=1 // pred_region
      %7507 = vsyncadd [#allocation4], 0
      %s7508 = sshll.u32 [#allocation3], 4
      %s7509 = int_to_ptr.vmem [resolvable:$true] %s7508
      %s7510 = sshll.u32 %s7, 4
      %s7511 = int_to_ptr.hbm [resolvable:$true] %s7510
      %7516 = dma.vmem_to_hbm [thread:$0]  %s7509, 8192, %s7511, [#allocation4], 128, 128, 8
    $region33: #{refine_block_forward.1} parent=1 // pred_fallthru
      _
    // Predicated region
    $region34: #{refine_block_forward.1} parent=1 // pred_check
      _
    $region35: #{refine_block_forward.1} parent=1 // pred_check_branch
      %7518 = sbr.rel (0) target = $region37
    $region36: #{refine_block_forward.1} parent=1 // pred_region
      %7520 = dma.done [#allocation4], 8192
    $region37: #{refine_block_forward.1} parent=1 // pred_fallthru
      _
    %7521 = vsyncpa [#allocation4], 1

</llo_original>
